<compile_context>
chip_gen: v7x
topology: tpu7x:2x2x1
jax: 0.10.0
libtpu: 0.0.40
codegen_flags: <defaults>
</compile_context>

<pallas_src>
import functools

import jax
import jax.numpy as jnp
from jax.experimental import pallas as pl
from jax.experimental.pallas import tpu as pltpu

Z_DIM = 100
Z_PAD = 128      # z padded to a full lane tile
H1 = 1024
H2 = 513         # = 3 * 171
C = 171
CP = 256         # channel dim padded to lane-dense multiple of 128
KW = 128         # final "kernel width" -> output feature bins
N_TCONV = 4
EPS = 1e-5

_vmem = pl.BlockSpec(memory_space=pltpu.MemorySpace.VMEM)


def _round_up(x, m):
    return (x + m - 1) // m * m


def _bn_relu(y, gamma, beta, count):
    """Training-mode BatchNorm (biased variance, one-pass stats) folded to scale+shift, + ReLU."""
    inv = 1.0 / count
    mean = jnp.sum(y, axis=0, keepdims=True) * inv
    var = jnp.maximum(jnp.sum(y * y, axis=0, keepdims=True) * inv - mean * mean, 0.0)
    a = gamma * jax.lax.rsqrt(var + EPS)
    c = beta - mean * a
    return jnp.maximum(y * a + c, 0.0)


def _generator_kernel(B, Bpad,
                      z_ref, w1_ref, g1_ref, b1_ref,
                      w2_ref, g2_ref, b2_ref,
                      wt1_ref, gt1_ref, bt1_ref,
                      wt2_ref, gt2_ref, bt2_ref,
                      wt3_ref, gt3_ref, bt3_ref,
                      wt4_ref, gt4_ref, bt4_ref,
                      w5_ref,
                      out_ref, act_ref):
    f32, bf16 = jnp.float32, jnp.bfloat16

    # ---- fc1 -> BN1d(1024) -> ReLU  (Linear bias is exactly cancelled by BN mean subtraction)
    y1 = jnp.dot(z_ref[...].astype(bf16), w1_ref[...], preferred_element_type=f32)
    h1 = _bn_relu(y1, g1_ref[...], b1_ref[...], B)                       # (B, 1024) f32

    # ---- fc2 -> BN1d(513) -> ReLU  (columns pre-permuted to (height, channel_pad) order)
    y2 = jnp.dot(h1.astype(bf16), w2_ref[...], preferred_element_type=f32)   # (B, 3*CP)
    h2 = _bn_relu(y2, g2_ref[...], b2_ref[...], B)

    # Activation scratch holds "pieces" of Bpad rows each (real rows [0:B], padding rows = 0).
    real_mask = None
    if Bpad != B:
        act_ref[0:3 * Bpad, :] = jnp.zeros((3 * Bpad, CP), f32)
        # 0/1 mask for "real" rows, built once at the largest tconv-stage input size
        # (24*Bpad rows); aligned sublane slices of it are free.
        row = jax.lax.broadcasted_iota(jnp.int32, (24 * Bpad, 1), 0)
        real_mask = ((row % Bpad) < B).astype(f32)
    # Scatter the 3 height slices (channel-last) into pieces 0..2:  piece index = h0
    for h in range(3):
        act_ref[h * Bpad:h * Bpad + B, :] = h2[:, h * CP:(h + 1) * CP]

    # ---- 4 x [ConvTranspose2d((2,1), stride 2, no bias) -> BN2d -> ReLU]
    tconvs = ((wt1_ref, gt1_ref, bt1_ref), (wt2_ref, gt2_ref, bt2_ref),
              (wt3_ref, gt3_ref, bt3_ref), (wt4_ref, gt4_ref, bt4_ref))
    P = 3                                    # current number of height positions (pieces)
    for wt_ref, gt_ref, bt_ref in tconvs:
        rows = P * Bpad
        x = act_ref[0:rows, :]                                                # (rows, CP) f32
        # both kernel taps in one matmul: columns [0:CP]=even rows, [CP:2CP]=odd rows
        y = jnp.dot(x.astype(bf16), wt_ref[...], preferred_element_type=f32)  # (rows, 2*CP)

        # BatchNorm2d stats over all B * (2P) output positions per channel.
        # Padding rows are exactly zero, so they add nothing to the sums; divide by true count.
        # One reduce over the fused [even|odd] result, halves combined on the 1-row vector.
        inv = 1.0 / (2 * P * B)
        s1 = jnp.sum(y, axis=0, keepdims=True)                                # (1, 2*CP)
        s2 = jnp.sum(y * y, axis=0, keepdims=True)                            # (1, 2*CP)
        mean = (s1[:, 0:CP] + s1[:, CP:2 * CP]) * inv
        sq = (s2[:, 0:CP] + s2[:, CP:2 * CP]) * inv
        var = jnp.maximum(sq - mean * mean, 0.0)
        a = gt_ref[...] * jax.lax.rsqrt(var + EPS)
        c = bt_ref[...] - mean * a

        bn_e = jnp.maximum(y[:, 0:CP] * a + c, 0.0)
        bn_o = jnp.maximum(y[:, CP:2 * CP] * a + c, 0.0)
        if Bpad != B:
            # keep padding rows at exact zero so downstream stats stay correct
            m = real_mask[0:rows, :]
            bn_e = bn_e * m
            bn_o = bn_o * m

        # even outputs keep their piece index, odd outputs become pieces [P, 2P)
        act_ref[0:rows, :] = bn_e
        act_ref[rows:2 * rows, :] = bn_o
        P = 2 * P

    # ---- final ConvTranspose (acts as a (1,128) kernel -> plain matmul over channels) + Sigmoid
    xf = act_ref[0:P * Bpad, :]                                               # (48*Bpad, CP)
    yf = jnp.dot(xf.astype(bf16), w5_ref[...], preferred_element_type=f32)    # (48*Bpad, 128)
    out_ref[...] = jax.nn.sigmoid(yf)


# ---------------------------------------------------------------------------
# One-time weight packing: pad to lane-dense widths, permute fc2 columns to
# (height, channel) order, concatenate tconv taps, cast matmul weights to bf16.
# ---------------------------------------------------------------------------
def prepare_params(params):
    f32, bf16 = jnp.float32, jnp.bfloat16
    out = {}

    out["w1"] = jnp.zeros((Z_PAD, H1), f32).at[:Z_DIM, :].set(params["fc1_w"]).astype(bf16)
    out["g1"] = params["bn1_g"].reshape(1, H1)
    out["b1"] = params["bn1_b"].reshape(1, H1)

    # PyTorch view(B, 171, 3, 1): fc2 column (c*3 + h) -> (channel c, height h).
    # New column (h*CP + c) so the kernel activation is already channel-last per height.
    perm = (jnp.arange(C)[None, :] * 3 + jnp.arange(3)[:, None]).reshape(-1)   # old column ids
    w2 = params["fc2_w"][:, perm].reshape(H1, 3, C)
    g2 = params["bn2_g"][perm].reshape(3, C)
    b2 = params["bn2_b"][perm].reshape(3, C)
    out["w2"] = jnp.zeros((H1, 3, CP), f32).at[:, :, :C].set(w2).reshape(H1, 3 * CP).astype(bf16)
    out["g2"] = jnp.zeros((3, CP), f32).at[:, :C].set(g2).reshape(1, 3 * CP)
    out["b2"] = jnp.zeros((3, CP), f32).at[:, :C].set(b2).reshape(1, 3 * CP)

    for i in range(1, N_TCONV + 1):
        wt = jnp.zeros((CP, 2 * CP), f32)
        wt = wt.at[:C, :C].set(params[f"tconv{i}_w0"])          # even-row tap  weight[:,:,0,0]
        wt = wt.at[:C, CP:CP + C].set(params[f"tconv{i}_w1"])   # odd-row tap   weight[:,:,1,0]
        out[f"wt{i}"] = wt.astype(bf16)
        out[f"gt{i}"] = jnp.zeros((1, CP), f32).at[0, :C].set(params[f"bn2d{i}_g"])
        out[f"bt{i}"] = jnp.zeros((1, CP), f32).at[0, :C].set(params[f"bn2d{i}_b"])

    out["w5"] = jnp.zeros((CP, KW), f32).at[:C, :].set(params["tconv5_w"]).astype(bf16)
    return out


# ---------------------------------------------------------------------------
# Parameter init (deterministic, synthetic)
# ---------------------------------------------------------------------------
def init_params(key):
    keys = jax.random.split(key, 32)
    ki = iter(range(32))

    def nrm(shape, scale):
        return scale * jax.random.normal(keys[next(ki)], shape, dtype=jnp.float32)

    p = {
        "fc1_w": nrm((Z_DIM, H1), 0.05),
        "fc1_b": nrm((H1,), 0.05),     # cancelled exactly by BN1d mean subtraction (unused)
        "bn1_g": 1.0 + nrm((H1,), 0.05),
        "bn1_b": nrm((H1,), 0.05),
        "fc2_w": nrm((H1, H2), 0.05),
        "fc2_b": nrm((H2,), 0.05),     # cancelled exactly by BN1d mean subtraction (unused)
        "bn2_g": 1.0 + nrm((H2,), 0.05),
        "bn2_b": nrm((H2,), 0.05),
    }
    for i in range(1, N_TCONV + 1):
        # ConvTranspose2d weight is (Cin, Cout, 2, 1); store the two (Cin, Cout) taps.
        p[f"tconv{i}_w0"] = nrm((C, C), 0.05)
        p[f"tconv{i}_w1"] = nrm((C, C), 0.05)
        p[f"bn2d{i}_g"] = 1.0 + nrm((C,), 0.05)
        p[f"bn2d{i}_b"] = nrm((C,), 0.05)
    # ConvTranspose1d weight is (Cin=171, Cout=1, 1, 128); store as (Cin, 128).
    p["tconv5_w"] = nrm((C, KW), 0.05)
    return p


# ---------------------------------------------------------------------------
# Fused forward
# ---------------------------------------------------------------------------
@jax.jit
def generator_forward(z, prep):
    B = z.shape[0]
    Bpad = _round_up(B, 8)
    zp = jnp.pad(z, ((0, 0), (0, Z_PAD - Z_DIM)))

    kernel = functools.partial(_generator_kernel, B, Bpad)
    out_flat = pl.pallas_call(
        kernel,
        out_shape=jax.ShapeDtypeStruct((48 * Bpad, KW), jnp.float32),
        in_specs=[_vmem] * 20,
        out_specs=_vmem,
        scratch_shapes=[pltpu.VMEM((48 * Bpad, CP), jnp.float32)],
    )(zp,
      prep["w1"], prep["g1"], prep["b1"],
      prep["w2"], prep["g2"], prep["b2"],
      prep["wt1"], prep["gt1"], prep["bt1"],
      prep["wt2"], prep["gt2"], prep["bt2"],
      prep["wt3"], prep["gt3"], prep["bt3"],
      prep["wt4"], prep["gt4"], prep["bt4"],
      prep["w5"])

    # Row index encodes (e4, e3, e2, e1, h0, b); spatial h = 16*h0 + 8*e1 + 4*e2 + 2*e3 + e4.
    out = out_flat.reshape(2, 2, 2, 2, 3, Bpad, KW)[:, :, :, :, :, :B, :]
    out = out.transpose(5, 4, 3, 2, 1, 0, 6).reshape(B, 1, 48, KW)
    return out


if __name__ == "__main__":
    key = jax.random.PRNGKey(0)
    pkey, zkey = jax.random.split(key)
    params = init_params(pkey)
    prep = prepare_params(params)      # one-time weight permutation / padding / bf16 cast

    B = 2
    z = jax.random.normal(zkey, (B, Z_DIM), dtype=jnp.float32)

    out = generator_forward(z, prep)
    out = jax.block_until_ready(out)

    assert out.shape == (B, 1, 48, 128), out.shape
    assert bool(jnp.all(jnp.isfinite(out)))
    assert bool(jnp.all((out >= 0.0) & (out <= 1.0)))   # sigmoid range
    print("KERNEL_OK")
</pallas_src>

<mosaic_0001>
module attributes {stable_mosaic.version = 11 : i64} {
  func.func @_generator_kernel(%arg0: memref<2x128xf32, #tpu.memory_space<vmem>>, %arg1: memref<128x1024xbf16, #tpu.memory_space<vmem>>, %arg2: memref<1x1024xf32, #tpu.memory_space<vmem>>, %arg3: memref<1x1024xf32, #tpu.memory_space<vmem>>, %arg4: memref<1024x768xbf16, #tpu.memory_space<vmem>>, %arg5: memref<1x768xf32, #tpu.memory_space<vmem>>, %arg6: memref<1x768xf32, #tpu.memory_space<vmem>>, %arg7: memref<256x512xbf16, #tpu.memory_space<vmem>>, %arg8: memref<1x256xf32, #tpu.memory_space<vmem>>, %arg9: memref<1x256xf32, #tpu.memory_space<vmem>>, %arg10: memref<256x512xbf16, #tpu.memory_space<vmem>>, %arg11: memref<1x256xf32, #tpu.memory_space<vmem>>, %arg12: memref<1x256xf32, #tpu.memory_space<vmem>>, %arg13: memref<256x512xbf16, #tpu.memory_space<vmem>>, %arg14: memref<1x256xf32, #tpu.memory_space<vmem>>, %arg15: memref<1x256xf32, #tpu.memory_space<vmem>>, %arg16: memref<256x512xbf16, #tpu.memory_space<vmem>>, %arg17: memref<1x256xf32, #tpu.memory_space<vmem>>, %arg18: memref<1x256xf32, #tpu.memory_space<vmem>>, %arg19: memref<256x128xbf16, #tpu.memory_space<vmem>>, %arg20: memref<384x128xf32, #tpu.memory_space<vmem>>, %arg21: memref<384x256xf32, #tpu.memory_space<vmem>>) attributes {dimension_semantics = [], scalar_prefetch = 0 : i64, scratch_operands = 1 : i64, tpu.core_type = #tpu.core_type<tc>} {
    %c0 = arith.constant 0 : index
    %c0_0 = arith.constant 0 : index
    %0 = vector.load %arg0[%c0, %c0_0] : memref<2x128xf32, #tpu.memory_space<vmem>>, vector<2x128xf32>
    %1 = arith.truncf %0 : vector<2x128xf32> to vector<2x128xbf16>
    %c0_1 = arith.constant 0 : index
    %c0_2 = arith.constant 0 : index
    %2 = vector.load %arg1[%c0_1, %c0_2] : memref<128x1024xbf16, #tpu.memory_space<vmem>>, vector<128x1024xbf16>
    %cst = arith.constant dense<0.000000e+00> : vector<2x1024xf32>
    %3 = tpu.matmul %1, %2, %cst {dimension_numbers = #tpu.dot_dimension_numbers<[1], [0], [0], [1], [0, 0, 1, 1], [], []>} : vector<2x128xbf16>, vector<128x1024xbf16>, vector<2x1024xf32> -> vector<2x1024xf32>
    %c0_3 = arith.constant 0 : index
    %c0_4 = arith.constant 0 : index
    %4 = vector.load %arg2[%c0_3, %c0_4] : memref<1x1024xf32, #tpu.memory_space<vmem>>, vector<1x1024xf32>
    %c0_5 = arith.constant 0 : index
    %c0_6 = arith.constant 0 : index
    %5 = vector.load %arg3[%c0_5, %c0_6] : memref<1x1024xf32, #tpu.memory_space<vmem>>, vector<1x1024xf32>
    %cst_7 = arith.constant dense<0.000000e+00> : vector<1024xf32>
    %6 = vector.multi_reduction <add>, %3, %cst_7 [0] : vector<2x1024xf32> to vector<1024xf32>
    %7 = vector.shape_cast %6 : vector<1024xf32> to vector<1x1024xf32>
    %cst_8 = arith.constant 5.000000e-01 : f32
    %8 = vector.broadcast %cst_8 : f32 to vector<1x1024xf32>
    %9 = arith.mulf %7, %8 : vector<1x1024xf32>
    %10 = arith.mulf %3, %3 : vector<2x1024xf32>
    %cst_9 = arith.constant dense<0.000000e+00> : vector<1024xf32>
    %11 = vector.multi_reduction <add>, %10, %cst_9 [0] : vector<2x1024xf32> to vector<1024xf32>
    %12 = vector.shape_cast %11 : vector<1024xf32> to vector<1x1024xf32>
    %cst_10 = arith.constant 5.000000e-01 : f32
    %13 = vector.broadcast %cst_10 : f32 to vector<1x1024xf32>
    %14 = arith.mulf %12, %13 : vector<1x1024xf32>
    %15 = arith.mulf %9, %9 : vector<1x1024xf32>
    %16 = arith.subf %14, %15 : vector<1x1024xf32>
    %cst_11 = arith.constant 0.000000e+00 : f32
    %17 = vector.broadcast %cst_11 : f32 to vector<1x1024xf32>
    %18 = arith.maximumf %16, %17 : vector<1x1024xf32>
    %cst_12 = arith.constant 9.99999974E-6 : f32
    %19 = vector.broadcast %cst_12 : f32 to vector<1x1024xf32>
    %20 = arith.addf %18, %19 : vector<1x1024xf32>
    %21 = math.rsqrt %20 : vector<1x1024xf32>
    %22 = arith.mulf %4, %21 : vector<1x1024xf32>
    %23 = arith.mulf %9, %22 : vector<1x1024xf32>
    %24 = arith.subf %5, %23 : vector<1x1024xf32>
    %25 = vector.broadcast %22 : vector<1x1024xf32> to vector<2x1024xf32>
    %26 = arith.mulf %3, %25 : vector<2x1024xf32>
    %27 = vector.broadcast %24 : vector<1x1024xf32> to vector<2x1024xf32>
    %28 = arith.addf %26, %27 : vector<2x1024xf32>
    %cst_13 = arith.constant 0.000000e+00 : f32
    %29 = vector.broadcast %cst_13 : f32 to vector<2x1024xf32>
    %30 = arith.maximumf %28, %29 : vector<2x1024xf32>
    %31 = arith.truncf %30 : vector<2x1024xf32> to vector<2x1024xbf16>
    %c0_14 = arith.constant 0 : index
    %c0_15 = arith.constant 0 : index
    %32 = vector.load %arg4[%c0_14, %c0_15] : memref<1024x768xbf16, #tpu.memory_space<vmem>>, vector<1024x768xbf16>
    %cst_16 = arith.constant dense<0.000000e+00> : vector<2x768xf32>
    %33 = tpu.matmul %31, %32, %cst_16 {dimension_numbers = #tpu.dot_dimension_numbers<[1], [0], [0], [1], [0, 0, 1, 1], [], []>} : vector<2x1024xbf16>, vector<1024x768xbf16>, vector<2x768xf32> -> vector<2x768xf32>
    %c0_17 = arith.constant 0 : index
    %c0_18 = arith.constant 0 : index
    %34 = vector.load %arg5[%c0_17, %c0_18] : memref<1x768xf32, #tpu.memory_space<vmem>>, vector<1x768xf32>
    %c0_19 = arith.constant 0 : index
    %c0_20 = arith.constant 0 : index
    %35 = vector.load %arg6[%c0_19, %c0_20] : memref<1x768xf32, #tpu.memory_space<vmem>>, vector<1x768xf32>
    %cst_21 = arith.constant dense<0.000000e+00> : vector<768xf32>
    %36 = vector.multi_reduction <add>, %33, %cst_21 [0] : vector<2x768xf32> to vector<768xf32>
    %37 = vector.shape_cast %36 : vector<768xf32> to vector<1x768xf32>
    %cst_22 = arith.constant 5.000000e-01 : f32
    %38 = vector.broadcast %cst_22 : f32 to vector<1x768xf32>
    %39 = arith.mulf %37, %38 : vector<1x768xf32>
    %40 = arith.mulf %33, %33 : vector<2x768xf32>
    %cst_23 = arith.constant dense<0.000000e+00> : vector<768xf32>
    %41 = vector.multi_reduction <add>, %40, %cst_23 [0] : vector<2x768xf32> to vector<768xf32>
    %42 = vector.shape_cast %41 : vector<768xf32> to vector<1x768xf32>
    %cst_24 = arith.constant 5.000000e-01 : f32
    %43 = vector.broadcast %cst_24 : f32 to vector<1x768xf32>
    %44 = arith.mulf %42, %43 : vector<1x768xf32>
    %45 = arith.mulf %39, %39 : vector<1x768xf32>
    %46 = arith.subf %44, %45 : vector<1x768xf32>
    %cst_25 = arith.constant 0.000000e+00 : f32
    %47 = vector.broadcast %cst_25 : f32 to vector<1x768xf32>
    %48 = arith.maximumf %46, %47 : vector<1x768xf32>
    %cst_26 = arith.constant 9.99999974E-6 : f32
    %49 = vector.broadcast %cst_26 : f32 to vector<1x768xf32>
    %50 = arith.addf %48, %49 : vector<1x768xf32>
    %51 = math.rsqrt %50 : vector<1x768xf32>
    %52 = arith.mulf %34, %51 : vector<1x768xf32>
    %53 = arith.mulf %39, %52 : vector<1x768xf32>
    %54 = arith.subf %35, %53 : vector<1x768xf32>
    %55 = vector.broadcast %52 : vector<1x768xf32> to vector<2x768xf32>
    %56 = arith.mulf %33, %55 : vector<2x768xf32>
    %57 = vector.broadcast %54 : vector<1x768xf32> to vector<2x768xf32>
    %58 = arith.addf %56, %57 : vector<2x768xf32>
    %cst_27 = arith.constant 0.000000e+00 : f32
    %59 = vector.broadcast %cst_27 : f32 to vector<2x768xf32>
    %60 = arith.maximumf %58, %59 : vector<2x768xf32>
    %cst_28 = arith.constant 0.000000e+00 : f32
    %61 = vector.broadcast %cst_28 : f32 to vector<24x256xf32>
    %c0_29 = arith.constant 0 : index
    %c0_30 = arith.constant 0 : index
    %62 = vector.load %arg21[%c0_29, %c0_30] : memref<384x256xf32, #tpu.memory_space<vmem>>, vector<24x256xf32>
    tpu.vector_store %arg21[%c0_29, %c0_30], %61 {strides = array<i32>} : memref<384x256xf32, #tpu.memory_space<vmem>>, vector<24x256xf32>,
    %63 = tpu.iota {dimensions = array<i32: 0>} : vector<192x1xi32>
    %c8_i32 = arith.constant 8 : i32
    %c0_i32 = arith.constant 0 : i32
    %64 = arith.cmpi eq, %c8_i32, %c0_i32 : i32
    %c1_i32 = arith.constant 1 : i32
    %65 = arith.select %64, %c1_i32, %c8_i32 : i32
    %66 = vector.broadcast %65 : i32 to vector<192x1xi32>
    %67 = arith.remsi %63, %66 : vector<192x1xi32>
    %c0_i32_31 = arith.constant 0 : i32
    %68 = vector.broadcast %c0_i32_31 : i32 to vector<192x1xi32>
    %69 = arith.cmpi ne, %67, %68 : vector<192x1xi32>
    %c0_i32_32 = arith.constant 0 : i32
    %70 = vector.broadcast %c0_i32_32 : i32 to vector<192x1xi32>
    %71 = arith.cmpi slt, %67, %70 : vector<192x1xi32>
    %c0_i32_33 = arith.constant 0 : i32
    %72 = arith.cmpi slt, %65, %c0_i32_33 : i32
    %73 = vector.broadcast %72 : i1 to vector<192x1xi1>
    %74 = vector.broadcast %73 : vector<192x1xi1> to vector<192x1xi1>
    %75 = arith.xori %71, %74 : vector<192x1xi1>
    %76 = arith.andi %75, %69 : vector<192x1xi1>
    %77 = vector.broadcast %65 : i32 to vector<192x1xi32>
    %78 = arith.addi %67, %77 : vector<192x1xi32>
    %79 = arith.select %76, %78, %67 : vector<192x1xi1>, vector<192x1xi32>
    %c2_i32 = arith.constant 2 : i32
    %80 = vector.broadcast %c2_i32 : i32 to vector<192x1xi32>
    %81 = arith.cmpi slt, %79, %80 : vector<192x1xi32>
    %82 = arith.extui %81 : vector<192x1xi1> to vector<192x1xi32>
    %83 = arith.sitofp %82 : vector<192x1xi32> to vector<192x1xf32>
    %84 = vector.extract_strided_slice %60 {offsets = [0, 0], sizes = [2, 256], strides = [1, 1]} : vector<2x768xf32> to vector<2x256xf32>
    %c0_34 = arith.constant 0 : index
    %c0_35 = arith.constant 0 : index
    %85 = vector.load %arg21[%c0_34, %c0_35] : memref<384x256xf32, #tpu.memory_space<vmem>>, vector<2x256xf32>
    tpu.vector_store %arg21[%c0_34, %c0_35], %84 {strides = array<i32>} : memref<384x256xf32, #tpu.memory_space<vmem>>, vector<2x256xf32>,
    %86 = vector.extract_strided_slice %60 {offsets = [0, 256], sizes = [2, 256], strides = [1, 1]} : vector<2x768xf32> to vector<2x256xf32>
    %c8 = arith.constant 8 : index
    %c0_36 = arith.constant 0 : index
    %87 = vector.load %arg21[%c8, %c0_36] : memref<384x256xf32, #tpu.memory_space<vmem>>, vector<2x256xf32>
    tpu.vector_store %arg21[%c8, %c0_36], %86 {strides = array<i32>} : memref<384x256xf32, #tpu.memory_space<vmem>>, vector<2x256xf32>,
    %88 = vector.extract_strided_slice %60 {offsets = [0, 512], sizes = [2, 256], strides = [1, 1]} : vector<2x768xf32> to vector<2x256xf32>
    %c16 = arith.constant 16 : index
    %c0_37 = arith.constant 0 : index
    %89 = vector.load %arg21[%c16, %c0_37] : memref<384x256xf32, #tpu.memory_space<vmem>>, vector<2x256xf32>
    tpu.vector_store %arg21[%c16, %c0_37], %88 {strides = array<i32>} : memref<384x256xf32, #tpu.memory_space<vmem>>, vector<2x256xf32>,
    %c0_38 = arith.constant 0 : index
    %c0_39 = arith.constant 0 : index
    %90 = vector.load %arg21[%c0_38, %c0_39] : memref<384x256xf32, #tpu.memory_space<vmem>>, vector<24x256xf32>
    %91 = arith.truncf %90 : vector<24x256xf32> to vector<24x256xbf16>
    %c0_40 = arith.constant 0 : index
    %c0_41 = arith.constant 0 : index
    %92 = vector.load %arg7[%c0_40, %c0_41] : memref<256x512xbf16, #tpu.memory_space<vmem>>, vector<256x512xbf16>
    %cst_42 = arith.constant dense<0.000000e+00> : vector<24x512xf32>
    %93 = tpu.matmul %91, %92, %cst_42 {dimension_numbers = #tpu.dot_dimension_numbers<[1], [0], [0], [1], [0, 0, 1, 1], [], []>} : vector<24x256xbf16>, vector<256x512xbf16>, vector<24x512xf32> -> vector<24x512xf32>
    %cst_43 = arith.constant dense<0.000000e+00> : vector<512xf32>
    %94 = vector.multi_reduction <add>, %93, %cst_43 [0] : vector<24x512xf32> to vector<512xf32>
    %95 = vector.shape_cast %94 : vector<512xf32> to vector<1x512xf32>
    %96 = arith.mulf %93, %93 : vector<24x512xf32>
    %cst_44 = arith.constant dense<0.000000e+00> : vector<512xf32>
    %97 = vector.multi_reduction <add>, %96, %cst_44 [0] : vector<24x512xf32> to vector<512xf32>
    %98 = vector.shape_cast %97 : vector<512xf32> to vector<1x512xf32>
    %99 = vector.extract_strided_slice %95 {offsets = [0, 0], sizes = [1, 256], strides = [1, 1]} : vector<1x512xf32> to vector<1x256xf32>
    %100 = vector.extract_strided_slice %95 {offsets = [0, 256], sizes = [1, 256], strides = [1, 1]} : vector<1x512xf32> to vector<1x256xf32>
    %101 = arith.addf %99, %100 : vector<1x256xf32>
    %cst_45 = arith.constant 0.0833333358 : f32
    %102 = vector.broadcast %cst_45 : f32 to vector<1x256xf32>
    %103 = arith.mulf %101, %102 : vector<1x256xf32>
    %104 = vector.extract_strided_slice %98 {offsets = [0, 0], sizes = [1, 256], strides = [1, 1]} : vector<1x512xf32> to vector<1x256xf32>
    %105 = vector.extract_strided_slice %98 {offsets = [0, 256], sizes = [1, 256], strides = [1, 1]} : vector<1x512xf32> to vector<1x256xf32>
    %106 = arith.addf %104, %105 : vector<1x256xf32>
    %cst_46 = arith.constant 0.0833333358 : f32
    %107 = vector.broadcast %cst_46 : f32 to vector<1x256xf32>
    %108 = arith.mulf %106, %107 : vector<1x256xf32>
    %109 = arith.mulf %103, %103 : vector<1x256xf32>
    %110 = arith.subf %108, %109 : vector<1x256xf32>
    %cst_47 = arith.constant 0.000000e+00 : f32
    %111 = vector.broadcast %cst_47 : f32 to vector<1x256xf32>
    %112 = arith.maximumf %110, %111 : vector<1x256xf32>
    %c0_48 = arith.constant 0 : index
    %c0_49 = arith.constant 0 : index
    %113 = vector.load %arg8[%c0_48, %c0_49] : memref<1x256xf32, #tpu.memory_space<vmem>>, vector<1x256xf32>
    %cst_50 = arith.constant 9.99999974E-6 : f32
    %114 = vector.broadcast %cst_50 : f32 to vector<1x256xf32>
    %115 = arith.addf %112, %114 : vector<1x256xf32>
    %116 = math.rsqrt %115 : vector<1x256xf32>
    %117 = arith.mulf %113, %116 : vector<1x256xf32>
    %c0_51 = arith.constant 0 : index
    %c0_52 = arith.constant 0 : index
    %118 = vector.load %arg9[%c0_51, %c0_52] : memref<1x256xf32, #tpu.memory_space<vmem>>, vector<1x256xf32>
    %119 = arith.mulf %103, %117 : vector<1x256xf32>
    %120 = arith.subf %118, %119 : vector<1x256xf32>
    %121 = vector.extract_strided_slice %93 {offsets = [0, 0], sizes = [24, 256], strides = [1, 1]} : vector<24x512xf32> to vector<24x256xf32>
    %122 = vector.broadcast %117 : vector<1x256xf32> to vector<24x256xf32>
    %123 = arith.mulf %121, %122 : vector<24x256xf32>
    %124 = vector.broadcast %120 : vector<1x256xf32> to vector<24x256xf32>
    %125 = arith.addf %123, %124 : vector<24x256xf32>
    %cst_53 = arith.constant 0.000000e+00 : f32
    %126 = vector.broadcast %cst_53 : f32 to vector<24x256xf32>
    %127 = arith.maximumf %125, %126 : vector<24x256xf32>
    %128 = vector.extract_strided_slice %93 {offsets = [0, 256], sizes = [24, 256], strides = [1, 1]} : vector<24x512xf32> to vector<24x256xf32>
    %129 = vector.broadcast %117 : vector<1x256xf32> to vector<24x256xf32>
    %130 = arith.mulf %128, %129 : vector<24x256xf32>
    %131 = vector.broadcast %120 : vector<1x256xf32> to vector<24x256xf32>
    %132 = arith.addf %130, %131 : vector<24x256xf32>
    %cst_54 = arith.constant 0.000000e+00 : f32
    %133 = vector.broadcast %cst_54 : f32 to vector<24x256xf32>
    %134 = arith.maximumf %132, %133 : vector<24x256xf32>
    %135 = vector.extract_strided_slice %83 {offsets = [0, 0], sizes = [24, 1], strides = [1, 1]} : vector<192x1xf32> to vector<24x1xf32>
    %136 = vector.broadcast %135 : vector<24x1xf32> to vector<24x256xf32>
    %137 = arith.mulf %127, %136 : vector<24x256xf32>
    %138 = vector.broadcast %135 : vector<24x1xf32> to vector<24x256xf32>
    %139 = arith.mulf %134, %138 : vector<24x256xf32>
    %c0_55 = arith.constant 0 : index
    %c0_56 = arith.constant 0 : index
    %140 = vector.load %arg21[%c0_55, %c0_56] : memref<384x256xf32, #tpu.memory_space<vmem>>, vector<24x256xf32>
    tpu.vector_store %arg21[%c0_55, %c0_56], %137 {strides = array<i32>} : memref<384x256xf32, #tpu.memory_space<vmem>>, vector<24x256xf32>,
    %c24 = arith.constant 24 : index
    %c0_57 = arith.constant 0 : index
    %141 = vector.load %arg21[%c24, %c0_57] : memref<384x256xf32, #tpu.memory_space<vmem>>, vector<24x256xf32>
    tpu.vector_store %arg21[%c24, %c0_57], %139 {strides = array<i32>} : memref<384x256xf32, #tpu.memory_space<vmem>>, vector<24x256xf32>,
    %c0_58 = arith.constant 0 : index
    %c0_59 = arith.constant 0 : index
    %142 = vector.load %arg21[%c0_58, %c0_59] : memref<384x256xf32, #tpu.memory_space<vmem>>, vector<48x256xf32>
    %143 = arith.truncf %142 : vector<48x256xf32> to vector<48x256xbf16>
    %c0_60 = arith.constant 0 : index
    %c0_61 = arith.constant 0 : index
    %144 = vector.load %arg10[%c0_60, %c0_61] : memref<256x512xbf16, #tpu.memory_space<vmem>>, vector<256x512xbf16>
    %cst_62 = arith.constant dense<0.000000e+00> : vector<48x512xf32>
    %145 = tpu.matmul %143, %144, %cst_62 {dimension_numbers = #tpu.dot_dimension_numbers<[1], [0], [0], [1], [0, 0, 1, 1], [], []>} : vector<48x256xbf16>, vector<256x512xbf16>, vector<48x512xf32> -> vector<48x512xf32>
    %cst_63 = arith.constant dense<0.000000e+00> : vector<512xf32>
    %146 = vector.multi_reduction <add>, %145, %cst_63 [0] : vector<48x512xf32> to vector<512xf32>
    %147 = vector.shape_cast %146 : vector<512xf32> to vector<1x512xf32>
    %148 = arith.mulf %145, %145 : vector<48x512xf32>
    %cst_64 = arith.constant dense<0.000000e+00> : vector<512xf32>
    %149 = vector.multi_reduction <add>, %148, %cst_64 [0] : vector<48x512xf32> to vector<512xf32>
    %150 = vector.shape_cast %149 : vector<512xf32> to vector<1x512xf32>
    %151 = vector.extract_strided_slice %147 {offsets = [0, 0], sizes = [1, 256], strides = [1, 1]} : vector<1x512xf32> to vector<1x256xf32>
    %152 = vector.extract_strided_slice %147 {offsets = [0, 256], sizes = [1, 256], strides = [1, 1]} : vector<1x512xf32> to vector<1x256xf32>
    %153 = arith.addf %151, %152 : vector<1x256xf32>
    %cst_65 = arith.constant 0.0416666679 : f32
    %154 = vector.broadcast %cst_65 : f32 to vector<1x256xf32>
    %155 = arith.mulf %153, %154 : vector<1x256xf32>
    %156 = vector.extract_strided_slice %150 {offsets = [0, 0], sizes = [1, 256], strides = [1, 1]} : vector<1x512xf32> to vector<1x256xf32>
    %157 = vector.extract_strided_slice %150 {offsets = [0, 256], sizes = [1, 256], strides = [1, 1]} : vector<1x512xf32> to vector<1x256xf32>
    %158 = arith.addf %156, %157 : vector<1x256xf32>
    %cst_66 = arith.constant 0.0416666679 : f32
    %159 = vector.broadcast %cst_66 : f32 to vector<1x256xf32>
    %160 = arith.mulf %158, %159 : vector<1x256xf32>
    %161 = arith.mulf %155, %155 : vector<1x256xf32>
    %162 = arith.subf %160, %161 : vector<1x256xf32>
    %cst_67 = arith.constant 0.000000e+00 : f32
    %163 = vector.broadcast %cst_67 : f32 to vector<1x256xf32>
    %164 = arith.maximumf %162, %163 : vector<1x256xf32>
    %c0_68 = arith.constant 0 : index
    %c0_69 = arith.constant 0 : index
    %165 = vector.load %arg11[%c0_68, %c0_69] : memref<1x256xf32, #tpu.memory_space<vmem>>, vector<1x256xf32>
    %cst_70 = arith.constant 9.99999974E-6 : f32
    %166 = vector.broadcast %cst_70 : f32 to vector<1x256xf32>
    %167 = arith.addf %164, %166 : vector<1x256xf32>
    %168 = math.rsqrt %167 : vector<1x256xf32>
    %169 = arith.mulf %165, %168 : vector<1x256xf32>
    %c0_71 = arith.constant 0 : index
    %c0_72 = arith.constant 0 : index
    %170 = vector.load %arg12[%c0_71, %c0_72] : memref<1x256xf32, #tpu.memory_space<vmem>>, vector<1x256xf32>
    %171 = arith.mulf %155, %169 : vector<1x256xf32>
    %172 = arith.subf %170, %171 : vector<1x256xf32>
    %173 = vector.extract_strided_slice %145 {offsets = [0, 0], sizes = [48, 256], strides = [1, 1]} : vector<48x512xf32> to vector<48x256xf32>
    %174 = vector.broadcast %169 : vector<1x256xf32> to vector<48x256xf32>
    %175 = arith.mulf %173, %174 : vector<48x256xf32>
    %176 = vector.broadcast %172 : vector<1x256xf32> to vector<48x256xf32>
    %177 = arith.addf %175, %176 : vector<48x256xf32>
    %cst_73 = arith.constant 0.000000e+00 : f32
    %178 = vector.broadcast %cst_73 : f32 to vector<48x256xf32>
    %179 = arith.maximumf %177, %178 : vector<48x256xf32>
    %180 = vector.extract_strided_slice %145 {offsets = [0, 256], sizes = [48, 256], strides = [1, 1]} : vector<48x512xf32> to vector<48x256xf32>
    %181 = vector.broadcast %169 : vector<1x256xf32> to vector<48x256xf32>
    %182 = arith.mulf %180, %181 : vector<48x256xf32>
    %183 = vector.broadcast %172 : vector<1x256xf32> to vector<48x256xf32>
    %184 = arith.addf %182, %183 : vector<48x256xf32>
    %cst_74 = arith.constant 0.000000e+00 : f32
    %185 = vector.broadcast %cst_74 : f32 to vector<48x256xf32>
    %186 = arith.maximumf %184, %185 : vector<48x256xf32>
    %187 = vector.extract_strided_slice %83 {offsets = [0, 0], sizes = [48, 1], strides = [1, 1]} : vector<192x1xf32> to vector<48x1xf32>
    %188 = vector.broadcast %187 : vector<48x1xf32> to vector<48x256xf32>
    %189 = arith.mulf %179, %188 : vector<48x256xf32>
    %190 = vector.broadcast %187 : vector<48x1xf32> to vector<48x256xf32>
    %191 = arith.mulf %186, %190 : vector<48x256xf32>
    %c0_75 = arith.constant 0 : index
    %c0_76 = arith.constant 0 : index
    %192 = vector.load %arg21[%c0_75, %c0_76] : memref<384x256xf32, #tpu.memory_space<vmem>>, vector<48x256xf32>
    tpu.vector_store %arg21[%c0_75, %c0_76], %189 {strides = array<i32>} : memref<384x256xf32, #tpu.memory_space<vmem>>, vector<48x256xf32>,
    %c48 = arith.constant 48 : index
    %c0_77 = arith.constant 0 : index
    %193 = vector.load %arg21[%c48, %c0_77] : memref<384x256xf32, #tpu.memory_space<vmem>>, vector<48x256xf32>
    tpu.vector_store %arg21[%c48, %c0_77], %191 {strides = array<i32>} : memref<384x256xf32, #tpu.memory_space<vmem>>, vector<48x256xf32>,
    %c0_78 = arith.constant 0 : index
    %c0_79 = arith.constant 0 : index
    %194 = vector.load %arg21[%c0_78, %c0_79] : memref<384x256xf32, #tpu.memory_space<vmem>>, vector<96x256xf32>
    %195 = arith.truncf %194 : vector<96x256xf32> to vector<96x256xbf16>
    %c0_80 = arith.constant 0 : index
    %c0_81 = arith.constant 0 : index
    %196 = vector.load %arg13[%c0_80, %c0_81] : memref<256x512xbf16, #tpu.memory_space<vmem>>, vector<256x512xbf16>
    %cst_82 = arith.constant dense<0.000000e+00> : vector<96x512xf32>
    %197 = tpu.matmul %195, %196, %cst_82 {dimension_numbers = #tpu.dot_dimension_numbers<[1], [0], [0], [1], [0, 0, 1, 1], [], []>} : vector<96x256xbf16>, vector<256x512xbf16>, vector<96x512xf32> -> vector<96x512xf32>
    %cst_83 = arith.constant dense<0.000000e+00> : vector<512xf32>
    %198 = vector.multi_reduction <add>, %197, %cst_83 [0] : vector<96x512xf32> to vector<512xf32>
    %199 = vector.shape_cast %198 : vector<512xf32> to vector<1x512xf32>
    %200 = arith.mulf %197, %197 : vector<96x512xf32>
    %cst_84 = arith.constant dense<0.000000e+00> : vector<512xf32>
    %201 = vector.multi_reduction <add>, %200, %cst_84 [0] : vector<96x512xf32> to vector<512xf32>
    %202 = vector.shape_cast %201 : vector<512xf32> to vector<1x512xf32>
    %203 = vector.extract_strided_slice %199 {offsets = [0, 0], sizes = [1, 256], strides = [1, 1]} : vector<1x512xf32> to vector<1x256xf32>
    %204 = vector.extract_strided_slice %199 {offsets = [0, 256], sizes = [1, 256], strides = [1, 1]} : vector<1x512xf32> to vector<1x256xf32>
    %205 = arith.addf %203, %204 : vector<1x256xf32>
    %cst_85 = arith.constant 0.020833334 : f32
    %206 = vector.broadcast %cst_85 : f32 to vector<1x256xf32>
    %207 = arith.mulf %205, %206 : vector<1x256xf32>
    %208 = vector.extract_strided_slice %202 {offsets = [0, 0], sizes = [1, 256], strides = [1, 1]} : vector<1x512xf32> to vector<1x256xf32>
    %209 = vector.extract_strided_slice %202 {offsets = [0, 256], sizes = [1, 256], strides = [1, 1]} : vector<1x512xf32> to vector<1x256xf32>
    %210 = arith.addf %208, %209 : vector<1x256xf32>
    %cst_86 = arith.constant 0.020833334 : f32
    %211 = vector.broadcast %cst_86 : f32 to vector<1x256xf32>
    %212 = arith.mulf %210, %211 : vector<1x256xf32>
    %213 = arith.mulf %207, %207 : vector<1x256xf32>
    %214 = arith.subf %212, %213 : vector<1x256xf32>
    %cst_87 = arith.constant 0.000000e+00 : f32
    %215 = vector.broadcast %cst_87 : f32 to vector<1x256xf32>
    %216 = arith.maximumf %214, %215 : vector<1x256xf32>
    %c0_88 = arith.constant 0 : index
    %c0_89 = arith.constant 0 : index
    %217 = vector.load %arg14[%c0_88, %c0_89] : memref<1x256xf32, #tpu.memory_space<vmem>>, vector<1x256xf32>
    %cst_90 = arith.constant 9.99999974E-6 : f32
    %218 = vector.broadcast %cst_90 : f32 to vector<1x256xf32>
    %219 = arith.addf %216, %218 : vector<1x256xf32>
    %220 = math.rsqrt %219 : vector<1x256xf32>
    %221 = arith.mulf %217, %220 : vector<1x256xf32>
    %c0_91 = arith.constant 0 : index
    %c0_92 = arith.constant 0 : index
    %222 = vector.load %arg15[%c0_91, %c0_92] : memref<1x256xf32, #tpu.memory_space<vmem>>, vector<1x256xf32>
    %223 = arith.mulf %207, %221 : vector<1x256xf32>
    %224 = arith.subf %222, %223 : vector<1x256xf32>
    %225 = vector.extract_strided_slice %197 {offsets = [0, 0], sizes = [96, 256], strides = [1, 1]} : vector<96x512xf32> to vector<96x256xf32>
    %226 = vector.broadcast %221 : vector<1x256xf32> to vector<96x256xf32>
    %227 = arith.mulf %225, %226 : vector<96x256xf32>
    %228 = vector.broadcast %224 : vector<1x256xf32> to vector<96x256xf32>
    %229 = arith.addf %227, %228 : vector<96x256xf32>
    %cst_93 = arith.constant 0.000000e+00 : f32
    %230 = vector.broadcast %cst_93 : f32 to vector<96x256xf32>
    %231 = arith.maximumf %229, %230 : vector<96x256xf32>
    %232 = vector.extract_strided_slice %197 {offsets = [0, 256], sizes = [96, 256], strides = [1, 1]} : vector<96x512xf32> to vector<96x256xf32>
    %233 = vector.broadcast %221 : vector<1x256xf32> to vector<96x256xf32>
    %234 = arith.mulf %232, %233 : vector<96x256xf32>
    %235 = vector.broadcast %224 : vector<1x256xf32> to vector<96x256xf32>
    %236 = arith.addf %234, %235 : vector<96x256xf32>
    %cst_94 = arith.constant 0.000000e+00 : f32
    %237 = vector.broadcast %cst_94 : f32 to vector<96x256xf32>
    %238 = arith.maximumf %236, %237 : vector<96x256xf32>
    %239 = vector.extract_strided_slice %83 {offsets = [0, 0], sizes = [96, 1], strides = [1, 1]} : vector<192x1xf32> to vector<96x1xf32>
    %240 = vector.broadcast %239 : vector<96x1xf32> to vector<96x256xf32>
    %241 = arith.mulf %231, %240 : vector<96x256xf32>
    %242 = vector.broadcast %239 : vector<96x1xf32> to vector<96x256xf32>
    %243 = arith.mulf %238, %242 : vector<96x256xf32>
    %c0_95 = arith.constant 0 : index
    %c0_96 = arith.constant 0 : index
    %244 = vector.load %arg21[%c0_95, %c0_96] : memref<384x256xf32, #tpu.memory_space<vmem>>, vector<96x256xf32>
    tpu.vector_store %arg21[%c0_95, %c0_96], %241 {strides = array<i32>} : memref<384x256xf32, #tpu.memory_space<vmem>>, vector<96x256xf32>,
    %c96 = arith.constant 96 : index
    %c0_97 = arith.constant 0 : index
    %245 = vector.load %arg21[%c96, %c0_97] : memref<384x256xf32, #tpu.memory_space<vmem>>, vector<96x256xf32>
    tpu.vector_store %arg21[%c96, %c0_97], %243 {strides = array<i32>} : memref<384x256xf32, #tpu.memory_space<vmem>>, vector<96x256xf32>,
    %c0_98 = arith.constant 0 : index
    %c0_99 = arith.constant 0 : index
    %246 = vector.load %arg21[%c0_98, %c0_99] : memref<384x256xf32, #tpu.memory_space<vmem>>, vector<192x256xf32>
    %247 = arith.truncf %246 : vector<192x256xf32> to vector<192x256xbf16>
    %c0_100 = arith.constant 0 : index
    %c0_101 = arith.constant 0 : index
    %248 = vector.load %arg16[%c0_100, %c0_101] : memref<256x512xbf16, #tpu.memory_space<vmem>>, vector<256x512xbf16>
    %cst_102 = arith.constant dense<0.000000e+00> : vector<192x512xf32>
    %249 = tpu.matmul %247, %248, %cst_102 {dimension_numbers = #tpu.dot_dimension_numbers<[1], [0], [0], [1], [0, 0, 1, 1], [], []>} : vector<192x256xbf16>, vector<256x512xbf16>, vector<192x512xf32> -> vector<192x512xf32>
    %cst_103 = arith.constant dense<0.000000e+00> : vector<512xf32>
    %250 = vector.multi_reduction <add>, %249, %cst_103 [0] : vector<192x512xf32> to vector<512xf32>
    %251 = vector.shape_cast %250 : vector<512xf32> to vector<1x512xf32>
    %252 = arith.mulf %249, %249 : vector<192x512xf32>
    %cst_104 = arith.constant dense<0.000000e+00> : vector<512xf32>
    %253 = vector.multi_reduction <add>, %252, %cst_104 [0] : vector<192x512xf32> to vector<512xf32>
    %254 = vector.shape_cast %253 : vector<512xf32> to vector<1x512xf32>
    %255 = vector.extract_strided_slice %251 {offsets = [0, 0], sizes = [1, 256], strides = [1, 1]} : vector<1x512xf32> to vector<1x256xf32>
    %256 = vector.extract_strided_slice %251 {offsets = [0, 256], sizes = [1, 256], strides = [1, 1]} : vector<1x512xf32> to vector<1x256xf32>
    %257 = arith.addf %255, %256 : vector<1x256xf32>
    %cst_105 = arith.constant 0.010416667 : f32
    %258 = vector.broadcast %cst_105 : f32 to vector<1x256xf32>
    %259 = arith.mulf %257, %258 : vector<1x256xf32>
    %260 = vector.extract_strided_slice %254 {offsets = [0, 0], sizes = [1, 256], strides = [1, 1]} : vector<1x512xf32> to vector<1x256xf32>
    %261 = vector.extract_strided_slice %254 {offsets = [0, 256], sizes = [1, 256], strides = [1, 1]} : vector<1x512xf32> to vector<1x256xf32>
    %262 = arith.addf %260, %261 : vector<1x256xf32>
    %cst_106 = arith.constant 0.010416667 : f32
    %263 = vector.broadcast %cst_106 : f32 to vector<1x256xf32>
    %264 = arith.mulf %262, %263 : vector<1x256xf32>
    %265 = arith.mulf %259, %259 : vector<1x256xf32>
    %266 = arith.subf %264, %265 : vector<1x256xf32>
    %cst_107 = arith.constant 0.000000e+00 : f32
    %267 = vector.broadcast %cst_107 : f32 to vector<1x256xf32>
    %268 = arith.maximumf %266, %267 : vector<1x256xf32>
    %c0_108 = arith.constant 0 : index
    %c0_109 = arith.constant 0 : index
    %269 = vector.load %arg17[%c0_108, %c0_109] : memref<1x256xf32, #tpu.memory_space<vmem>>, vector<1x256xf32>
    %cst_110 = arith.constant 9.99999974E-6 : f32
    %270 = vector.broadcast %cst_110 : f32 to vector<1x256xf32>
    %271 = arith.addf %268, %270 : vector<1x256xf32>
    %272 = math.rsqrt %271 : vector<1x256xf32>
    %273 = arith.mulf %269, %272 : vector<1x256xf32>
    %c0_111 = arith.constant 0 : index
    %c0_112 = arith.constant 0 : index
    %274 = vector.load %arg18[%c0_111, %c0_112] : memref<1x256xf32, #tpu.memory_space<vmem>>, vector<1x256xf32>
    %275 = arith.mulf %259, %273 : vector<1x256xf32>
    %276 = arith.subf %274, %275 : vector<1x256xf32>
    %277 = vector.extract_strided_slice %249 {offsets = [0, 0], sizes = [192, 256], strides = [1, 1]} : vector<192x512xf32> to vector<192x256xf32>
    %278 = vector.broadcast %273 : vector<1x256xf32> to vector<192x256xf32>
    %279 = arith.mulf %277, %278 : vector<192x256xf32>
    %280 = vector.broadcast %276 : vector<1x256xf32> to vector<192x256xf32>
    %281 = arith.addf %279, %280 : vector<192x256xf32>
    %cst_113 = arith.constant 0.000000e+00 : f32
    %282 = vector.broadcast %cst_113 : f32 to vector<192x256xf32>
    %283 = arith.maximumf %281, %282 : vector<192x256xf32>
    %284 = vector.extract_strided_slice %249 {offsets = [0, 256], sizes = [192, 256], strides = [1, 1]} : vector<192x512xf32> to vector<192x256xf32>
    %285 = vector.broadcast %273 : vector<1x256xf32> to vector<192x256xf32>
    %286 = arith.mulf %284, %285 : vector<192x256xf32>
    %287 = vector.broadcast %276 : vector<1x256xf32> to vector<192x256xf32>
    %288 = arith.addf %286, %287 : vector<192x256xf32>
    %cst_114 = arith.constant 0.000000e+00 : f32
    %289 = vector.broadcast %cst_114 : f32 to vector<192x256xf32>
    %290 = arith.maximumf %288, %289 : vector<192x256xf32>
    %291 = vector.broadcast %83 : vector<192x1xf32> to vector<192x256xf32>
    %292 = arith.mulf %283, %291 : vector<192x256xf32>
    %293 = vector.broadcast %83 : vector<192x1xf32> to vector<192x256xf32>
    %294 = arith.mulf %290, %293 : vector<192x256xf32>
    %c0_115 = arith.constant 0 : index
    %c0_116 = arith.constant 0 : index
    %295 = vector.load %arg21[%c0_115, %c0_116] : memref<384x256xf32, #tpu.memory_space<vmem>>, vector<192x256xf32>
    tpu.vector_store %arg21[%c0_115, %c0_116], %292 {strides = array<i32>} : memref<384x256xf32, #tpu.memory_space<vmem>>, vector<192x256xf32>,
    %c192 = arith.constant 192 : index
    %c0_117 = arith.constant 0 : index
    %296 = vector.load %arg21[%c192, %c0_117] : memref<384x256xf32, #tpu.memory_space<vmem>>, vector<192x256xf32>
    tpu.vector_store %arg21[%c192, %c0_117], %294 {strides = array<i32>} : memref<384x256xf32, #tpu.memory_space<vmem>>, vector<192x256xf32>,
    %c0_118 = arith.constant 0 : index
    %c0_119 = arith.constant 0 : index
    %297 = vector.load %arg21[%c0_118, %c0_119] : memref<384x256xf32, #tpu.memory_space<vmem>>, vector<384x256xf32>
    %298 = arith.truncf %297 : vector<384x256xf32> to vector<384x256xbf16>
    %c0_120 = arith.constant 0 : index
    %c0_121 = arith.constant 0 : index
    %299 = vector.load %arg19[%c0_120, %c0_121] : memref<256x128xbf16, #tpu.memory_space<vmem>>, vector<256x128xbf16>
    %cst_122 = arith.constant dense<0.000000e+00> : vector<384x128xf32>
    %300 = tpu.matmul %298, %299, %cst_122 {dimension_numbers = #tpu.dot_dimension_numbers<[1], [0], [0], [1], [0, 0, 1, 1], [], []>} : vector<384x256xbf16>, vector<256x128xbf16>, vector<384x128xf32> -> vector<384x128xf32>
    %301 = arith.negf %300 : vector<384x128xf32>
    %302 = math.exp %301 : vector<384x128xf32>
    %cst_123 = arith.constant 1.000000e+00 : f32
    %303 = vector.broadcast %cst_123 : f32 to vector<384x128xf32>
    %304 = arith.addf %303, %302 : vector<384x128xf32>
    %305 = arith.divf %303, %304 : vector<384x128xf32>
    %c0_124 = arith.constant 0 : index
    %c0_125 = arith.constant 0 : index
    %306 = vector.load %arg20[%c0_124, %c0_125] : memref<384x128xf32, #tpu.memory_space<vmem>>, vector<384x128xf32>
    tpu.vector_store %arg20[%c0_124, %c0_125], %305 {strides = array<i32>} : memref<384x128xf32, #tpu.memory_space<vmem>>, vector<384x128xf32>,
    return
  }
}

</mosaic_0001>

<llo_original>
// kernel: generator_forward.1
$region0: #{generator_forward.1}
  #allocation0 [shape = 'u32[]', space=smem, size = 0x4, offset = 0x4, fixed_abs, tag = 'smem constant byte address 0x4 - core index']
  #allocation1 [shape = 'u32[144,128]{1,0:T(1,128)}', space=vmem, size = 0x12000, scoped, tag = 'internal scratch']
  #allocation2 [shape = 'f32[384,256]{1,0:T(8,128)}', space=vmem, size = 0x60000, scoped, tag = 'scratch operand']
  %s0 = inlined_call_operand.vmem [shape: f32[2,128], index: 0, kind: input, shape index: {}]
  %s1 = inlined_call_operand.hbm [shape: bf16[128,1024], index: 1, kind: input, shape index: {}]
  %s2 = inlined_call_operand.hbm [shape: f32[1,1024], index: 2, kind: input, shape index: {}]
  %s3 = inlined_call_operand.hbm [shape: f32[1,1024], index: 3, kind: input, shape index: {}]
  %s4 = inlined_call_operand.hbm [shape: bf16[1024,768], index: 4, kind: input, shape index: {}]
  %s5 = inlined_call_operand.hbm [shape: f32[1,768], index: 5, kind: input, shape index: {}]
  %s6 = inlined_call_operand.hbm [shape: f32[1,768], index: 6, kind: input, shape index: {}]
  %s7 = inlined_call_operand.hbm [shape: bf16[256,512], index: 7, kind: input, shape index: {}]
  %s8 = inlined_call_operand.hbm [shape: f32[1,256], index: 8, kind: input, shape index: {}]
  %s9 = inlined_call_operand.hbm [shape: f32[1,256], index: 9, kind: input, shape index: {}]
  %s10 = inlined_call_operand.hbm [shape: bf16[256,512], index: 10, kind: input, shape index: {}]
  %s11 = inlined_call_operand.hbm [shape: f32[1,256], index: 11, kind: input, shape index: {}]
  %s12 = inlined_call_operand.hbm [shape: f32[1,256], index: 12, kind: input, shape index: {}]
  %s13 = inlined_call_operand.hbm [shape: bf16[256,512], index: 13, kind: input, shape index: {}]
  %s14 = inlined_call_operand.hbm [shape: f32[1,256], index: 14, kind: input, shape index: {}]
  %s15 = inlined_call_operand.hbm [shape: f32[1,256], index: 15, kind: input, shape index: {}]
  %s16 = inlined_call_operand.hbm [shape: bf16[256,512], index: 16, kind: input, shape index: {}]
  %s17 = inlined_call_operand.hbm [shape: f32[1,256], index: 17, kind: input, shape index: {}]
  %s18 = inlined_call_operand.hbm [shape: f32[1,256], index: 18, kind: input, shape index: {}]
  %s19 = inlined_call_operand.hbm [shape: bf16[256,128], index: 19, kind: input, shape index: {}]
  %s20 = inlined_call_operand.vmem [shape: f32[384,128], index: 20, kind: output, shape index: {}]
  %s21 = sld [smem:[#allocation0]]
  $region166: #{generator_forward.1} parent=0
    _
  %s23 = ssub.s32 1, %s21
  %s24 = scalar_select 0, %s23, %s21
  $region1: #{generator_forward.1} parent=0
    #allocation3 [shape = 'u8[262144]{0}', space=vmem, size = 0x40000, scoped, tag = 'input window, operand 1, single buffered']
    #allocation4 [shape = 's32[1]{0}', space=sflag, size = 0x4, scoped, tag = 'scoped memory for generator_forward.1']
    #allocation5 [shape = 'u8[4096]{0}', space=vmem, size = 0x1000, scoped, tag = 'input window, operand 2, single buffered']
    #allocation6 [shape = 's32[1]{0}', space=sflag, size = 0x4, scoped, tag = 'scoped memory for generator_forward.1']
    #allocation7 [shape = 'u8[4096]{0}', space=vmem, size = 0x1000, scoped, tag = 'input window, operand 3, single buffered']
    #allocation8 [shape = 'u8[1572864]{0}', space=vmem, size = 0x180000, scoped, tag = 'input window, operand 4, single buffered']
    #allocation9 [shape = 's32[1]{0}', space=sflag, size = 0x4, scoped, tag = 'scoped memory for generator_forward.1']
    #allocation10 [shape = 'u8[3072]{0}', space=vmem, size = 0xc00, scoped, tag = 'input window, operand 5, single buffered']
    #allocation11 [shape = 'u8[3072]{0}', space=vmem, size = 0xc00, scoped, tag = 'input window, operand 6, single buffered']
    #allocation12 [shape = 's32[1]{0}', space=sflag, size = 0x4, scoped, tag = 'scoped memory for generator_forward.1']
    #allocation13 [shape = 'u8[262144]{0}', space=vmem, size = 0x40000, scoped, tag = 'input window, operand 7, single buffered']
    #allocation14 [shape = 'u8[1024]{0}', space=vmem, size = 0x400, scoped, tag = 'input window, operand 8, single buffered']
    #allocation15 [shape = 's32[1]{0}', space=sflag, size = 0x4, scoped, tag = 'scoped memory for generator_forward.1']
    #allocation16 [shape = 'u8[1024]{0}', space=vmem, size = 0x400, scoped, tag = 'input window, operand 9, single buffered']
    #allocation17 [shape = 'u8[262144]{0}', space=vmem, size = 0x40000, scoped, tag = 'input window, operand 10, single buffered']
    #allocation18 [shape = 's32[1]{0}', space=sflag, size = 0x4, scoped, tag = 'scoped memory for generator_forward.1']
    #allocation19 [shape = 'u8[1024]{0}', space=vmem, size = 0x400, scoped, tag = 'input window, operand 11, single buffered']
    #allocation20 [shape = 'u8[1024]{0}', space=vmem, size = 0x400, scoped, tag = 'input window, operand 12, single buffered']
    #allocation21 [shape = 's32[1]{0}', space=sflag, size = 0x4, scoped, tag = 'scoped memory for generator_forward.1']
    #allocation22 [shape = 'u8[262144]{0}', space=vmem, size = 0x40000, scoped, tag = 'input window, operand 13, single buffered']
    #allocation23 [shape = 'u8[1024]{0}', space=vmem, size = 0x400, scoped, tag = 'input window, operand 14, single buffered']
    #allocation24 [shape = 's32[1]{0}', space=sflag, size = 0x4, scoped, tag = 'scoped memory for generator_forward.1']
    #allocation25 [shape = 'u8[1024]{0}', space=vmem, size = 0x400, scoped, tag = 'input window, operand 15, single buffered']
    #allocation26 [shape = 'u8[262144]{0}', space=vmem, size = 0x40000, scoped, tag = 'input window, operand 16, single buffered']
    #allocation27 [shape = 's32[1]{0}', space=sflag, size = 0x4, scoped, tag = 'scoped memory for generator_forward.1']
    #allocation28 [shape = 'u8[1024]{0}', space=vmem, size = 0x400, scoped, tag = 'input window, operand 17, single buffered']
    #allocation29 [shape = 'u8[1024]{0}', space=vmem, size = 0x400, scoped, tag = 'input window, operand 18, single buffered']
    #allocation30 [shape = 's32[1]{0}', space=sflag, size = 0x4, scoped, tag = 'scoped memory for generator_forward.1']
    #allocation31 [shape = 'u8[65536]{0}', space=vmem, size = 0x10000, scoped, tag = 'input window, operand 19, single buffered']
    %25 = vsyncpa [#allocation4], 0
    %26 = vsyncpa [#allocation6], 0
    %27 = vsyncpa [#allocation9], 0
    %28 = vsyncpa [#allocation12], 0
    %29 = vsyncpa [#allocation15], 0
    %30 = vsyncpa [#allocation18], 0
    %31 = vsyncpa [#allocation21], 0
    %32 = vsyncpa [#allocation24], 0
    %33 = vsyncpa [#allocation27], 0
    %34 = vsyncpa [#allocation30], 0
    // Predicated region
    $region2: #{generator_forward.1} parent=1 // pred_check
      _
    $region3: #{generator_forward.1} parent=1 // pred_check_branch
      %36 = sbr.rel (0) target = $region5
    $region4: #{generator_forward.1} parent=1 // pred_region
      _
    $region5: #{generator_forward.1} parent=1 // pred_fallthru
      _
    // Predicated region
    $region6: #{generator_forward.1} parent=1 // pred_check
      _
    $region7: #{generator_forward.1} parent=1 // pred_check_branch
      %38 = sbr.rel (0) target = $region9
    $region8: #{generator_forward.1} parent=1 // pred_region
      %s40 = ssub.s32 8192, 8192
      %41 = vsyncadd [#allocation4], %s40
      %s42 = sshll.u32 [#allocation3], 4
      %s43 = int_to_ptr.vmem [resolvable:$true] %s42
      %48 = dma.hbm_to_vmem [thread:$0]  %s1, 8192, %s43, [#allocation4], 512, 512, 32
    $region9: #{generator_forward.1} parent=1 // pred_fallthru
      _
    // Predicated region
    $region10: #{generator_forward.1} parent=1 // pred_check
      _
    $region11: #{generator_forward.1} parent=1 // pred_check_branch
      %50 = sbr.rel (0) target = $region13
    $region12: #{generator_forward.1} parent=1 // pred_region
      %s52 = ssub.s32 128, 128
      %53 = vsyncadd [#allocation6], %s52
      %s55 = sshll.u32 [#allocation5], 4
      %s56 = int_to_ptr.vmem [resolvable:$true] %s55
      %58 = dma.hbm_to_vmem [thread:$0]  %s2, 128, %s56, [#allocation6]
    $region13: #{generator_forward.1} parent=1 // pred_fallthru
      _
    // Predicated region
    $region14: #{generator_forward.1} parent=1 // pred_check
      _
    $region15: #{generator_forward.1} parent=1 // pred_check_branch
      %60 = sbr.rel (0) target = $region17
    $region16: #{generator_forward.1} parent=1 // pred_region
      %s62 = ssub.s32 128, 128
      %63 = vsyncadd [#allocation6], %s62
      %s65 = sshll.u32 [#allocation7], 4
      %s66 = int_to_ptr.vmem [resolvable:$true] %s65
      %68 = dma.hbm_to_vmem [thread:$0]  %s3, 128, %s66, [#allocation6]
    $region17: #{generator_forward.1} parent=1 // pred_fallthru
      _
    // Predicated region
    $region18: #{generator_forward.1} parent=1 // pred_check
      _
    $region19: #{generator_forward.1} parent=1 // pred_check_branch
      %70 = sbr.rel (0) target = $region21
    $region20: #{generator_forward.1} parent=1 // pred_region
      %s72 = ssub.s32 49152, 49152
      %73 = vsyncadd [#allocation9], %s72
      %s74 = sshll.u32 [#allocation8], 4
      %s75 = int_to_ptr.vmem [resolvable:$true] %s74
      %80 = dma.hbm_to_vmem [thread:$0]  %s4, 49152, %s75, [#allocation9], 384, 384, 24
    $region21: #{generator_forward.1} parent=1 // pred_fallthru
      _
    // Predicated region
    $region22: #{generator_forward.1} parent=1 // pred_check
      _
    $region23: #{generator_forward.1} parent=1 // pred_check_branch
      %82 = sbr.rel (0) target = $region25
    $region24: #{generator_forward.1} parent=1 // pred_region
      %s84 = ssub.s32 96, 96
      %85 = vsyncadd [#allocation9], %s84
      %s87 = sshll.u32 [#allocation10], 4
      %s88 = int_to_ptr.vmem [resolvable:$true] %s87
      %90 = dma.hbm_to_vmem [thread:$0]  %s5, 96, %s88, [#allocation9]
    $region25: #{generator_forward.1} parent=1 // pred_fallthru
      _
    // Predicated region
    $region26: #{generator_forward.1} parent=1 // pred_check
      _
    $region27: #{generator_forward.1} parent=1 // pred_check_branch
      %92 = sbr.rel (0) target = $region29
    $region28: #{generator_forward.1} parent=1 // pred_region
      %s94 = ssub.s32 96, 96
      %95 = vsyncadd [#allocation12], %s94
      %s97 = sshll.u32 [#allocation11], 4
      %s98 = int_to_ptr.vmem [resolvable:$true] %s97
      %100 = dma.hbm_to_vmem [thread:$0]  %s6, 96, %s98, [#allocation12]
    $region29: #{generator_forward.1} parent=1 // pred_fallthru
      _
    // Predicated region
    $region30: #{generator_forward.1} parent=1 // pred_check
      _
    $region31: #{generator_forward.1} parent=1 // pred_check_branch
      %102 = sbr.rel (0) target = $region33
    $region32: #{generator_forward.1} parent=1 // pred_region
      %s104 = ssub.s32 8192, 8192
      %105 = vsyncadd [#allocation12], %s104
      %s106 = sshll.u32 [#allocation13], 4
      %s107 = int_to_ptr.vmem [resolvable:$true] %s106
      %112 = dma.hbm_to_vmem [thread:$0]  %s7, 8192, %s107, [#allocation12], 256, 256, 16
    $region33: #{generator_forward.1} parent=1 // pred_fallthru
      _
    // Predicated region
    $region34: #{generator_forward.1} parent=1 // pred_check
      _
    $region35: #{generator_forward.1} parent=1 // pred_check_branch
      %114 = sbr.rel (0) target = $region37
    $region36: #{generator_forward.1} parent=1 // pred_region
      %s116 = ssub.s32 32, 32
      %117 = vsyncadd [#allocation15], %s116
      %s119 = sshll.u32 [#allocation14], 4
      %s120 = int_to_ptr.vmem [resolvable:$true] %s119
      %122 = dma.hbm_to_vmem [thread:$0]  %s8, 32, %s120, [#allocation15]
    $region37: #{generator_forward.1} parent=1 // pred_fallthru
      _
    // Predicated region
    $region38: #{generator_forward.1} parent=1 // pred_check
      _
    $region39: #{generator_forward.1} parent=1 // pred_check_branch
      %124 = sbr.rel (0) target = $region41
    $region40: #{generator_forward.1} parent=1 // pred_region
      %s126 = ssub.s32 32, 32
      %127 = vsyncadd [#allocation15], %s126
      %s129 = sshll.u32 [#allocation16], 4
      %s130 = int_to_ptr.vmem [resolvable:$true] %s129
      %132 = dma.hbm_to_vmem [thread:$0]  %s9, 32, %s130, [#allocation15]
    $region41: #{generator_forward.1} parent=1 // pred_fallthru
      _
    // Predicated region
    $region42: #{generator_forward.1} parent=1 // pred_check
      _
    $region43: #{generator_forward.1} parent=1 // pred_check_branch
      %134 = sbr.rel (0) target = $region45
    $region44: #{generator_forward.1} parent=1 // pred_region
      %s136 = ssub.s32 8192, 8192
      %137 = vsyncadd [#allocation18], %s136
      %s138 = sshll.u32 [#allocation17], 4
      %s139 = int_to_ptr.vmem [resolvable:$true] %s138
      %144 = dma.hbm_to_vmem [thread:$0]  %s10, 8192, %s139, [#allocation18], 256, 256, 16
    $region45: #{generator_forward.1} parent=1 // pred_fallthru
      _
    // Predicated region
    $region46: #{generator_forward.1} parent=1 // pred_check
      _
    $region47: #{generator_forward.1} parent=1 // pred_check_branch
      %146 = sbr.rel (0) target = $region49
    $region48: #{generator_forward.1} parent=1 // pred_region
      %s148 = ssub.s32 32, 32
      %149 = vsyncadd [#allocation18], %s148
      %s151 = sshll.u32 [#allocation19], 4
      %s152 = int_to_ptr.vmem [resolvable:$true] %s151
      %154 = dma.hbm_to_vmem [thread:$0]  %s11, 32, %s152, [#allocation18]
    $region49: #{generator_forward.1} parent=1 // pred_fallthru
      _
    // Predicated region
    $region50: #{generator_forward.1} parent=1 // pred_check
      _
    $region51: #{generator_forward.1} parent=1 // pred_check_branch
      %156 = sbr.rel (0) target = $region53
    $region52: #{generator_forward.1} parent=1 // pred_region
      %s158 = ssub.s32 32, 32
      %159 = vsyncadd [#allocation21], %s158
      %s161 = sshll.u32 [#allocation20], 4
      %s162 = int_to_ptr.vmem [resolvable:$true] %s161
      %164 = dma.hbm_to_vmem [thread:$0]  %s12, 32, %s162, [#allocation21]
    $region53: #{generator_forward.1} parent=1 // pred_fallthru
      _
    // Predicated region
    $region54: #{generator_forward.1} parent=1 // pred_check
      _
    $region55: #{generator_forward.1} parent=1 // pred_check_branch
      %166 = sbr.rel (0) target = $region57
    $region56: #{generator_forward.1} parent=1 // pred_region
      %s168 = ssub.s32 8192, 8192
      %169 = vsyncadd [#allocation21], %s168
      %s170 = sshll.u32 [#allocation22], 4
      %s171 = int_to_ptr.vmem [resolvable:$true] %s170
      %176 = dma.hbm_to_vmem [thread:$0]  %s13, 8192, %s171, [#allocation21], 256, 256, 16
    $region57: #{generator_forward.1} parent=1 // pred_fallthru
      _
    // Predicated region
    $region58: #{generator_forward.1} parent=1 // pred_check
      _
    $region59: #{generator_forward.1} parent=1 // pred_check_branch
      %178 = sbr.rel (0) target = $region61
    $region60: #{generator_forward.1} parent=1 // pred_region
      %s180 = ssub.s32 32, 32
      %181 = vsyncadd [#allocation24], %s180
      %s183 = sshll.u32 [#allocation23], 4
      %s184 = int_to_ptr.vmem [resolvable:$true] %s183
      %186 = dma.hbm_to_vmem [thread:$0]  %s14, 32, %s184, [#allocation24]
    $region61: #{generator_forward.1} parent=1 // pred_fallthru
      _
    // Predicated region
    $region62: #{generator_forward.1} parent=1 // pred_check
      _
    $region63: #{generator_forward.1} parent=1 // pred_check_branch
      %188 = sbr.rel (0) target = $region65
    $region64: #{generator_forward.1} parent=1 // pred_region
      %s190 = ssub.s32 32, 32
      %191 = vsyncadd [#allocation24], %s190
      %s193 = sshll.u32 [#allocation25], 4
      %s194 = int_to_ptr.vmem [resolvable:$true] %s193
      %196 = dma.hbm_to_vmem [thread:$0]  %s15, 32, %s194, [#allocation24]
    $region65: #{generator_forward.1} parent=1 // pred_fallthru
      _
    // Predicated region
    $region66: #{generator_forward.1} parent=1 // pred_check
      _
    $region67: #{generator_forward.1} parent=1 // pred_check_branch
      %198 = sbr.rel (0) target = $region69
    $region68: #{generator_forward.1} parent=1 // pred_region
      %s200 = ssub.s32 8192, 8192
      %201 = vsyncadd [#allocation27], %s200
      %s202 = sshll.u32 [#allocation26], 4
      %s203 = int_to_ptr.vmem [resolvable:$true] %s202
      %208 = dma.hbm_to_vmem [thread:$0]  %s16, 8192, %s203, [#allocation27], 256, 256, 16
    $region69: #{generator_forward.1} parent=1 // pred_fallthru
      _
    // Predicated region
    $region70: #{generator_forward.1} parent=1 // pred_check
      _
    $region71: #{generator_forward.1} parent=1 // pred_check_branch
      %210 = sbr.rel (0) target = $region73
    $region72: #{generator_forward.1} parent=1 // pred_region
      %s212 = ssub.s32 32, 32
      %213 = vsyncadd [#allocation27], %s212
      %s215 = sshll.u32 [#allocation28], 4
      %s216 = int_to_ptr.vmem [resolvable:$true] %s215
      %218 = dma.hbm_to_vmem [thread:$0]  %s17, 32, %s216, [#allocation27]
    $region73: #{generator_forward.1} parent=1 // pred_fallthru
      _
    // Predicated region
    $region74: #{generator_forward.1} parent=1 // pred_check
      _
    $region75: #{generator_forward.1} parent=1 // pred_check_branch
      %220 = sbr.rel (0) target = $region77
    $region76: #{generator_forward.1} parent=1 // pred_region
      %s222 = ssub.s32 32, 32
      %223 = vsyncadd [#allocation30], %s222
      %s225 = sshll.u32 [#allocation29], 4
      %s226 = int_to_ptr.vmem [resolvable:$true] %s225
      %228 = dma.hbm_to_vmem [thread:$0]  %s18, 32, %s226, [#allocation30]
    $region77: #{generator_forward.1} parent=1 // pred_fallthru
      _
    // Predicated region
    $region78: #{generator_forward.1} parent=1 // pred_check
      _
    $region79: #{generator_forward.1} parent=1 // pred_check_branch
      %230 = sbr.rel (0) target = $region81
    $region80: #{generator_forward.1} parent=1 // pred_region
      %s232 = ssub.s32 2048, 2048
      %233 = vsyncadd [#allocation30], %s232
      %s234 = sshll.u32 [#allocation31], 4
      %s235 = int_to_ptr.vmem [resolvable:$true] %s234
      %240 = dma.hbm_to_vmem [thread:$0]  %s19, 2048, %s235, [#allocation30], 64, 64, 4
    $region81: #{generator_forward.1} parent=1 // pred_fallthru
      _
    // Predicated region
    $region82: #{generator_forward.1} parent=1 // pred_check
      _
    $region83: #{generator_forward.1} parent=1 // pred_check_branch
      %242 = sbr.rel (0) target = $region85
    $region84: #{generator_forward.1} parent=1 // pred_region
      %243 = dma.done [#allocation4], 8192
    $region85: #{generator_forward.1} parent=1 // pred_fallthru
      _
    // Predicated region
    $region86: #{generator_forward.1} parent=1 // pred_check
      _
    $region87: #{generator_forward.1} parent=1 // pred_check_branch
      %245 = sbr.rel (0) target = $region89
    $region88: #{generator_forward.1} parent=1 // pred_region
      %246 = dma.done [#allocation6], 128
    $region89: #{generator_forward.1} parent=1 // pred_fallthru
      _
    // Predicated region
    $region90: #{generator_forward.1} parent=1 // pred_check
      _
    $region91: #{generator_forward.1} parent=1 // pred_check_branch
      %248 = sbr.rel (0) target = $region93
    $region92: #{generator_forward.1} parent=1 // pred_region
      %249 = dma.done [#allocation6], 128
    $region93: #{generator_forward.1} parent=1 // pred_fallthru
      _
    // Predicated region
    $region94: #{generator_forward.1} parent=1 // pred_check
      _
    $region95: #{generator_forward.1} parent=1 // pred_check_branch
      %251 = sbr.rel (0) target = $region97
    $region96: #{generator_forward.1} parent=1 // pred_region
      %252 = dma.done [#allocation9], 49152
    $region97: #{generator_forward.1} parent=1 // pred_fallthru
      _
    // Predicated region
    $region98: #{generator_forward.1} parent=1 // pred_check
      _
    $region99: #{generator_forward.1} parent=1 // pred_check_branch
      %254 = sbr.rel (0) target = $region101
    $region100: #{generator_forward.1} parent=1 // pred_region
      %255 = dma.done [#allocation9], 96
    $region101: #{generator_forward.1} parent=1 // pred_fallthru
      _
    // Predicated region
    $region102: #{generator_forward.1} parent=1 // pred_check
      _
    $region103: #{generator_forward.1} parent=1 // pred_check_branch
      %257 = sbr.rel (0) target = $region105
    $region104: #{generator_forward.1} parent=1 // pred_region
      %258 = dma.done [#allocation12], 96
    $region105: #{generator_forward.1} parent=1 // pred_fallthru
      _
    // Predicated region
    $region106: #{generator_forward.1} parent=1 // pred_check
      _
    $region107: #{generator_forward.1} parent=1 // pred_check_branch
      %260 = sbr.rel (0) target = $region109
    $region108: #{generator_forward.1} parent=1 // pred_region
      %261 = dma.done [#allocation12], 8192
    $region109: #{generator_forward.1} parent=1 // pred_fallthru
      _
    // Predicated region
    $region110: #{generator_forward.1} parent=1 // pred_check
      _
    $region111: #{generator_forward.1} parent=1 // pred_check_branch
      %263 = sbr.rel (0) target = $region113
    $region112: #{generator_forward.1} parent=1 // pred_region
      %264 = dma.done [#allocation15], 32
    $region113: #{generator_forward.1} parent=1 // pred_fallthru
      _
    // Predicated region
    $region114: #{generator_forward.1} parent=1 // pred_check
      _
    $region115: #{generator_forward.1} parent=1 // pred_check_branch
      %266 = sbr.rel (0) target = $region117
    $region116: #{generator_forward.1} parent=1 // pred_region
      %267 = dma.done [#allocation15], 32
    $region117: #{generator_forward.1} parent=1 // pred_fallthru
      _
    // Predicated region
    $region118: #{generator_forward.1} parent=1 // pred_check
      _
    $region119: #{generator_forward.1} parent=1 // pred_check_branch
      %269 = sbr.rel (0) target = $region121
    $region120: #{generator_forward.1} parent=1 // pred_region
      %270 = dma.done [#allocation18], 8192
    $region121: #{generator_forward.1} parent=1 // pred_fallthru
      _
    // Predicated region
    $region122: #{generator_forward.1} parent=1 // pred_check
      _
    $region123: #{generator_forward.1} parent=1 // pred_check_branch
      %272 = sbr.rel (0) target = $region125
    $region124: #{generator_forward.1} parent=1 // pred_region
      %273 = dma.done [#allocation18], 32
    $region125: #{generator_forward.1} parent=1 // pred_fallthru
      _
    // Predicated region
    $region126: #{generator_forward.1} parent=1 // pred_check
      _
    $region127: #{generator_forward.1} parent=1 // pred_check_branch
      %275 = sbr.rel (0) target = $region129
    $region128: #{generator_forward.1} parent=1 // pred_region
      %276 = dma.done [#allocation21], 32
    $region129: #{generator_forward.1} parent=1 // pred_fallthru
      _
    // Predicated region
    $region130: #{generator_forward.1} parent=1 // pred_check
      _
    $region131: #{generator_forward.1} parent=1 // pred_check_branch
      %278 = sbr.rel (0) target = $region133
    $region132: #{generator_forward.1} parent=1 // pred_region
      %279 = dma.done [#allocation21], 8192
    $region133: #{generator_forward.1} parent=1 // pred_fallthru
      _
    // Predicated region
    $region134: #{generator_forward.1} parent=1 // pred_check
      _
    $region135: #{generator_forward.1} parent=1 // pred_check_branch
      %281 = sbr.rel (0) target = $region137
    $region136: #{generator_forward.1} parent=1 // pred_region
      %282 = dma.done [#allocation24], 32
    $region137: #{generator_forward.1} parent=1 // pred_fallthru
      _
    // Predicated region
    $region138: #{generator_forward.1} parent=1 // pred_check
      _
    $region139: #{generator_forward.1} parent=1 // pred_check_branch
      %284 = sbr.rel (0) target = $region141
    $region140: #{generator_forward.1} parent=1 // pred_region
      %285 = dma.done [#allocation24], 32
    $region141: #{generator_forward.1} parent=1 // pred_fallthru
      _
    // Predicated region
    $region142: #{generator_forward.1} parent=1 // pred_check
      _
    $region143: #{generator_forward.1} parent=1 // pred_check_branch
      %287 = sbr.rel (0) target = $region145
    $region144: #{generator_forward.1} parent=1 // pred_region
      %288 = dma.done [#allocation27], 8192
    $region145: #{generator_forward.1} parent=1 // pred_fallthru
      _
    // Predicated region
    $region146: #{generator_forward.1} parent=1 // pred_check
      _
    $region147: #{generator_forward.1} parent=1 // pred_check_branch
      %290 = sbr.rel (0) target = $region149
    $region148: #{generator_forward.1} parent=1 // pred_region
      %291 = dma.done [#allocation27], 32
    $region149: #{generator_forward.1} parent=1 // pred_fallthru
      _
    // Predicated region
    $region150: #{generator_forward.1} parent=1 // pred_check
      _
    $region151: #{generator_forward.1} parent=1 // pred_check_branch
      %293 = sbr.rel (0) target = $region153
    $region152: #{generator_forward.1} parent=1 // pred_region
      %294 = dma.done [#allocation30], 32
    $region153: #{generator_forward.1} parent=1 // pred_fallthru
      _
    // Predicated region
    $region154: #{generator_forward.1} parent=1 // pred_check
      _
    $region155: #{generator_forward.1} parent=1 // pred_check_branch
      %296 = sbr.rel (0) target = $region157
    $region156: #{generator_forward.1} parent=1 // pred_region
      %297 = dma.done [#allocation30], 2048
    $region157: #{generator_forward.1} parent=1 // pred_fallthru
      _
    %v299 = vld [vmem:[%s0] sm:$0x3]
    %v300 = vpack.c.bf16 %v299, %v299
    %v301 = vld [vmem:[#allocation3] sm:$0xff]
    %v302 = vld [vmem:[#allocation3 + $0x8] sm:$0xff]
    %v303 = vld [vmem:[#allocation3 + $0x10] sm:$0xff]
    %v304 = vld [vmem:[#allocation3 + $0x18] sm:$0xff]
    %v305 = vld [vmem:[#allocation3 + $0x20] sm:$0xff]
    %v306 = vld [vmem:[#allocation3 + $0x28] sm:$0xff]
    %v307 = vld [vmem:[#allocation3 + $0x30] sm:$0xff]
    %v308 = vld [vmem:[#allocation3 + $0x38] sm:$0xff]
    %v309 = vld [vmem:[#allocation3 + $0x40] sm:$0xff]
    %v310 = vld [vmem:[#allocation3 + $0x48] sm:$0xff]
    %v311 = vld [vmem:[#allocation3 + $0x50] sm:$0xff]
    %v312 = vld [vmem:[#allocation3 + $0x58] sm:$0xff]
    %v313 = vld [vmem:[#allocation3 + $0x60] sm:$0xff]
    %v314 = vld [vmem:[#allocation3 + $0x68] sm:$0xff]
    %v315 = vld [vmem:[#allocation3 + $0x70] sm:$0xff]
    %v316 = vld [vmem:[#allocation3 + $0x78] sm:$0xff]
    %v317 = vld [vmem:[#allocation3 + $0x80] sm:$0xff]
    %v318 = vld [vmem:[#allocation3 + $0x88] sm:$0xff]
    %v319 = vld [vmem:[#allocation3 + $0x90] sm:$0xff]
    %v320 = vld [vmem:[#allocation3 + $0x98] sm:$0xff]
    %v321 = vld [vmem:[#allocation3 + $0xa0] sm:$0xff]
    %v322 = vld [vmem:[#allocation3 + $0xa8] sm:$0xff]
    %v323 = vld [vmem:[#allocation3 + $0xb0] sm:$0xff]
    %v324 = vld [vmem:[#allocation3 + $0xb8] sm:$0xff]
    %v325 = vld [vmem:[#allocation3 + $0xc0] sm:$0xff]
    %v326 = vld [vmem:[#allocation3 + $0xc8] sm:$0xff]
    %v327 = vld [vmem:[#allocation3 + $0xd0] sm:$0xff]
    %v328 = vld [vmem:[#allocation3 + $0xd8] sm:$0xff]
    %v329 = vld [vmem:[#allocation3 + $0xe0] sm:$0xff]
    %v330 = vld [vmem:[#allocation3 + $0xe8] sm:$0xff]
    %v331 = vld [vmem:[#allocation3 + $0xf0] sm:$0xff]
    %v332 = vld [vmem:[#allocation3 + $0xf8] sm:$0xff]
    %v333 = vld [vmem:[#allocation3 + $0x100] sm:$0xff]
    %v334 = vld [vmem:[#allocation3 + $0x108] sm:$0xff]
    %v335 = vld [vmem:[#allocation3 + $0x110] sm:$0xff]
    %v336 = vld [vmem:[#allocation3 + $0x118] sm:$0xff]
    %v337 = vld [vmem:[#allocation3 + $0x120] sm:$0xff]
    %v338 = vld [vmem:[#allocation3 + $0x128] sm:$0xff]
    %v339 = vld [vmem:[#allocation3 + $0x130] sm:$0xff]
    %v340 = vld [vmem:[#allocation3 + $0x138] sm:$0xff]
    %v341 = vld [vmem:[#allocation3 + $0x140] sm:$0xff]
    %v342 = vld [vmem:[#allocation3 + $0x148] sm:$0xff]
    %v343 = vld [vmem:[#allocation3 + $0x150] sm:$0xff]
    %v344 = vld [vmem:[#allocation3 + $0x158] sm:$0xff]
    %v345 = vld [vmem:[#allocation3 + $0x160] sm:$0xff]
    %v346 = vld [vmem:[#allocation3 + $0x168] sm:$0xff]
    %v347 = vld [vmem:[#allocation3 + $0x170] sm:$0xff]
    %v348 = vld [vmem:[#allocation3 + $0x178] sm:$0xff]
    %v349 = vld [vmem:[#allocation3 + $0x180] sm:$0xff]
    %v350 = vld [vmem:[#allocation3 + $0x188] sm:$0xff]
    %v351 = vld [vmem:[#allocation3 + $0x190] sm:$0xff]
    %v352 = vld [vmem:[#allocation3 + $0x198] sm:$0xff]
    %v353 = vld [vmem:[#allocation3 + $0x1a0] sm:$0xff]
    %v354 = vld [vmem:[#allocation3 + $0x1a8] sm:$0xff]
    %v355 = vld [vmem:[#allocation3 + $0x1b0] sm:$0xff]
    %v356 = vld [vmem:[#allocation3 + $0x1b8] sm:$0xff]
    %v357 = vld [vmem:[#allocation3 + $0x1c0] sm:$0xff]
    %v358 = vld [vmem:[#allocation3 + $0x1c8] sm:$0xff]
    %v359 = vld [vmem:[#allocation3 + $0x1d0] sm:$0xff]
    %v360 = vld [vmem:[#allocation3 + $0x1d8] sm:$0xff]
    %v361 = vld [vmem:[#allocation3 + $0x1e0] sm:$0xff]
    %v362 = vld [vmem:[#allocation3 + $0x1e8] sm:$0xff]
    %v363 = vld [vmem:[#allocation3 + $0x1f0] sm:$0xff]
    %v364 = vld [vmem:[#allocation3 + $0x1f8] sm:$0xff]
    %v429 = vunpack.c.l.b16 %v301
    %v430 = vunpack.c.h.b16 %v301
    %v431 = vunpack.c.l.b16 %v302
    %v432 = vunpack.c.h.b16 %v302
    %v433 = vunpack.c.l.b16 %v303
    %v434 = vunpack.c.h.b16 %v303
    %v435 = vunpack.c.l.b16 %v304
    %v436 = vunpack.c.h.b16 %v304
    %v437 = vunpack.c.l.b16 %v305
    %v438 = vunpack.c.h.b16 %v305
    %v439 = vunpack.c.l.b16 %v306
    %v440 = vunpack.c.h.b16 %v306
    %v441 = vunpack.c.l.b16 %v307
    %v442 = vunpack.c.h.b16 %v307
    %v443 = vunpack.c.l.b16 %v308
    %v444 = vunpack.c.h.b16 %v308
    %v445 = vunpack.c.l.b16 %v309
    %v446 = vunpack.c.h.b16 %v309
    %v447 = vunpack.c.l.b16 %v310
    %v448 = vunpack.c.h.b16 %v310
    %v449 = vunpack.c.l.b16 %v311
    %v450 = vunpack.c.h.b16 %v311
    %v451 = vunpack.c.l.b16 %v312
    %v452 = vunpack.c.h.b16 %v312
    %v453 = vunpack.c.l.b16 %v313
    %v454 = vunpack.c.h.b16 %v313
    %v455 = vunpack.c.l.b16 %v314
    %v456 = vunpack.c.h.b16 %v314
    %v457 = vunpack.c.l.b16 %v315
    %v458 = vunpack.c.h.b16 %v315
    %v459 = vunpack.c.l.b16 %v316
    %v460 = vunpack.c.h.b16 %v316
    %v461 = vunpack.c.l.b16 %v317
    %v462 = vunpack.c.h.b16 %v317
    %v463 = vunpack.c.l.b16 %v318
    %v464 = vunpack.c.h.b16 %v318
    %v465 = vunpack.c.l.b16 %v319
    %v466 = vunpack.c.h.b16 %v319
    %v467 = vunpack.c.l.b16 %v320
    %v468 = vunpack.c.h.b16 %v320
    %v469 = vunpack.c.l.b16 %v321
    %v470 = vunpack.c.h.b16 %v321
    %v471 = vunpack.c.l.b16 %v322
    %v472 = vunpack.c.h.b16 %v322
    %v473 = vunpack.c.l.b16 %v323
    %v474 = vunpack.c.h.b16 %v323
    %v475 = vunpack.c.l.b16 %v324
    %v476 = vunpack.c.h.b16 %v324
    %v477 = vunpack.c.l.b16 %v325
    %v478 = vunpack.c.h.b16 %v325
    %v479 = vunpack.c.l.b16 %v326
    %v480 = vunpack.c.h.b16 %v326
    %v481 = vunpack.c.l.b16 %v327
    %v482 = vunpack.c.h.b16 %v327
    %v483 = vunpack.c.l.b16 %v328
    %v484 = vunpack.c.h.b16 %v328
    %v485 = vunpack.c.l.b16 %v329
    %v486 = vunpack.c.h.b16 %v329
    %v487 = vunpack.c.l.b16 %v330
    %v488 = vunpack.c.h.b16 %v330
    %v489 = vunpack.c.l.b16 %v331
    %v490 = vunpack.c.h.b16 %v331
    %v491 = vunpack.c.l.b16 %v332
    %v492 = vunpack.c.h.b16 %v332
    %v493 = vunpack.c.l.b16 %v333
    %v494 = vunpack.c.h.b16 %v333
    %v495 = vunpack.c.l.b16 %v334
    %v496 = vunpack.c.h.b16 %v334
    %v497 = vunpack.c.l.b16 %v335
    %v498 = vunpack.c.h.b16 %v335
    %v499 = vunpack.c.l.b16 %v336
    %v500 = vunpack.c.h.b16 %v336
    %v501 = vunpack.c.l.b16 %v337
    %v502 = vunpack.c.h.b16 %v337
    %v503 = vunpack.c.l.b16 %v338
    %v504 = vunpack.c.h.b16 %v338
    %v505 = vunpack.c.l.b16 %v339
    %v506 = vunpack.c.h.b16 %v339
    %v507 = vunpack.c.l.b16 %v340
    %v508 = vunpack.c.h.b16 %v340
    %v509 = vunpack.c.l.b16 %v341
    %v510 = vunpack.c.h.b16 %v341
    %v511 = vunpack.c.l.b16 %v342
    %v512 = vunpack.c.h.b16 %v342
    %v513 = vunpack.c.l.b16 %v343
    %v514 = vunpack.c.h.b16 %v343
    %v515 = vunpack.c.l.b16 %v344
    %v516 = vunpack.c.h.b16 %v344
    %v517 = vunpack.c.l.b16 %v345
    %v518 = vunpack.c.h.b16 %v345
    %v519 = vunpack.c.l.b16 %v346
    %v520 = vunpack.c.h.b16 %v346
    %v521 = vunpack.c.l.b16 %v347
    %v522 = vunpack.c.h.b16 %v347
    %v523 = vunpack.c.l.b16 %v348
    %v524 = vunpack.c.h.b16 %v348
    %v525 = vunpack.c.l.b16 %v349
    %v526 = vunpack.c.h.b16 %v349
    %v527 = vunpack.c.l.b16 %v350
    %v528 = vunpack.c.h.b16 %v350
    %v529 = vunpack.c.l.b16 %v351
    %v530 = vunpack.c.h.b16 %v351
    %v531 = vunpack.c.l.b16 %v352
    %v532 = vunpack.c.h.b16 %v352
    %v533 = vunpack.c.l.b16 %v353
    %v534 = vunpack.c.h.b16 %v353
    %v535 = vunpack.c.l.b16 %v354
    %v536 = vunpack.c.h.b16 %v354
    %v537 = vunpack.c.l.b16 %v355
    %v538 = vunpack.c.h.b16 %v355
    %v539 = vunpack.c.l.b16 %v356
    %v540 = vunpack.c.h.b16 %v356
    %v541 = vunpack.c.l.b16 %v357
    %v542 = vunpack.c.h.b16 %v357
    %v543 = vunpack.c.l.b16 %v358
    %v544 = vunpack.c.h.b16 %v358
    %v545 = vunpack.c.l.b16 %v359
    %v546 = vunpack.c.h.b16 %v359
    %v547 = vunpack.c.l.b16 %v360
    %v548 = vunpack.c.h.b16 %v360
    %v549 = vunpack.c.l.b16 %v361
    %v550 = vunpack.c.h.b16 %v361
    %v551 = vunpack.c.l.b16 %v362
    %v552 = vunpack.c.h.b16 %v362
    %v553 = vunpack.c.l.b16 %v363
    %v554 = vunpack.c.h.b16 %v363
    %v555 = vunpack.c.l.b16 %v364
    %v556 = vunpack.c.h.b16 %v364
    %v557 = vpack.c.b16 %v437, %v429
    %v558 = vpack.c.b16 %v438, %v430
    %v559 = vpack.c.b16 %v439, %v431
    %v560 = vpack.c.b16 %v440, %v432
    %v561 = vpack.c.b16 %v441, %v433
    %v562 = vpack.c.b16 %v442, %v434
    %v563 = vpack.c.b16 %v443, %v435
    %v564 = vpack.c.b16 %v444, %v436
    %v565 = vpack.c.b16 %v453, %v445
    %v566 = vpack.c.b16 %v454, %v446
    %v567 = vpack.c.b16 %v455, %v447
    %v568 = vpack.c.b16 %v456, %v448
    %v569 = vpack.c.b16 %v457, %v449
    %v570 = vpack.c.b16 %v458, %v450
    %v571 = vpack.c.b16 %v459, %v451
    %v572 = vpack.c.b16 %v460, %v452
    %v573 = vpack.c.b16 %v469, %v461
    %v574 = vpack.c.b16 %v470, %v462
    %v575 = vpack.c.b16 %v471, %v463
    %v576 = vpack.c.b16 %v472, %v464
    %v577 = vpack.c.b16 %v473, %v465
    %v578 = vpack.c.b16 %v474, %v466
    %v579 = vpack.c.b16 %v475, %v467
    %v580 = vpack.c.b16 %v476, %v468
    %v581 = vpack.c.b16 %v485, %v477
    %v582 = vpack.c.b16 %v486, %v478
    %v583 = vpack.c.b16 %v487, %v479
    %v584 = vpack.c.b16 %v488, %v480
    %v585 = vpack.c.b16 %v489, %v481
    %v586 = vpack.c.b16 %v490, %v482
    %v587 = vpack.c.b16 %v491, %v483
    %v588 = vpack.c.b16 %v492, %v484
    %v589 = vpack.c.b16 %v501, %v493
    %v590 = vpack.c.b16 %v502, %v494
    %v591 = vpack.c.b16 %v503, %v495
    %v592 = vpack.c.b16 %v504, %v496
    %v593 = vpack.c.b16 %v505, %v497
    %v594 = vpack.c.b16 %v506, %v498
    %v595 = vpack.c.b16 %v507, %v499
    %v596 = vpack.c.b16 %v508, %v500
    %v597 = vpack.c.b16 %v517, %v509
    %v598 = vpack.c.b16 %v518, %v510
    %v599 = vpack.c.b16 %v519, %v511
    %v600 = vpack.c.b16 %v520, %v512
    %v601 = vpack.c.b16 %v521, %v513
    %v602 = vpack.c.b16 %v522, %v514
    %v603 = vpack.c.b16 %v523, %v515
    %v604 = vpack.c.b16 %v524, %v516
    %v605 = vpack.c.b16 %v533, %v525
    %v606 = vpack.c.b16 %v534, %v526
    %v607 = vpack.c.b16 %v535, %v527
    %v608 = vpack.c.b16 %v536, %v528
    %v609 = vpack.c.b16 %v537, %v529
    %v610 = vpack.c.b16 %v538, %v530
    %v611 = vpack.c.b16 %v539, %v531
    %v612 = vpack.c.b16 %v540, %v532
    %v613 = vpack.c.b16 %v549, %v541
    %v614 = vpack.c.b16 %v550, %v542
    %v615 = vpack.c.b16 %v551, %v543
    %v616 = vpack.c.b16 %v552, %v544
    %v617 = vpack.c.b16 %v553, %v545
    %v618 = vpack.c.b16 %v554, %v546
    %v619 = vpack.c.b16 %v555, %v547
    %v620 = vpack.c.b16 %v556, %v548
    %685 = vmatprep.subr.bf16.mxu0 %v558
    %686 = vmatpush1.bf16.msra.mxu0 %v557
    %687 = vmatprep.subr.bf16.mxu0 %v566
    %688 = vmatpush1.bf16.msra.mxu0 %v565
    %689 = vmatprep.subr.bf16.mxu0 %v574
    %690 = vmatpush1.bf16.msra.mxu0 %v573
    %691 = vmatprep.subr.bf16.mxu0 %v582
    %692 = vmatpush1.bf16.msra.mxu0 %v581
    %693 = vmatprep.subr.bf16.mxu0 %v590
    %694 = vmatpush1.bf16.msra.mxu0 %v589
    %695 = vmatprep.subr.bf16.mxu0 %v598
    %696 = vmatpush1.bf16.msra.mxu0 %v597
    %697 = vmatprep.subr.bf16.mxu0 %v606
    %698 = vmatpush1.bf16.msra.mxu0 %v605
    %699 = vmatprep.subr.bf16.mxu0 %v614
    %700 = vmatpush1.bf16.msra.mxu0 %v613
    %701 = vmatprep.subr.bf16.mxu0 0
    %702 = vmatpush1.bf16.msra.mxu0 0
    %703 = vmatprep.subr.bf16.mxu0 0
    %704 = vmatpush1.bf16.msra.mxu0 0
    %705 = vmatprep.subr.bf16.mxu0 0
    %706 = vmatpush1.bf16.msra.mxu0 0
    %707 = vmatprep.subr.bf16.mxu0 0
    %708 = vmatpush1.bf16.msra.mxu0 0
    %709 = vmatprep.subr.bf16.mxu0 0
    %710 = vmatpush1.bf16.msra.mxu0 0
    %711 = vmatprep.subr.bf16.mxu0 0
    %712 = vmatpush1.bf16.msra.mxu0 0
    %713 = vmatprep.subr.bf16.mxu0 0
    %714 = vmatpush1.bf16.msra.mxu0 0
    %715 = vmatprep.subr.bf16.mxu0 0
    %716 = vmatpush1.bf16.msra.mxu0 0
    %717 = vmatprep.mubr.bf16.mxu0 0
    %718 = vmatmul.mubr.bf16.gmra.mrb[0].mxu0 %v300
    %v719 = vpop.f32.mrb[0].mxu0
    %v720 = vadd.f32 0.0, %v719
    %v721 = vpop.f32.mrb[0].mxu0
    %v722 = vadd.f32 0.0, %v721
    %v723 = vpop.f32.mrb[0].mxu0
    %v724 = vpop.f32.mrb[0].mxu0
    %725 = vdwg.mxu0
    %726 = vmatprep.subr.bf16.mxu0 %v560
    %727 = vmatpush1.bf16.msra.mxu0 %v559
    %728 = vmatprep.subr.bf16.mxu0 %v568
    %729 = vmatpush1.bf16.msra.mxu0 %v567
    %730 = vmatprep.subr.bf16.mxu0 %v576
    %731 = vmatpush1.bf16.msra.mxu0 %v575
    %732 = vmatprep.subr.bf16.mxu0 %v584
    %733 = vmatpush1.bf16.msra.mxu0 %v583
    %734 = vmatprep.subr.bf16.mxu0 %v592
    %735 = vmatpush1.bf16.msra.mxu0 %v591
    %736 = vmatprep.subr.bf16.mxu0 %v600
    %737 = vmatpush1.bf16.msra.mxu0 %v599
    %738 = vmatprep.subr.bf16.mxu0 %v608
    %739 = vmatpush1.bf16.msra.mxu0 %v607
    %740 = vmatprep.subr.bf16.mxu0 %v616
    %741 = vmatpush1.bf16.msra.mxu0 %v615
    %742 = vmatprep.subr.bf16.mxu0 0
    %743 = vmatpush1.bf16.msra.mxu0 0
    %744 = vmatprep.subr.bf16.mxu0 0
    %745 = vmatpush1.bf16.msra.mxu0 0
    %746 = vmatprep.subr.bf16.mxu0 0
    %747 = vmatpush1.bf16.msra.mxu0 0
    %748 = vmatprep.subr.bf16.mxu0 0
    %749 = vmatpush1.bf16.msra.mxu0 0
    %750 = vmatprep.subr.bf16.mxu0 0
    %751 = vmatpush1.bf16.msra.mxu0 0
    %752 = vmatprep.subr.bf16.mxu0 0
    %753 = vmatpush1.bf16.msra.mxu0 0
    %754 = vmatprep.subr.bf16.mxu0 0
    %755 = vmatpush1.bf16.msra.mxu0 0
    %756 = vmatprep.subr.bf16.mxu0 0
    %757 = vmatpush1.bf16.msra.mxu0 0
    %758 = vmatprep.mubr.bf16.mxu0 0
    %759 = vmatmul.mubr.bf16.gmra.mrb[0].mxu0 %v300
    %v760 = vpop.f32.mrb[0].mxu0
    %v761 = vadd.f32 0.0, %v760
    %v762 = vpop.f32.mrb[0].mxu0
    %v763 = vadd.f32 0.0, %v762
    %v764 = vpop.f32.mrb[0].mxu0
    %v765 = vpop.f32.mrb[0].mxu0
    %766 = vdwg.mxu0
    %767 = vmatprep.subr.bf16.mxu0 %v562
    %768 = vmatpush1.bf16.msra.mxu0 %v561
    %769 = vmatprep.subr.bf16.mxu0 %v570
    %770 = vmatpush1.bf16.msra.mxu0 %v569
    %771 = vmatprep.subr.bf16.mxu0 %v578
    %772 = vmatpush1.bf16.msra.mxu0 %v577
    %773 = vmatprep.subr.bf16.mxu0 %v586
    %774 = vmatpush1.bf16.msra.mxu0 %v585
    %775 = vmatprep.subr.bf16.mxu0 %v594
    %776 = vmatpush1.bf16.msra.mxu0 %v593
    %777 = vmatprep.subr.bf16.mxu0 %v602
    %778 = vmatpush1.bf16.msra.mxu0 %v601
    %779 = vmatprep.subr.bf16.mxu0 %v610
    %780 = vmatpush1.bf16.msra.mxu0 %v609
    %781 = vmatprep.subr.bf16.mxu0 %v618
    %782 = vmatpush1.bf16.msra.mxu0 %v617
    %783 = vmatprep.subr.bf16.mxu0 0
    %784 = vmatpush1.bf16.msra.mxu0 0
    %785 = vmatprep.subr.bf16.mxu0 0
    %786 = vmatpush1.bf16.msra.mxu0 0
    %787 = vmatprep.subr.bf16.mxu0 0
    %788 = vmatpush1.bf16.msra.mxu0 0
    %789 = vmatprep.subr.bf16.mxu0 0
    %790 = vmatpush1.bf16.msra.mxu0 0
    %791 = vmatprep.subr.bf16.mxu0 0
    %792 = vmatpush1.bf16.msra.mxu0 0
    %793 = vmatprep.subr.bf16.mxu0 0
    %794 = vmatpush1.bf16.msra.mxu0 0
    %795 = vmatprep.subr.bf16.mxu0 0
    %796 = vmatpush1.bf16.msra.mxu0 0
    %797 = vmatprep.subr.bf16.mxu0 0
    %798 = vmatpush1.bf16.msra.mxu0 0
    %799 = vmatprep.mubr.bf16.mxu0 0
    %800 = vmatmul.mubr.bf16.gmra.mrb[0].mxu0 %v300
    %v801 = vpop.f32.mrb[0].mxu0
    %v802 = vadd.f32 0.0, %v801
    %v803 = vpop.f32.mrb[0].mxu0
    %v804 = vadd.f32 0.0, %v803
    %v805 = vpop.f32.mrb[0].mxu0
    %v806 = vpop.f32.mrb[0].mxu0
    %807 = vdwg.mxu0
    %808 = vmatprep.subr.bf16.mxu0 %v564
    %809 = vmatpush1.bf16.msra.mxu0 %v563
    %810 = vmatprep.subr.bf16.mxu0 %v572
    %811 = vmatpush1.bf16.msra.mxu0 %v571
    %812 = vmatprep.subr.bf16.mxu0 %v580
    %813 = vmatpush1.bf16.msra.mxu0 %v579
    %814 = vmatprep.subr.bf16.mxu0 %v588
    %815 = vmatpush1.bf16.msra.mxu0 %v587
    %816 = vmatprep.subr.bf16.mxu0 %v596
    %817 = vmatpush1.bf16.msra.mxu0 %v595
    %818 = vmatprep.subr.bf16.mxu0 %v604
    %819 = vmatpush1.bf16.msra.mxu0 %v603
    %820 = vmatprep.subr.bf16.mxu0 %v612
    %821 = vmatpush1.bf16.msra.mxu0 %v611
    %822 = vmatprep.subr.bf16.mxu0 %v620
    %823 = vmatpush1.bf16.msra.mxu0 %v619
    %824 = vmatprep.subr.bf16.mxu0 0
    %825 = vmatpush1.bf16.msra.mxu0 0
    %826 = vmatprep.subr.bf16.mxu0 0
    %827 = vmatpush1.bf16.msra.mxu0 0
    %828 = vmatprep.subr.bf16.mxu0 0
    %829 = vmatpush1.bf16.msra.mxu0 0
    %830 = vmatprep.subr.bf16.mxu0 0
    %831 = vmatpush1.bf16.msra.mxu0 0
    %832 = vmatprep.subr.bf16.mxu0 0
    %833 = vmatpush1.bf16.msra.mxu0 0
    %834 = vmatprep.subr.bf16.mxu0 0
    %835 = vmatpush1.bf16.msra.mxu0 0
    %836 = vmatprep.subr.bf16.mxu0 0
    %837 = vmatpush1.bf16.msra.mxu0 0
    %838 = vmatprep.subr.bf16.mxu0 0
    %839 = vmatpush1.bf16.msra.mxu0 0
    %840 = vmatprep.mubr.bf16.mxu0 0
    %841 = vmatmul.mubr.bf16.gmra.mrb[0].mxu0 %v300
    %v842 = vpop.f32.mrb[0].mxu0
    %v843 = vadd.f32 0.0, %v842
    %v844 = vpop.f32.mrb[0].mxu0
    %v845 = vadd.f32 0.0, %v844
    %v846 = vpop.f32.mrb[0].mxu0
    %v847 = vpop.f32.mrb[0].mxu0
    %848 = vdwg.mxu0
    %v849 = vld [vmem:[#allocation5] sm:$0xff]
    %v850 = vld [vmem:[#allocation7] sm:$0xff]
    %vm851 = vcmask 1041408
    %v852 = vsel %vm851, %v720, 0.0
    %v853 = vrot.slane %v852, 4
    %v854 = vadd.f32 %v852, %v853
    %v855 = vrot.slane %v854, 2
    %v856 = vadd.f32 %v854, %v855
    %v857 = vrot.slane %v856, 1
    %v858 = vadd.f32 %v856, %v857
    %v859 = vsel %vm851, %v722, 0.0
    %v860 = vrot.slane %v859, 4
    %v861 = vadd.f32 %v859, %v860
    %v862 = vrot.slane %v861, 2
    %v863 = vadd.f32 %v861, %v862
    %v864 = vrot.slane %v863, 1
    %v865 = vadd.f32 %v863, %v864
    %v866 = vsel %vm851, %v761, 0.0
    %v867 = vrot.slane %v866, 4
    %v868 = vadd.f32 %v866, %v867
    %v869 = vrot.slane %v868, 2
    %v870 = vadd.f32 %v868, %v869
    %v871 = vrot.slane %v870, 1
    %v872 = vadd.f32 %v870, %v871
    %v873 = vsel %vm851, %v763, 0.0
    %v874 = vrot.slane %v873, 4
    %v875 = vadd.f32 %v873, %v874
    %v876 = vrot.slane %v875, 2
    %v877 = vadd.f32 %v875, %v876
    %v878 = vrot.slane %v877, 1
    %v879 = vadd.f32 %v877, %v878
    %v880 = vsel %vm851, %v802, 0.0
    %v881 = vrot.slane %v880, 4
    %v882 = vadd.f32 %v880, %v881
    %v883 = vrot.slane %v882, 2
    %v884 = vadd.f32 %v882, %v883
    %v885 = vrot.slane %v884, 1
    %v886 = vadd.f32 %v884, %v885
    %v887 = vsel %vm851, %v804, 0.0
    %v888 = vrot.slane %v887, 4
    %v889 = vadd.f32 %v887, %v888
    %v890 = vrot.slane %v889, 2
    %v891 = vadd.f32 %v889, %v890
    %v892 = vrot.slane %v891, 1
    %v893 = vadd.f32 %v891, %v892
    %v894 = vsel %vm851, %v843, 0.0
    %v895 = vrot.slane %v894, 4
    %v896 = vadd.f32 %v894, %v895
    %v897 = vrot.slane %v896, 2
    %v898 = vadd.f32 %v896, %v897
    %v899 = vrot.slane %v898, 1
    %v900 = vadd.f32 %v898, %v899
    %v901 = vsel %vm851, %v845, 0.0
    %v902 = vrot.slane %v901, 4
    %v903 = vadd.f32 %v901, %v902
    %v904 = vrot.slane %v903, 2
    %v905 = vadd.f32 %v903, %v904
    %v906 = vrot.slane %v905, 1
    %v907 = vadd.f32 %v905, %v906
    %v908 = vmul.f32 %v858, 0.5
    %v909 = vmul.f32 %v865, 0.5
    %v910 = vmul.f32 %v872, 0.5
    %v911 = vmul.f32 %v879, 0.5
    %v912 = vmul.f32 %v886, 0.5
    %v913 = vmul.f32 %v893, 0.5
    %v914 = vmul.f32 %v900, 0.5
    %v915 = vmul.f32 %v907, 0.5
    %v916 = vmul.f32 %v720, %v720
    %v917 = vmul.f32 %v722, %v722
    %v918 = vmul.f32 %v761, %v761
    %v919 = vmul.f32 %v763, %v763
    %v920 = vmul.f32 %v802, %v802
    %v921 = vmul.f32 %v804, %v804
    %v922 = vmul.f32 %v843, %v843
    %v923 = vmul.f32 %v845, %v845
    %v924 = vsel %vm851, %v916, 0.0
    %v925 = vrot.slane %v924, 4
    %v926 = vadd.f32 %v924, %v925
    %v927 = vrot.slane %v926, 2
    %v928 = vadd.f32 %v926, %v927
    %v929 = vrot.slane %v928, 1
    %v930 = vadd.f32 %v928, %v929
    %v931 = vsel %vm851, %v917, 0.0
    %v932 = vrot.slane %v931, 4
    %v933 = vadd.f32 %v931, %v932
    %v934 = vrot.slane %v933, 2
    %v935 = vadd.f32 %v933, %v934
    %v936 = vrot.slane %v935, 1
    %v937 = vadd.f32 %v935, %v936
    %v938 = vsel %vm851, %v918, 0.0
    %v939 = vrot.slane %v938, 4
    %v940 = vadd.f32 %v938, %v939
    %v941 = vrot.slane %v940, 2
    %v942 = vadd.f32 %v940, %v941
    %v943 = vrot.slane %v942, 1
    %v944 = vadd.f32 %v942, %v943
    %v945 = vsel %vm851, %v919, 0.0
    %v946 = vrot.slane %v945, 4
    %v947 = vadd.f32 %v945, %v946
    %v948 = vrot.slane %v947, 2
    %v949 = vadd.f32 %v947, %v948
    %v950 = vrot.slane %v949, 1
    %v951 = vadd.f32 %v949, %v950
    %v952 = vsel %vm851, %v920, 0.0
    %v953 = vrot.slane %v952, 4
    %v954 = vadd.f32 %v952, %v953
    %v955 = vrot.slane %v954, 2
    %v956 = vadd.f32 %v954, %v955
    %v957 = vrot.slane %v956, 1
    %v958 = vadd.f32 %v956, %v957
    %v959 = vsel %vm851, %v921, 0.0
    %v960 = vrot.slane %v959, 4
    %v961 = vadd.f32 %v959, %v960
    %v962 = vrot.slane %v961, 2
    %v963 = vadd.f32 %v961, %v962
    %v964 = vrot.slane %v963, 1
    %v965 = vadd.f32 %v963, %v964
    %v966 = vsel %vm851, %v922, 0.0
    %v967 = vrot.slane %v966, 4
    %v968 = vadd.f32 %v966, %v967
    %v969 = vrot.slane %v968, 2
    %v970 = vadd.f32 %v968, %v969
    %v971 = vrot.slane %v970, 1
    %v972 = vadd.f32 %v970, %v971
    %v973 = vsel %vm851, %v923, 0.0
    %v974 = vrot.slane %v973, 4
    %v975 = vadd.f32 %v973, %v974
    %v976 = vrot.slane %v975, 2
    %v977 = vadd.f32 %v975, %v976
    %v978 = vrot.slane %v977, 1
    %v979 = vadd.f32 %v977, %v978
    %v980 = vmul.f32 %v930, 0.5
    %v981 = vmul.f32 %v937, 0.5
    %v982 = vmul.f32 %v944, 0.5
    %v983 = vmul.f32 %v951, 0.5
    %v984 = vmul.f32 %v958, 0.5
    %v985 = vmul.f32 %v965, 0.5
    %v986 = vmul.f32 %v972, 0.5
    %v987 = vmul.f32 %v979, 0.5
    %v988 = vmul.f32 %v908, %v908
    %v989 = vmul.f32 %v909, %v909
    %v990 = vmul.f32 %v910, %v910
    %v991 = vmul.f32 %v911, %v911
    %v992 = vmul.f32 %v912, %v912
    %v993 = vmul.f32 %v913, %v913
    %v994 = vmul.f32 %v914, %v914
    %v995 = vmul.f32 %v915, %v915
    %v996 = vsub.f32 %v980, %v988
    %v997 = vsub.f32 %v981, %v989
    %v998 = vsub.f32 %v982, %v990
    %v999 = vsub.f32 %v983, %v991
    %v1000 = vsub.f32 %v984, %v992
    %v1001 = vsub.f32 %v985, %v993
    %v1002 = vsub.f32 %v986, %v994
    %v1003 = vsub.f32 %v987, %v995
    %v1004 = vmax.f32 %v996, 0.0
    %v1005 = vmax.f32 %v997, 0.0
    %v1006 = vmax.f32 %v998, 0.0
    %v1007 = vmax.f32 %v999, 0.0
    %v1008 = vmax.f32 %v1000, 0.0
    %v1009 = vmax.f32 %v1001, 0.0
    %v1010 = vmax.f32 %v1002, 0.0
    %v1011 = vmax.f32 %v1003, 0.0
    %v1012 = vadd.f32 %v1004, 1e-05
    %v1013 = vadd.f32 %v1005, 1e-05
    %v1014 = vadd.f32 %v1006, 1e-05
    %v1015 = vadd.f32 %v1007, 1e-05
    %v1016 = vadd.f32 %v1008, 1e-05
    %v1017 = vadd.f32 %v1009, 1e-05
    %v1018 = vadd.f32 %v1010, 1e-05
    %v1019 = vadd.f32 %v1011, 1e-05
    %v1020 = vrsqrt.pop %v1012
    %v1021 = vrsqrt.pop %v1013
    %v1022 = vrsqrt.pop %v1014
    %v1023 = vrsqrt.pop %v1015
    %v1024 = vrsqrt.pop %v1016
    %v1025 = vrsqrt.pop %v1017
    %v1026 = vrsqrt.pop %v1018
    %v1027 = vrsqrt.pop %v1019
    %v1036 = vcombine.low %v1020, %v1021
    %v1037 = vcombine.low %v1022, %v1023
    %v1038 = vcombine.low %v1024, %v1025
    %v1039 = vcombine.low %v1026, %v1027
    %v1041 = vunpack.c.l.s4 1966171168
    %v1042 = vunpack.c.0.s8 %v1041
    %v1043 = vlaneseq
    %v1044 = vshrl.u32 %v1043, 7
    %v1045 = vsub.s32 %v1042, %v1044
    %v1046 = vrot.slane %v1036, %v1045
    %v1048 = vunpack.c.l.s4 1966171168
    %v1049 = vunpack.c.0.s8 %v1048
    %v1050 = vlaneseq
    %v1051 = vshrl.u32 %v1050, 7
    %v1052 = vsub.s32 %v1049, %v1051
    %v1053 = vrot.slane %v1037, %v1052
    %v1055 = vunpack.c.l.s4 1966171168
    %v1056 = vunpack.c.0.s8 %v1055
    %v1057 = vlaneseq
    %v1058 = vshrl.u32 %v1057, 7
    %v1059 = vsub.s32 %v1056, %v1058
    %v1060 = vrot.slane %v1038, %v1059
    %v1062 = vunpack.c.l.s4 1966171168
    %v1063 = vunpack.c.0.s8 %v1062
    %v1064 = vlaneseq
    %v1065 = vshrl.u32 %v1064, 7
    %v1066 = vsub.s32 %v1063, %v1065
    %v1067 = vrot.slane %v1039, %v1066
    %v1068 = vcombine.low %v1046, %v1053
    %v1069 = vcombine.low %v1060, %v1067
    %v1071 = vunpack.c.l.s4 1966171168
    %v1072 = vunpack.c.0.s8 %v1071
    %v1073 = vlaneseq
    %v1074 = vshrl.u32 %v1073, 7
    %v1075 = vsub.s32 %v1072, %v1074
    %v1076 = vrot.slane %v1068, %v1075
    %v1078 = vunpack.c.l.s4 1966171168
    %v1079 = vunpack.c.0.s8 %v1078
    %v1080 = vlaneseq
    %v1081 = vshrl.u32 %v1080, 7
    %v1082 = vsub.s32 %v1079, %v1081
    %v1083 = vrot.slane %v1069, %v1082
    %v1084 = vcombine.low %v1076, %v1083
    %v1086 = vmul.f32 %v849, %v1084
    %v1088 = vlaneseq
    %v1089 = vshrl.u32 %v1088, 7
    %v1090 = vsub.s32 0, %v1089
    %v1091 = vrot.slane %v1086, %v1090
    %v1092 = vlaneseq
    %v1093 = vshrl.u32 %v1092, 7
    %v1094 = vsub.s32 1, %v1093
    %v1095 = vrot.slane %v1086, %v1094
    %v1096 = vlaneseq
    %v1097 = vshrl.u32 %v1096, 7
    %v1098 = vsub.s32 2, %v1097
    %v1099 = vrot.slane %v1086, %v1098
    %v1100 = vlaneseq
    %v1101 = vshrl.u32 %v1100, 7
    %v1102 = vsub.s32 3, %v1101
    %v1103 = vrot.slane %v1086, %v1102
    %v1104 = vlaneseq
    %v1105 = vshrl.u32 %v1104, 7
    %v1106 = vsub.s32 4, %v1105
    %v1107 = vrot.slane %v1086, %v1106
    %v1108 = vlaneseq
    %v1109 = vshrl.u32 %v1108, 7
    %v1110 = vsub.s32 5, %v1109
    %v1111 = vrot.slane %v1086, %v1110
    %v1112 = vlaneseq
    %v1113 = vshrl.u32 %v1112, 7
    %v1114 = vsub.s32 6, %v1113
    %v1115 = vrot.slane %v1086, %v1114
    %v1116 = vlaneseq
    %v1117 = vshrl.u32 %v1116, 7
    %v1118 = vsub.s32 7, %v1117
    %v1119 = vrot.slane %v1086, %v1118
    %v1128 = vmul.f32 %v908, %v1091
    %v1129 = vmul.f32 %v909, %v1095
    %v1130 = vmul.f32 %v910, %v1099
    %v1131 = vmul.f32 %v911, %v1103
    %v1132 = vmul.f32 %v912, %v1107
    %v1133 = vmul.f32 %v913, %v1111
    %v1134 = vmul.f32 %v914, %v1115
    %v1135 = vmul.f32 %v915, %v1119
    %v1144 = vcombine.low %v1128, %v1129
    %v1145 = vcombine.low %v1130, %v1131
    %v1146 = vcombine.low %v1132, %v1133
    %v1147 = vcombine.low %v1134, %v1135
    %v1149 = vunpack.c.l.s4 1966171168
    %v1150 = vunpack.c.0.s8 %v1149
    %v1151 = vlaneseq
    %v1152 = vshrl.u32 %v1151, 7
    %v1153 = vsub.s32 %v1150, %v1152
    %v1154 = vrot.slane %v1144, %v1153
    %v1156 = vunpack.c.l.s4 1966171168
    %v1157 = vunpack.c.0.s8 %v1156
    %v1158 = vlaneseq
    %v1159 = vshrl.u32 %v1158, 7
    %v1160 = vsub.s32 %v1157, %v1159
    %v1161 = vrot.slane %v1145, %v1160
    %v1163 = vunpack.c.l.s4 1966171168
    %v1164 = vunpack.c.0.s8 %v1163
    %v1165 = vlaneseq
    %v1166 = vshrl.u32 %v1165, 7
    %v1167 = vsub.s32 %v1164, %v1166
    %v1168 = vrot.slane %v1146, %v1167
    %v1170 = vunpack.c.l.s4 1966171168
    %v1171 = vunpack.c.0.s8 %v1170
    %v1172 = vlaneseq
    %v1173 = vshrl.u32 %v1172, 7
    %v1174 = vsub.s32 %v1171, %v1173
    %v1175 = vrot.slane %v1147, %v1174
    %v1176 = vcombine.low %v1154, %v1161
    %v1177 = vcombine.low %v1168, %v1175
    %v1179 = vunpack.c.l.s4 1966171168
    %v1180 = vunpack.c.0.s8 %v1179
    %v1181 = vlaneseq
    %v1182 = vshrl.u32 %v1181, 7
    %v1183 = vsub.s32 %v1180, %v1182
    %v1184 = vrot.slane %v1176, %v1183
    %v1186 = vunpack.c.l.s4 1966171168
    %v1187 = vunpack.c.0.s8 %v1186
    %v1188 = vlaneseq
    %v1189 = vshrl.u32 %v1188, 7
    %v1190 = vsub.s32 %v1187, %v1189
    %v1191 = vrot.slane %v1177, %v1190
    %v1192 = vcombine.low %v1184, %v1191
    %v1194 = vsub.f32 %v850, %v1192
    %v1195 = vmul.f32 %v720, %v1091
    %v1196 = vmul.f32 %v722, %v1095
    %v1197 = vmul.f32 %v761, %v1099
    %v1198 = vmul.f32 %v763, %v1103
    %v1199 = vmul.f32 %v802, %v1107
    %v1200 = vmul.f32 %v804, %v1111
    %v1201 = vmul.f32 %v843, %v1115
    %v1202 = vmul.f32 %v845, %v1119
    %v1204 = vlaneseq
    %v1205 = vshrl.u32 %v1204, 7
    %v1206 = vsub.s32 0, %v1205
    %v1207 = vrot.slane %v1194, %v1206
    %v1208 = vlaneseq
    %v1209 = vshrl.u32 %v1208, 7
    %v1210 = vsub.s32 1, %v1209
    %v1211 = vrot.slane %v1194, %v1210
    %v1212 = vlaneseq
    %v1213 = vshrl.u32 %v1212, 7
    %v1214 = vsub.s32 2, %v1213
    %v1215 = vrot.slane %v1194, %v1214
    %v1216 = vlaneseq
    %v1217 = vshrl.u32 %v1216, 7
    %v1218 = vsub.s32 3, %v1217
    %v1219 = vrot.slane %v1194, %v1218
    %v1220 = vlaneseq
    %v1221 = vshrl.u32 %v1220, 7
    %v1222 = vsub.s32 4, %v1221
    %v1223 = vrot.slane %v1194, %v1222
    %v1224 = vlaneseq
    %v1225 = vshrl.u32 %v1224, 7
    %v1226 = vsub.s32 5, %v1225
    %v1227 = vrot.slane %v1194, %v1226
    %v1228 = vlaneseq
    %v1229 = vshrl.u32 %v1228, 7
    %v1230 = vsub.s32 6, %v1229
    %v1231 = vrot.slane %v1194, %v1230
    %v1232 = vlaneseq
    %v1233 = vshrl.u32 %v1232, 7
    %v1234 = vsub.s32 7, %v1233
    %v1235 = vrot.slane %v1194, %v1234
    %v1244 = vadd.f32 %v1195, %v1207
    %v1245 = vadd.f32 %v1196, %v1211
    %v1246 = vadd.f32 %v1197, %v1215
    %v1247 = vadd.f32 %v1198, %v1219
    %v1248 = vadd.f32 %v1199, %v1223
    %v1249 = vadd.f32 %v1200, %v1227
    %v1250 = vadd.f32 %v1201, %v1231
    %v1251 = vadd.f32 %v1202, %v1235
    %v1252 = vmax.f32 %v1244, 0.0
    %v1253 = vmax.f32 %v1245, 0.0
    %v1254 = vmax.f32 %v1246, 0.0
    %v1255 = vmax.f32 %v1247, 0.0
    %v1256 = vmax.f32 %v1248, 0.0
    %v1257 = vmax.f32 %v1249, 0.0
    %v1258 = vmax.f32 %v1250, 0.0
    %v1259 = vmax.f32 %v1251, 0.0
    %v1260 = vpack.c.bf16 %v1252, %v1252
    %v1261 = vpack.c.bf16 %v1253, %v1253
    %v1262 = vpack.c.bf16 %v1254, %v1254
    %v1263 = vpack.c.bf16 %v1255, %v1255
    %v1264 = vpack.c.bf16 %v1256, %v1256
    %v1265 = vpack.c.bf16 %v1257, %v1257
    %v1266 = vpack.c.bf16 %v1258, %v1258
    %v1267 = vpack.c.bf16 %v1259, %v1259
    %v1268 = vld [vmem:[#allocation8] sm:$0xff]
    %v1269 = vld [vmem:[#allocation8 + $0x8] sm:$0xff]
    %v1270 = vld [vmem:[#allocation8 + $0x10] sm:$0xff]
    %v1271 = vld [vmem:[#allocation8 + $0x18] sm:$0xff]
    %v1272 = vld [vmem:[#allocation8 + $0x20] sm:$0xff]
    %v1273 = vld [vmem:[#allocation8 + $0x28] sm:$0xff]
    %v1274 = vld [vmem:[#allocation8 + $0x30] sm:$0xff]
    %v1275 = vld [vmem:[#allocation8 + $0x38] sm:$0xff]
    %v1276 = vld [vmem:[#allocation8 + $0x40] sm:$0xff]
    %v1277 = vld [vmem:[#allocation8 + $0x48] sm:$0xff]
    %v1278 = vld [vmem:[#allocation8 + $0x50] sm:$0xff]
    %v1279 = vld [vmem:[#allocation8 + $0x58] sm:$0xff]
    %v1280 = vld [vmem:[#allocation8 + $0x60] sm:$0xff]
    %v1281 = vld [vmem:[#allocation8 + $0x68] sm:$0xff]
    %v1282 = vld [vmem:[#allocation8 + $0x70] sm:$0xff]
    %v1283 = vld [vmem:[#allocation8 + $0x78] sm:$0xff]
    %v1284 = vld [vmem:[#allocation8 + $0x80] sm:$0xff]
    %v1285 = vld [vmem:[#allocation8 + $0x88] sm:$0xff]
    %v1286 = vld [vmem:[#allocation8 + $0x90] sm:$0xff]
    %v1287 = vld [vmem:[#allocation8 + $0x98] sm:$0xff]
    %v1288 = vld [vmem:[#allocation8 + $0xa0] sm:$0xff]
    %v1289 = vld [vmem:[#allocation8 + $0xa8] sm:$0xff]
    %v1290 = vld [vmem:[#allocation8 + $0xb0] sm:$0xff]
    %v1291 = vld [vmem:[#allocation8 + $0xb8] sm:$0xff]
    %v1292 = vld [vmem:[#allocation8 + $0xc0] sm:$0xff]
    %v1293 = vld [vmem:[#allocation8 + $0xc8] sm:$0xff]
    %v1294 = vld [vmem:[#allocation8 + $0xd0] sm:$0xff]
    %v1295 = vld [vmem:[#allocation8 + $0xd8] sm:$0xff]
    %v1296 = vld [vmem:[#allocation8 + $0xe0] sm:$0xff]
    %v1297 = vld [vmem:[#allocation8 + $0xe8] sm:$0xff]
    %v1298 = vld [vmem:[#allocation8 + $0xf0] sm:$0xff]
    %v1299 = vld [vmem:[#allocation8 + $0xf8] sm:$0xff]
    %v1300 = vld [vmem:[#allocation8 + $0x100] sm:$0xff]
    %v1301 = vld [vmem:[#allocation8 + $0x108] sm:$0xff]
    %v1302 = vld [vmem:[#allocation8 + $0x110] sm:$0xff]
    %v1303 = vld [vmem:[#allocation8 + $0x118] sm:$0xff]
    %v1304 = vld [vmem:[#allocation8 + $0x120] sm:$0xff]
    %v1305 = vld [vmem:[#allocation8 + $0x128] sm:$0xff]
    %v1306 = vld [vmem:[#allocation8 + $0x130] sm:$0xff]
    %v1307 = vld [vmem:[#allocation8 + $0x138] sm:$0xff]
    %v1308 = vld [vmem:[#allocation8 + $0x140] sm:$0xff]
    %v1309 = vld [vmem:[#allocation8 + $0x148] sm:$0xff]
    %v1310 = vld [vmem:[#allocation8 + $0x150] sm:$0xff]
    %v1311 = vld [vmem:[#allocation8 + $0x158] sm:$0xff]
    %v1312 = vld [vmem:[#allocation8 + $0x160] sm:$0xff]
    %v1313 = vld [vmem:[#allocation8 + $0x168] sm:$0xff]
    %v1314 = vld [vmem:[#allocation8 + $0x170] sm:$0xff]
    %v1315 = vld [vmem:[#allocation8 + $0x178] sm:$0xff]
    %v1316 = vld [vmem:[#allocation8 + $0x180] sm:$0xff]
    %v1317 = vld [vmem:[#allocation8 + $0x188] sm:$0xff]
    %v1318 = vld [vmem:[#allocation8 + $0x190] sm:$0xff]
    %v1319 = vld [vmem:[#allocation8 + $0x198] sm:$0xff]
    %v1320 = vld [vmem:[#allocation8 + $0x1a0] sm:$0xff]
    %v1321 = vld [vmem:[#allocation8 + $0x1a8] sm:$0xff]
    %v1322 = vld [vmem:[#allocation8 + $0x1b0] sm:$0xff]
    %v1323 = vld [vmem:[#allocation8 + $0x1b8] sm:$0xff]
    %v1324 = vld [vmem:[#allocation8 + $0x1c0] sm:$0xff]
    %v1325 = vld [vmem:[#allocation8 + $0x1c8] sm:$0xff]
    %v1326 = vld [vmem:[#allocation8 + $0x1d0] sm:$0xff]
    %v1327 = vld [vmem:[#allocation8 + $0x1d8] sm:$0xff]
    %v1328 = vld [vmem:[#allocation8 + $0x1e0] sm:$0xff]
    %v1329 = vld [vmem:[#allocation8 + $0x1e8] sm:$0xff]
    %v1330 = vld [vmem:[#allocation8 + $0x1f0] sm:$0xff]
    %v1331 = vld [vmem:[#allocation8 + $0x1f8] sm:$0xff]
    %v1332 = vld [vmem:[#allocation8 + $0x200] sm:$0xff]
    %v1333 = vld [vmem:[#allocation8 + $0x208] sm:$0xff]
    %v1334 = vld [vmem:[#allocation8 + $0x210] sm:$0xff]
    %v1335 = vld [vmem:[#allocation8 + $0x218] sm:$0xff]
    %v1336 = vld [vmem:[#allocation8 + $0x220] sm:$0xff]
    %v1337 = vld [vmem:[#allocation8 + $0x228] sm:$0xff]
    %v1338 = vld [vmem:[#allocation8 + $0x230] sm:$0xff]
    %v1339 = vld [vmem:[#allocation8 + $0x238] sm:$0xff]
    %v1340 = vld [vmem:[#allocation8 + $0x240] sm:$0xff]
    %v1341 = vld [vmem:[#allocation8 + $0x248] sm:$0xff]
    %v1342 = vld [vmem:[#allocation8 + $0x250] sm:$0xff]
    %v1343 = vld [vmem:[#allocation8 + $0x258] sm:$0xff]
    %v1344 = vld [vmem:[#allocation8 + $0x260] sm:$0xff]
    %v1345 = vld [vmem:[#allocation8 + $0x268] sm:$0xff]
    %v1346 = vld [vmem:[#allocation8 + $0x270] sm:$0xff]
    %v1347 = vld [vmem:[#allocation8 + $0x278] sm:$0xff]
    %v1348 = vld [vmem:[#allocation8 + $0x280] sm:$0xff]
    %v1349 = vld [vmem:[#allocation8 + $0x288] sm:$0xff]
    %v1350 = vld [vmem:[#allocation8 + $0x290] sm:$0xff]
    %v1351 = vld [vmem:[#allocation8 + $0x298] sm:$0xff]
    %v1352 = vld [vmem:[#allocation8 + $0x2a0] sm:$0xff]
    %v1353 = vld [vmem:[#allocation8 + $0x2a8] sm:$0xff]
    %v1354 = vld [vmem:[#allocation8 + $0x2b0] sm:$0xff]
    %v1355 = vld [vmem:[#allocation8 + $0x2b8] sm:$0xff]
    %v1356 = vld [vmem:[#allocation8 + $0x2c0] sm:$0xff]
    %v1357 = vld [vmem:[#allocation8 + $0x2c8] sm:$0xff]
    %v1358 = vld [vmem:[#allocation8 + $0x2d0] sm:$0xff]
    %v1359 = vld [vmem:[#allocation8 + $0x2d8] sm:$0xff]
    %v1360 = vld [vmem:[#allocation8 + $0x2e0] sm:$0xff]
    %v1361 = vld [vmem:[#allocation8 + $0x2e8] sm:$0xff]
    %v1362 = vld [vmem:[#allocation8 + $0x2f0] sm:$0xff]
    %v1363 = vld [vmem:[#allocation8 + $0x2f8] sm:$0xff]
    %v1364 = vld [vmem:[#allocation8 + $0x300] sm:$0xff]
    %v1365 = vld [vmem:[#allocation8 + $0x308] sm:$0xff]
    %v1366 = vld [vmem:[#allocation8 + $0x310] sm:$0xff]
    %v1367 = vld [vmem:[#allocation8 + $0x318] sm:$0xff]
    %v1368 = vld [vmem:[#allocation8 + $0x320] sm:$0xff]
    %v1369 = vld [vmem:[#allocation8 + $0x328] sm:$0xff]
    %v1370 = vld [vmem:[#allocation8 + $0x330] sm:$0xff]
    %v1371 = vld [vmem:[#allocation8 + $0x338] sm:$0xff]
    %v1372 = vld [vmem:[#allocation8 + $0x340] sm:$0xff]
    %v1373 = vld [vmem:[#allocation8 + $0x348] sm:$0xff]
    %v1374 = vld [vmem:[#allocation8 + $0x350] sm:$0xff]
    %v1375 = vld [vmem:[#allocation8 + $0x358] sm:$0xff]
    %v1376 = vld [vmem:[#allocation8 + $0x360] sm:$0xff]
    %v1377 = vld [vmem:[#allocation8 + $0x368] sm:$0xff]
    %v1378 = vld [vmem:[#allocation8 + $0x370] sm:$0xff]
    %v1379 = vld [vmem:[#allocation8 + $0x378] sm:$0xff]
    %v1380 = vld [vmem:[#allocation8 + $0x380] sm:$0xff]
    %v1381 = vld [vmem:[#allocation8 + $0x388] sm:$0xff]
    %v1382 = vld [vmem:[#allocation8 + $0x390] sm:$0xff]
    %v1383 = vld [vmem:[#allocation8 + $0x398] sm:$0xff]
    %v1384 = vld [vmem:[#allocation8 + $0x3a0] sm:$0xff]
    %v1385 = vld [vmem:[#allocation8 + $0x3a8] sm:$0xff]
    %v1386 = vld [vmem:[#allocation8 + $0x3b0] sm:$0xff]
    %v1387 = vld [vmem:[#allocation8 + $0x3b8] sm:$0xff]
    %v1388 = vld [vmem:[#allocation8 + $0x3c0] sm:$0xff]
    %v1389 = vld [vmem:[#allocation8 + $0x3c8] sm:$0xff]
    %v1390 = vld [vmem:[#allocation8 + $0x3d0] sm:$0xff]
    %v1391 = vld [vmem:[#allocation8 + $0x3d8] sm:$0xff]
    %v1392 = vld [vmem:[#allocation8 + $0x3e0] sm:$0xff]
    %v1393 = vld [vmem:[#allocation8 + $0x3e8] sm:$0xff]
    %v1394 = vld [vmem:[#allocation8 + $0x3f0] sm:$0xff]
    %v1395 = vld [vmem:[#allocation8 + $0x3f8] sm:$0xff]
    %v1396 = vld [vmem:[#allocation8 + $0x400] sm:$0xff]
    %v1397 = vld [vmem:[#allocation8 + $0x408] sm:$0xff]
    %v1398 = vld [vmem:[#allocation8 + $0x410] sm:$0xff]
    %v1399 = vld [vmem:[#allocation8 + $0x418] sm:$0xff]
    %v1400 = vld [vmem:[#allocation8 + $0x420] sm:$0xff]
    %v1401 = vld [vmem:[#allocation8 + $0x428] sm:$0xff]
    %v1402 = vld [vmem:[#allocation8 + $0x430] sm:$0xff]
    %v1403 = vld [vmem:[#allocation8 + $0x438] sm:$0xff]
    %v1404 = vld [vmem:[#allocation8 + $0x440] sm:$0xff]
    %v1405 = vld [vmem:[#allocation8 + $0x448] sm:$0xff]
    %v1406 = vld [vmem:[#allocation8 + $0x450] sm:$0xff]
    %v1407 = vld [vmem:[#allocation8 + $0x458] sm:$0xff]
    %v1408 = vld [vmem:[#allocation8 + $0x460] sm:$0xff]
    %v1409 = vld [vmem:[#allocation8 + $0x468] sm:$0xff]
    %v1410 = vld [vmem:[#allocation8 + $0x470] sm:$0xff]
    %v1411 = vld [vmem:[#allocation8 + $0x478] sm:$0xff]
    %v1412 = vld [vmem:[#allocation8 + $0x480] sm:$0xff]
    %v1413 = vld [vmem:[#allocation8 + $0x488] sm:$0xff]
    %v1414 = vld [vmem:[#allocation8 + $0x490] sm:$0xff]
    %v1415 = vld [vmem:[#allocation8 + $0x498] sm:$0xff]
    %v1416 = vld [vmem:[#allocation8 + $0x4a0] sm:$0xff]
    %v1417 = vld [vmem:[#allocation8 + $0x4a8] sm:$0xff]
    %v1418 = vld [vmem:[#allocation8 + $0x4b0] sm:$0xff]
    %v1419 = vld [vmem:[#allocation8 + $0x4b8] sm:$0xff]
    %v1420 = vld [vmem:[#allocation8 + $0x4c0] sm:$0xff]
    %v1421 = vld [vmem:[#allocation8 + $0x4c8] sm:$0xff]
    %v1422 = vld [vmem:[#allocation8 + $0x4d0] sm:$0xff]
    %v1423 = vld [vmem:[#allocation8 + $0x4d8] sm:$0xff]
    %v1424 = vld [vmem:[#allocation8 + $0x4e0] sm:$0xff]
    %v1425 = vld [vmem:[#allocation8 + $0x4e8] sm:$0xff]
    %v1426 = vld [vmem:[#allocation8 + $0x4f0] sm:$0xff]
    %v1427 = vld [vmem:[#allocation8 + $0x4f8] sm:$0xff]
    %v1428 = vld [vmem:[#allocation8 + $0x500] sm:$0xff]
    %v1429 = vld [vmem:[#allocation8 + $0x508] sm:$0xff]
    %v1430 = vld [vmem:[#allocation8 + $0x510] sm:$0xff]
    %v1431 = vld [vmem:[#allocation8 + $0x518] sm:$0xff]
    %v1432 = vld [vmem:[#allocation8 + $0x520] sm:$0xff]
    %v1433 = vld [vmem:[#allocation8 + $0x528] sm:$0xff]
    %v1434 = vld [vmem:[#allocation8 + $0x530] sm:$0xff]
    %v1435 = vld [vmem:[#allocation8 + $0x538] sm:$0xff]
    %v1436 = vld [vmem:[#allocation8 + $0x540] sm:$0xff]
    %v1437 = vld [vmem:[#allocation8 + $0x548] sm:$0xff]
    %v1438 = vld [vmem:[#allocation8 + $0x550] sm:$0xff]
    %v1439 = vld [vmem:[#allocation8 + $0x558] sm:$0xff]
    %v1440 = vld [vmem:[#allocation8 + $0x560] sm:$0xff]
    %v1441 = vld [vmem:[#allocation8 + $0x568] sm:$0xff]
    %v1442 = vld [vmem:[#allocation8 + $0x570] sm:$0xff]
    %v1443 = vld [vmem:[#allocation8 + $0x578] sm:$0xff]
    %v1444 = vld [vmem:[#allocation8 + $0x580] sm:$0xff]
    %v1445 = vld [vmem:[#allocation8 + $0x588] sm:$0xff]
    %v1446 = vld [vmem:[#allocation8 + $0x590] sm:$0xff]
    %v1447 = vld [vmem:[#allocation8 + $0x598] sm:$0xff]
    %v1448 = vld [vmem:[#allocation8 + $0x5a0] sm:$0xff]
    %v1449 = vld [vmem:[#allocation8 + $0x5a8] sm:$0xff]
    %v1450 = vld [vmem:[#allocation8 + $0x5b0] sm:$0xff]
    %v1451 = vld [vmem:[#allocation8 + $0x5b8] sm:$0xff]
    %v1452 = vld [vmem:[#allocation8 + $0x5c0] sm:$0xff]
    %v1453 = vld [vmem:[#allocation8 + $0x5c8] sm:$0xff]
    %v1454 = vld [vmem:[#allocation8 + $0x5d0] sm:$0xff]
    %v1455 = vld [vmem:[#allocation8 + $0x5d8] sm:$0xff]
    %v1456 = vld [vmem:[#allocation8 + $0x5e0] sm:$0xff]
    %v1457 = vld [vmem:[#allocation8 + $0x5e8] sm:$0xff]
    %v1458 = vld [vmem:[#allocation8 + $0x5f0] sm:$0xff]
    %v1459 = vld [vmem:[#allocation8 + $0x5f8] sm:$0xff]
    %v1460 = vld [vmem:[#allocation8 + $0x600] sm:$0xff]
    %v1461 = vld [vmem:[#allocation8 + $0x608] sm:$0xff]
    %v1462 = vld [vmem:[#allocation8 + $0x610] sm:$0xff]
    %v1463 = vld [vmem:[#allocation8 + $0x618] sm:$0xff]
    %v1464 = vld [vmem:[#allocation8 + $0x620] sm:$0xff]
    %v1465 = vld [vmem:[#allocation8 + $0x628] sm:$0xff]
    %v1466 = vld [vmem:[#allocation8 + $0x630] sm:$0xff]
    %v1467 = vld [vmem:[#allocation8 + $0x638] sm:$0xff]
    %v1468 = vld [vmem:[#allocation8 + $0x640] sm:$0xff]
    %v1469 = vld [vmem:[#allocation8 + $0x648] sm:$0xff]
    %v1470 = vld [vmem:[#allocation8 + $0x650] sm:$0xff]
    %v1471 = vld [vmem:[#allocation8 + $0x658] sm:$0xff]
    %v1472 = vld [vmem:[#allocation8 + $0x660] sm:$0xff]
    %v1473 = vld [vmem:[#allocation8 + $0x668] sm:$0xff]
    %v1474 = vld [vmem:[#allocation8 + $0x670] sm:$0xff]
    %v1475 = vld [vmem:[#allocation8 + $0x678] sm:$0xff]
    %v1476 = vld [vmem:[#allocation8 + $0x680] sm:$0xff]
    %v1477 = vld [vmem:[#allocation8 + $0x688] sm:$0xff]
    %v1478 = vld [vmem:[#allocation8 + $0x690] sm:$0xff]
    %v1479 = vld [vmem:[#allocation8 + $0x698] sm:$0xff]
    %v1480 = vld [vmem:[#allocation8 + $0x6a0] sm:$0xff]
    %v1481 = vld [vmem:[#allocation8 + $0x6a8] sm:$0xff]
    %v1482 = vld [vmem:[#allocation8 + $0x6b0] sm:$0xff]
    %v1483 = vld [vmem:[#allocation8 + $0x6b8] sm:$0xff]
    %v1484 = vld [vmem:[#allocation8 + $0x6c0] sm:$0xff]
    %v1485 = vld [vmem:[#allocation8 + $0x6c8] sm:$0xff]
    %v1486 = vld [vmem:[#allocation8 + $0x6d0] sm:$0xff]
    %v1487 = vld [vmem:[#allocation8 + $0x6d8] sm:$0xff]
    %v1488 = vld [vmem:[#allocation8 + $0x6e0] sm:$0xff]
    %v1489 = vld [vmem:[#allocation8 + $0x6e8] sm:$0xff]
    %v1490 = vld [vmem:[#allocation8 + $0x6f0] sm:$0xff]
    %v1491 = vld [vmem:[#allocation8 + $0x6f8] sm:$0xff]
    %v1492 = vld [vmem:[#allocation8 + $0x700] sm:$0xff]
    %v1493 = vld [vmem:[#allocation8 + $0x708] sm:$0xff]
    %v1494 = vld [vmem:[#allocation8 + $0x710] sm:$0xff]
    %v1495 = vld [vmem:[#allocation8 + $0x718] sm:$0xff]
    %v1496 = vld [vmem:[#allocation8 + $0x720] sm:$0xff]
    %v1497 = vld [vmem:[#allocation8 + $0x728] sm:$0xff]
    %v1498 = vld [vmem:[#allocation8 + $0x730] sm:$0xff]
    %v1499 = vld [vmem:[#allocation8 + $0x738] sm:$0xff]
    %v1500 = vld [vmem:[#allocation8 + $0x740] sm:$0xff]
    %v1501 = vld [vmem:[#allocation8 + $0x748] sm:$0xff]
    %v1502 = vld [vmem:[#allocation8 + $0x750] sm:$0xff]
    %v1503 = vld [vmem:[#allocation8 + $0x758] sm:$0xff]
    %v1504 = vld [vmem:[#allocation8 + $0x760] sm:$0xff]
    %v1505 = vld [vmem:[#allocation8 + $0x768] sm:$0xff]
    %v1506 = vld [vmem:[#allocation8 + $0x770] sm:$0xff]
    %v1507 = vld [vmem:[#allocation8 + $0x778] sm:$0xff]
    %v1508 = vld [vmem:[#allocation8 + $0x780] sm:$0xff]
    %v1509 = vld [vmem:[#allocation8 + $0x788] sm:$0xff]
    %v1510 = vld [vmem:[#allocation8 + $0x790] sm:$0xff]
    %v1511 = vld [vmem:[#allocation8 + $0x798] sm:$0xff]
    %v1512 = vld [vmem:[#allocation8 + $0x7a0] sm:$0xff]
    %v1513 = vld [vmem:[#allocation8 + $0x7a8] sm:$0xff]
    %v1514 = vld [vmem:[#allocation8 + $0x7b0] sm:$0xff]
    %v1515 = vld [vmem:[#allocation8 + $0x7b8] sm:$0xff]
    %v1516 = vld [vmem:[#allocation8 + $0x7c0] sm:$0xff]
    %v1517 = vld [vmem:[#allocation8 + $0x7c8] sm:$0xff]
    %v1518 = vld [vmem:[#allocation8 + $0x7d0] sm:$0xff]
    %v1519 = vld [vmem:[#allocation8 + $0x7d8] sm:$0xff]
    %v1520 = vld [vmem:[#allocation8 + $0x7e0] sm:$0xff]
    %v1521 = vld [vmem:[#allocation8 + $0x7e8] sm:$0xff]
    %v1522 = vld [vmem:[#allocation8 + $0x7f0] sm:$0xff]
    %v1523 = vld [vmem:[#allocation8 + $0x7f8] sm:$0xff]
    %v1524 = vld [vmem:[#allocation8 + $0x800] sm:$0xff]
    %v1525 = vld [vmem:[#allocation8 + $0x808] sm:$0xff]
    %v1526 = vld [vmem:[#allocation8 + $0x810] sm:$0xff]
    %v1527 = vld [vmem:[#allocation8 + $0x818] sm:$0xff]
    %v1528 = vld [vmem:[#allocation8 + $0x820] sm:$0xff]
    %v1529 = vld [vmem:[#allocation8 + $0x828] sm:$0xff]
    %v1530 = vld [vmem:[#allocation8 + $0x830] sm:$0xff]
    %v1531 = vld [vmem:[#allocation8 + $0x838] sm:$0xff]
    %v1532 = vld [vmem:[#allocation8 + $0x840] sm:$0xff]
    %v1533 = vld [vmem:[#allocation8 + $0x848] sm:$0xff]
    %v1534 = vld [vmem:[#allocation8 + $0x850] sm:$0xff]
    %v1535 = vld [vmem:[#allocation8 + $0x858] sm:$0xff]
    %v1536 = vld [vmem:[#allocation8 + $0x860] sm:$0xff]
    %v1537 = vld [vmem:[#allocation8 + $0x868] sm:$0xff]
    %v1538 = vld [vmem:[#allocation8 + $0x870] sm:$0xff]
    %v1539 = vld [vmem:[#allocation8 + $0x878] sm:$0xff]
    %v1540 = vld [vmem:[#allocation8 + $0x880] sm:$0xff]
    %v1541 = vld [vmem:[#allocation8 + $0x888] sm:$0xff]
    %v1542 = vld [vmem:[#allocation8 + $0x890] sm:$0xff]
    %v1543 = vld [vmem:[#allocation8 + $0x898] sm:$0xff]
    %v1544 = vld [vmem:[#allocation8 + $0x8a0] sm:$0xff]
    %v1545 = vld [vmem:[#allocation8 + $0x8a8] sm:$0xff]
    %v1546 = vld [vmem:[#allocation8 + $0x8b0] sm:$0xff]
    %v1547 = vld [vmem:[#allocation8 + $0x8b8] sm:$0xff]
    %v1548 = vld [vmem:[#allocation8 + $0x8c0] sm:$0xff]
    %v1549 = vld [vmem:[#allocation8 + $0x8c8] sm:$0xff]
    %v1550 = vld [vmem:[#allocation8 + $0x8d0] sm:$0xff]
    %v1551 = vld [vmem:[#allocation8 + $0x8d8] sm:$0xff]
    %v1552 = vld [vmem:[#allocation8 + $0x8e0] sm:$0xff]
    %v1553 = vld [vmem:[#allocation8 + $0x8e8] sm:$0xff]
    %v1554 = vld [vmem:[#allocation8 + $0x8f0] sm:$0xff]
    %v1555 = vld [vmem:[#allocation8 + $0x8f8] sm:$0xff]
    %v1556 = vld [vmem:[#allocation8 + $0x900] sm:$0xff]
    %v1557 = vld [vmem:[#allocation8 + $0x908] sm:$0xff]
    %v1558 = vld [vmem:[#allocation8 + $0x910] sm:$0xff]
    %v1559 = vld [vmem:[#allocation8 + $0x918] sm:$0xff]
    %v1560 = vld [vmem:[#allocation8 + $0x920] sm:$0xff]
    %v1561 = vld [vmem:[#allocation8 + $0x928] sm:$0xff]
    %v1562 = vld [vmem:[#allocation8 + $0x930] sm:$0xff]
    %v1563 = vld [vmem:[#allocation8 + $0x938] sm:$0xff]
    %v1564 = vld [vmem:[#allocation8 + $0x940] sm:$0xff]
    %v1565 = vld [vmem:[#allocation8 + $0x948] sm:$0xff]
    %v1566 = vld [vmem:[#allocation8 + $0x950] sm:$0xff]
    %v1567 = vld [vmem:[#allocation8 + $0x958] sm:$0xff]
    %v1568 = vld [vmem:[#allocation8 + $0x960] sm:$0xff]
    %v1569 = vld [vmem:[#allocation8 + $0x968] sm:$0xff]
    %v1570 = vld [vmem:[#allocation8 + $0x970] sm:$0xff]
    %v1571 = vld [vmem:[#allocation8 + $0x978] sm:$0xff]
    %v1572 = vld [vmem:[#allocation8 + $0x980] sm:$0xff]
    %v1573 = vld [vmem:[#allocation8 + $0x988] sm:$0xff]
    %v1574 = vld [vmem:[#allocation8 + $0x990] sm:$0xff]
    %v1575 = vld [vmem:[#allocation8 + $0x998] sm:$0xff]
    %v1576 = vld [vmem:[#allocation8 + $0x9a0] sm:$0xff]
    %v1577 = vld [vmem:[#allocation8 + $0x9a8] sm:$0xff]
    %v1578 = vld [vmem:[#allocation8 + $0x9b0] sm:$0xff]
    %v1579 = vld [vmem:[#allocation8 + $0x9b8] sm:$0xff]
    %v1580 = vld [vmem:[#allocation8 + $0x9c0] sm:$0xff]
    %v1581 = vld [vmem:[#allocation8 + $0x9c8] sm:$0xff]
    %v1582 = vld [vmem:[#allocation8 + $0x9d0] sm:$0xff]
    %v1583 = vld [vmem:[#allocation8 + $0x9d8] sm:$0xff]
    %v1584 = vld [vmem:[#allocation8 + $0x9e0] sm:$0xff]
    %v1585 = vld [vmem:[#allocation8 + $0x9e8] sm:$0xff]
    %v1586 = vld [vmem:[#allocation8 + $0x9f0] sm:$0xff]
    %v1587 = vld [vmem:[#allocation8 + $0x9f8] sm:$0xff]
    %v1588 = vld [vmem:[#allocation8 + $0xa00] sm:$0xff]
    %v1589 = vld [vmem:[#allocation8 + $0xa08] sm:$0xff]
    %v1590 = vld [vmem:[#allocation8 + $0xa10] sm:$0xff]
    %v1591 = vld [vmem:[#allocation8 + $0xa18] sm:$0xff]
    %v1592 = vld [vmem:[#allocation8 + $0xa20] sm:$0xff]
    %v1593 = vld [vmem:[#allocation8 + $0xa28] sm:$0xff]
    %v1594 = vld [vmem:[#allocation8 + $0xa30] sm:$0xff]
    %v1595 = vld [vmem:[#allocation8 + $0xa38] sm:$0xff]
    %v1596 = vld [vmem:[#allocation8 + $0xa40] sm:$0xff]
    %v1597 = vld [vmem:[#allocation8 + $0xa48] sm:$0xff]
    %v1598 = vld [vmem:[#allocation8 + $0xa50] sm:$0xff]
    %v1599 = vld [vmem:[#allocation8 + $0xa58] sm:$0xff]
    %v1600 = vld [vmem:[#allocation8 + $0xa60] sm:$0xff]
    %v1601 = vld [vmem:[#allocation8 + $0xa68] sm:$0xff]
    %v1602 = vld [vmem:[#allocation8 + $0xa70] sm:$0xff]
    %v1603 = vld [vmem:[#allocation8 + $0xa78] sm:$0xff]
    %v1604 = vld [vmem:[#allocation8 + $0xa80] sm:$0xff]
    %v1605 = vld [vmem:[#allocation8 + $0xa88] sm:$0xff]
    %v1606 = vld [vmem:[#allocation8 + $0xa90] sm:$0xff]
    %v1607 = vld [vmem:[#allocation8 + $0xa98] sm:$0xff]
    %v1608 = vld [vmem:[#allocation8 + $0xaa0] sm:$0xff]
    %v1609 = vld [vmem:[#allocation8 + $0xaa8] sm:$0xff]
    %v1610 = vld [vmem:[#allocation8 + $0xab0] sm:$0xff]
    %v1611 = vld [vmem:[#allocation8 + $0xab8] sm:$0xff]
    %v1612 = vld [vmem:[#allocation8 + $0xac0] sm:$0xff]
    %v1613 = vld [vmem:[#allocation8 + $0xac8] sm:$0xff]
    %v1614 = vld [vmem:[#allocation8 + $0xad0] sm:$0xff]
    %v1615 = vld [vmem:[#allocation8 + $0xad8] sm:$0xff]
    %v1616 = vld [vmem:[#allocation8 + $0xae0] sm:$0xff]
    %v1617 = vld [vmem:[#allocation8 + $0xae8] sm:$0xff]
    %v1618 = vld [vmem:[#allocation8 + $0xaf0] sm:$0xff]
    %v1619 = vld [vmem:[#allocation8 + $0xaf8] sm:$0xff]
    %v1620 = vld [vmem:[#allocation8 + $0xb00] sm:$0xff]
    %v1621 = vld [vmem:[#allocation8 + $0xb08] sm:$0xff]
    %v1622 = vld [vmem:[#allocation8 + $0xb10] sm:$0xff]
    %v1623 = vld [vmem:[#allocation8 + $0xb18] sm:$0xff]
    %v1624 = vld [vmem:[#allocation8 + $0xb20] sm:$0xff]
    %v1625 = vld [vmem:[#allocation8 + $0xb28] sm:$0xff]
    %v1626 = vld [vmem:[#allocation8 + $0xb30] sm:$0xff]
    %v1627 = vld [vmem:[#allocation8 + $0xb38] sm:$0xff]
    %v1628 = vld [vmem:[#allocation8 + $0xb40] sm:$0xff]
    %v1629 = vld [vmem:[#allocation8 + $0xb48] sm:$0xff]
    %v1630 = vld [vmem:[#allocation8 + $0xb50] sm:$0xff]
    %v1631 = vld [vmem:[#allocation8 + $0xb58] sm:$0xff]
    %v1632 = vld [vmem:[#allocation8 + $0xb60] sm:$0xff]
    %v1633 = vld [vmem:[#allocation8 + $0xb68] sm:$0xff]
    %v1634 = vld [vmem:[#allocation8 + $0xb70] sm:$0xff]
    %v1635 = vld [vmem:[#allocation8 + $0xb78] sm:$0xff]
    %v1636 = vld [vmem:[#allocation8 + $0xb80] sm:$0xff]
    %v1637 = vld [vmem:[#allocation8 + $0xb88] sm:$0xff]
    %v1638 = vld [vmem:[#allocation8 + $0xb90] sm:$0xff]
    %v1639 = vld [vmem:[#allocation8 + $0xb98] sm:$0xff]
    %v1640 = vld [vmem:[#allocation8 + $0xba0] sm:$0xff]
    %v1641 = vld [vmem:[#allocation8 + $0xba8] sm:$0xff]
    %v1642 = vld [vmem:[#allocation8 + $0xbb0] sm:$0xff]
    %v1643 = vld [vmem:[#allocation8 + $0xbb8] sm:$0xff]
    %v1644 = vld [vmem:[#allocation8 + $0xbc0] sm:$0xff]
    %v1645 = vld [vmem:[#allocation8 + $0xbc8] sm:$0xff]
    %v1646 = vld [vmem:[#allocation8 + $0xbd0] sm:$0xff]
    %v1647 = vld [vmem:[#allocation8 + $0xbd8] sm:$0xff]
    %v1648 = vld [vmem:[#allocation8 + $0xbe0] sm:$0xff]
    %v1649 = vld [vmem:[#allocation8 + $0xbe8] sm:$0xff]
    %v1650 = vld [vmem:[#allocation8 + $0xbf0] sm:$0xff]
    %v1651 = vld [vmem:[#allocation8 + $0xbf8] sm:$0xff]
    %v2036 = vunpack.c.l.b16 %v1268
    %v2037 = vunpack.c.h.b16 %v1268
    %v2038 = vunpack.c.l.b16 %v1269
    %v2039 = vunpack.c.h.b16 %v1269
    %v2040 = vunpack.c.l.b16 %v1270
    %v2041 = vunpack.c.h.b16 %v1270
    %v2042 = vunpack.c.l.b16 %v1271
    %v2043 = vunpack.c.h.b16 %v1271
    %v2044 = vunpack.c.l.b16 %v1272
    %v2045 = vunpack.c.h.b16 %v1272
    %v2046 = vunpack.c.l.b16 %v1273
    %v2047 = vunpack.c.h.b16 %v1273
    %v2048 = vunpack.c.l.b16 %v1274
    %v2049 = vunpack.c.h.b16 %v1274
    %v2050 = vunpack.c.l.b16 %v1275
    %v2051 = vunpack.c.h.b16 %v1275
    %v2052 = vunpack.c.l.b16 %v1276
    %v2053 = vunpack.c.h.b16 %v1276
    %v2054 = vunpack.c.l.b16 %v1277
    %v2055 = vunpack.c.h.b16 %v1277
    %v2056 = vunpack.c.l.b16 %v1278
    %v2057 = vunpack.c.h.b16 %v1278
    %v2058 = vunpack.c.l.b16 %v1279
    %v2059 = vunpack.c.h.b16 %v1279
    %v2060 = vunpack.c.l.b16 %v1280
    %v2061 = vunpack.c.h.b16 %v1280
    %v2062 = vunpack.c.l.b16 %v1281
    %v2063 = vunpack.c.h.b16 %v1281
    %v2064 = vunpack.c.l.b16 %v1282
    %v2065 = vunpack.c.h.b16 %v1282
    %v2066 = vunpack.c.l.b16 %v1283
    %v2067 = vunpack.c.h.b16 %v1283
    %v2068 = vunpack.c.l.b16 %v1284
    %v2069 = vunpack.c.h.b16 %v1284
    %v2070 = vunpack.c.l.b16 %v1285
    %v2071 = vunpack.c.h.b16 %v1285
    %v2072 = vunpack.c.l.b16 %v1286
    %v2073 = vunpack.c.h.b16 %v1286
    %v2074 = vunpack.c.l.b16 %v1287
    %v2075 = vunpack.c.h.b16 %v1287
    %v2076 = vunpack.c.l.b16 %v1288
    %v2077 = vunpack.c.h.b16 %v1288
    %v2078 = vunpack.c.l.b16 %v1289
    %v2079 = vunpack.c.h.b16 %v1289
    %v2080 = vunpack.c.l.b16 %v1290
    %v2081 = vunpack.c.h.b16 %v1290
    %v2082 = vunpack.c.l.b16 %v1291
    %v2083 = vunpack.c.h.b16 %v1291
    %v2084 = vunpack.c.l.b16 %v1292
    %v2085 = vunpack.c.h.b16 %v1292
    %v2086 = vunpack.c.l.b16 %v1293
    %v2087 = vunpack.c.h.b16 %v1293
    %v2088 = vunpack.c.l.b16 %v1294
    %v2089 = vunpack.c.h.b16 %v1294
    %v2090 = vunpack.c.l.b16 %v1295
    %v2091 = vunpack.c.h.b16 %v1295
    %v2092 = vunpack.c.l.b16 %v1296
    %v2093 = vunpack.c.h.b16 %v1296
    %v2094 = vunpack.c.l.b16 %v1297
    %v2095 = vunpack.c.h.b16 %v1297
    %v2096 = vunpack.c.l.b16 %v1298
    %v2097 = vunpack.c.h.b16 %v1298
    %v2098 = vunpack.c.l.b16 %v1299
    %v2099 = vunpack.c.h.b16 %v1299
    %v2100 = vunpack.c.l.b16 %v1300
    %v2101 = vunpack.c.h.b16 %v1300
    %v2102 = vunpack.c.l.b16 %v1301
    %v2103 = vunpack.c.h.b16 %v1301
    %v2104 = vunpack.c.l.b16 %v1302
    %v2105 = vunpack.c.h.b16 %v1302
    %v2106 = vunpack.c.l.b16 %v1303
    %v2107 = vunpack.c.h.b16 %v1303
    %v2108 = vunpack.c.l.b16 %v1304
    %v2109 = vunpack.c.h.b16 %v1304
    %v2110 = vunpack.c.l.b16 %v1305
    %v2111 = vunpack.c.h.b16 %v1305
    %v2112 = vunpack.c.l.b16 %v1306
    %v2113 = vunpack.c.h.b16 %v1306
    %v2114 = vunpack.c.l.b16 %v1307
    %v2115 = vunpack.c.h.b16 %v1307
    %v2116 = vunpack.c.l.b16 %v1308
    %v2117 = vunpack.c.h.b16 %v1308
    %v2118 = vunpack.c.l.b16 %v1309
    %v2119 = vunpack.c.h.b16 %v1309
    %v2120 = vunpack.c.l.b16 %v1310
    %v2121 = vunpack.c.h.b16 %v1310
    %v2122 = vunpack.c.l.b16 %v1311
    %v2123 = vunpack.c.h.b16 %v1311
    %v2124 = vunpack.c.l.b16 %v1312
    %v2125 = vunpack.c.h.b16 %v1312
    %v2126 = vunpack.c.l.b16 %v1313
    %v2127 = vunpack.c.h.b16 %v1313
    %v2128 = vunpack.c.l.b16 %v1314
    %v2129 = vunpack.c.h.b16 %v1314
    %v2130 = vunpack.c.l.b16 %v1315
    %v2131 = vunpack.c.h.b16 %v1315
    %v2132 = vunpack.c.l.b16 %v1316
    %v2133 = vunpack.c.h.b16 %v1316
    %v2134 = vunpack.c.l.b16 %v1317
    %v2135 = vunpack.c.h.b16 %v1317
    %v2136 = vunpack.c.l.b16 %v1318
    %v2137 = vunpack.c.h.b16 %v1318
    %v2138 = vunpack.c.l.b16 %v1319
    %v2139 = vunpack.c.h.b16 %v1319
    %v2140 = vunpack.c.l.b16 %v1320
    %v2141 = vunpack.c.h.b16 %v1320
    %v2142 = vunpack.c.l.b16 %v1321
    %v2143 = vunpack.c.h.b16 %v1321
    %v2144 = vunpack.c.l.b16 %v1322
    %v2145 = vunpack.c.h.b16 %v1322
    %v2146 = vunpack.c.l.b16 %v1323
    %v2147 = vunpack.c.h.b16 %v1323
    %v2148 = vunpack.c.l.b16 %v1324
    %v2149 = vunpack.c.h.b16 %v1324
    %v2150 = vunpack.c.l.b16 %v1325
    %v2151 = vunpack.c.h.b16 %v1325
    %v2152 = vunpack.c.l.b16 %v1326
    %v2153 = vunpack.c.h.b16 %v1326
    %v2154 = vunpack.c.l.b16 %v1327
    %v2155 = vunpack.c.h.b16 %v1327
    %v2156 = vunpack.c.l.b16 %v1328
    %v2157 = vunpack.c.h.b16 %v1328
    %v2158 = vunpack.c.l.b16 %v1329
    %v2159 = vunpack.c.h.b16 %v1329
    %v2160 = vunpack.c.l.b16 %v1330
    %v2161 = vunpack.c.h.b16 %v1330
    %v2162 = vunpack.c.l.b16 %v1331
    %v2163 = vunpack.c.h.b16 %v1331
    %v2164 = vunpack.c.l.b16 %v1332
    %v2165 = vunpack.c.h.b16 %v1332
    %v2166 = vunpack.c.l.b16 %v1333
    %v2167 = vunpack.c.h.b16 %v1333
    %v2168 = vunpack.c.l.b16 %v1334
    %v2169 = vunpack.c.h.b16 %v1334
    %v2170 = vunpack.c.l.b16 %v1335
    %v2171 = vunpack.c.h.b16 %v1335
    %v2172 = vunpack.c.l.b16 %v1336
    %v2173 = vunpack.c.h.b16 %v1336
    %v2174 = vunpack.c.l.b16 %v1337
    %v2175 = vunpack.c.h.b16 %v1337
    %v2176 = vunpack.c.l.b16 %v1338
    %v2177 = vunpack.c.h.b16 %v1338
    %v2178 = vunpack.c.l.b16 %v1339
    %v2179 = vunpack.c.h.b16 %v1339
    %v2180 = vunpack.c.l.b16 %v1340
    %v2181 = vunpack.c.h.b16 %v1340
    %v2182 = vunpack.c.l.b16 %v1341
    %v2183 = vunpack.c.h.b16 %v1341
    %v2184 = vunpack.c.l.b16 %v1342
    %v2185 = vunpack.c.h.b16 %v1342
    %v2186 = vunpack.c.l.b16 %v1343
    %v2187 = vunpack.c.h.b16 %v1343
    %v2188 = vunpack.c.l.b16 %v1344
    %v2189 = vunpack.c.h.b16 %v1344
    %v2190 = vunpack.c.l.b16 %v1345
    %v2191 = vunpack.c.h.b16 %v1345
    %v2192 = vunpack.c.l.b16 %v1346
    %v2193 = vunpack.c.h.b16 %v1346
    %v2194 = vunpack.c.l.b16 %v1347
    %v2195 = vunpack.c.h.b16 %v1347
    %v2196 = vunpack.c.l.b16 %v1348
    %v2197 = vunpack.c.h.b16 %v1348
    %v2198 = vunpack.c.l.b16 %v1349
    %v2199 = vunpack.c.h.b16 %v1349
    %v2200 = vunpack.c.l.b16 %v1350
    %v2201 = vunpack.c.h.b16 %v1350
    %v2202 = vunpack.c.l.b16 %v1351
    %v2203 = vunpack.c.h.b16 %v1351
    %v2204 = vunpack.c.l.b16 %v1352
    %v2205 = vunpack.c.h.b16 %v1352
    %v2206 = vunpack.c.l.b16 %v1353
    %v2207 = vunpack.c.h.b16 %v1353
    %v2208 = vunpack.c.l.b16 %v1354
    %v2209 = vunpack.c.h.b16 %v1354
    %v2210 = vunpack.c.l.b16 %v1355
    %v2211 = vunpack.c.h.b16 %v1355
    %v2212 = vunpack.c.l.b16 %v1356
    %v2213 = vunpack.c.h.b16 %v1356
    %v2214 = vunpack.c.l.b16 %v1357
    %v2215 = vunpack.c.h.b16 %v1357
    %v2216 = vunpack.c.l.b16 %v1358
    %v2217 = vunpack.c.h.b16 %v1358
    %v2218 = vunpack.c.l.b16 %v1359
    %v2219 = vunpack.c.h.b16 %v1359
    %v2220 = vunpack.c.l.b16 %v1360
    %v2221 = vunpack.c.h.b16 %v1360
    %v2222 = vunpack.c.l.b16 %v1361
    %v2223 = vunpack.c.h.b16 %v1361
    %v2224 = vunpack.c.l.b16 %v1362
    %v2225 = vunpack.c.h.b16 %v1362
    %v2226 = vunpack.c.l.b16 %v1363
    %v2227 = vunpack.c.h.b16 %v1363
    %v2228 = vunpack.c.l.b16 %v1364
    %v2229 = vunpack.c.h.b16 %v1364
    %v2230 = vunpack.c.l.b16 %v1365
    %v2231 = vunpack.c.h.b16 %v1365
    %v2232 = vunpack.c.l.b16 %v1366
    %v2233 = vunpack.c.h.b16 %v1366
    %v2234 = vunpack.c.l.b16 %v1367
    %v2235 = vunpack.c.h.b16 %v1367
    %v2236 = vunpack.c.l.b16 %v1368
    %v2237 = vunpack.c.h.b16 %v1368
    %v2238 = vunpack.c.l.b16 %v1369
    %v2239 = vunpack.c.h.b16 %v1369
    %v2240 = vunpack.c.l.b16 %v1370
    %v2241 = vunpack.c.h.b16 %v1370
    %v2242 = vunpack.c.l.b16 %v1371
    %v2243 = vunpack.c.h.b16 %v1371
    %v2244 = vunpack.c.l.b16 %v1372
    %v2245 = vunpack.c.h.b16 %v1372
    %v2246 = vunpack.c.l.b16 %v1373
    %v2247 = vunpack.c.h.b16 %v1373
    %v2248 = vunpack.c.l.b16 %v1374
    %v2249 = vunpack.c.h.b16 %v1374
    %v2250 = vunpack.c.l.b16 %v1375
    %v2251 = vunpack.c.h.b16 %v1375
    %v2252 = vunpack.c.l.b16 %v1376
    %v2253 = vunpack.c.h.b16 %v1376
    %v2254 = vunpack.c.l.b16 %v1377
    %v2255 = vunpack.c.h.b16 %v1377
    %v2256 = vunpack.c.l.b16 %v1378
    %v2257 = vunpack.c.h.b16 %v1378
    %v2258 = vunpack.c.l.b16 %v1379
    %v2259 = vunpack.c.h.b16 %v1379
    %v2260 = vunpack.c.l.b16 %v1380
    %v2261 = vunpack.c.h.b16 %v1380
    %v2262 = vunpack.c.l.b16 %v1381
    %v2263 = vunpack.c.h.b16 %v1381
    %v2264 = vunpack.c.l.b16 %v1382
    %v2265 = vunpack.c.h.b16 %v1382
    %v2266 = vunpack.c.l.b16 %v1383
    %v2267 = vunpack.c.h.b16 %v1383
    %v2268 = vunpack.c.l.b16 %v1384
    %v2269 = vunpack.c.h.b16 %v1384
    %v2270 = vunpack.c.l.b16 %v1385
    %v2271 = vunpack.c.h.b16 %v1385
    %v2272 = vunpack.c.l.b16 %v1386
    %v2273 = vunpack.c.h.b16 %v1386
    %v2274 = vunpack.c.l.b16 %v1387
    %v2275 = vunpack.c.h.b16 %v1387
    %v2276 = vunpack.c.l.b16 %v1388
    %v2277 = vunpack.c.h.b16 %v1388
    %v2278 = vunpack.c.l.b16 %v1389
    %v2279 = vunpack.c.h.b16 %v1389
    %v2280 = vunpack.c.l.b16 %v1390
    %v2281 = vunpack.c.h.b16 %v1390
    %v2282 = vunpack.c.l.b16 %v1391
    %v2283 = vunpack.c.h.b16 %v1391
    %v2284 = vunpack.c.l.b16 %v1392
    %v2285 = vunpack.c.h.b16 %v1392
    %v2286 = vunpack.c.l.b16 %v1393
    %v2287 = vunpack.c.h.b16 %v1393
    %v2288 = vunpack.c.l.b16 %v1394
    %v2289 = vunpack.c.h.b16 %v1394
    %v2290 = vunpack.c.l.b16 %v1395
    %v2291 = vunpack.c.h.b16 %v1395
    %v2292 = vunpack.c.l.b16 %v1396
    %v2293 = vunpack.c.h.b16 %v1396
    %v2294 = vunpack.c.l.b16 %v1397
    %v2295 = vunpack.c.h.b16 %v1397
    %v2296 = vunpack.c.l.b16 %v1398
    %v2297 = vunpack.c.h.b16 %v1398
    %v2298 = vunpack.c.l.b16 %v1399
    %v2299 = vunpack.c.h.b16 %v1399
    %v2300 = vunpack.c.l.b16 %v1400
    %v2301 = vunpack.c.h.b16 %v1400
    %v2302 = vunpack.c.l.b16 %v1401
    %v2303 = vunpack.c.h.b16 %v1401
    %v2304 = vunpack.c.l.b16 %v1402
    %v2305 = vunpack.c.h.b16 %v1402
    %v2306 = vunpack.c.l.b16 %v1403
    %v2307 = vunpack.c.h.b16 %v1403
    %v2308 = vunpack.c.l.b16 %v1404
    %v2309 = vunpack.c.h.b16 %v1404
    %v2310 = vunpack.c.l.b16 %v1405
    %v2311 = vunpack.c.h.b16 %v1405
    %v2312 = vunpack.c.l.b16 %v1406
    %v2313 = vunpack.c.h.b16 %v1406
    %v2314 = vunpack.c.l.b16 %v1407
    %v2315 = vunpack.c.h.b16 %v1407
    %v2316 = vunpack.c.l.b16 %v1408
    %v2317 = vunpack.c.h.b16 %v1408
    %v2318 = vunpack.c.l.b16 %v1409
    %v2319 = vunpack.c.h.b16 %v1409
    %v2320 = vunpack.c.l.b16 %v1410
    %v2321 = vunpack.c.h.b16 %v1410
    %v2322 = vunpack.c.l.b16 %v1411
    %v2323 = vunpack.c.h.b16 %v1411
    %v2324 = vunpack.c.l.b16 %v1412
    %v2325 = vunpack.c.h.b16 %v1412
    %v2326 = vunpack.c.l.b16 %v1413
    %v2327 = vunpack.c.h.b16 %v1413
    %v2328 = vunpack.c.l.b16 %v1414
    %v2329 = vunpack.c.h.b16 %v1414
    %v2330 = vunpack.c.l.b16 %v1415
    %v2331 = vunpack.c.h.b16 %v1415
    %v2332 = vunpack.c.l.b16 %v1416
    %v2333 = vunpack.c.h.b16 %v1416
    %v2334 = vunpack.c.l.b16 %v1417
    %v2335 = vunpack.c.h.b16 %v1417
    %v2336 = vunpack.c.l.b16 %v1418
    %v2337 = vunpack.c.h.b16 %v1418
    %v2338 = vunpack.c.l.b16 %v1419
    %v2339 = vunpack.c.h.b16 %v1419
    %v2340 = vunpack.c.l.b16 %v1420
    %v2341 = vunpack.c.h.b16 %v1420
    %v2342 = vunpack.c.l.b16 %v1421
    %v2343 = vunpack.c.h.b16 %v1421
    %v2344 = vunpack.c.l.b16 %v1422
    %v2345 = vunpack.c.h.b16 %v1422
    %v2346 = vunpack.c.l.b16 %v1423
    %v2347 = vunpack.c.h.b16 %v1423
    %v2348 = vunpack.c.l.b16 %v1424
    %v2349 = vunpack.c.h.b16 %v1424
    %v2350 = vunpack.c.l.b16 %v1425
    %v2351 = vunpack.c.h.b16 %v1425
    %v2352 = vunpack.c.l.b16 %v1426
    %v2353 = vunpack.c.h.b16 %v1426
    %v2354 = vunpack.c.l.b16 %v1427
    %v2355 = vunpack.c.h.b16 %v1427
    %v2356 = vunpack.c.l.b16 %v1428
    %v2357 = vunpack.c.h.b16 %v1428
    %v2358 = vunpack.c.l.b16 %v1429
    %v2359 = vunpack.c.h.b16 %v1429
    %v2360 = vunpack.c.l.b16 %v1430
    %v2361 = vunpack.c.h.b16 %v1430
    %v2362 = vunpack.c.l.b16 %v1431
    %v2363 = vunpack.c.h.b16 %v1431
    %v2364 = vunpack.c.l.b16 %v1432
    %v2365 = vunpack.c.h.b16 %v1432
    %v2366 = vunpack.c.l.b16 %v1433
    %v2367 = vunpack.c.h.b16 %v1433
    %v2368 = vunpack.c.l.b16 %v1434
    %v2369 = vunpack.c.h.b16 %v1434
    %v2370 = vunpack.c.l.b16 %v1435
    %v2371 = vunpack.c.h.b16 %v1435
    %v2372 = vunpack.c.l.b16 %v1436
    %v2373 = vunpack.c.h.b16 %v1436
    %v2374 = vunpack.c.l.b16 %v1437
    %v2375 = vunpack.c.h.b16 %v1437
    %v2376 = vunpack.c.l.b16 %v1438
    %v2377 = vunpack.c.h.b16 %v1438
    %v2378 = vunpack.c.l.b16 %v1439
    %v2379 = vunpack.c.h.b16 %v1439
    %v2380 = vunpack.c.l.b16 %v1440
    %v2381 = vunpack.c.h.b16 %v1440
    %v2382 = vunpack.c.l.b16 %v1441
    %v2383 = vunpack.c.h.b16 %v1441
    %v2384 = vunpack.c.l.b16 %v1442
    %v2385 = vunpack.c.h.b16 %v1442
    %v2386 = vunpack.c.l.b16 %v1443
    %v2387 = vunpack.c.h.b16 %v1443
    %v2388 = vunpack.c.l.b16 %v1444
    %v2389 = vunpack.c.h.b16 %v1444
    %v2390 = vunpack.c.l.b16 %v1445
    %v2391 = vunpack.c.h.b16 %v1445
    %v2392 = vunpack.c.l.b16 %v1446
    %v2393 = vunpack.c.h.b16 %v1446
    %v2394 = vunpack.c.l.b16 %v1447
    %v2395 = vunpack.c.h.b16 %v1447
    %v2396 = vunpack.c.l.b16 %v1448
    %v2397 = vunpack.c.h.b16 %v1448
    %v2398 = vunpack.c.l.b16 %v1449
    %v2399 = vunpack.c.h.b16 %v1449
    %v2400 = vunpack.c.l.b16 %v1450
    %v2401 = vunpack.c.h.b16 %v1450
    %v2402 = vunpack.c.l.b16 %v1451
    %v2403 = vunpack.c.h.b16 %v1451
    %v2404 = vunpack.c.l.b16 %v1452
    %v2405 = vunpack.c.h.b16 %v1452
    %v2406 = vunpack.c.l.b16 %v1453
    %v2407 = vunpack.c.h.b16 %v1453
    %v2408 = vunpack.c.l.b16 %v1454
    %v2409 = vunpack.c.h.b16 %v1454
    %v2410 = vunpack.c.l.b16 %v1455
    %v2411 = vunpack.c.h.b16 %v1455
    %v2412 = vunpack.c.l.b16 %v1456
    %v2413 = vunpack.c.h.b16 %v1456
    %v2414 = vunpack.c.l.b16 %v1457
    %v2415 = vunpack.c.h.b16 %v1457
    %v2416 = vunpack.c.l.b16 %v1458
    %v2417 = vunpack.c.h.b16 %v1458
    %v2418 = vunpack.c.l.b16 %v1459
    %v2419 = vunpack.c.h.b16 %v1459
    %v2420 = vunpack.c.l.b16 %v1460
    %v2421 = vunpack.c.h.b16 %v1460
    %v2422 = vunpack.c.l.b16 %v1461
    %v2423 = vunpack.c.h.b16 %v1461
    %v2424 = vunpack.c.l.b16 %v1462
    %v2425 = vunpack.c.h.b16 %v1462
    %v2426 = vunpack.c.l.b16 %v1463
    %v2427 = vunpack.c.h.b16 %v1463
    %v2428 = vunpack.c.l.b16 %v1464
    %v2429 = vunpack.c.h.b16 %v1464
    %v2430 = vunpack.c.l.b16 %v1465
    %v2431 = vunpack.c.h.b16 %v1465
    %v2432 = vunpack.c.l.b16 %v1466
    %v2433 = vunpack.c.h.b16 %v1466
    %v2434 = vunpack.c.l.b16 %v1467
    %v2435 = vunpack.c.h.b16 %v1467
    %v2436 = vunpack.c.l.b16 %v1468
    %v2437 = vunpack.c.h.b16 %v1468
    %v2438 = vunpack.c.l.b16 %v1469
    %v2439 = vunpack.c.h.b16 %v1469
    %v2440 = vunpack.c.l.b16 %v1470
    %v2441 = vunpack.c.h.b16 %v1470
    %v2442 = vunpack.c.l.b16 %v1471
    %v2443 = vunpack.c.h.b16 %v1471
    %v2444 = vunpack.c.l.b16 %v1472
    %v2445 = vunpack.c.h.b16 %v1472
    %v2446 = vunpack.c.l.b16 %v1473
    %v2447 = vunpack.c.h.b16 %v1473
    %v2448 = vunpack.c.l.b16 %v1474
    %v2449 = vunpack.c.h.b16 %v1474
    %v2450 = vunpack.c.l.b16 %v1475
    %v2451 = vunpack.c.h.b16 %v1475
    %v2452 = vunpack.c.l.b16 %v1476
    %v2453 = vunpack.c.h.b16 %v1476
    %v2454 = vunpack.c.l.b16 %v1477
    %v2455 = vunpack.c.h.b16 %v1477
    %v2456 = vunpack.c.l.b16 %v1478
    %v2457 = vunpack.c.h.b16 %v1478
    %v2458 = vunpack.c.l.b16 %v1479
    %v2459 = vunpack.c.h.b16 %v1479
    %v2460 = vunpack.c.l.b16 %v1480
    %v2461 = vunpack.c.h.b16 %v1480
    %v2462 = vunpack.c.l.b16 %v1481
    %v2463 = vunpack.c.h.b16 %v1481
    %v2464 = vunpack.c.l.b16 %v1482
    %v2465 = vunpack.c.h.b16 %v1482
    %v2466 = vunpack.c.l.b16 %v1483
    %v2467 = vunpack.c.h.b16 %v1483
    %v2468 = vunpack.c.l.b16 %v1484
    %v2469 = vunpack.c.h.b16 %v1484
    %v2470 = vunpack.c.l.b16 %v1485
    %v2471 = vunpack.c.h.b16 %v1485
    %v2472 = vunpack.c.l.b16 %v1486
    %v2473 = vunpack.c.h.b16 %v1486
    %v2474 = vunpack.c.l.b16 %v1487
    %v2475 = vunpack.c.h.b16 %v1487
    %v2476 = vunpack.c.l.b16 %v1488
    %v2477 = vunpack.c.h.b16 %v1488
    %v2478 = vunpack.c.l.b16 %v1489
    %v2479 = vunpack.c.h.b16 %v1489
    %v2480 = vunpack.c.l.b16 %v1490
    %v2481 = vunpack.c.h.b16 %v1490
    %v2482 = vunpack.c.l.b16 %v1491
    %v2483 = vunpack.c.h.b16 %v1491
    %v2484 = vunpack.c.l.b16 %v1492
    %v2485 = vunpack.c.h.b16 %v1492
    %v2486 = vunpack.c.l.b16 %v1493
    %v2487 = vunpack.c.h.b16 %v1493
    %v2488 = vunpack.c.l.b16 %v1494
    %v2489 = vunpack.c.h.b16 %v1494
    %v2490 = vunpack.c.l.b16 %v1495
    %v2491 = vunpack.c.h.b16 %v1495
    %v2492 = vunpack.c.l.b16 %v1496
    %v2493 = vunpack.c.h.b16 %v1496
    %v2494 = vunpack.c.l.b16 %v1497
    %v2495 = vunpack.c.h.b16 %v1497
    %v2496 = vunpack.c.l.b16 %v1498
    %v2497 = vunpack.c.h.b16 %v1498
    %v2498 = vunpack.c.l.b16 %v1499
    %v2499 = vunpack.c.h.b16 %v1499
    %v2500 = vunpack.c.l.b16 %v1500
    %v2501 = vunpack.c.h.b16 %v1500
    %v2502 = vunpack.c.l.b16 %v1501
    %v2503 = vunpack.c.h.b16 %v1501
    %v2504 = vunpack.c.l.b16 %v1502
    %v2505 = vunpack.c.h.b16 %v1502
    %v2506 = vunpack.c.l.b16 %v1503
    %v2507 = vunpack.c.h.b16 %v1503
    %v2508 = vunpack.c.l.b16 %v1504
    %v2509 = vunpack.c.h.b16 %v1504
    %v2510 = vunpack.c.l.b16 %v1505
    %v2511 = vunpack.c.h.b16 %v1505
    %v2512 = vunpack.c.l.b16 %v1506
    %v2513 = vunpack.c.h.b16 %v1506
    %v2514 = vunpack.c.l.b16 %v1507
    %v2515 = vunpack.c.h.b16 %v1507
    %v2516 = vunpack.c.l.b16 %v1508
    %v2517 = vunpack.c.h.b16 %v1508
    %v2518 = vunpack.c.l.b16 %v1509
    %v2519 = vunpack.c.h.b16 %v1509
    %v2520 = vunpack.c.l.b16 %v1510
    %v2521 = vunpack.c.h.b16 %v1510
    %v2522 = vunpack.c.l.b16 %v1511
    %v2523 = vunpack.c.h.b16 %v1511
    %v2524 = vunpack.c.l.b16 %v1512
    %v2525 = vunpack.c.h.b16 %v1512
    %v2526 = vunpack.c.l.b16 %v1513
    %v2527 = vunpack.c.h.b16 %v1513
    %v2528 = vunpack.c.l.b16 %v1514
    %v2529 = vunpack.c.h.b16 %v1514
    %v2530 = vunpack.c.l.b16 %v1515
    %v2531 = vunpack.c.h.b16 %v1515
    %v2532 = vunpack.c.l.b16 %v1516
    %v2533 = vunpack.c.h.b16 %v1516
    %v2534 = vunpack.c.l.b16 %v1517
    %v2535 = vunpack.c.h.b16 %v1517
    %v2536 = vunpack.c.l.b16 %v1518
    %v2537 = vunpack.c.h.b16 %v1518
    %v2538 = vunpack.c.l.b16 %v1519
    %v2539 = vunpack.c.h.b16 %v1519
    %v2540 = vunpack.c.l.b16 %v1520
    %v2541 = vunpack.c.h.b16 %v1520
    %v2542 = vunpack.c.l.b16 %v1521
    %v2543 = vunpack.c.h.b16 %v1521
    %v2544 = vunpack.c.l.b16 %v1522
    %v2545 = vunpack.c.h.b16 %v1522
    %v2546 = vunpack.c.l.b16 %v1523
    %v2547 = vunpack.c.h.b16 %v1523
    %v2548 = vunpack.c.l.b16 %v1524
    %v2549 = vunpack.c.h.b16 %v1524
    %v2550 = vunpack.c.l.b16 %v1525
    %v2551 = vunpack.c.h.b16 %v1525
    %v2552 = vunpack.c.l.b16 %v1526
    %v2553 = vunpack.c.h.b16 %v1526
    %v2554 = vunpack.c.l.b16 %v1527
    %v2555 = vunpack.c.h.b16 %v1527
    %v2556 = vunpack.c.l.b16 %v1528
    %v2557 = vunpack.c.h.b16 %v1528
    %v2558 = vunpack.c.l.b16 %v1529
    %v2559 = vunpack.c.h.b16 %v1529
    %v2560 = vunpack.c.l.b16 %v1530
    %v2561 = vunpack.c.h.b16 %v1530
    %v2562 = vunpack.c.l.b16 %v1531
    %v2563 = vunpack.c.h.b16 %v1531
    %v2564 = vunpack.c.l.b16 %v1532
    %v2565 = vunpack.c.h.b16 %v1532
    %v2566 = vunpack.c.l.b16 %v1533
    %v2567 = vunpack.c.h.b16 %v1533
    %v2568 = vunpack.c.l.b16 %v1534
    %v2569 = vunpack.c.h.b16 %v1534
    %v2570 = vunpack.c.l.b16 %v1535
    %v2571 = vunpack.c.h.b16 %v1535
    %v2572 = vunpack.c.l.b16 %v1536
    %v2573 = vunpack.c.h.b16 %v1536
    %v2574 = vunpack.c.l.b16 %v1537
    %v2575 = vunpack.c.h.b16 %v1537
    %v2576 = vunpack.c.l.b16 %v1538
    %v2577 = vunpack.c.h.b16 %v1538
    %v2578 = vunpack.c.l.b16 %v1539
    %v2579 = vunpack.c.h.b16 %v1539
    %v2580 = vunpack.c.l.b16 %v1540
    %v2581 = vunpack.c.h.b16 %v1540
    %v2582 = vunpack.c.l.b16 %v1541
    %v2583 = vunpack.c.h.b16 %v1541
    %v2584 = vunpack.c.l.b16 %v1542
    %v2585 = vunpack.c.h.b16 %v1542
    %v2586 = vunpack.c.l.b16 %v1543
    %v2587 = vunpack.c.h.b16 %v1543
    %v2588 = vunpack.c.l.b16 %v1544
    %v2589 = vunpack.c.h.b16 %v1544
    %v2590 = vunpack.c.l.b16 %v1545
    %v2591 = vunpack.c.h.b16 %v1545
    %v2592 = vunpack.c.l.b16 %v1546
    %v2593 = vunpack.c.h.b16 %v1546
    %v2594 = vunpack.c.l.b16 %v1547
    %v2595 = vunpack.c.h.b16 %v1547
    %v2596 = vunpack.c.l.b16 %v1548
    %v2597 = vunpack.c.h.b16 %v1548
    %v2598 = vunpack.c.l.b16 %v1549
    %v2599 = vunpack.c.h.b16 %v1549
    %v2600 = vunpack.c.l.b16 %v1550
    %v2601 = vunpack.c.h.b16 %v1550
    %v2602 = vunpack.c.l.b16 %v1551
    %v2603 = vunpack.c.h.b16 %v1551
    %v2604 = vunpack.c.l.b16 %v1552
    %v2605 = vunpack.c.h.b16 %v1552
    %v2606 = vunpack.c.l.b16 %v1553
    %v2607 = vunpack.c.h.b16 %v1553
    %v2608 = vunpack.c.l.b16 %v1554
    %v2609 = vunpack.c.h.b16 %v1554
    %v2610 = vunpack.c.l.b16 %v1555
    %v2611 = vunpack.c.h.b16 %v1555
    %v2612 = vunpack.c.l.b16 %v1556
    %v2613 = vunpack.c.h.b16 %v1556
    %v2614 = vunpack.c.l.b16 %v1557
    %v2615 = vunpack.c.h.b16 %v1557
    %v2616 = vunpack.c.l.b16 %v1558
    %v2617 = vunpack.c.h.b16 %v1558
    %v2618 = vunpack.c.l.b16 %v1559
    %v2619 = vunpack.c.h.b16 %v1559
    %v2620 = vunpack.c.l.b16 %v1560
    %v2621 = vunpack.c.h.b16 %v1560
    %v2622 = vunpack.c.l.b16 %v1561
    %v2623 = vunpack.c.h.b16 %v1561
    %v2624 = vunpack.c.l.b16 %v1562
    %v2625 = vunpack.c.h.b16 %v1562
    %v2626 = vunpack.c.l.b16 %v1563
    %v2627 = vunpack.c.h.b16 %v1563
    %v2628 = vunpack.c.l.b16 %v1564
    %v2629 = vunpack.c.h.b16 %v1564
    %v2630 = vunpack.c.l.b16 %v1565
    %v2631 = vunpack.c.h.b16 %v1565
    %v2632 = vunpack.c.l.b16 %v1566
    %v2633 = vunpack.c.h.b16 %v1566
    %v2634 = vunpack.c.l.b16 %v1567
    %v2635 = vunpack.c.h.b16 %v1567
    %v2636 = vunpack.c.l.b16 %v1568
    %v2637 = vunpack.c.h.b16 %v1568
    %v2638 = vunpack.c.l.b16 %v1569
    %v2639 = vunpack.c.h.b16 %v1569
    %v2640 = vunpack.c.l.b16 %v1570
    %v2641 = vunpack.c.h.b16 %v1570
    %v2642 = vunpack.c.l.b16 %v1571
    %v2643 = vunpack.c.h.b16 %v1571
    %v2644 = vunpack.c.l.b16 %v1572
    %v2645 = vunpack.c.h.b16 %v1572
    %v2646 = vunpack.c.l.b16 %v1573
    %v2647 = vunpack.c.h.b16 %v1573
    %v2648 = vunpack.c.l.b16 %v1574
    %v2649 = vunpack.c.h.b16 %v1574
    %v2650 = vunpack.c.l.b16 %v1575
    %v2651 = vunpack.c.h.b16 %v1575
    %v2652 = vunpack.c.l.b16 %v1576
    %v2653 = vunpack.c.h.b16 %v1576
    %v2654 = vunpack.c.l.b16 %v1577
    %v2655 = vunpack.c.h.b16 %v1577
    %v2656 = vunpack.c.l.b16 %v1578
    %v2657 = vunpack.c.h.b16 %v1578
    %v2658 = vunpack.c.l.b16 %v1579
    %v2659 = vunpack.c.h.b16 %v1579
    %v2660 = vunpack.c.l.b16 %v1580
    %v2661 = vunpack.c.h.b16 %v1580
    %v2662 = vunpack.c.l.b16 %v1581
    %v2663 = vunpack.c.h.b16 %v1581
    %v2664 = vunpack.c.l.b16 %v1582
    %v2665 = vunpack.c.h.b16 %v1582
    %v2666 = vunpack.c.l.b16 %v1583
    %v2667 = vunpack.c.h.b16 %v1583
    %v2668 = vunpack.c.l.b16 %v1584
    %v2669 = vunpack.c.h.b16 %v1584
    %v2670 = vunpack.c.l.b16 %v1585
    %v2671 = vunpack.c.h.b16 %v1585
    %v2672 = vunpack.c.l.b16 %v1586
    %v2673 = vunpack.c.h.b16 %v1586
    %v2674 = vunpack.c.l.b16 %v1587
    %v2675 = vunpack.c.h.b16 %v1587
    %v2676 = vunpack.c.l.b16 %v1588
    %v2677 = vunpack.c.h.b16 %v1588
    %v2678 = vunpack.c.l.b16 %v1589
    %v2679 = vunpack.c.h.b16 %v1589
    %v2680 = vunpack.c.l.b16 %v1590
    %v2681 = vunpack.c.h.b16 %v1590
    %v2682 = vunpack.c.l.b16 %v1591
    %v2683 = vunpack.c.h.b16 %v1591
    %v2684 = vunpack.c.l.b16 %v1592
    %v2685 = vunpack.c.h.b16 %v1592
    %v2686 = vunpack.c.l.b16 %v1593
    %v2687 = vunpack.c.h.b16 %v1593
    %v2688 = vunpack.c.l.b16 %v1594
    %v2689 = vunpack.c.h.b16 %v1594
    %v2690 = vunpack.c.l.b16 %v1595
    %v2691 = vunpack.c.h.b16 %v1595
    %v2692 = vunpack.c.l.b16 %v1596
    %v2693 = vunpack.c.h.b16 %v1596
    %v2694 = vunpack.c.l.b16 %v1597
    %v2695 = vunpack.c.h.b16 %v1597
    %v2696 = vunpack.c.l.b16 %v1598
    %v2697 = vunpack.c.h.b16 %v1598
    %v2698 = vunpack.c.l.b16 %v1599
    %v2699 = vunpack.c.h.b16 %v1599
    %v2700 = vunpack.c.l.b16 %v1600
    %v2701 = vunpack.c.h.b16 %v1600
    %v2702 = vunpack.c.l.b16 %v1601
    %v2703 = vunpack.c.h.b16 %v1601
    %v2704 = vunpack.c.l.b16 %v1602
    %v2705 = vunpack.c.h.b16 %v1602
    %v2706 = vunpack.c.l.b16 %v1603
    %v2707 = vunpack.c.h.b16 %v1603
    %v2708 = vunpack.c.l.b16 %v1604
    %v2709 = vunpack.c.h.b16 %v1604
    %v2710 = vunpack.c.l.b16 %v1605
    %v2711 = vunpack.c.h.b16 %v1605
    %v2712 = vunpack.c.l.b16 %v1606
    %v2713 = vunpack.c.h.b16 %v1606
    %v2714 = vunpack.c.l.b16 %v1607
    %v2715 = vunpack.c.h.b16 %v1607
    %v2716 = vunpack.c.l.b16 %v1608
    %v2717 = vunpack.c.h.b16 %v1608
    %v2718 = vunpack.c.l.b16 %v1609
    %v2719 = vunpack.c.h.b16 %v1609
    %v2720 = vunpack.c.l.b16 %v1610
    %v2721 = vunpack.c.h.b16 %v1610
    %v2722 = vunpack.c.l.b16 %v1611
    %v2723 = vunpack.c.h.b16 %v1611
    %v2724 = vunpack.c.l.b16 %v1612
    %v2725 = vunpack.c.h.b16 %v1612
    %v2726 = vunpack.c.l.b16 %v1613
    %v2727 = vunpack.c.h.b16 %v1613
    %v2728 = vunpack.c.l.b16 %v1614
    %v2729 = vunpack.c.h.b16 %v1614
    %v2730 = vunpack.c.l.b16 %v1615
    %v2731 = vunpack.c.h.b16 %v1615
    %v2732 = vunpack.c.l.b16 %v1616
    %v2733 = vunpack.c.h.b16 %v1616
    %v2734 = vunpack.c.l.b16 %v1617
    %v2735 = vunpack.c.h.b16 %v1617
    %v2736 = vunpack.c.l.b16 %v1618
    %v2737 = vunpack.c.h.b16 %v1618
    %v2738 = vunpack.c.l.b16 %v1619
    %v2739 = vunpack.c.h.b16 %v1619
    %v2740 = vunpack.c.l.b16 %v1620
    %v2741 = vunpack.c.h.b16 %v1620
    %v2742 = vunpack.c.l.b16 %v1621
    %v2743 = vunpack.c.h.b16 %v1621
    %v2744 = vunpack.c.l.b16 %v1622
    %v2745 = vunpack.c.h.b16 %v1622
    %v2746 = vunpack.c.l.b16 %v1623
    %v2747 = vunpack.c.h.b16 %v1623
    %v2748 = vunpack.c.l.b16 %v1624
    %v2749 = vunpack.c.h.b16 %v1624
    %v2750 = vunpack.c.l.b16 %v1625
    %v2751 = vunpack.c.h.b16 %v1625
    %v2752 = vunpack.c.l.b16 %v1626
    %v2753 = vunpack.c.h.b16 %v1626
    %v2754 = vunpack.c.l.b16 %v1627
    %v2755 = vunpack.c.h.b16 %v1627
    %v2756 = vunpack.c.l.b16 %v1628
    %v2757 = vunpack.c.h.b16 %v1628
    %v2758 = vunpack.c.l.b16 %v1629
    %v2759 = vunpack.c.h.b16 %v1629
    %v2760 = vunpack.c.l.b16 %v1630
    %v2761 = vunpack.c.h.b16 %v1630
    %v2762 = vunpack.c.l.b16 %v1631
    %v2763 = vunpack.c.h.b16 %v1631
    %v2764 = vunpack.c.l.b16 %v1632
    %v2765 = vunpack.c.h.b16 %v1632
    %v2766 = vunpack.c.l.b16 %v1633
    %v2767 = vunpack.c.h.b16 %v1633
    %v2768 = vunpack.c.l.b16 %v1634
    %v2769 = vunpack.c.h.b16 %v1634
    %v2770 = vunpack.c.l.b16 %v1635
    %v2771 = vunpack.c.h.b16 %v1635
    %v2772 = vunpack.c.l.b16 %v1636
    %v2773 = vunpack.c.h.b16 %v1636
    %v2774 = vunpack.c.l.b16 %v1637
    %v2775 = vunpack.c.h.b16 %v1637
    %v2776 = vunpack.c.l.b16 %v1638
    %v2777 = vunpack.c.h.b16 %v1638
    %v2778 = vunpack.c.l.b16 %v1639
    %v2779 = vunpack.c.h.b16 %v1639
    %v2780 = vunpack.c.l.b16 %v1640
    %v2781 = vunpack.c.h.b16 %v1640
    %v2782 = vunpack.c.l.b16 %v1641
    %v2783 = vunpack.c.h.b16 %v1641
    %v2784 = vunpack.c.l.b16 %v1642
    %v2785 = vunpack.c.h.b16 %v1642
    %v2786 = vunpack.c.l.b16 %v1643
    %v2787 = vunpack.c.h.b16 %v1643
    %v2788 = vunpack.c.l.b16 %v1644
    %v2789 = vunpack.c.h.b16 %v1644
    %v2790 = vunpack.c.l.b16 %v1645
    %v2791 = vunpack.c.h.b16 %v1645
    %v2792 = vunpack.c.l.b16 %v1646
    %v2793 = vunpack.c.h.b16 %v1646
    %v2794 = vunpack.c.l.b16 %v1647
    %v2795 = vunpack.c.h.b16 %v1647
    %v2796 = vunpack.c.l.b16 %v1648
    %v2797 = vunpack.c.h.b16 %v1648
    %v2798 = vunpack.c.l.b16 %v1649
    %v2799 = vunpack.c.h.b16 %v1649
    %v2800 = vunpack.c.l.b16 %v1650
    %v2801 = vunpack.c.h.b16 %v1650
    %v2802 = vunpack.c.l.b16 %v1651
    %v2803 = vunpack.c.h.b16 %v1651
    %v2804 = vpack.c.b16 %v2042, %v2036
    %v2805 = vpack.c.b16 %v2043, %v2037
    %v2806 = vpack.c.b16 %v2044, %v2038
    %v2807 = vpack.c.b16 %v2045, %v2039
    %v2808 = vpack.c.b16 %v2046, %v2040
    %v2809 = vpack.c.b16 %v2047, %v2041
    %v2810 = vpack.c.b16 %v2054, %v2048
    %v2811 = vpack.c.b16 %v2055, %v2049
    %v2812 = vpack.c.b16 %v2056, %v2050
    %v2813 = vpack.c.b16 %v2057, %v2051
    %v2814 = vpack.c.b16 %v2058, %v2052
    %v2815 = vpack.c.b16 %v2059, %v2053
    %v2816 = vpack.c.b16 %v2066, %v2060
    %v2817 = vpack.c.b16 %v2067, %v2061
    %v2818 = vpack.c.b16 %v2068, %v2062
    %v2819 = vpack.c.b16 %v2069, %v2063
    %v2820 = vpack.c.b16 %v2070, %v2064
    %v2821 = vpack.c.b16 %v2071, %v2065
    %v2822 = vpack.c.b16 %v2078, %v2072
    %v2823 = vpack.c.b16 %v2079, %v2073
    %v2824 = vpack.c.b16 %v2080, %v2074
    %v2825 = vpack.c.b16 %v2081, %v2075
    %v2826 = vpack.c.b16 %v2082, %v2076
    %v2827 = vpack.c.b16 %v2083, %v2077
    %v2828 = vpack.c.b16 %v2090, %v2084
    %v2829 = vpack.c.b16 %v2091, %v2085
    %v2830 = vpack.c.b16 %v2092, %v2086
    %v2831 = vpack.c.b16 %v2093, %v2087
    %v2832 = vpack.c.b16 %v2094, %v2088
    %v2833 = vpack.c.b16 %v2095, %v2089
    %v2834 = vpack.c.b16 %v2102, %v2096
    %v2835 = vpack.c.b16 %v2103, %v2097
    %v2836 = vpack.c.b16 %v2104, %v2098
    %v2837 = vpack.c.b16 %v2105, %v2099
    %v2838 = vpack.c.b16 %v2106, %v2100
    %v2839 = vpack.c.b16 %v2107, %v2101
    %v2840 = vpack.c.b16 %v2114, %v2108
    %v2841 = vpack.c.b16 %v2115, %v2109
    %v2842 = vpack.c.b16 %v2116, %v2110
    %v2843 = vpack.c.b16 %v2117, %v2111
    %v2844 = vpack.c.b16 %v2118, %v2112
    %v2845 = vpack.c.b16 %v2119, %v2113
    %v2846 = vpack.c.b16 %v2126, %v2120
    %v2847 = vpack.c.b16 %v2127, %v2121
    %v2848 = vpack.c.b16 %v2128, %v2122
    %v2849 = vpack.c.b16 %v2129, %v2123
    %v2850 = vpack.c.b16 %v2130, %v2124
    %v2851 = vpack.c.b16 %v2131, %v2125
    %v2852 = vpack.c.b16 %v2138, %v2132
    %v2853 = vpack.c.b16 %v2139, %v2133
    %v2854 = vpack.c.b16 %v2140, %v2134
    %v2855 = vpack.c.b16 %v2141, %v2135
    %v2856 = vpack.c.b16 %v2142, %v2136
    %v2857 = vpack.c.b16 %v2143, %v2137
    %v2858 = vpack.c.b16 %v2150, %v2144
    %v2859 = vpack.c.b16 %v2151, %v2145
    %v2860 = vpack.c.b16 %v2152, %v2146
    %v2861 = vpack.c.b16 %v2153, %v2147
    %v2862 = vpack.c.b16 %v2154, %v2148
    %v2863 = vpack.c.b16 %v2155, %v2149
    %v2864 = vpack.c.b16 %v2162, %v2156
    %v2865 = vpack.c.b16 %v2163, %v2157
    %v2866 = vpack.c.b16 %v2164, %v2158
    %v2867 = vpack.c.b16 %v2165, %v2159
    %v2868 = vpack.c.b16 %v2166, %v2160
    %v2869 = vpack.c.b16 %v2167, %v2161
    %v2870 = vpack.c.b16 %v2174, %v2168
    %v2871 = vpack.c.b16 %v2175, %v2169
    %v2872 = vpack.c.b16 %v2176, %v2170
    %v2873 = vpack.c.b16 %v2177, %v2171
    %v2874 = vpack.c.b16 %v2178, %v2172
    %v2875 = vpack.c.b16 %v2179, %v2173
    %v2876 = vpack.c.b16 %v2186, %v2180
    %v2877 = vpack.c.b16 %v2187, %v2181
    %v2878 = vpack.c.b16 %v2188, %v2182
    %v2879 = vpack.c.b16 %v2189, %v2183
    %v2880 = vpack.c.b16 %v2190, %v2184
    %v2881 = vpack.c.b16 %v2191, %v2185
    %v2882 = vpack.c.b16 %v2198, %v2192
    %v2883 = vpack.c.b16 %v2199, %v2193
    %v2884 = vpack.c.b16 %v2200, %v2194
    %v2885 = vpack.c.b16 %v2201, %v2195
    %v2886 = vpack.c.b16 %v2202, %v2196
    %v2887 = vpack.c.b16 %v2203, %v2197
    %v2888 = vpack.c.b16 %v2210, %v2204
    %v2889 = vpack.c.b16 %v2211, %v2205
    %v2890 = vpack.c.b16 %v2212, %v2206
    %v2891 = vpack.c.b16 %v2213, %v2207
    %v2892 = vpack.c.b16 %v2214, %v2208
    %v2893 = vpack.c.b16 %v2215, %v2209
    %v2894 = vpack.c.b16 %v2222, %v2216
    %v2895 = vpack.c.b16 %v2223, %v2217
    %v2896 = vpack.c.b16 %v2224, %v2218
    %v2897 = vpack.c.b16 %v2225, %v2219
    %v2898 = vpack.c.b16 %v2226, %v2220
    %v2899 = vpack.c.b16 %v2227, %v2221
    %v2900 = vpack.c.b16 %v2234, %v2228
    %v2901 = vpack.c.b16 %v2235, %v2229
    %v2902 = vpack.c.b16 %v2236, %v2230
    %v2903 = vpack.c.b16 %v2237, %v2231
    %v2904 = vpack.c.b16 %v2238, %v2232
    %v2905 = vpack.c.b16 %v2239, %v2233
    %v2906 = vpack.c.b16 %v2246, %v2240
    %v2907 = vpack.c.b16 %v2247, %v2241
    %v2908 = vpack.c.b16 %v2248, %v2242
    %v2909 = vpack.c.b16 %v2249, %v2243
    %v2910 = vpack.c.b16 %v2250, %v2244
    %v2911 = vpack.c.b16 %v2251, %v2245
    %v2912 = vpack.c.b16 %v2258, %v2252
    %v2913 = vpack.c.b16 %v2259, %v2253
    %v2914 = vpack.c.b16 %v2260, %v2254
    %v2915 = vpack.c.b16 %v2261, %v2255
    %v2916 = vpack.c.b16 %v2262, %v2256
    %v2917 = vpack.c.b16 %v2263, %v2257
    %v2918 = vpack.c.b16 %v2270, %v2264
    %v2919 = vpack.c.b16 %v2271, %v2265
    %v2920 = vpack.c.b16 %v2272, %v2266
    %v2921 = vpack.c.b16 %v2273, %v2267
    %v2922 = vpack.c.b16 %v2274, %v2268
    %v2923 = vpack.c.b16 %v2275, %v2269
    %v2924 = vpack.c.b16 %v2282, %v2276
    %v2925 = vpack.c.b16 %v2283, %v2277
    %v2926 = vpack.c.b16 %v2284, %v2278
    %v2927 = vpack.c.b16 %v2285, %v2279
    %v2928 = vpack.c.b16 %v2286, %v2280
    %v2929 = vpack.c.b16 %v2287, %v2281
    %v2930 = vpack.c.b16 %v2294, %v2288
    %v2931 = vpack.c.b16 %v2295, %v2289
    %v2932 = vpack.c.b16 %v2296, %v2290
    %v2933 = vpack.c.b16 %v2297, %v2291
    %v2934 = vpack.c.b16 %v2298, %v2292
    %v2935 = vpack.c.b16 %v2299, %v2293
    %v2936 = vpack.c.b16 %v2306, %v2300
    %v2937 = vpack.c.b16 %v2307, %v2301
    %v2938 = vpack.c.b16 %v2308, %v2302
    %v2939 = vpack.c.b16 %v2309, %v2303
    %v2940 = vpack.c.b16 %v2310, %v2304
    %v2941 = vpack.c.b16 %v2311, %v2305
    %v2942 = vpack.c.b16 %v2318, %v2312
    %v2943 = vpack.c.b16 %v2319, %v2313
    %v2944 = vpack.c.b16 %v2320, %v2314
    %v2945 = vpack.c.b16 %v2321, %v2315
    %v2946 = vpack.c.b16 %v2322, %v2316
    %v2947 = vpack.c.b16 %v2323, %v2317
    %v2948 = vpack.c.b16 %v2330, %v2324
    %v2949 = vpack.c.b16 %v2331, %v2325
    %v2950 = vpack.c.b16 %v2332, %v2326
    %v2951 = vpack.c.b16 %v2333, %v2327
    %v2952 = vpack.c.b16 %v2334, %v2328
    %v2953 = vpack.c.b16 %v2335, %v2329
    %v2954 = vpack.c.b16 %v2342, %v2336
    %v2955 = vpack.c.b16 %v2343, %v2337
    %v2956 = vpack.c.b16 %v2344, %v2338
    %v2957 = vpack.c.b16 %v2345, %v2339
    %v2958 = vpack.c.b16 %v2346, %v2340
    %v2959 = vpack.c.b16 %v2347, %v2341
    %v2960 = vpack.c.b16 %v2354, %v2348
    %v2961 = vpack.c.b16 %v2355, %v2349
    %v2962 = vpack.c.b16 %v2356, %v2350
    %v2963 = vpack.c.b16 %v2357, %v2351
    %v2964 = vpack.c.b16 %v2358, %v2352
    %v2965 = vpack.c.b16 %v2359, %v2353
    %v2966 = vpack.c.b16 %v2366, %v2360
    %v2967 = vpack.c.b16 %v2367, %v2361
    %v2968 = vpack.c.b16 %v2368, %v2362
    %v2969 = vpack.c.b16 %v2369, %v2363
    %v2970 = vpack.c.b16 %v2370, %v2364
    %v2971 = vpack.c.b16 %v2371, %v2365
    %v2972 = vpack.c.b16 %v2378, %v2372
    %v2973 = vpack.c.b16 %v2379, %v2373
    %v2974 = vpack.c.b16 %v2380, %v2374
    %v2975 = vpack.c.b16 %v2381, %v2375
    %v2976 = vpack.c.b16 %v2382, %v2376
    %v2977 = vpack.c.b16 %v2383, %v2377
    %v2978 = vpack.c.b16 %v2390, %v2384
    %v2979 = vpack.c.b16 %v2391, %v2385
    %v2980 = vpack.c.b16 %v2392, %v2386
    %v2981 = vpack.c.b16 %v2393, %v2387
    %v2982 = vpack.c.b16 %v2394, %v2388
    %v2983 = vpack.c.b16 %v2395, %v2389
    %v2984 = vpack.c.b16 %v2402, %v2396
    %v2985 = vpack.c.b16 %v2403, %v2397
    %v2986 = vpack.c.b16 %v2404, %v2398
    %v2987 = vpack.c.b16 %v2405, %v2399
    %v2988 = vpack.c.b16 %v2406, %v2400
    %v2989 = vpack.c.b16 %v2407, %v2401
    %v2990 = vpack.c.b16 %v2414, %v2408
    %v2991 = vpack.c.b16 %v2415, %v2409
    %v2992 = vpack.c.b16 %v2416, %v2410
    %v2993 = vpack.c.b16 %v2417, %v2411
    %v2994 = vpack.c.b16 %v2418, %v2412
    %v2995 = vpack.c.b16 %v2419, %v2413
    %v2996 = vpack.c.b16 %v2426, %v2420
    %v2997 = vpack.c.b16 %v2427, %v2421
    %v2998 = vpack.c.b16 %v2428, %v2422
    %v2999 = vpack.c.b16 %v2429, %v2423
    %v3000 = vpack.c.b16 %v2430, %v2424
    %v3001 = vpack.c.b16 %v2431, %v2425
    %v3002 = vpack.c.b16 %v2438, %v2432
    %v3003 = vpack.c.b16 %v2439, %v2433
    %v3004 = vpack.c.b16 %v2440, %v2434
    %v3005 = vpack.c.b16 %v2441, %v2435
    %v3006 = vpack.c.b16 %v2442, %v2436
    %v3007 = vpack.c.b16 %v2443, %v2437
    %v3008 = vpack.c.b16 %v2450, %v2444
    %v3009 = vpack.c.b16 %v2451, %v2445
    %v3010 = vpack.c.b16 %v2452, %v2446
    %v3011 = vpack.c.b16 %v2453, %v2447
    %v3012 = vpack.c.b16 %v2454, %v2448
    %v3013 = vpack.c.b16 %v2455, %v2449
    %v3014 = vpack.c.b16 %v2462, %v2456
    %v3015 = vpack.c.b16 %v2463, %v2457
    %v3016 = vpack.c.b16 %v2464, %v2458
    %v3017 = vpack.c.b16 %v2465, %v2459
    %v3018 = vpack.c.b16 %v2466, %v2460
    %v3019 = vpack.c.b16 %v2467, %v2461
    %v3020 = vpack.c.b16 %v2474, %v2468
    %v3021 = vpack.c.b16 %v2475, %v2469
    %v3022 = vpack.c.b16 %v2476, %v2470
    %v3023 = vpack.c.b16 %v2477, %v2471
    %v3024 = vpack.c.b16 %v2478, %v2472
    %v3025 = vpack.c.b16 %v2479, %v2473
    %v3026 = vpack.c.b16 %v2486, %v2480
    %v3027 = vpack.c.b16 %v2487, %v2481
    %v3028 = vpack.c.b16 %v2488, %v2482
    %v3029 = vpack.c.b16 %v2489, %v2483
    %v3030 = vpack.c.b16 %v2490, %v2484
    %v3031 = vpack.c.b16 %v2491, %v2485
    %v3032 = vpack.c.b16 %v2498, %v2492
    %v3033 = vpack.c.b16 %v2499, %v2493
    %v3034 = vpack.c.b16 %v2500, %v2494
    %v3035 = vpack.c.b16 %v2501, %v2495
    %v3036 = vpack.c.b16 %v2502, %v2496
    %v3037 = vpack.c.b16 %v2503, %v2497
    %v3038 = vpack.c.b16 %v2510, %v2504
    %v3039 = vpack.c.b16 %v2511, %v2505
    %v3040 = vpack.c.b16 %v2512, %v2506
    %v3041 = vpack.c.b16 %v2513, %v2507
    %v3042 = vpack.c.b16 %v2514, %v2508
    %v3043 = vpack.c.b16 %v2515, %v2509
    %v3044 = vpack.c.b16 %v2522, %v2516
    %v3045 = vpack.c.b16 %v2523, %v2517
    %v3046 = vpack.c.b16 %v2524, %v2518
    %v3047 = vpack.c.b16 %v2525, %v2519
    %v3048 = vpack.c.b16 %v2526, %v2520
    %v3049 = vpack.c.b16 %v2527, %v2521
    %v3050 = vpack.c.b16 %v2534, %v2528
    %v3051 = vpack.c.b16 %v2535, %v2529
    %v3052 = vpack.c.b16 %v2536, %v2530
    %v3053 = vpack.c.b16 %v2537, %v2531
    %v3054 = vpack.c.b16 %v2538, %v2532
    %v3055 = vpack.c.b16 %v2539, %v2533
    %v3056 = vpack.c.b16 %v2546, %v2540
    %v3057 = vpack.c.b16 %v2547, %v2541
    %v3058 = vpack.c.b16 %v2548, %v2542
    %v3059 = vpack.c.b16 %v2549, %v2543
    %v3060 = vpack.c.b16 %v2550, %v2544
    %v3061 = vpack.c.b16 %v2551, %v2545
    %v3062 = vpack.c.b16 %v2558, %v2552
    %v3063 = vpack.c.b16 %v2559, %v2553
    %v3064 = vpack.c.b16 %v2560, %v2554
    %v3065 = vpack.c.b16 %v2561, %v2555
    %v3066 = vpack.c.b16 %v2562, %v2556
    %v3067 = vpack.c.b16 %v2563, %v2557
    %v3068 = vpack.c.b16 %v2570, %v2564
    %v3069 = vpack.c.b16 %v2571, %v2565
    %v3070 = vpack.c.b16 %v2572, %v2566
    %v3071 = vpack.c.b16 %v2573, %v2567
    %v3072 = vpack.c.b16 %v2574, %v2568
    %v3073 = vpack.c.b16 %v2575, %v2569
    %v3074 = vpack.c.b16 %v2582, %v2576
    %v3075 = vpack.c.b16 %v2583, %v2577
    %v3076 = vpack.c.b16 %v2584, %v2578
    %v3077 = vpack.c.b16 %v2585, %v2579
    %v3078 = vpack.c.b16 %v2586, %v2580
    %v3079 = vpack.c.b16 %v2587, %v2581
    %v3080 = vpack.c.b16 %v2594, %v2588
    %v3081 = vpack.c.b16 %v2595, %v2589
    %v3082 = vpack.c.b16 %v2596, %v2590
    %v3083 = vpack.c.b16 %v2597, %v2591
    %v3084 = vpack.c.b16 %v2598, %v2592
    %v3085 = vpack.c.b16 %v2599, %v2593
    %v3086 = vpack.c.b16 %v2606, %v2600
    %v3087 = vpack.c.b16 %v2607, %v2601
    %v3088 = vpack.c.b16 %v2608, %v2602
    %v3089 = vpack.c.b16 %v2609, %v2603
    %v3090 = vpack.c.b16 %v2610, %v2604
    %v3091 = vpack.c.b16 %v2611, %v2605
    %v3092 = vpack.c.b16 %v2618, %v2612
    %v3093 = vpack.c.b16 %v2619, %v2613
    %v3094 = vpack.c.b16 %v2620, %v2614
    %v3095 = vpack.c.b16 %v2621, %v2615
    %v3096 = vpack.c.b16 %v2622, %v2616
    %v3097 = vpack.c.b16 %v2623, %v2617
    %v3098 = vpack.c.b16 %v2630, %v2624
    %v3099 = vpack.c.b16 %v2631, %v2625
    %v3100 = vpack.c.b16 %v2632, %v2626
    %v3101 = vpack.c.b16 %v2633, %v2627
    %v3102 = vpack.c.b16 %v2634, %v2628
    %v3103 = vpack.c.b16 %v2635, %v2629
    %v3104 = vpack.c.b16 %v2642, %v2636
    %v3105 = vpack.c.b16 %v2643, %v2637
    %v3106 = vpack.c.b16 %v2644, %v2638
    %v3107 = vpack.c.b16 %v2645, %v2639
    %v3108 = vpack.c.b16 %v2646, %v2640
    %v3109 = vpack.c.b16 %v2647, %v2641
    %v3110 = vpack.c.b16 %v2654, %v2648
    %v3111 = vpack.c.b16 %v2655, %v2649
    %v3112 = vpack.c.b16 %v2656, %v2650
    %v3113 = vpack.c.b16 %v2657, %v2651
    %v3114 = vpack.c.b16 %v2658, %v2652
    %v3115 = vpack.c.b16 %v2659, %v2653
    %v3116 = vpack.c.b16 %v2666, %v2660
    %v3117 = vpack.c.b16 %v2667, %v2661
    %v3118 = vpack.c.b16 %v2668, %v2662
    %v3119 = vpack.c.b16 %v2669, %v2663
    %v3120 = vpack.c.b16 %v2670, %v2664
    %v3121 = vpack.c.b16 %v2671, %v2665
    %v3122 = vpack.c.b16 %v2678, %v2672
    %v3123 = vpack.c.b16 %v2679, %v2673
    %v3124 = vpack.c.b16 %v2680, %v2674
    %v3125 = vpack.c.b16 %v2681, %v2675
    %v3126 = vpack.c.b16 %v2682, %v2676
    %v3127 = vpack.c.b16 %v2683, %v2677
    %v3128 = vpack.c.b16 %v2690, %v2684
    %v3129 = vpack.c.b16 %v2691, %v2685
    %v3130 = vpack.c.b16 %v2692, %v2686
    %v3131 = vpack.c.b16 %v2693, %v2687
    %v3132 = vpack.c.b16 %v2694, %v2688
    %v3133 = vpack.c.b16 %v2695, %v2689
    %v3134 = vpack.c.b16 %v2702, %v2696
    %v3135 = vpack.c.b16 %v2703, %v2697
    %v3136 = vpack.c.b16 %v2704, %v2698
    %v3137 = vpack.c.b16 %v2705, %v2699
    %v3138 = vpack.c.b16 %v2706, %v2700
    %v3139 = vpack.c.b16 %v2707, %v2701
    %v3140 = vpack.c.b16 %v2714, %v2708
    %v3141 = vpack.c.b16 %v2715, %v2709
    %v3142 = vpack.c.b16 %v2716, %v2710
    %v3143 = vpack.c.b16 %v2717, %v2711
    %v3144 = vpack.c.b16 %v2718, %v2712
    %v3145 = vpack.c.b16 %v2719, %v2713
    %v3146 = vpack.c.b16 %v2726, %v2720
    %v3147 = vpack.c.b16 %v2727, %v2721
    %v3148 = vpack.c.b16 %v2728, %v2722
    %v3149 = vpack.c.b16 %v2729, %v2723
    %v3150 = vpack.c.b16 %v2730, %v2724
    %v3151 = vpack.c.b16 %v2731, %v2725
    %v3152 = vpack.c.b16 %v2738, %v2732
    %v3153 = vpack.c.b16 %v2739, %v2733
    %v3154 = vpack.c.b16 %v2740, %v2734
    %v3155 = vpack.c.b16 %v2741, %v2735
    %v3156 = vpack.c.b16 %v2742, %v2736
    %v3157 = vpack.c.b16 %v2743, %v2737
    %v3158 = vpack.c.b16 %v2750, %v2744
    %v3159 = vpack.c.b16 %v2751, %v2745
    %v3160 = vpack.c.b16 %v2752, %v2746
    %v3161 = vpack.c.b16 %v2753, %v2747
    %v3162 = vpack.c.b16 %v2754, %v2748
    %v3163 = vpack.c.b16 %v2755, %v2749
    %v3164 = vpack.c.b16 %v2762, %v2756
    %v3165 = vpack.c.b16 %v2763, %v2757
    %v3166 = vpack.c.b16 %v2764, %v2758
    %v3167 = vpack.c.b16 %v2765, %v2759
    %v3168 = vpack.c.b16 %v2766, %v2760
    %v3169 = vpack.c.b16 %v2767, %v2761
    %v3170 = vpack.c.b16 %v2774, %v2768
    %v3171 = vpack.c.b16 %v2775, %v2769
    %v3172 = vpack.c.b16 %v2776, %v2770
    %v3173 = vpack.c.b16 %v2777, %v2771
    %v3174 = vpack.c.b16 %v2778, %v2772
    %v3175 = vpack.c.b16 %v2779, %v2773
    %v3176 = vpack.c.b16 %v2786, %v2780
    %v3177 = vpack.c.b16 %v2787, %v2781
    %v3178 = vpack.c.b16 %v2788, %v2782
    %v3179 = vpack.c.b16 %v2789, %v2783
    %v3180 = vpack.c.b16 %v2790, %v2784
    %v3181 = vpack.c.b16 %v2791, %v2785
    %v3182 = vpack.c.b16 %v2798, %v2792
    %v3183 = vpack.c.b16 %v2799, %v2793
    %v3184 = vpack.c.b16 %v2800, %v2794
    %v3185 = vpack.c.b16 %v2801, %v2795
    %v3186 = vpack.c.b16 %v2802, %v2796
    %v3187 = vpack.c.b16 %v2803, %v2797
    %3572 = vmatprep.subr.bf16.mxu0 %v2805
    %3573 = vmatpush1.bf16.msra.mxu0 %v2804
    %3574 = vmatprep.subr.bf16.mxu0 %v2811
    %3575 = vmatpush1.bf16.msra.mxu0 %v2810
    %3576 = vmatprep.subr.bf16.mxu0 %v2817
    %3577 = vmatpush1.bf16.msra.mxu0 %v2816
    %3578 = vmatprep.subr.bf16.mxu0 %v2823
    %3579 = vmatpush1.bf16.msra.mxu0 %v2822
    %3580 = vmatprep.subr.bf16.mxu0 %v2829
    %3581 = vmatpush1.bf16.msra.mxu0 %v2828
    %3582 = vmatprep.subr.bf16.mxu0 %v2835
    %3583 = vmatpush1.bf16.msra.mxu0 %v2834
    %3584 = vmatprep.subr.bf16.mxu0 %v2841
    %3585 = vmatpush1.bf16.msra.mxu0 %v2840
    %3586 = vmatprep.subr.bf16.mxu0 %v2847
    %3587 = vmatpush1.bf16.msra.mxu0 %v2846
    %3588 = vmatprep.subr.bf16.mxu0 %v2853
    %3589 = vmatpush1.bf16.msra.mxu0 %v2852
    %3590 = vmatprep.subr.bf16.mxu0 %v2859
    %3591 = vmatpush1.bf16.msra.mxu0 %v2858
    %3592 = vmatprep.subr.bf16.mxu0 %v2865
    %3593 = vmatpush1.bf16.msra.mxu0 %v2864
    %3594 = vmatprep.subr.bf16.mxu0 %v2871
    %3595 = vmatpush1.bf16.msra.mxu0 %v2870
    %3596 = vmatprep.subr.bf16.mxu0 %v2877
    %3597 = vmatpush1.bf16.msra.mxu0 %v2876
    %3598 = vmatprep.subr.bf16.mxu0 %v2883
    %3599 = vmatpush1.bf16.msra.mxu0 %v2882
    %3600 = vmatprep.subr.bf16.mxu0 %v2889
    %3601 = vmatpush1.bf16.msra.mxu0 %v2888
    %3602 = vmatprep.subr.bf16.mxu0 %v2895
    %3603 = vmatpush1.bf16.msra.mxu0 %v2894
    %3604 = vmatprep.mubr.bf16.mxu0 %v1261
    %3605 = vmatmul.mubr.bf16.gmra.mrb[0].mxu0 %v1260
    %v3606 = vpop.f32.mrb[0].mxu0
    %v3607 = vadd.f32 0.0, %v3606
    %v3608 = vpop.f32.mrb[0].mxu0
    %v3609 = vadd.f32 0.0, %v3608
    %v3610 = vpop.f32.mrb[0].mxu0
    %v3611 = vpop.f32.mrb[0].mxu0
    %3612 = vdwg.mxu0
    %3613 = vmatprep.subr.bf16.mxu0 %v2901
    %3614 = vmatpush1.bf16.msra.mxu0 %v2900
    %3615 = vmatprep.subr.bf16.mxu0 %v2907
    %3616 = vmatpush1.bf16.msra.mxu0 %v2906
    %3617 = vmatprep.subr.bf16.mxu0 %v2913
    %3618 = vmatpush1.bf16.msra.mxu0 %v2912
    %3619 = vmatprep.subr.bf16.mxu0 %v2919
    %3620 = vmatpush1.bf16.msra.mxu0 %v2918
    %3621 = vmatprep.subr.bf16.mxu0 %v2925
    %3622 = vmatpush1.bf16.msra.mxu0 %v2924
    %3623 = vmatprep.subr.bf16.mxu0 %v2931
    %3624 = vmatpush1.bf16.msra.mxu0 %v2930
    %3625 = vmatprep.subr.bf16.mxu0 %v2937
    %3626 = vmatpush1.bf16.msra.mxu0 %v2936
    %3627 = vmatprep.subr.bf16.mxu0 %v2943
    %3628 = vmatpush1.bf16.msra.mxu0 %v2942
    %3629 = vmatprep.subr.bf16.mxu0 %v2949
    %3630 = vmatpush1.bf16.msra.mxu0 %v2948
    %3631 = vmatprep.subr.bf16.mxu0 %v2955
    %3632 = vmatpush1.bf16.msra.mxu0 %v2954
    %3633 = vmatprep.subr.bf16.mxu0 %v2961
    %3634 = vmatpush1.bf16.msra.mxu0 %v2960
    %3635 = vmatprep.subr.bf16.mxu0 %v2967
    %3636 = vmatpush1.bf16.msra.mxu0 %v2966
    %3637 = vmatprep.subr.bf16.mxu0 %v2973
    %3638 = vmatpush1.bf16.msra.mxu0 %v2972
    %3639 = vmatprep.subr.bf16.mxu0 %v2979
    %3640 = vmatpush1.bf16.msra.mxu0 %v2978
    %3641 = vmatprep.subr.bf16.mxu0 %v2985
    %3642 = vmatpush1.bf16.msra.mxu0 %v2984
    %3643 = vmatprep.subr.bf16.mxu0 %v2991
    %3644 = vmatpush1.bf16.msra.mxu0 %v2990
    %3645 = vmatprep.mubr.bf16.mxu0 %v1263
    %3646 = vmatmul.mubr.bf16.gmra.mrb[0].mxu0 %v1262
    %v3647 = vpop.f32.mrb[0].mxu0
    %v3648 = vadd.f32 %v3607, %v3647
    %v3649 = vpop.f32.mrb[0].mxu0
    %v3650 = vadd.f32 %v3609, %v3649
    %v3651 = vpop.f32.mrb[0].mxu0
    %v3652 = vpop.f32.mrb[0].mxu0
    %3653 = vdwg.mxu0
    %3654 = vmatprep.subr.bf16.mxu0 %v2997
    %3655 = vmatpush1.bf16.msra.mxu0 %v2996
    %3656 = vmatprep.subr.bf16.mxu0 %v3003
    %3657 = vmatpush1.bf16.msra.mxu0 %v3002
    %3658 = vmatprep.subr.bf16.mxu0 %v3009
    %3659 = vmatpush1.bf16.msra.mxu0 %v3008
    %3660 = vmatprep.subr.bf16.mxu0 %v3015
    %3661 = vmatpush1.bf16.msra.mxu0 %v3014
    %3662 = vmatprep.subr.bf16.mxu0 %v3021
    %3663 = vmatpush1.bf16.msra.mxu0 %v3020
    %3664 = vmatprep.subr.bf16.mxu0 %v3027
    %3665 = vmatpush1.bf16.msra.mxu0 %v3026
    %3666 = vmatprep.subr.bf16.mxu0 %v3033
    %3667 = vmatpush1.bf16.msra.mxu0 %v3032
    %3668 = vmatprep.subr.bf16.mxu0 %v3039
    %3669 = vmatpush1.bf16.msra.mxu0 %v3038
    %3670 = vmatprep.subr.bf16.mxu0 %v3045
    %3671 = vmatpush1.bf16.msra.mxu0 %v3044
    %3672 = vmatprep.subr.bf16.mxu0 %v3051
    %3673 = vmatpush1.bf16.msra.mxu0 %v3050
    %3674 = vmatprep.subr.bf16.mxu0 %v3057
    %3675 = vmatpush1.bf16.msra.mxu0 %v3056
    %3676 = vmatprep.subr.bf16.mxu0 %v3063
    %3677 = vmatpush1.bf16.msra.mxu0 %v3062
    %3678 = vmatprep.subr.bf16.mxu0 %v3069
    %3679 = vmatpush1.bf16.msra.mxu0 %v3068
    %3680 = vmatprep.subr.bf16.mxu0 %v3075
    %3681 = vmatpush1.bf16.msra.mxu0 %v3074
    %3682 = vmatprep.subr.bf16.mxu0 %v3081
    %3683 = vmatpush1.bf16.msra.mxu0 %v3080
    %3684 = vmatprep.subr.bf16.mxu0 %v3087
    %3685 = vmatpush1.bf16.msra.mxu0 %v3086
    %3686 = vmatprep.mubr.bf16.mxu0 %v1265
    %3687 = vmatmul.mubr.bf16.gmra.mrb[0].mxu0 %v1264
    %v3688 = vpop.f32.mrb[0].mxu0
    %v3689 = vadd.f32 %v3648, %v3688
    %v3690 = vpop.f32.mrb[0].mxu0
    %v3691 = vadd.f32 %v3650, %v3690
    %v3692 = vpop.f32.mrb[0].mxu0
    %v3693 = vpop.f32.mrb[0].mxu0
    %3694 = vdwg.mxu0
    %3695 = vmatprep.subr.bf16.mxu0 %v3093
    %3696 = vmatpush1.bf16.msra.mxu0 %v3092
    %3697 = vmatprep.subr.bf16.mxu0 %v3099
    %3698 = vmatpush1.bf16.msra.mxu0 %v3098
    %3699 = vmatprep.subr.bf16.mxu0 %v3105
    %3700 = vmatpush1.bf16.msra.mxu0 %v3104
    %3701 = vmatprep.subr.bf16.mxu0 %v3111
    %3702 = vmatpush1.bf16.msra.mxu0 %v3110
    %3703 = vmatprep.subr.bf16.mxu0 %v3117
    %3704 = vmatpush1.bf16.msra.mxu0 %v3116
    %3705 = vmatprep.subr.bf16.mxu0 %v3123
    %3706 = vmatpush1.bf16.msra.mxu0 %v3122
    %3707 = vmatprep.subr.bf16.mxu0 %v3129
    %3708 = vmatpush1.bf16.msra.mxu0 %v3128
    %3709 = vmatprep.subr.bf16.mxu0 %v3135
    %3710 = vmatpush1.bf16.msra.mxu0 %v3134
    %3711 = vmatprep.subr.bf16.mxu0 %v3141
    %3712 = vmatpush1.bf16.msra.mxu0 %v3140
    %3713 = vmatprep.subr.bf16.mxu0 %v3147
    %3714 = vmatpush1.bf16.msra.mxu0 %v3146
    %3715 = vmatprep.subr.bf16.mxu0 %v3153
    %3716 = vmatpush1.bf16.msra.mxu0 %v3152
    %3717 = vmatprep.subr.bf16.mxu0 %v3159
    %3718 = vmatpush1.bf16.msra.mxu0 %v3158
    %3719 = vmatprep.subr.bf16.mxu0 %v3165
    %3720 = vmatpush1.bf16.msra.mxu0 %v3164
    %3721 = vmatprep.subr.bf16.mxu0 %v3171
    %3722 = vmatpush1.bf16.msra.mxu0 %v3170
    %3723 = vmatprep.subr.bf16.mxu0 %v3177
    %3724 = vmatpush1.bf16.msra.mxu0 %v3176
    %3725 = vmatprep.subr.bf16.mxu0 %v3183
    %3726 = vmatpush1.bf16.msra.mxu0 %v3182
    %3727 = vmatprep.mubr.bf16.mxu0 %v1267
    %3728 = vmatmul.mubr.bf16.gmra.mrb[0].mxu0 %v1266
    %v3729 = vpop.f32.mrb[0].mxu0
    %v3730 = vadd.f32 %v3689, %v3729
    %v3731 = vpop.f32.mrb[0].mxu0
    %v3732 = vadd.f32 %v3691, %v3731
    %v3733 = vpop.f32.mrb[0].mxu0
    %v3734 = vpop.f32.mrb[0].mxu0
    %3735 = vdwg.mxu0
    %3736 = vmatprep.subr.bf16.mxu0 %v2807
    %3737 = vmatpush1.bf16.msra.mxu0 %v2806
    %3738 = vmatprep.subr.bf16.mxu0 %v2813
    %3739 = vmatpush1.bf16.msra.mxu0 %v2812
    %3740 = vmatprep.subr.bf16.mxu0 %v2819
    %3741 = vmatpush1.bf16.msra.mxu0 %v2818
    %3742 = vmatprep.subr.bf16.mxu0 %v2825
    %3743 = vmatpush1.bf16.msra.mxu0 %v2824
    %3744 = vmatprep.subr.bf16.mxu0 %v2831
    %3745 = vmatpush1.bf16.msra.mxu0 %v2830
    %3746 = vmatprep.subr.bf16.mxu0 %v2837
    %3747 = vmatpush1.bf16.msra.mxu0 %v2836
    %3748 = vmatprep.subr.bf16.mxu0 %v2843
    %3749 = vmatpush1.bf16.msra.mxu0 %v2842
    %3750 = vmatprep.subr.bf16.mxu0 %v2849
    %3751 = vmatpush1.bf16.msra.mxu0 %v2848
    %3752 = vmatprep.subr.bf16.mxu0 %v2855
    %3753 = vmatpush1.bf16.msra.mxu0 %v2854
    %3754 = vmatprep.subr.bf16.mxu0 %v2861
    %3755 = vmatpush1.bf16.msra.mxu0 %v2860
    %3756 = vmatprep.subr.bf16.mxu0 %v2867
    %3757 = vmatpush1.bf16.msra.mxu0 %v2866
    %3758 = vmatprep.subr.bf16.mxu0 %v2873
    %3759 = vmatpush1.bf16.msra.mxu0 %v2872
    %3760 = vmatprep.subr.bf16.mxu0 %v2879
    %3761 = vmatpush1.bf16.msra.mxu0 %v2878
    %3762 = vmatprep.subr.bf16.mxu0 %v2885
    %3763 = vmatpush1.bf16.msra.mxu0 %v2884
    %3764 = vmatprep.subr.bf16.mxu0 %v2891
    %3765 = vmatpush1.bf16.msra.mxu0 %v2890
    %3766 = vmatprep.subr.bf16.mxu0 %v2897
    %3767 = vmatpush1.bf16.msra.mxu0 %v2896
    %3768 = vmatprep.mubr.bf16.mxu0 %v1261
    %3769 = vmatmul.mubr.bf16.gmra.mrb[0].mxu0 %v1260
    %v3770 = vpop.f32.mrb[0].mxu0
    %v3771 = vadd.f32 0.0, %v3770
    %v3772 = vpop.f32.mrb[0].mxu0
    %v3773 = vadd.f32 0.0, %v3772
    %v3774 = vpop.f32.mrb[0].mxu0
    %v3775 = vpop.f32.mrb[0].mxu0
    %3776 = vdwg.mxu0
    %3777 = vmatprep.subr.bf16.mxu0 %v2903
    %3778 = vmatpush1.bf16.msra.mxu0 %v2902
    %3779 = vmatprep.subr.bf16.mxu0 %v2909
    %3780 = vmatpush1.bf16.msra.mxu0 %v2908
    %3781 = vmatprep.subr.bf16.mxu0 %v2915
    %3782 = vmatpush1.bf16.msra.mxu0 %v2914
    %3783 = vmatprep.subr.bf16.mxu0 %v2921
    %3784 = vmatpush1.bf16.msra.mxu0 %v2920
    %3785 = vmatprep.subr.bf16.mxu0 %v2927
    %3786 = vmatpush1.bf16.msra.mxu0 %v2926
    %3787 = vmatprep.subr.bf16.mxu0 %v2933
    %3788 = vmatpush1.bf16.msra.mxu0 %v2932
    %3789 = vmatprep.subr.bf16.mxu0 %v2939
    %3790 = vmatpush1.bf16.msra.mxu0 %v2938
    %3791 = vmatprep.subr.bf16.mxu0 %v2945
    %3792 = vmatpush1.bf16.msra.mxu0 %v2944
    %3793 = vmatprep.subr.bf16.mxu0 %v2951
    %3794 = vmatpush1.bf16.msra.mxu0 %v2950
    %3795 = vmatprep.subr.bf16.mxu0 %v2957
    %3796 = vmatpush1.bf16.msra.mxu0 %v2956
    %3797 = vmatprep.subr.bf16.mxu0 %v2963
    %3798 = vmatpush1.bf16.msra.mxu0 %v2962
    %3799 = vmatprep.subr.bf16.mxu0 %v2969
    %3800 = vmatpush1.bf16.msra.mxu0 %v2968
    %3801 = vmatprep.subr.bf16.mxu0 %v2975
    %3802 = vmatpush1.bf16.msra.mxu0 %v2974
    %3803 = vmatprep.subr.bf16.mxu0 %v2981
    %3804 = vmatpush1.bf16.msra.mxu0 %v2980
    %3805 = vmatprep.subr.bf16.mxu0 %v2987
    %3806 = vmatpush1.bf16.msra.mxu0 %v2986
    %3807 = vmatprep.subr.bf16.mxu0 %v2993
    %3808 = vmatpush1.bf16.msra.mxu0 %v2992
    %3809 = vmatprep.mubr.bf16.mxu0 %v1263
    %3810 = vmatmul.mubr.bf16.gmra.mrb[0].mxu0 %v1262
    %v3811 = vpop.f32.mrb[0].mxu0
    %v3812 = vadd.f32 %v3771, %v3811
    %v3813 = vpop.f32.mrb[0].mxu0
    %v3814 = vadd.f32 %v3773, %v3813
    %v3815 = vpop.f32.mrb[0].mxu0
    %v3816 = vpop.f32.mrb[0].mxu0
    %3817 = vdwg.mxu0
    %3818 = vmatprep.subr.bf16.mxu0 %v2999
    %3819 = vmatpush1.bf16.msra.mxu0 %v2998
    %3820 = vmatprep.subr.bf16.mxu0 %v3005
    %3821 = vmatpush1.bf16.msra.mxu0 %v3004
    %3822 = vmatprep.subr.bf16.mxu0 %v3011
    %3823 = vmatpush1.bf16.msra.mxu0 %v3010
    %3824 = vmatprep.subr.bf16.mxu0 %v3017
    %3825 = vmatpush1.bf16.msra.mxu0 %v3016
    %3826 = vmatprep.subr.bf16.mxu0 %v3023
    %3827 = vmatpush1.bf16.msra.mxu0 %v3022
    %3828 = vmatprep.subr.bf16.mxu0 %v3029
    %3829 = vmatpush1.bf16.msra.mxu0 %v3028
    %3830 = vmatprep.subr.bf16.mxu0 %v3035
    %3831 = vmatpush1.bf16.msra.mxu0 %v3034
    %3832 = vmatprep.subr.bf16.mxu0 %v3041
    %3833 = vmatpush1.bf16.msra.mxu0 %v3040
    %3834 = vmatprep.subr.bf16.mxu0 %v3047
    %3835 = vmatpush1.bf16.msra.mxu0 %v3046
    %3836 = vmatprep.subr.bf16.mxu0 %v3053
    %3837 = vmatpush1.bf16.msra.mxu0 %v3052
    %3838 = vmatprep.subr.bf16.mxu0 %v3059
    %3839 = vmatpush1.bf16.msra.mxu0 %v3058
    %3840 = vmatprep.subr.bf16.mxu0 %v3065
    %3841 = vmatpush1.bf16.msra.mxu0 %v3064
    %3842 = vmatprep.subr.bf16.mxu0 %v3071
    %3843 = vmatpush1.bf16.msra.mxu0 %v3070
    %3844 = vmatprep.subr.bf16.mxu0 %v3077
    %3845 = vmatpush1.bf16.msra.mxu0 %v3076
    %3846 = vmatprep.subr.bf16.mxu0 %v3083
    %3847 = vmatpush1.bf16.msra.mxu0 %v3082
    %3848 = vmatprep.subr.bf16.mxu0 %v3089
    %3849 = vmatpush1.bf16.msra.mxu0 %v3088
    %3850 = vmatprep.mubr.bf16.mxu0 %v1265
    %3851 = vmatmul.mubr.bf16.gmra.mrb[0].mxu0 %v1264
    %v3852 = vpop.f32.mrb[0].mxu0
    %v3853 = vadd.f32 %v3812, %v3852
    %v3854 = vpop.f32.mrb[0].mxu0
    %v3855 = vadd.f32 %v3814, %v3854
    %v3856 = vpop.f32.mrb[0].mxu0
    %v3857 = vpop.f32.mrb[0].mxu0
    %3858 = vdwg.mxu0
    %3859 = vmatprep.subr.bf16.mxu0 %v3095
    %3860 = vmatpush1.bf16.msra.mxu0 %v3094
    %3861 = vmatprep.subr.bf16.mxu0 %v3101
    %3862 = vmatpush1.bf16.msra.mxu0 %v3100
    %3863 = vmatprep.subr.bf16.mxu0 %v3107
    %3864 = vmatpush1.bf16.msra.mxu0 %v3106
    %3865 = vmatprep.subr.bf16.mxu0 %v3113
    %3866 = vmatpush1.bf16.msra.mxu0 %v3112
    %3867 = vmatprep.subr.bf16.mxu0 %v3119
    %3868 = vmatpush1.bf16.msra.mxu0 %v3118
    %3869 = vmatprep.subr.bf16.mxu0 %v3125
    %3870 = vmatpush1.bf16.msra.mxu0 %v3124
    %3871 = vmatprep.subr.bf16.mxu0 %v3131
    %3872 = vmatpush1.bf16.msra.mxu0 %v3130
    %3873 = vmatprep.subr.bf16.mxu0 %v3137
    %3874 = vmatpush1.bf16.msra.mxu0 %v3136
    %3875 = vmatprep.subr.bf16.mxu0 %v3143
    %3876 = vmatpush1.bf16.msra.mxu0 %v3142
    %3877 = vmatprep.subr.bf16.mxu0 %v3149
    %3878 = vmatpush1.bf16.msra.mxu0 %v3148
    %3879 = vmatprep.subr.bf16.mxu0 %v3155
    %3880 = vmatpush1.bf16.msra.mxu0 %v3154
    %3881 = vmatprep.subr.bf16.mxu0 %v3161
    %3882 = vmatpush1.bf16.msra.mxu0 %v3160
    %3883 = vmatprep.subr.bf16.mxu0 %v3167
    %3884 = vmatpush1.bf16.msra.mxu0 %v3166
    %3885 = vmatprep.subr.bf16.mxu0 %v3173
    %3886 = vmatpush1.bf16.msra.mxu0 %v3172
    %3887 = vmatprep.subr.bf16.mxu0 %v3179
    %3888 = vmatpush1.bf16.msra.mxu0 %v3178
    %3889 = vmatprep.subr.bf16.mxu0 %v3185
    %3890 = vmatpush1.bf16.msra.mxu0 %v3184
    %3891 = vmatprep.mubr.bf16.mxu0 %v1267
    %3892 = vmatmul.mubr.bf16.gmra.mrb[0].mxu0 %v1266
    %v3893 = vpop.f32.mrb[0].mxu0
    %v3894 = vadd.f32 %v3853, %v3893
    %v3895 = vpop.f32.mrb[0].mxu0
    %v3896 = vadd.f32 %v3855, %v3895
    %v3897 = vpop.f32.mrb[0].mxu0
    %v3898 = vpop.f32.mrb[0].mxu0
    %3899 = vdwg.mxu0
    %3900 = vmatprep.subr.bf16.mxu0 %v2809
    %3901 = vmatpush1.bf16.msra.mxu0 %v2808
    %3902 = vmatprep.subr.bf16.mxu0 %v2815
    %3903 = vmatpush1.bf16.msra.mxu0 %v2814
    %3904 = vmatprep.subr.bf16.mxu0 %v2821
    %3905 = vmatpush1.bf16.msra.mxu0 %v2820
    %3906 = vmatprep.subr.bf16.mxu0 %v2827
    %3907 = vmatpush1.bf16.msra.mxu0 %v2826
    %3908 = vmatprep.subr.bf16.mxu0 %v2833
    %3909 = vmatpush1.bf16.msra.mxu0 %v2832
    %3910 = vmatprep.subr.bf16.mxu0 %v2839
    %3911 = vmatpush1.bf16.msra.mxu0 %v2838
    %3912 = vmatprep.subr.bf16.mxu0 %v2845
    %3913 = vmatpush1.bf16.msra.mxu0 %v2844
    %3914 = vmatprep.subr.bf16.mxu0 %v2851
    %3915 = vmatpush1.bf16.msra.mxu0 %v2850
    %3916 = vmatprep.subr.bf16.mxu0 %v2857
    %3917 = vmatpush1.bf16.msra.mxu0 %v2856
    %3918 = vmatprep.subr.bf16.mxu0 %v2863
    %3919 = vmatpush1.bf16.msra.mxu0 %v2862
    %3920 = vmatprep.subr.bf16.mxu0 %v2869
    %3921 = vmatpush1.bf16.msra.mxu0 %v2868
    %3922 = vmatprep.subr.bf16.mxu0 %v2875
    %3923 = vmatpush1.bf16.msra.mxu0 %v2874
    %3924 = vmatprep.subr.bf16.mxu0 %v2881
    %3925 = vmatpush1.bf16.msra.mxu0 %v2880
    %3926 = vmatprep.subr.bf16.mxu0 %v2887
    %3927 = vmatpush1.bf16.msra.mxu0 %v2886
    %3928 = vmatprep.subr.bf16.mxu0 %v2893
    %3929 = vmatpush1.bf16.msra.mxu0 %v2892
    %3930 = vmatprep.subr.bf16.mxu0 %v2899
    %3931 = vmatpush1.bf16.msra.mxu0 %v2898
    %3932 = vmatprep.mubr.bf16.mxu0 %v1261
    %3933 = vmatmul.mubr.bf16.gmra.mrb[0].mxu0 %v1260
    %v3934 = vpop.f32.mrb[0].mxu0
    %v3935 = vadd.f32 0.0, %v3934
    %v3936 = vpop.f32.mrb[0].mxu0
    %v3937 = vadd.f32 0.0, %v3936
    %v3938 = vpop.f32.mrb[0].mxu0
    %v3939 = vpop.f32.mrb[0].mxu0
    %3940 = vdwg.mxu0
    %3941 = vmatprep.subr.bf16.mxu0 %v2905
    %3942 = vmatpush1.bf16.msra.mxu0 %v2904
    %3943 = vmatprep.subr.bf16.mxu0 %v2911
    %3944 = vmatpush1.bf16.msra.mxu0 %v2910
    %3945 = vmatprep.subr.bf16.mxu0 %v2917
    %3946 = vmatpush1.bf16.msra.mxu0 %v2916
    %3947 = vmatprep.subr.bf16.mxu0 %v2923
    %3948 = vmatpush1.bf16.msra.mxu0 %v2922
    %3949 = vmatprep.subr.bf16.mxu0 %v2929
    %3950 = vmatpush1.bf16.msra.mxu0 %v2928
    %3951 = vmatprep.subr.bf16.mxu0 %v2935
    %3952 = vmatpush1.bf16.msra.mxu0 %v2934
    %3953 = vmatprep.subr.bf16.mxu0 %v2941
    %3954 = vmatpush1.bf16.msra.mxu0 %v2940
    %3955 = vmatprep.subr.bf16.mxu0 %v2947
    %3956 = vmatpush1.bf16.msra.mxu0 %v2946
    %3957 = vmatprep.subr.bf16.mxu0 %v2953
    %3958 = vmatpush1.bf16.msra.mxu0 %v2952
    %3959 = vmatprep.subr.bf16.mxu0 %v2959
    %3960 = vmatpush1.bf16.msra.mxu0 %v2958
    %3961 = vmatprep.subr.bf16.mxu0 %v2965
    %3962 = vmatpush1.bf16.msra.mxu0 %v2964
    %3963 = vmatprep.subr.bf16.mxu0 %v2971
    %3964 = vmatpush1.bf16.msra.mxu0 %v2970
    %3965 = vmatprep.subr.bf16.mxu0 %v2977
    %3966 = vmatpush1.bf16.msra.mxu0 %v2976
    %3967 = vmatprep.subr.bf16.mxu0 %v2983
    %3968 = vmatpush1.bf16.msra.mxu0 %v2982
    %3969 = vmatprep.subr.bf16.mxu0 %v2989
    %3970 = vmatpush1.bf16.msra.mxu0 %v2988
    %3971 = vmatprep.subr.bf16.mxu0 %v2995
    %3972 = vmatpush1.bf16.msra.mxu0 %v2994
    %3973 = vmatprep.mubr.bf16.mxu0 %v1263
    %3974 = vmatmul.mubr.bf16.gmra.mrb[0].mxu0 %v1262
    %v3975 = vpop.f32.mrb[0].mxu0
    %v3976 = vadd.f32 %v3935, %v3975
    %v3977 = vpop.f32.mrb[0].mxu0
    %v3978 = vadd.f32 %v3937, %v3977
    %v3979 = vpop.f32.mrb[0].mxu0
    %v3980 = vpop.f32.mrb[0].mxu0
    %3981 = vdwg.mxu0
    %3982 = vmatprep.subr.bf16.mxu0 %v3001
    %3983 = vmatpush1.bf16.msra.mxu0 %v3000
    %3984 = vmatprep.subr.bf16.mxu0 %v3007
    %3985 = vmatpush1.bf16.msra.mxu0 %v3006
    %3986 = vmatprep.subr.bf16.mxu0 %v3013
    %3987 = vmatpush1.bf16.msra.mxu0 %v3012
    %3988 = vmatprep.subr.bf16.mxu0 %v3019
    %3989 = vmatpush1.bf16.msra.mxu0 %v3018
    %3990 = vmatprep.subr.bf16.mxu0 %v3025
    %3991 = vmatpush1.bf16.msra.mxu0 %v3024
    %3992 = vmatprep.subr.bf16.mxu0 %v3031
    %3993 = vmatpush1.bf16.msra.mxu0 %v3030
    %3994 = vmatprep.subr.bf16.mxu0 %v3037
    %3995 = vmatpush1.bf16.msra.mxu0 %v3036
    %3996 = vmatprep.subr.bf16.mxu0 %v3043
    %3997 = vmatpush1.bf16.msra.mxu0 %v3042
    %3998 = vmatprep.subr.bf16.mxu0 %v3049
    %3999 = vmatpush1.bf16.msra.mxu0 %v3048
    %4000 = vmatprep.subr.bf16.mxu0 %v3055
    %4001 = vmatpush1.bf16.msra.mxu0 %v3054
    %4002 = vmatprep.subr.bf16.mxu0 %v3061
    %4003 = vmatpush1.bf16.msra.mxu0 %v3060
    %4004 = vmatprep.subr.bf16.mxu0 %v3067
    %4005 = vmatpush1.bf16.msra.mxu0 %v3066
    %4006 = vmatprep.subr.bf16.mxu0 %v3073
    %4007 = vmatpush1.bf16.msra.mxu0 %v3072
    %4008 = vmatprep.subr.bf16.mxu0 %v3079
    %4009 = vmatpush1.bf16.msra.mxu0 %v3078
    %4010 = vmatprep.subr.bf16.mxu0 %v3085
    %4011 = vmatpush1.bf16.msra.mxu0 %v3084
    %4012 = vmatprep.subr.bf16.mxu0 %v3091
    %4013 = vmatpush1.bf16.msra.mxu0 %v3090
    %4014 = vmatprep.mubr.bf16.mxu0 %v1265
    %4015 = vmatmul.mubr.bf16.gmra.mrb[0].mxu0 %v1264
    %v4016 = vpop.f32.mrb[0].mxu0
    %v4017 = vadd.f32 %v3976, %v4016
    %v4018 = vpop.f32.mrb[0].mxu0
    %v4019 = vadd.f32 %v3978, %v4018
    %v4020 = vpop.f32.mrb[0].mxu0
    %v4021 = vpop.f32.mrb[0].mxu0
    %4022 = vdwg.mxu0
    %4023 = vmatprep.subr.bf16.mxu0 %v3097
    %4024 = vmatpush1.bf16.msra.mxu0 %v3096
    %4025 = vmatprep.subr.bf16.mxu0 %v3103
    %4026 = vmatpush1.bf16.msra.mxu0 %v3102
    %4027 = vmatprep.subr.bf16.mxu0 %v3109
    %4028 = vmatpush1.bf16.msra.mxu0 %v3108
    %4029 = vmatprep.subr.bf16.mxu0 %v3115
    %4030 = vmatpush1.bf16.msra.mxu0 %v3114
    %4031 = vmatprep.subr.bf16.mxu0 %v3121
    %4032 = vmatpush1.bf16.msra.mxu0 %v3120
    %4033 = vmatprep.subr.bf16.mxu0 %v3127
    %4034 = vmatpush1.bf16.msra.mxu0 %v3126
    %4035 = vmatprep.subr.bf16.mxu0 %v3133
    %4036 = vmatpush1.bf16.msra.mxu0 %v3132
    %4037 = vmatprep.subr.bf16.mxu0 %v3139
    %4038 = vmatpush1.bf16.msra.mxu0 %v3138
    %4039 = vmatprep.subr.bf16.mxu0 %v3145
    %4040 = vmatpush1.bf16.msra.mxu0 %v3144
    %4041 = vmatprep.subr.bf16.mxu0 %v3151
    %4042 = vmatpush1.bf16.msra.mxu0 %v3150
    %4043 = vmatprep.subr.bf16.mxu0 %v3157
    %4044 = vmatpush1.bf16.msra.mxu0 %v3156
    %4045 = vmatprep.subr.bf16.mxu0 %v3163
    %4046 = vmatpush1.bf16.msra.mxu0 %v3162
    %4047 = vmatprep.subr.bf16.mxu0 %v3169
    %4048 = vmatpush1.bf16.msra.mxu0 %v3168
    %4049 = vmatprep.subr.bf16.mxu0 %v3175
    %4050 = vmatpush1.bf16.msra.mxu0 %v3174
    %4051 = vmatprep.subr.bf16.mxu0 %v3181
    %4052 = vmatpush1.bf16.msra.mxu0 %v3180
    %4053 = vmatprep.subr.bf16.mxu0 %v3187
    %4054 = vmatpush1.bf16.msra.mxu0 %v3186
    %4055 = vmatprep.mubr.bf16.mxu0 %v1267
    %4056 = vmatmul.mubr.bf16.gmra.mrb[0].mxu0 %v1266
    %v4057 = vpop.f32.mrb[0].mxu0
    %v4058 = vadd.f32 %v4017, %v4057
    %v4059 = vpop.f32.mrb[0].mxu0
    %v4060 = vadd.f32 %v4019, %v4059
    %v4061 = vpop.f32.mrb[0].mxu0
    %v4062 = vpop.f32.mrb[0].mxu0
    %4063 = vdwg.mxu0
    %v4064 = vld [vmem:[#allocation10] sm:$0x3f]
    %v4065 = vld [vmem:[#allocation11] sm:$0x3f]
    %v4066 = vsel %vm851, %v3730, 0.0
    %v4067 = vrot.slane %v4066, 4
    %v4068 = vadd.f32 %v4066, %v4067
    %v4069 = vrot.slane %v4068, 2
    %v4070 = vadd.f32 %v4068, %v4069
    %v4071 = vrot.slane %v4070, 1
    %v4072 = vadd.f32 %v4070, %v4071
    %v4073 = vsel %vm851, %v3732, 0.0
    %v4074 = vrot.slane %v4073, 4
    %v4075 = vadd.f32 %v4073, %v4074
    %v4076 = vrot.slane %v4075, 2
    %v4077 = vadd.f32 %v4075, %v4076
    %v4078 = vrot.slane %v4077, 1
    %v4079 = vadd.f32 %v4077, %v4078
    %v4080 = vsel %vm851, %v3894, 0.0
    %v4081 = vrot.slane %v4080, 4
    %v4082 = vadd.f32 %v4080, %v4081
    %v4083 = vrot.slane %v4082, 2
    %v4084 = vadd.f32 %v4082, %v4083
    %v4085 = vrot.slane %v4084, 1
    %v4086 = vadd.f32 %v4084, %v4085
    %v4087 = vsel %vm851, %v3896, 0.0
    %v4088 = vrot.slane %v4087, 4
    %v4089 = vadd.f32 %v4087, %v4088
    %v4090 = vrot.slane %v4089, 2
    %v4091 = vadd.f32 %v4089, %v4090
    %v4092 = vrot.slane %v4091, 1
    %v4093 = vadd.f32 %v4091, %v4092
    %v4094 = vsel %vm851, %v4058, 0.0
    %v4095 = vrot.slane %v4094, 4
    %v4096 = vadd.f32 %v4094, %v4095
    %v4097 = vrot.slane %v4096, 2
    %v4098 = vadd.f32 %v4096, %v4097
    %v4099 = vrot.slane %v4098, 1
    %v4100 = vadd.f32 %v4098, %v4099
    %v4101 = vsel %vm851, %v4060, 0.0
    %v4102 = vrot.slane %v4101, 4
    %v4103 = vadd.f32 %v4101, %v4102
    %v4104 = vrot.slane %v4103, 2
    %v4105 = vadd.f32 %v4103, %v4104
    %v4106 = vrot.slane %v4105, 1
    %v4107 = vadd.f32 %v4105, %v4106
    %v4108 = vmul.f32 %v4072, 0.5
    %v4109 = vmul.f32 %v4079, 0.5
    %v4110 = vmul.f32 %v4086, 0.5
    %v4111 = vmul.f32 %v4093, 0.5
    %v4112 = vmul.f32 %v4100, 0.5
    %v4113 = vmul.f32 %v4107, 0.5
    %v4114 = vmul.f32 %v3730, %v3730
    %v4115 = vmul.f32 %v3732, %v3732
    %v4116 = vmul.f32 %v3894, %v3894
    %v4117 = vmul.f32 %v3896, %v3896
    %v4118 = vmul.f32 %v4058, %v4058
    %v4119 = vmul.f32 %v4060, %v4060
    %v4120 = vsel %vm851, %v4114, 0.0
    %v4121 = vrot.slane %v4120, 4
    %v4122 = vadd.f32 %v4120, %v4121
    %v4123 = vrot.slane %v4122, 2
    %v4124 = vadd.f32 %v4122, %v4123
    %v4125 = vrot.slane %v4124, 1
    %v4126 = vadd.f32 %v4124, %v4125
    %v4127 = vsel %vm851, %v4115, 0.0
    %v4128 = vrot.slane %v4127, 4
    %v4129 = vadd.f32 %v4127, %v4128
    %v4130 = vrot.slane %v4129, 2
    %v4131 = vadd.f32 %v4129, %v4130
    %v4132 = vrot.slane %v4131, 1
    %v4133 = vadd.f32 %v4131, %v4132
    %v4134 = vsel %vm851, %v4116, 0.0
    %v4135 = vrot.slane %v4134, 4
    %v4136 = vadd.f32 %v4134, %v4135
    %v4137 = vrot.slane %v4136, 2
    %v4138 = vadd.f32 %v4136, %v4137
    %v4139 = vrot.slane %v4138, 1
    %v4140 = vadd.f32 %v4138, %v4139
    %v4141 = vsel %vm851, %v4117, 0.0
    %v4142 = vrot.slane %v4141, 4
    %v4143 = vadd.f32 %v4141, %v4142
    %v4144 = vrot.slane %v4143, 2
    %v4145 = vadd.f32 %v4143, %v4144
    %v4146 = vrot.slane %v4145, 1
    %v4147 = vadd.f32 %v4145, %v4146
    %v4148 = vsel %vm851, %v4118, 0.0
    %v4149 = vrot.slane %v4148, 4
    %v4150 = vadd.f32 %v4148, %v4149
    %v4151 = vrot.slane %v4150, 2
    %v4152 = vadd.f32 %v4150, %v4151
    %v4153 = vrot.slane %v4152, 1
    %v4154 = vadd.f32 %v4152, %v4153
    %v4155 = vsel %vm851, %v4119, 0.0
    %v4156 = vrot.slane %v4155, 4
    %v4157 = vadd.f32 %v4155, %v4156
    %v4158 = vrot.slane %v4157, 2
    %v4159 = vadd.f32 %v4157, %v4158
    %v4160 = vrot.slane %v4159, 1
    %v4161 = vadd.f32 %v4159, %v4160
    %v4162 = vmul.f32 %v4126, 0.5
    %v4163 = vmul.f32 %v4133, 0.5
    %v4164 = vmul.f32 %v4140, 0.5
    %v4165 = vmul.f32 %v4147, 0.5
    %v4166 = vmul.f32 %v4154, 0.5
    %v4167 = vmul.f32 %v4161, 0.5
    %v4168 = vmul.f32 %v4108, %v4108
    %v4169 = vmul.f32 %v4109, %v4109
    %v4170 = vmul.f32 %v4110, %v4110
    %v4171 = vmul.f32 %v4111, %v4111
    %v4172 = vmul.f32 %v4112, %v4112
    %v4173 = vmul.f32 %v4113, %v4113
    %v4174 = vsub.f32 %v4162, %v4168
    %v4175 = vsub.f32 %v4163, %v4169
    %v4176 = vsub.f32 %v4164, %v4170
    %v4177 = vsub.f32 %v4165, %v4171
    %v4178 = vsub.f32 %v4166, %v4172
    %v4179 = vsub.f32 %v4167, %v4173
    %v4180 = vmax.f32 %v4174, 0.0
    %v4181 = vmax.f32 %v4175, 0.0
    %v4182 = vmax.f32 %v4176, 0.0
    %v4183 = vmax.f32 %v4177, 0.0
    %v4184 = vmax.f32 %v4178, 0.0
    %v4185 = vmax.f32 %v4179, 0.0
    %v4186 = vadd.f32 %v4180, 1e-05
    %v4187 = vadd.f32 %v4181, 1e-05
    %v4188 = vadd.f32 %v4182, 1e-05
    %v4189 = vadd.f32 %v4183, 1e-05
    %v4190 = vadd.f32 %v4184, 1e-05
    %v4191 = vadd.f32 %v4185, 1e-05
    %v4192 = vrsqrt.pop %v4186
    %v4193 = vrsqrt.pop %v4187
    %v4194 = vrsqrt.pop %v4188
    %v4195 = vrsqrt.pop %v4189
    %v4196 = vrsqrt.pop %v4190
    %v4197 = vrsqrt.pop %v4191
    %v4204 = vcombine.low %v4192, %v4193
    %v4205 = vcombine.low %v4194, %v4195
    %v4206 = vcombine.low %v4196, %v4197
    %v4208 = vunpack.c.l.s4 1966171168
    %v4209 = vunpack.c.0.s8 %v4208
    %v4210 = vlaneseq
    %v4211 = vshrl.u32 %v4210, 7
    %v4212 = vsub.s32 %v4209, %v4211
    %v4213 = vrot.slane %v4204, %v4212
    %v4215 = vunpack.c.l.s4 1966171168
    %v4216 = vunpack.c.0.s8 %v4215
    %v4217 = vlaneseq
    %v4218 = vshrl.u32 %v4217, 7
    %v4219 = vsub.s32 %v4216, %v4218
    %v4220 = vrot.slane %v4205, %v4219
    %v4222 = vunpack.c.l.s4 1966171168
    %v4223 = vunpack.c.0.s8 %v4222
    %v4224 = vlaneseq
    %v4225 = vshrl.u32 %v4224, 7
    %v4226 = vsub.s32 %v4223, %v4225
    %v4227 = vrot.slane %v4206, %v4226
    %v4228 = vcombine.low %v4213, %v4220
    %v4230 = vunpack.c.l.s4 1966171168
    %v4231 = vunpack.c.0.s8 %v4230
    %v4232 = vlaneseq
    %v4233 = vshrl.u32 %v4232, 7
    %v4234 = vsub.s32 %v4231, %v4233
    %v4235 = vrot.slane %v4228, %v4234
    %v4237 = vunpack.c.l.s4 1966171168
    %v4238 = vunpack.c.0.s8 %v4237
    %v4239 = vlaneseq
    %v4240 = vshrl.u32 %v4239, 7
    %v4241 = vsub.s32 %v4238, %v4240
    %v4242 = vrot.slane %v4227, %v4241
    %v4243 = vcombine.low %v4235, %v4242
    %v4245 = vmul.f32 %v4064, %v4243
    %v4247 = vlaneseq
    %v4248 = vshrl.u32 %v4247, 7
    %v4249 = vsub.s32 0, %v4248
    %v4250 = vrot.slane %v4245, %v4249
    %v4251 = vlaneseq
    %v4252 = vshrl.u32 %v4251, 7
    %v4253 = vsub.s32 1, %v4252
    %v4254 = vrot.slane %v4245, %v4253
    %v4255 = vlaneseq
    %v4256 = vshrl.u32 %v4255, 7
    %v4257 = vsub.s32 2, %v4256
    %v4258 = vrot.slane %v4245, %v4257
    %v4259 = vlaneseq
    %v4260 = vshrl.u32 %v4259, 7
    %v4261 = vsub.s32 3, %v4260
    %v4262 = vrot.slane %v4245, %v4261
    %v4263 = vlaneseq
    %v4264 = vshrl.u32 %v4263, 7
    %v4265 = vsub.s32 4, %v4264
    %v4266 = vrot.slane %v4245, %v4265
    %v4267 = vlaneseq
    %v4268 = vshrl.u32 %v4267, 7
    %v4269 = vsub.s32 5, %v4268
    %v4270 = vrot.slane %v4245, %v4269
    %v4277 = vmul.f32 %v4108, %v4250
    %v4278 = vmul.f32 %v4109, %v4254
    %v4279 = vmul.f32 %v4110, %v4258
    %v4280 = vmul.f32 %v4111, %v4262
    %v4281 = vmul.f32 %v4112, %v4266
    %v4282 = vmul.f32 %v4113, %v4270
    %v4289 = vcombine.low %v4277, %v4278
    %v4290 = vcombine.low %v4279, %v4280
    %v4291 = vcombine.low %v4281, %v4282
    %v4293 = vunpack.c.l.s4 1966171168
    %v4294 = vunpack.c.0.s8 %v4293
    %v4295 = vlaneseq
    %v4296 = vshrl.u32 %v4295, 7
    %v4297 = vsub.s32 %v4294, %v4296
    %v4298 = vrot.slane %v4289, %v4297
    %v4300 = vunpack.c.l.s4 1966171168
    %v4301 = vunpack.c.0.s8 %v4300
    %v4302 = vlaneseq
    %v4303 = vshrl.u32 %v4302, 7
    %v4304 = vsub.s32 %v4301, %v4303
    %v4305 = vrot.slane %v4290, %v4304
    %v4307 = vunpack.c.l.s4 1966171168
    %v4308 = vunpack.c.0.s8 %v4307
    %v4309 = vlaneseq
    %v4310 = vshrl.u32 %v4309, 7
    %v4311 = vsub.s32 %v4308, %v4310
    %v4312 = vrot.slane %v4291, %v4311
    %v4313 = vcombine.low %v4298, %v4305
    %v4315 = vunpack.c.l.s4 1966171168
    %v4316 = vunpack.c.0.s8 %v4315
    %v4317 = vlaneseq
    %v4318 = vshrl.u32 %v4317, 7
    %v4319 = vsub.s32 %v4316, %v4318
    %v4320 = vrot.slane %v4313, %v4319
    %v4322 = vunpack.c.l.s4 1966171168
    %v4323 = vunpack.c.0.s8 %v4322
    %v4324 = vlaneseq
    %v4325 = vshrl.u32 %v4324, 7
    %v4326 = vsub.s32 %v4323, %v4325
    %v4327 = vrot.slane %v4312, %v4326
    %v4328 = vcombine.low %v4320, %v4327
    %v4330 = vsub.f32 %v4065, %v4328
    %v4331 = vmul.f32 %v3730, %v4250
    %v4332 = vmul.f32 %v3732, %v4254
    %v4333 = vmul.f32 %v3894, %v4258
    %v4334 = vmul.f32 %v3896, %v4262
    %v4335 = vmul.f32 %v4058, %v4266
    %v4336 = vmul.f32 %v4060, %v4270
    %v4338 = vlaneseq
    %v4339 = vshrl.u32 %v4338, 7
    %v4340 = vsub.s32 0, %v4339
    %v4341 = vrot.slane %v4330, %v4340
    %v4342 = vlaneseq
    %v4343 = vshrl.u32 %v4342, 7
    %v4344 = vsub.s32 1, %v4343
    %v4345 = vrot.slane %v4330, %v4344
    %v4346 = vlaneseq
    %v4347 = vshrl.u32 %v4346, 7
    %v4348 = vsub.s32 2, %v4347
    %v4349 = vrot.slane %v4330, %v4348
    %v4350 = vlaneseq
    %v4351 = vshrl.u32 %v4350, 7
    %v4352 = vsub.s32 3, %v4351
    %v4353 = vrot.slane %v4330, %v4352
    %v4354 = vlaneseq
    %v4355 = vshrl.u32 %v4354, 7
    %v4356 = vsub.s32 4, %v4355
    %v4357 = vrot.slane %v4330, %v4356
    %v4358 = vlaneseq
    %v4359 = vshrl.u32 %v4358, 7
    %v4360 = vsub.s32 5, %v4359
    %v4361 = vrot.slane %v4330, %v4360
    %v4368 = vadd.f32 %v4331, %v4341
    %v4369 = vadd.f32 %v4332, %v4345
    %v4370 = vadd.f32 %v4333, %v4349
    %v4371 = vadd.f32 %v4334, %v4353
    %v4372 = vadd.f32 %v4335, %v4357
    %v4373 = vadd.f32 %v4336, %v4361
    %v4374 = vmax.f32 %v4368, 0.0
    %v4375 = vmax.f32 %v4369, 0.0
    %v4376 = vmax.f32 %v4370, 0.0
    %v4377 = vmax.f32 %v4371, 0.0
    %v4378 = vmax.f32 %v4372, 0.0
    %v4379 = vmax.f32 %v4373, 0.0
    %4380 = vst [vmem:[#allocation2] sm:$0xff] 0.0
    %4381 = vst [vmem:[#allocation2 + $0x8] sm:$0xff] 0.0
    %4382 = vst [vmem:[#allocation2 + $0x10] sm:$0xff] 0.0
    %4383 = vst [vmem:[#allocation2 + $0x18] sm:$0xff] 0.0
    %4384 = vst [vmem:[#allocation2 + $0x20] sm:$0xff] 0.0
    %4385 = vst [vmem:[#allocation2 + $0x28] sm:$0xff] 0.0
    %v4386 = vlaneseq
    %v4387 = vshrl.u32 %v4386, 7
    %v4388 = vadd.s32 %v4387, 8
    %v4389 = vadd.s32 %v4387, 16
    %v4390 = vadd.s32 %v4387, 24
    %v4391 = vadd.s32 %v4387, 32
    %v4392 = vadd.s32 %v4387, 40
    %v4393 = vadd.s32 %v4387, 48
    %v4394 = vadd.s32 %v4387, 56
    %v4395 = vadd.s32 %v4387, 64
    %v4396 = vadd.s32 %v4387, 72
    %v4397 = vadd.s32 %v4387, 80
    %v4398 = vadd.s32 %v4387, 88
    %v4399 = vadd.s32 %v4387, 96
    %v4400 = vadd.s32 %v4387, 104
    %v4401 = vadd.s32 %v4387, 112
    %v4402 = vadd.s32 %v4387, 120
    %v4403 = vadd.s32 %v4387, 128
    %v4404 = vadd.s32 %v4387, 136
    %v4405 = vadd.s32 %v4387, 144
    %v4406 = vadd.s32 %v4387, 152
    %v4407 = vadd.s32 %v4387, 160
    %v4408 = vadd.s32 %v4387, 168
    %v4409 = vadd.s32 %v4387, 176
    %v4410 = vadd.s32 %v4387, 184
    %vm4411 = vcmp.lt.s32.totalorder %v4387, 0
    %v4412 = vsub.s32 0, %v4387
    %v4413 = vsel %vm4411, %v4412, %v4387
    %v4414 = vshrl.u32 %v4413, 3
    %v4415 = vand.u32 %v4413, 7
    %v4416 = vsub.s32 0, %v4415
    %v4417 = vsel %vm4411, %v4416, %v4415
    %vm4418 = vcmp.lt.s32.totalorder %v4388, 0
    %v4419 = vsub.s32 0, %v4388
    %v4420 = vsel %vm4418, %v4419, %v4388
    %v4421 = vshrl.u32 %v4420, 3
    %v4422 = vand.u32 %v4420, 7
    %v4423 = vsub.s32 0, %v4422
    %v4424 = vsel %vm4418, %v4423, %v4422
    %vm4425 = vcmp.lt.s32.totalorder %v4389, 0
    %v4426 = vsub.s32 0, %v4389
    %v4427 = vsel %vm4425, %v4426, %v4389
    %v4428 = vshrl.u32 %v4427, 3
    %v4429 = vand.u32 %v4427, 7
    %v4430 = vsub.s32 0, %v4429
    %v4431 = vsel %vm4425, %v4430, %v4429
    %vm4432 = vcmp.lt.s32.totalorder %v4390, 0
    %v4433 = vsub.s32 0, %v4390
    %v4434 = vsel %vm4432, %v4433, %v4390
    %v4435 = vshrl.u32 %v4434, 3
    %v4436 = vand.u32 %v4434, 7
    %v4437 = vsub.s32 0, %v4436
    %v4438 = vsel %vm4432, %v4437, %v4436
    %vm4439 = vcmp.lt.s32.totalorder %v4391, 0
    %v4440 = vsub.s32 0, %v4391
    %v4441 = vsel %vm4439, %v4440, %v4391
    %v4442 = vshrl.u32 %v4441, 3
    %v4443 = vand.u32 %v4441, 7
    %v4444 = vsub.s32 0, %v4443
    %v4445 = vsel %vm4439, %v4444, %v4443
    %vm4446 = vcmp.lt.s32.totalorder %v4392, 0
    %v4447 = vsub.s32 0, %v4392
    %v4448 = vsel %vm4446, %v4447, %v4392
    %v4449 = vshrl.u32 %v4448, 3
    %v4450 = vand.u32 %v4448, 7
    %v4451 = vsub.s32 0, %v4450
    %v4452 = vsel %vm4446, %v4451, %v4450
    %vm4453 = vcmp.lt.s32.totalorder %v4393, 0
    %v4454 = vsub.s32 0, %v4393
    %v4455 = vsel %vm4453, %v4454, %v4393
    %v4456 = vshrl.u32 %v4455, 3
    %v4457 = vand.u32 %v4455, 7
    %v4458 = vsub.s32 0, %v4457
    %v4459 = vsel %vm4453, %v4458, %v4457
    %vm4460 = vcmp.lt.s32.totalorder %v4394, 0
    %v4461 = vsub.s32 0, %v4394
    %v4462 = vsel %vm4460, %v4461, %v4394
    %v4463 = vshrl.u32 %v4462, 3
    %v4464 = vand.u32 %v4462, 7
    %v4465 = vsub.s32 0, %v4464
    %v4466 = vsel %vm4460, %v4465, %v4464
    %vm4467 = vcmp.lt.s32.totalorder %v4395, 0
    %v4468 = vsub.s32 0, %v4395
    %v4469 = vsel %vm4467, %v4468, %v4395
    %v4470 = vshrl.u32 %v4469, 3
    %v4471 = vand.u32 %v4469, 7
    %v4472 = vsub.s32 0, %v4471
    %v4473 = vsel %vm4467, %v4472, %v4471
    %vm4474 = vcmp.lt.s32.totalorder %v4396, 0
    %v4475 = vsub.s32 0, %v4396
    %v4476 = vsel %vm4474, %v4475, %v4396
    %v4477 = vshrl.u32 %v4476, 3
    %v4478 = vand.u32 %v4476, 7
    %v4479 = vsub.s32 0, %v4478
    %v4480 = vsel %vm4474, %v4479, %v4478
    %vm4481 = vcmp.lt.s32.totalorder %v4397, 0
    %v4482 = vsub.s32 0, %v4397
    %v4483 = vsel %vm4481, %v4482, %v4397
    %v4484 = vshrl.u32 %v4483, 3
    %v4485 = vand.u32 %v4483, 7
    %v4486 = vsub.s32 0, %v4485
    %v4487 = vsel %vm4481, %v4486, %v4485
    %vm4488 = vcmp.lt.s32.totalorder %v4398, 0
    %v4489 = vsub.s32 0, %v4398
    %v4490 = vsel %vm4488, %v4489, %v4398
    %v4491 = vshrl.u32 %v4490, 3
    %v4492 = vand.u32 %v4490, 7
    %v4493 = vsub.s32 0, %v4492
    %v4494 = vsel %vm4488, %v4493, %v4492
    %vm4495 = vcmp.lt.s32.totalorder %v4399, 0
    %v4496 = vsub.s32 0, %v4399
    %v4497 = vsel %vm4495, %v4496, %v4399
    %v4498 = vshrl.u32 %v4497, 3
    %v4499 = vand.u32 %v4497, 7
    %v4500 = vsub.s32 0, %v4499
    %v4501 = vsel %vm4495, %v4500, %v4499
    %vm4502 = vcmp.lt.s32.totalorder %v4400, 0
    %v4503 = vsub.s32 0, %v4400
    %v4504 = vsel %vm4502, %v4503, %v4400
    %v4505 = vshrl.u32 %v4504, 3
    %v4506 = vand.u32 %v4504, 7
    %v4507 = vsub.s32 0, %v4506
    %v4508 = vsel %vm4502, %v4507, %v4506
    %vm4509 = vcmp.lt.s32.totalorder %v4401, 0
    %v4510 = vsub.s32 0, %v4401
    %v4511 = vsel %vm4509, %v4510, %v4401
    %v4512 = vshrl.u32 %v4511, 3
    %v4513 = vand.u32 %v4511, 7
    %v4514 = vsub.s32 0, %v4513
    %v4515 = vsel %vm4509, %v4514, %v4513
    %vm4516 = vcmp.lt.s32.totalorder %v4402, 0
    %v4517 = vsub.s32 0, %v4402
    %v4518 = vsel %vm4516, %v4517, %v4402
    %v4519 = vshrl.u32 %v4518, 3
    %v4520 = vand.u32 %v4518, 7
    %v4521 = vsub.s32 0, %v4520
    %v4522 = vsel %vm4516, %v4521, %v4520
    %vm4523 = vcmp.lt.s32.totalorder %v4403, 0
    %v4524 = vsub.s32 0, %v4403
    %v4525 = vsel %vm4523, %v4524, %v4403
    %v4526 = vshrl.u32 %v4525, 3
    %v4527 = vand.u32 %v4525, 7
    %v4528 = vsub.s32 0, %v4527
    %v4529 = vsel %vm4523, %v4528, %v4527
    %vm4530 = vcmp.lt.s32.totalorder %v4404, 0
    %v4531 = vsub.s32 0, %v4404
    %v4532 = vsel %vm4530, %v4531, %v4404
    %v4533 = vshrl.u32 %v4532, 3
    %v4534 = vand.u32 %v4532, 7
    %v4535 = vsub.s32 0, %v4534
    %v4536 = vsel %vm4530, %v4535, %v4534
    %vm4537 = vcmp.lt.s32.totalorder %v4405, 0
    %v4538 = vsub.s32 0, %v4405
    %v4539 = vsel %vm4537, %v4538, %v4405
    %v4540 = vshrl.u32 %v4539, 3
    %v4541 = vand.u32 %v4539, 7
    %v4542 = vsub.s32 0, %v4541
    %v4543 = vsel %vm4537, %v4542, %v4541
    %vm4544 = vcmp.lt.s32.totalorder %v4406, 0
    %v4545 = vsub.s32 0, %v4406
    %v4546 = vsel %vm4544, %v4545, %v4406
    %v4547 = vshrl.u32 %v4546, 3
    %v4548 = vand.u32 %v4546, 7
    %v4549 = vsub.s32 0, %v4548
    %v4550 = vsel %vm4544, %v4549, %v4548
    %vm4551 = vcmp.lt.s32.totalorder %v4407, 0
    %v4552 = vsub.s32 0, %v4407
    %v4553 = vsel %vm4551, %v4552, %v4407
    %v4554 = vshrl.u32 %v4553, 3
    %v4555 = vand.u32 %v4553, 7
    %v4556 = vsub.s32 0, %v4555
    %v4557 = vsel %vm4551, %v4556, %v4555
    %vm4558 = vcmp.lt.s32.totalorder %v4408, 0
    %v4559 = vsub.s32 0, %v4408
    %v4560 = vsel %vm4558, %v4559, %v4408
    %v4561 = vshrl.u32 %v4560, 3
    %v4562 = vand.u32 %v4560, 7
    %v4563 = vsub.s32 0, %v4562
    %v4564 = vsel %vm4558, %v4563, %v4562
    %vm4565 = vcmp.lt.s32.totalorder %v4409, 0
    %v4566 = vsub.s32 0, %v4409
    %v4567 = vsel %vm4565, %v4566, %v4409
    %v4568 = vshrl.u32 %v4567, 3
    %v4569 = vand.u32 %v4567, 7
    %v4570 = vsub.s32 0, %v4569
    %v4571 = vsel %vm4565, %v4570, %v4569
    %vm4572 = vcmp.lt.s32.totalorder %v4410, 0
    %v4573 = vsub.s32 0, %v4410
    %v4574 = vsel %vm4572, %v4573, %v4410
    %v4575 = vshrl.u32 %v4574, 3
    %v4576 = vand.u32 %v4574, 7
    %v4577 = vsub.s32 0, %v4576
    %v4578 = vsel %vm4572, %v4577, %v4576
    %vm4579 = vcmp.ne.s32.totalorder %v4417, 0
    %vm4580 = vcmp.ne.s32.totalorder %v4424, 0
    %vm4581 = vcmp.ne.s32.totalorder %v4431, 0
    %vm4582 = vcmp.ne.s32.totalorder %v4438, 0
    %vm4583 = vcmp.ne.s32.totalorder %v4445, 0
    %vm4584 = vcmp.ne.s32.totalorder %v4452, 0
    %vm4585 = vcmp.ne.s32.totalorder %v4459, 0
    %vm4586 = vcmp.ne.s32.totalorder %v4466, 0
    %vm4587 = vcmp.ne.s32.totalorder %v4473, 0
    %vm4588 = vcmp.ne.s32.totalorder %v4480, 0
    %vm4589 = vcmp.ne.s32.totalorder %v4487, 0
    %vm4590 = vcmp.ne.s32.totalorder %v4494, 0
    %vm4591 = vcmp.ne.s32.totalorder %v4501, 0
    %vm4592 = vcmp.ne.s32.totalorder %v4508, 0
    %vm4593 = vcmp.ne.s32.totalorder %v4515, 0
    %vm4594 = vcmp.ne.s32.totalorder %v4522, 0
    %vm4595 = vcmp.ne.s32.totalorder %v4529, 0
    %vm4596 = vcmp.ne.s32.totalorder %v4536, 0
    %vm4597 = vcmp.ne.s32.totalorder %v4543, 0
    %vm4598 = vcmp.ne.s32.totalorder %v4550, 0
    %vm4599 = vcmp.ne.s32.totalorder %v4557, 0
    %vm4600 = vcmp.ne.s32.totalorder %v4564, 0
    %vm4601 = vcmp.ne.s32.totalorder %v4571, 0
    %vm4602 = vcmp.ne.s32.totalorder %v4578, 0
    %vm4603 = vcmp.lt.s32.totalorder %v4417, 0
    %vm4604 = vcmp.lt.s32.totalorder %v4424, 0
    %vm4605 = vcmp.lt.s32.totalorder %v4431, 0
    %vm4606 = vcmp.lt.s32.totalorder %v4438, 0
    %vm4607 = vcmp.lt.s32.totalorder %v4445, 0
    %vm4608 = vcmp.lt.s32.totalorder %v4452, 0
    %vm4609 = vcmp.lt.s32.totalorder %v4459, 0
    %vm4610 = vcmp.lt.s32.totalorder %v4466, 0
    %vm4611 = vcmp.lt.s32.totalorder %v4473, 0
    %vm4612 = vcmp.lt.s32.totalorder %v4480, 0
    %vm4613 = vcmp.lt.s32.totalorder %v4487, 0
    %vm4614 = vcmp.lt.s32.totalorder %v4494, 0
    %vm4615 = vcmp.lt.s32.totalorder %v4501, 0
    %vm4616 = vcmp.lt.s32.totalorder %v4508, 0
    %vm4617 = vcmp.lt.s32.totalorder %v4515, 0
    %vm4618 = vcmp.lt.s32.totalorder %v4522, 0
    %vm4619 = vcmp.lt.s32.totalorder %v4529, 0
    %vm4620 = vcmp.lt.s32.totalorder %v4536, 0
    %vm4621 = vcmp.lt.s32.totalorder %v4543, 0
    %vm4622 = vcmp.lt.s32.totalorder %v4550, 0
    %vm4623 = vcmp.lt.s32.totalorder %v4557, 0
    %vm4624 = vcmp.lt.s32.totalorder %v4564, 0
    %vm4625 = vcmp.lt.s32.totalorder %v4571, 0
    %vm4626 = vcmp.lt.s32.totalorder %v4578, 0
    %vm4627 = vmand %vm4603, %vm4579
    %vm4628 = vmand %vm4604, %vm4580
    %vm4629 = vmand %vm4605, %vm4581
    %vm4630 = vmand %vm4606, %vm4582
    %vm4631 = vmand %vm4607, %vm4583
    %vm4632 = vmand %vm4608, %vm4584
    %vm4633 = vmand %vm4609, %vm4585
    %vm4634 = vmand %vm4610, %vm4586
    %vm4635 = vmand %vm4611, %vm4587
    %vm4636 = vmand %vm4612, %vm4588
    %vm4637 = vmand %vm4613, %vm4589
    %vm4638 = vmand %vm4614, %vm4590
    %vm4639 = vmand %vm4615, %vm4591
    %vm4640 = vmand %vm4616, %vm4592
    %vm4641 = vmand %vm4617, %vm4593
    %vm4642 = vmand %vm4618, %vm4594
    %vm4643 = vmand %vm4619, %vm4595
    %vm4644 = vmand %vm4620, %vm4596
    %vm4645 = vmand %vm4621, %vm4597
    %vm4646 = vmand %vm4622, %vm4598
    %vm4647 = vmand %vm4623, %vm4599
    %vm4648 = vmand %vm4624, %vm4600
    %vm4649 = vmand %vm4625, %vm4601
    %vm4650 = vmand %vm4626, %vm4602
    %v4651 = vadd.s32 %v4417, 8
    %v4652 = vadd.s32 %v4424, 8
    %v4653 = vadd.s32 %v4431, 8
    %v4654 = vadd.s32 %v4438, 8
    %v4655 = vadd.s32 %v4445, 8
    %v4656 = vadd.s32 %v4452, 8
    %v4657 = vadd.s32 %v4459, 8
    %v4658 = vadd.s32 %v4466, 8
    %v4659 = vadd.s32 %v4473, 8
    %v4660 = vadd.s32 %v4480, 8
    %v4661 = vadd.s32 %v4487, 8
    %v4662 = vadd.s32 %v4494, 8
    %v4663 = vadd.s32 %v4501, 8
    %v4664 = vadd.s32 %v4508, 8
    %v4665 = vadd.s32 %v4515, 8
    %v4666 = vadd.s32 %v4522, 8
    %v4667 = vadd.s32 %v4529, 8
    %v4668 = vadd.s32 %v4536, 8
    %v4669 = vadd.s32 %v4543, 8
    %v4670 = vadd.s32 %v4550, 8
    %v4671 = vadd.s32 %v4557, 8
    %v4672 = vadd.s32 %v4564, 8
    %v4673 = vadd.s32 %v4571, 8
    %v4674 = vadd.s32 %v4578, 8
    %v4675 = vsel %vm4627, %v4651, %v4417
    %v4676 = vsel %vm4628, %v4652, %v4424
    %v4677 = vsel %vm4629, %v4653, %v4431
    %v4678 = vsel %vm4630, %v4654, %v4438
    %v4679 = vsel %vm4631, %v4655, %v4445
    %v4680 = vsel %vm4632, %v4656, %v4452
    %v4681 = vsel %vm4633, %v4657, %v4459
    %v4682 = vsel %vm4634, %v4658, %v4466
    %v4683 = vsel %vm4635, %v4659, %v4473
    %v4684 = vsel %vm4636, %v4660, %v4480
    %v4685 = vsel %vm4637, %v4661, %v4487
    %v4686 = vsel %vm4638, %v4662, %v4494
    %v4687 = vsel %vm4639, %v4663, %v4501
    %v4688 = vsel %vm4640, %v4664, %v4508
    %v4689 = vsel %vm4641, %v4665, %v4515
    %v4690 = vsel %vm4642, %v4666, %v4522
    %v4691 = vsel %vm4643, %v4667, %v4529
    %v4692 = vsel %vm4644, %v4668, %v4536
    %v4693 = vsel %vm4645, %v4669, %v4543
    %v4694 = vsel %vm4646, %v4670, %v4550
    %v4695 = vsel %vm4647, %v4671, %v4557
    %v4696 = vsel %vm4648, %v4672, %v4564
    %v4697 = vsel %vm4649, %v4673, %v4571
    %v4698 = vsel %vm4650, %v4674, %v4578
    %vm4699 = vcmp.lt.s32.totalorder %v4675, 2
    %vm4700 = vcmp.lt.s32.totalorder %v4676, 2
    %vm4701 = vcmp.lt.s32.totalorder %v4677, 2
    %vm4702 = vcmp.lt.s32.totalorder %v4678, 2
    %vm4703 = vcmp.lt.s32.totalorder %v4679, 2
    %vm4704 = vcmp.lt.s32.totalorder %v4680, 2
    %vm4705 = vcmp.lt.s32.totalorder %v4681, 2
    %vm4706 = vcmp.lt.s32.totalorder %v4682, 2
    %vm4707 = vcmp.lt.s32.totalorder %v4683, 2
    %vm4708 = vcmp.lt.s32.totalorder %v4684, 2
    %vm4709 = vcmp.lt.s32.totalorder %v4685, 2
    %vm4710 = vcmp.lt.s32.totalorder %v4686, 2
    %vm4711 = vcmp.lt.s32.totalorder %v4687, 2
    %vm4712 = vcmp.lt.s32.totalorder %v4688, 2
    %vm4713 = vcmp.lt.s32.totalorder %v4689, 2
    %vm4714 = vcmp.lt.s32.totalorder %v4690, 2
    %vm4715 = vcmp.lt.s32.totalorder %v4691, 2
    %vm4716 = vcmp.lt.s32.totalorder %v4692, 2
    %vm4717 = vcmp.lt.s32.totalorder %v4693, 2
    %vm4718 = vcmp.lt.s32.totalorder %v4694, 2
    %vm4719 = vcmp.lt.s32.totalorder %v4695, 2
    %vm4720 = vcmp.lt.s32.totalorder %v4696, 2
    %vm4721 = vcmp.lt.s32.totalorder %v4697, 2
    %vm4722 = vcmp.lt.s32.totalorder %v4698, 2
    %v4723 = vsel %vm4699, 1, 0
    %v4724 = vsel %vm4700, 1, 0
    %v4725 = vsel %vm4701, 1, 0
    %v4726 = vsel %vm4702, 1, 0
    %v4727 = vsel %vm4703, 1, 0
    %v4728 = vsel %vm4704, 1, 0
    %v4729 = vsel %vm4705, 1, 0
    %v4730 = vsel %vm4706, 1, 0
    %v4731 = vsel %vm4707, 1, 0
    %v4732 = vsel %vm4708, 1, 0
    %v4733 = vsel %vm4709, 1, 0
    %v4734 = vsel %vm4710, 1, 0
    %v4735 = vsel %vm4711, 1, 0
    %v4736 = vsel %vm4712, 1, 0
    %v4737 = vsel %vm4713, 1, 0
    %v4738 = vsel %vm4714, 1, 0
    %v4739 = vsel %vm4715, 1, 0
    %v4740 = vsel %vm4716, 1, 0
    %v4741 = vsel %vm4717, 1, 0
    %v4742 = vsel %vm4718, 1, 0
    %v4743 = vsel %vm4719, 1, 0
    %v4744 = vsel %vm4720, 1, 0
    %v4745 = vsel %vm4721, 1, 0
    %v4746 = vsel %vm4722, 1, 0
    %v4747 = vcvt.s32.f32 %v4723
    %v4748 = vcvt.s32.f32 %v4724
    %v4749 = vcvt.s32.f32 %v4725
    %v4750 = vcvt.s32.f32 %v4726
    %v4751 = vcvt.s32.f32 %v4727
    %v4752 = vcvt.s32.f32 %v4728
    %v4753 = vcvt.s32.f32 %v4729
    %v4754 = vcvt.s32.f32 %v4730
    %v4755 = vcvt.s32.f32 %v4731
    %v4756 = vcvt.s32.f32 %v4732
    %v4757 = vcvt.s32.f32 %v4733
    %v4758 = vcvt.s32.f32 %v4734
    %v4759 = vcvt.s32.f32 %v4735
    %v4760 = vcvt.s32.f32 %v4736
    %v4761 = vcvt.s32.f32 %v4737
    %v4762 = vcvt.s32.f32 %v4738
    %v4763 = vcvt.s32.f32 %v4739
    %v4764 = vcvt.s32.f32 %v4740
    %v4765 = vcvt.s32.f32 %v4741
    %v4766 = vcvt.s32.f32 %v4742
    %v4767 = vcvt.s32.f32 %v4743
    %v4768 = vcvt.s32.f32 %v4744
    %v4769 = vcvt.s32.f32 %v4745
    %v4770 = vcvt.s32.f32 %v4746
    %4771 = vst [vmem:[#allocation2] sm:$0x3] %v4374
    %4772 = vst [vmem:[#allocation2 + $0x8] sm:$0x3] %v4375
    %4773 = vst [vmem:[#allocation2 + $0x10] sm:$0x3] %v4376
    %4774 = vst [vmem:[#allocation2 + $0x18] sm:$0x3] %v4377
    %4775 = vst [vmem:[#allocation2 + $0x20] sm:$0x3] %v4378
    %4776 = vst [vmem:[#allocation2 + $0x28] sm:$0x3] %v4379
    %v4777 = vld [vmem:[#allocation2] sm:$0xff]
    %v4778 = vld [vmem:[#allocation2 + $0x8] sm:$0xff]
    %v4779 = vld [vmem:[#allocation2 + $0x10] sm:$0xff]
    %v4780 = vld [vmem:[#allocation2 + $0x18] sm:$0xff]
    %v4781 = vld [vmem:[#allocation2 + $0x20] sm:$0xff]
    %v4782 = vld [vmem:[#allocation2 + $0x28] sm:$0xff]
    %v4783 = vpack.c.bf16 %v4779, %v4777
    %v4784 = vpack.c.bf16 %v4780, %v4778
    %v4785 = vpack.c.bf16 %v4781, %v4781
    %v4786 = vpack.c.bf16 %v4782, %v4782
    %v4787 = vld [vmem:[#allocation13] sm:$0xff]
    %v4788 = vld [vmem:[#allocation13 + $0x8] sm:$0xff]
    %v4789 = vld [vmem:[#allocation13 + $0x10] sm:$0xff]
    %v4790 = vld [vmem:[#allocation13 + $0x18] sm:$0xff]
    %v4791 = vld [vmem:[#allocation13 + $0x20] sm:$0xff]
    %v4792 = vld [vmem:[#allocation13 + $0x28] sm:$0xff]
    %v4793 = vld [vmem:[#allocation13 + $0x30] sm:$0xff]
    %v4794 = vld [vmem:[#allocation13 + $0x38] sm:$0xff]
    %v4795 = vld [vmem:[#allocation13 + $0x40] sm:$0xff]
    %v4796 = vld [vmem:[#allocation13 + $0x48] sm:$0xff]
    %v4797 = vld [vmem:[#allocation13 + $0x50] sm:$0xff]
    %v4798 = vld [vmem:[#allocation13 + $0x58] sm:$0xff]
    %v4799 = vld [vmem:[#allocation13 + $0x60] sm:$0xff]
    %v4800 = vld [vmem:[#allocation13 + $0x68] sm:$0xff]
    %v4801 = vld [vmem:[#allocation13 + $0x70] sm:$0xff]
    %v4802 = vld [vmem:[#allocation13 + $0x78] sm:$0xff]
    %v4803 = vld [vmem:[#allocation13 + $0x80] sm:$0xff]
    %v4804 = vld [vmem:[#allocation13 + $0x88] sm:$0xff]
    %v4805 = vld [vmem:[#allocation13 + $0x90] sm:$0xff]
    %v4806 = vld [vmem:[#allocation13 + $0x98] sm:$0xff]
    %v4807 = vld [vmem:[#allocation13 + $0xa0] sm:$0xff]
    %v4808 = vld [vmem:[#allocation13 + $0xa8] sm:$0xff]
    %v4809 = vld [vmem:[#allocation13 + $0xb0] sm:$0xff]
    %v4810 = vld [vmem:[#allocation13 + $0xb8] sm:$0xff]
    %v4811 = vld [vmem:[#allocation13 + $0xc0] sm:$0xff]
    %v4812 = vld [vmem:[#allocation13 + $0xc8] sm:$0xff]
    %v4813 = vld [vmem:[#allocation13 + $0xd0] sm:$0xff]
    %v4814 = vld [vmem:[#allocation13 + $0xd8] sm:$0xff]
    %v4815 = vld [vmem:[#allocation13 + $0xe0] sm:$0xff]
    %v4816 = vld [vmem:[#allocation13 + $0xe8] sm:$0xff]
    %v4817 = vld [vmem:[#allocation13 + $0xf0] sm:$0xff]
    %v4818 = vld [vmem:[#allocation13 + $0xf8] sm:$0xff]
    %v4819 = vld [vmem:[#allocation13 + $0x100] sm:$0xff]
    %v4820 = vld [vmem:[#allocation13 + $0x108] sm:$0xff]
    %v4821 = vld [vmem:[#allocation13 + $0x110] sm:$0xff]
    %v4822 = vld [vmem:[#allocation13 + $0x118] sm:$0xff]
    %v4823 = vld [vmem:[#allocation13 + $0x120] sm:$0xff]
    %v4824 = vld [vmem:[#allocation13 + $0x128] sm:$0xff]
    %v4825 = vld [vmem:[#allocation13 + $0x130] sm:$0xff]
    %v4826 = vld [vmem:[#allocation13 + $0x138] sm:$0xff]
    %v4827 = vld [vmem:[#allocation13 + $0x140] sm:$0xff]
    %v4828 = vld [vmem:[#allocation13 + $0x148] sm:$0xff]
    %v4829 = vld [vmem:[#allocation13 + $0x150] sm:$0xff]
    %v4830 = vld [vmem:[#allocation13 + $0x158] sm:$0xff]
    %v4831 = vld [vmem:[#allocation13 + $0x160] sm:$0xff]
    %v4832 = vld [vmem:[#allocation13 + $0x168] sm:$0xff]
    %v4833 = vld [vmem:[#allocation13 + $0x170] sm:$0xff]
    %v4834 = vld [vmem:[#allocation13 + $0x178] sm:$0xff]
    %v4835 = vld [vmem:[#allocation13 + $0x180] sm:$0xff]
    %v4836 = vld [vmem:[#allocation13 + $0x188] sm:$0xff]
    %v4837 = vld [vmem:[#allocation13 + $0x190] sm:$0xff]
    %v4838 = vld [vmem:[#allocation13 + $0x198] sm:$0xff]
    %v4839 = vld [vmem:[#allocation13 + $0x1a0] sm:$0xff]
    %v4840 = vld [vmem:[#allocation13 + $0x1a8] sm:$0xff]
    %v4841 = vld [vmem:[#allocation13 + $0x1b0] sm:$0xff]
    %v4842 = vld [vmem:[#allocation13 + $0x1b8] sm:$0xff]
    %v4843 = vld [vmem:[#allocation13 + $0x1c0] sm:$0xff]
    %v4844 = vld [vmem:[#allocation13 + $0x1c8] sm:$0xff]
    %v4845 = vld [vmem:[#allocation13 + $0x1d0] sm:$0xff]
    %v4846 = vld [vmem:[#allocation13 + $0x1d8] sm:$0xff]
    %v4847 = vld [vmem:[#allocation13 + $0x1e0] sm:$0xff]
    %v4848 = vld [vmem:[#allocation13 + $0x1e8] sm:$0xff]
    %v4849 = vld [vmem:[#allocation13 + $0x1f0] sm:$0xff]
    %v4850 = vld [vmem:[#allocation13 + $0x1f8] sm:$0xff]
    %v4915 = vunpack.c.l.b16 %v4787
    %v4916 = vunpack.c.h.b16 %v4787
    %v4917 = vunpack.c.l.b16 %v4788
    %v4918 = vunpack.c.h.b16 %v4788
    %v4919 = vunpack.c.l.b16 %v4789
    %v4920 = vunpack.c.h.b16 %v4789
    %v4921 = vunpack.c.l.b16 %v4790
    %v4922 = vunpack.c.h.b16 %v4790
    %v4923 = vunpack.c.l.b16 %v4791
    %v4924 = vunpack.c.h.b16 %v4791
    %v4925 = vunpack.c.l.b16 %v4792
    %v4926 = vunpack.c.h.b16 %v4792
    %v4927 = vunpack.c.l.b16 %v4793
    %v4928 = vunpack.c.h.b16 %v4793
    %v4929 = vunpack.c.l.b16 %v4794
    %v4930 = vunpack.c.h.b16 %v4794
    %v4931 = vunpack.c.l.b16 %v4795
    %v4932 = vunpack.c.h.b16 %v4795
    %v4933 = vunpack.c.l.b16 %v4796
    %v4934 = vunpack.c.h.b16 %v4796
    %v4935 = vunpack.c.l.b16 %v4797
    %v4936 = vunpack.c.h.b16 %v4797
    %v4937 = vunpack.c.l.b16 %v4798
    %v4938 = vunpack.c.h.b16 %v4798
    %v4939 = vunpack.c.l.b16 %v4799
    %v4940 = vunpack.c.h.b16 %v4799
    %v4941 = vunpack.c.l.b16 %v4800
    %v4942 = vunpack.c.h.b16 %v4800
    %v4943 = vunpack.c.l.b16 %v4801
    %v4944 = vunpack.c.h.b16 %v4801
    %v4945 = vunpack.c.l.b16 %v4802
    %v4946 = vunpack.c.h.b16 %v4802
    %v4947 = vunpack.c.l.b16 %v4803
    %v4948 = vunpack.c.h.b16 %v4803
    %v4949 = vunpack.c.l.b16 %v4804
    %v4950 = vunpack.c.h.b16 %v4804
    %v4951 = vunpack.c.l.b16 %v4805
    %v4952 = vunpack.c.h.b16 %v4805
    %v4953 = vunpack.c.l.b16 %v4806
    %v4954 = vunpack.c.h.b16 %v4806
    %v4955 = vunpack.c.l.b16 %v4807
    %v4956 = vunpack.c.h.b16 %v4807
    %v4957 = vunpack.c.l.b16 %v4808
    %v4958 = vunpack.c.h.b16 %v4808
    %v4959 = vunpack.c.l.b16 %v4809
    %v4960 = vunpack.c.h.b16 %v4809
    %v4961 = vunpack.c.l.b16 %v4810
    %v4962 = vunpack.c.h.b16 %v4810
    %v4963 = vunpack.c.l.b16 %v4811
    %v4964 = vunpack.c.h.b16 %v4811
    %v4965 = vunpack.c.l.b16 %v4812
    %v4966 = vunpack.c.h.b16 %v4812
    %v4967 = vunpack.c.l.b16 %v4813
    %v4968 = vunpack.c.h.b16 %v4813
    %v4969 = vunpack.c.l.b16 %v4814
    %v4970 = vunpack.c.h.b16 %v4814
    %v4971 = vunpack.c.l.b16 %v4815
    %v4972 = vunpack.c.h.b16 %v4815
    %v4973 = vunpack.c.l.b16 %v4816
    %v4974 = vunpack.c.h.b16 %v4816
    %v4975 = vunpack.c.l.b16 %v4817
    %v4976 = vunpack.c.h.b16 %v4817
    %v4977 = vunpack.c.l.b16 %v4818
    %v4978 = vunpack.c.h.b16 %v4818
    %v4979 = vunpack.c.l.b16 %v4819
    %v4980 = vunpack.c.h.b16 %v4819
    %v4981 = vunpack.c.l.b16 %v4820
    %v4982 = vunpack.c.h.b16 %v4820
    %v4983 = vunpack.c.l.b16 %v4821
    %v4984 = vunpack.c.h.b16 %v4821
    %v4985 = vunpack.c.l.b16 %v4822
    %v4986 = vunpack.c.h.b16 %v4822
    %v4987 = vunpack.c.l.b16 %v4823
    %v4988 = vunpack.c.h.b16 %v4823
    %v4989 = vunpack.c.l.b16 %v4824
    %v4990 = vunpack.c.h.b16 %v4824
    %v4991 = vunpack.c.l.b16 %v4825
    %v4992 = vunpack.c.h.b16 %v4825
    %v4993 = vunpack.c.l.b16 %v4826
    %v4994 = vunpack.c.h.b16 %v4826
    %v4995 = vunpack.c.l.b16 %v4827
    %v4996 = vunpack.c.h.b16 %v4827
    %v4997 = vunpack.c.l.b16 %v4828
    %v4998 = vunpack.c.h.b16 %v4828
    %v4999 = vunpack.c.l.b16 %v4829
    %v5000 = vunpack.c.h.b16 %v4829
    %v5001 = vunpack.c.l.b16 %v4830
    %v5002 = vunpack.c.h.b16 %v4830
    %v5003 = vunpack.c.l.b16 %v4831
    %v5004 = vunpack.c.h.b16 %v4831
    %v5005 = vunpack.c.l.b16 %v4832
    %v5006 = vunpack.c.h.b16 %v4832
    %v5007 = vunpack.c.l.b16 %v4833
    %v5008 = vunpack.c.h.b16 %v4833
    %v5009 = vunpack.c.l.b16 %v4834
    %v5010 = vunpack.c.h.b16 %v4834
    %v5011 = vunpack.c.l.b16 %v4835
    %v5012 = vunpack.c.h.b16 %v4835
    %v5013 = vunpack.c.l.b16 %v4836
    %v5014 = vunpack.c.h.b16 %v4836
    %v5015 = vunpack.c.l.b16 %v4837
    %v5016 = vunpack.c.h.b16 %v4837
    %v5017 = vunpack.c.l.b16 %v4838
    %v5018 = vunpack.c.h.b16 %v4838
    %v5019 = vunpack.c.l.b16 %v4839
    %v5020 = vunpack.c.h.b16 %v4839
    %v5021 = vunpack.c.l.b16 %v4840
    %v5022 = vunpack.c.h.b16 %v4840
    %v5023 = vunpack.c.l.b16 %v4841
    %v5024 = vunpack.c.h.b16 %v4841
    %v5025 = vunpack.c.l.b16 %v4842
    %v5026 = vunpack.c.h.b16 %v4842
    %v5027 = vunpack.c.l.b16 %v4843
    %v5028 = vunpack.c.h.b16 %v4843
    %v5029 = vunpack.c.l.b16 %v4844
    %v5030 = vunpack.c.h.b16 %v4844
    %v5031 = vunpack.c.l.b16 %v4845
    %v5032 = vunpack.c.h.b16 %v4845
    %v5033 = vunpack.c.l.b16 %v4846
    %v5034 = vunpack.c.h.b16 %v4846
    %v5035 = vunpack.c.l.b16 %v4847
    %v5036 = vunpack.c.h.b16 %v4847
    %v5037 = vunpack.c.l.b16 %v4848
    %v5038 = vunpack.c.h.b16 %v4848
    %v5039 = vunpack.c.l.b16 %v4849
    %v5040 = vunpack.c.h.b16 %v4849
    %v5041 = vunpack.c.l.b16 %v4850
    %v5042 = vunpack.c.h.b16 %v4850
    %v5043 = vpack.c.b16 %v4919, %v4915
    %v5044 = vpack.c.b16 %v4920, %v4916
    %v5045 = vpack.c.b16 %v4921, %v4917
    %v5046 = vpack.c.b16 %v4922, %v4918
    %v5047 = vpack.c.b16 %v4927, %v4923
    %v5048 = vpack.c.b16 %v4928, %v4924
    %v5049 = vpack.c.b16 %v4929, %v4925
    %v5050 = vpack.c.b16 %v4930, %v4926
    %v5051 = vpack.c.b16 %v4935, %v4931
    %v5052 = vpack.c.b16 %v4936, %v4932
    %v5053 = vpack.c.b16 %v4937, %v4933
    %v5054 = vpack.c.b16 %v4938, %v4934
    %v5055 = vpack.c.b16 %v4943, %v4939
    %v5056 = vpack.c.b16 %v4944, %v4940
    %v5057 = vpack.c.b16 %v4945, %v4941
    %v5058 = vpack.c.b16 %v4946, %v4942
    %v5059 = vpack.c.b16 %v4951, %v4947
    %v5060 = vpack.c.b16 %v4952, %v4948
    %v5061 = vpack.c.b16 %v4953, %v4949
    %v5062 = vpack.c.b16 %v4954, %v4950
    %v5063 = vpack.c.b16 %v4959, %v4955
    %v5064 = vpack.c.b16 %v4960, %v4956
    %v5065 = vpack.c.b16 %v4961, %v4957
    %v5066 = vpack.c.b16 %v4962, %v4958
    %v5067 = vpack.c.b16 %v4967, %v4963
    %v5068 = vpack.c.b16 %v4968, %v4964
    %v5069 = vpack.c.b16 %v4969, %v4965
    %v5070 = vpack.c.b16 %v4970, %v4966
    %v5071 = vpack.c.b16 %v4975, %v4971
    %v5072 = vpack.c.b16 %v4976, %v4972
    %v5073 = vpack.c.b16 %v4977, %v4973
    %v5074 = vpack.c.b16 %v4978, %v4974
    %v5075 = vpack.c.b16 %v4983, %v4979
    %v5076 = vpack.c.b16 %v4984, %v4980
    %v5077 = vpack.c.b16 %v4985, %v4981
    %v5078 = vpack.c.b16 %v4986, %v4982
    %v5079 = vpack.c.b16 %v4991, %v4987
    %v5080 = vpack.c.b16 %v4992, %v4988
    %v5081 = vpack.c.b16 %v4993, %v4989
    %v5082 = vpack.c.b16 %v4994, %v4990
    %v5083 = vpack.c.b16 %v4999, %v4995
    %v5084 = vpack.c.b16 %v5000, %v4996
    %v5085 = vpack.c.b16 %v5001, %v4997
    %v5086 = vpack.c.b16 %v5002, %v4998
    %v5087 = vpack.c.b16 %v5007, %v5003
    %v5088 = vpack.c.b16 %v5008, %v5004
    %v5089 = vpack.c.b16 %v5009, %v5005
    %v5090 = vpack.c.b16 %v5010, %v5006
    %v5091 = vpack.c.b16 %v5015, %v5011
    %v5092 = vpack.c.b16 %v5016, %v5012
    %v5093 = vpack.c.b16 %v5017, %v5013
    %v5094 = vpack.c.b16 %v5018, %v5014
    %v5095 = vpack.c.b16 %v5023, %v5019
    %v5096 = vpack.c.b16 %v5024, %v5020
    %v5097 = vpack.c.b16 %v5025, %v5021
    %v5098 = vpack.c.b16 %v5026, %v5022
    %v5099 = vpack.c.b16 %v5031, %v5027
    %v5100 = vpack.c.b16 %v5032, %v5028
    %v5101 = vpack.c.b16 %v5033, %v5029
    %v5102 = vpack.c.b16 %v5034, %v5030
    %v5103 = vpack.c.b16 %v5039, %v5035
    %v5104 = vpack.c.b16 %v5040, %v5036
    %v5105 = vpack.c.b16 %v5041, %v5037
    %v5106 = vpack.c.b16 %v5042, %v5038
    %5171 = vmatprep.subr.bf16.mxu0 %v5044
    %5172 = vmatpush1.bf16.msra.mxu0 %v5043
    %5173 = vmatprep.subr.bf16.mxu0 %v5048
    %5174 = vmatpush1.bf16.msra.mxu0 %v5047
    %5175 = vmatprep.subr.bf16.mxu0 %v5052
    %5176 = vmatpush1.bf16.msra.mxu0 %v5051
    %5177 = vmatprep.subr.bf16.mxu0 %v5056
    %5178 = vmatpush1.bf16.msra.mxu0 %v5055
    %5179 = vmatprep.subr.bf16.mxu0 %v5060
    %5180 = vmatpush1.bf16.msra.mxu0 %v5059
    %5181 = vmatprep.subr.bf16.mxu0 %v5064
    %5182 = vmatpush1.bf16.msra.mxu0 %v5063
    %5183 = vmatprep.subr.bf16.mxu0 %v5068
    %5184 = vmatpush1.bf16.msra.mxu0 %v5067
    %5185 = vmatprep.subr.bf16.mxu0 %v5072
    %5186 = vmatpush1.bf16.msra.mxu0 %v5071
    %5187 = vmatprep.subr.bf16.mxu0 %v5076
    %5188 = vmatpush1.bf16.msra.mxu0 %v5075
    %5189 = vmatprep.subr.bf16.mxu0 %v5080
    %5190 = vmatpush1.bf16.msra.mxu0 %v5079
    %5191 = vmatprep.subr.bf16.mxu0 %v5084
    %5192 = vmatpush1.bf16.msra.mxu0 %v5083
    %5193 = vmatprep.subr.bf16.mxu0 %v5088
    %5194 = vmatpush1.bf16.msra.mxu0 %v5087
    %5195 = vmatprep.subr.bf16.mxu0 %v5092
    %5196 = vmatpush1.bf16.msra.mxu0 %v5091
    %5197 = vmatprep.subr.bf16.mxu0 %v5096
    %5198 = vmatpush1.bf16.msra.mxu0 %v5095
    %5199 = vmatprep.subr.bf16.mxu0 %v5100
    %5200 = vmatpush1.bf16.msra.mxu0 %v5099
    %5201 = vmatprep.subr.bf16.mxu0 %v5104
    %5202 = vmatpush1.bf16.msra.mxu0 %v5103
    %5203 = vmatprep.mubr.bf16.mxu0 %v4784
    %5204 = vmatmul.mubr.bf16.gmra.mrb[0].mxu0 %v4783
    %v5205 = vpop.f32.mrb[0].mxu0
    %v5206 = vadd.f32 0.0, %v5205
    %v5207 = vpop.f32.mrb[0].mxu0
    %v5208 = vadd.f32 0.0, %v5207
    %v5209 = vpop.f32.mrb[0].mxu0
    %v5210 = vadd.f32 0.0, %v5209
    %v5211 = vpop.f32.mrb[0].mxu0
    %v5212 = vadd.f32 0.0, %v5211
    %5213 = vmatprep.mubr.bf16.mxu0 %v4786
    %5214 = vmatmul.mubr.bf16.gmra.mrb[0].mxu0 %v4785
    %v5215 = vpop.f32.mrb[0].mxu0
    %v5216 = vadd.f32 0.0, %v5215
    %v5217 = vpop.f32.mrb[0].mxu0
    %v5218 = vadd.f32 0.0, %v5217
    %v5219 = vpop.f32.mrb[0].mxu0
    %v5220 = vpop.f32.mrb[0].mxu0
    %5221 = vdwg.mxu0
    %5222 = vmatprep.subr.bf16.mxu0 %v5046
    %5223 = vmatpush1.bf16.msra.mxu0 %v5045
    %5224 = vmatprep.subr.bf16.mxu0 %v5050
    %5225 = vmatpush1.bf16.msra.mxu0 %v5049
    %5226 = vmatprep.subr.bf16.mxu0 %v5054
    %5227 = vmatpush1.bf16.msra.mxu0 %v5053
    %5228 = vmatprep.subr.bf16.mxu0 %v5058
    %5229 = vmatpush1.bf16.msra.mxu0 %v5057
    %5230 = vmatprep.subr.bf16.mxu0 %v5062
    %5231 = vmatpush1.bf16.msra.mxu0 %v5061
    %5232 = vmatprep.subr.bf16.mxu0 %v5066
    %5233 = vmatpush1.bf16.msra.mxu0 %v5065
    %5234 = vmatprep.subr.bf16.mxu0 %v5070
    %5235 = vmatpush1.bf16.msra.mxu0 %v5069
    %5236 = vmatprep.subr.bf16.mxu0 %v5074
    %5237 = vmatpush1.bf16.msra.mxu0 %v5073
    %5238 = vmatprep.subr.bf16.mxu0 %v5078
    %5239 = vmatpush1.bf16.msra.mxu0 %v5077
    %5240 = vmatprep.subr.bf16.mxu0 %v5082
    %5241 = vmatpush1.bf16.msra.mxu0 %v5081
    %5242 = vmatprep.subr.bf16.mxu0 %v5086
    %5243 = vmatpush1.bf16.msra.mxu0 %v5085
    %5244 = vmatprep.subr.bf16.mxu0 %v5090
    %5245 = vmatpush1.bf16.msra.mxu0 %v5089
    %5246 = vmatprep.subr.bf16.mxu0 %v5094
    %5247 = vmatpush1.bf16.msra.mxu0 %v5093
    %5248 = vmatprep.subr.bf16.mxu0 %v5098
    %5249 = vmatpush1.bf16.msra.mxu0 %v5097
    %5250 = vmatprep.subr.bf16.mxu0 %v5102
    %5251 = vmatpush1.bf16.msra.mxu0 %v5101
    %5252 = vmatprep.subr.bf16.mxu0 %v5106
    %5253 = vmatpush1.bf16.msra.mxu0 %v5105
    %5254 = vmatprep.mubr.bf16.mxu0 %v4784
    %5255 = vmatmul.mubr.bf16.gmra.mrb[0].mxu0 %v4783
    %v5256 = vpop.f32.mrb[0].mxu0
    %v5257 = vadd.f32 0.0, %v5256
    %v5258 = vpop.f32.mrb[0].mxu0
    %v5259 = vadd.f32 0.0, %v5258
    %v5260 = vpop.f32.mrb[0].mxu0
    %v5261 = vadd.f32 0.0, %v5260
    %v5262 = vpop.f32.mrb[0].mxu0
    %v5263 = vadd.f32 0.0, %v5262
    %5264 = vmatprep.mubr.bf16.mxu0 %v4786
    %5265 = vmatmul.mubr.bf16.gmra.mrb[0].mxu0 %v4785
    %v5266 = vpop.f32.mrb[0].mxu0
    %v5267 = vadd.f32 0.0, %v5266
    %v5268 = vpop.f32.mrb[0].mxu0
    %v5269 = vadd.f32 0.0, %v5268
    %v5270 = vpop.f32.mrb[0].mxu0
    %v5271 = vpop.f32.mrb[0].mxu0
    %5272 = vdwg.mxu0
    %v5273 = vadd.f32 %v5206, %v5210
    %v5274 = vadd.f32 %v5273, %v5216
    %v5275 = vrot.slane %v5274, 4
    %v5276 = vadd.f32 %v5274, %v5275
    %v5277 = vrot.slane %v5276, 2
    %v5278 = vadd.f32 %v5276, %v5277
    %v5279 = vrot.slane %v5278, 1
    %v5280 = vadd.f32 %v5278, %v5279
    %v5281 = vadd.f32 %v5208, %v5212
    %v5282 = vadd.f32 %v5281, %v5218
    %v5283 = vrot.slane %v5282, 4
    %v5284 = vadd.f32 %v5282, %v5283
    %v5285 = vrot.slane %v5284, 2
    %v5286 = vadd.f32 %v5284, %v5285
    %v5287 = vrot.slane %v5286, 1
    %v5288 = vadd.f32 %v5286, %v5287
    %v5289 = vadd.f32 %v5257, %v5261
    %v5290 = vadd.f32 %v5289, %v5267
    %v5291 = vrot.slane %v5290, 4
    %v5292 = vadd.f32 %v5290, %v5291
    %v5293 = vrot.slane %v5292, 2
    %v5294 = vadd.f32 %v5292, %v5293
    %v5295 = vrot.slane %v5294, 1
    %v5296 = vadd.f32 %v5294, %v5295
    %v5297 = vadd.f32 %v5259, %v5263
    %v5298 = vadd.f32 %v5297, %v5269
    %v5299 = vrot.slane %v5298, 4
    %v5300 = vadd.f32 %v5298, %v5299
    %v5301 = vrot.slane %v5300, 2
    %v5302 = vadd.f32 %v5300, %v5301
    %v5303 = vrot.slane %v5302, 1
    %v5304 = vadd.f32 %v5302, %v5303
    %v5305 = vmul.f32 %v5206, %v5206
    %v5306 = vmul.f32 %v5208, %v5208
    %v5307 = vmul.f32 %v5257, %v5257
    %v5308 = vmul.f32 %v5259, %v5259
    %v5309 = vmul.f32 %v5210, %v5210
    %v5310 = vmul.f32 %v5212, %v5212
    %v5311 = vmul.f32 %v5261, %v5261
    %v5312 = vmul.f32 %v5263, %v5263
    %v5313 = vmul.f32 %v5216, %v5216
    %v5314 = vmul.f32 %v5218, %v5218
    %v5315 = vmul.f32 %v5267, %v5267
    %v5316 = vmul.f32 %v5269, %v5269
    %v5317 = vadd.f32 %v5305, %v5309
    %v5318 = vadd.f32 %v5317, %v5313
    %v5319 = vrot.slane %v5318, 4
    %v5320 = vadd.f32 %v5318, %v5319
    %v5321 = vrot.slane %v5320, 2
    %v5322 = vadd.f32 %v5320, %v5321
    %v5323 = vrot.slane %v5322, 1
    %v5324 = vadd.f32 %v5322, %v5323
    %v5325 = vadd.f32 %v5306, %v5310
    %v5326 = vadd.f32 %v5325, %v5314
    %v5327 = vrot.slane %v5326, 4
    %v5328 = vadd.f32 %v5326, %v5327
    %v5329 = vrot.slane %v5328, 2
    %v5330 = vadd.f32 %v5328, %v5329
    %v5331 = vrot.slane %v5330, 1
    %v5332 = vadd.f32 %v5330, %v5331
    %v5333 = vadd.f32 %v5307, %v5311
    %v5334 = vadd.f32 %v5333, %v5315
    %v5335 = vrot.slane %v5334, 4
    %v5336 = vadd.f32 %v5334, %v5335
    %v5337 = vrot.slane %v5336, 2
    %v5338 = vadd.f32 %v5336, %v5337
    %v5339 = vrot.slane %v5338, 1
    %v5340 = vadd.f32 %v5338, %v5339
    %v5341 = vadd.f32 %v5308, %v5312
    %v5342 = vadd.f32 %v5341, %v5316
    %v5343 = vrot.slane %v5342, 4
    %v5344 = vadd.f32 %v5342, %v5343
    %v5345 = vrot.slane %v5344, 2
    %v5346 = vadd.f32 %v5344, %v5345
    %v5347 = vrot.slane %v5346, 1
    %v5348 = vadd.f32 %v5346, %v5347
    %v5349 = vadd.f32 %v5280, %v5296
    %v5350 = vadd.f32 %v5288, %v5304
    %v5351 = vmul.f32 %v5349, 0.083333336
    %v5352 = vmul.f32 %v5350, 0.083333336
    %v5353 = vadd.f32 %v5324, %v5340
    %v5354 = vadd.f32 %v5332, %v5348
    %v5355 = vmul.f32 %v5353, 0.083333336
    %v5356 = vmul.f32 %v5354, 0.083333336
    %v5357 = vmul.f32 %v5351, %v5351
    %v5358 = vmul.f32 %v5352, %v5352
    %v5359 = vsub.f32 %v5355, %v5357
    %v5360 = vsub.f32 %v5356, %v5358
    %v5361 = vmax.f32 %v5359, 0.0
    %v5362 = vmax.f32 %v5360, 0.0
    %v5363 = vld [vmem:[#allocation14] sm:$0x3]
    %v5364 = vadd.f32 %v5361, 1e-05
    %v5365 = vadd.f32 %v5362, 1e-05
    %v5366 = vrsqrt.pop %v5364
    %v5367 = vrsqrt.pop %v5365
    %v5370 = vcombine.low %v5366, %v5367
    %v5372 = vunpack.c.l.s4 1966171168
    %v5373 = vunpack.c.0.s8 %v5372
    %v5374 = vlaneseq
    %v5375 = vshrl.u32 %v5374, 7
    %v5376 = vsub.s32 %v5373, %v5375
    %v5377 = vrot.slane %v5370, %v5376
    %v5379 = vunpack.c.l.s4 1966171168
    %v5380 = vunpack.c.0.s8 %v5379
    %v5381 = vlaneseq
    %v5382 = vshrl.u32 %v5381, 7
    %v5383 = vsub.s32 %v5380, %v5382
    %v5384 = vrot.slane %v5377, %v5383
    %v5386 = vmul.f32 %v5363, %v5384
    %v5387 = vld [vmem:[#allocation16] sm:$0x3]
    %v5389 = vlaneseq
    %v5390 = vshrl.u32 %v5389, 7
    %v5391 = vsub.s32 0, %v5390
    %v5392 = vrot.slane %v5386, %v5391
    %v5393 = vlaneseq
    %v5394 = vshrl.u32 %v5393, 7
    %v5395 = vsub.s32 1, %v5394
    %v5396 = vrot.slane %v5386, %v5395
    %v5399 = vmul.f32 %v5351, %v5392
    %v5400 = vmul.f32 %v5352, %v5396
    %v5403 = vcombine.low %v5399, %v5400
    %v5405 = vunpack.c.l.s4 1966171168
    %v5406 = vunpack.c.0.s8 %v5405
    %v5407 = vlaneseq
    %v5408 = vshrl.u32 %v5407, 7
    %v5409 = vsub.s32 %v5406, %v5408
    %v5410 = vrot.slane %v5403, %v5409
    %v5412 = vunpack.c.l.s4 1966171168
    %v5413 = vunpack.c.0.s8 %v5412
    %v5414 = vlaneseq
    %v5415 = vshrl.u32 %v5414, 7
    %v5416 = vsub.s32 %v5413, %v5415
    %v5417 = vrot.slane %v5410, %v5416
    %v5419 = vsub.f32 %v5387, %v5417
    %v5420 = vmul.f32 %v5206, %v5392
    %v5421 = vmul.f32 %v5208, %v5396
    %v5422 = vmul.f32 %v5210, %v5392
    %v5423 = vmul.f32 %v5212, %v5396
    %v5424 = vmul.f32 %v5216, %v5392
    %v5425 = vmul.f32 %v5218, %v5396
    %v5427 = vlaneseq
    %v5428 = vshrl.u32 %v5427, 7
    %v5429 = vsub.s32 0, %v5428
    %v5430 = vrot.slane %v5419, %v5429
    %v5431 = vlaneseq
    %v5432 = vshrl.u32 %v5431, 7
    %v5433 = vsub.s32 1, %v5432
    %v5434 = vrot.slane %v5419, %v5433
    %v5437 = vadd.f32 %v5420, %v5430
    %v5438 = vadd.f32 %v5421, %v5434
    %v5439 = vadd.f32 %v5422, %v5430
    %v5440 = vadd.f32 %v5423, %v5434
    %v5441 = vadd.f32 %v5424, %v5430
    %v5442 = vadd.f32 %v5425, %v5434
    %v5443 = vmax.f32 %v5437, 0.0
    %v5444 = vmax.f32 %v5438, 0.0
    %v5445 = vmax.f32 %v5439, 0.0
    %v5446 = vmax.f32 %v5440, 0.0
    %v5447 = vmax.f32 %v5441, 0.0
    %v5448 = vmax.f32 %v5442, 0.0
    %v5449 = vmul.f32 %v5257, %v5392
    %v5450 = vmul.f32 %v5259, %v5396
    %v5451 = vmul.f32 %v5261, %v5392
    %v5452 = vmul.f32 %v5263, %v5396
    %v5453 = vmul.f32 %v5267, %v5392
    %v5454 = vmul.f32 %v5269, %v5396
    %v5455 = vadd.f32 %v5449, %v5430
    %v5456 = vadd.f32 %v5450, %v5434
    %v5457 = vadd.f32 %v5451, %v5430
    %v5458 = vadd.f32 %v5452, %v5434
    %v5459 = vadd.f32 %v5453, %v5430
    %v5460 = vadd.f32 %v5454, %v5434
    %v5461 = vmax.f32 %v5455, 0.0
    %v5462 = vmax.f32 %v5456, 0.0
    %v5463 = vmax.f32 %v5457, 0.0
    %v5464 = vmax.f32 %v5458, 0.0
    %v5465 = vmax.f32 %v5459, 0.0
    %v5466 = vmax.f32 %v5460, 0.0
    %v5467 = vmul.f32 %v5443, %v4747
    %v5468 = vmul.f32 %v5444, %v4747
    %v5469 = vmul.f32 %v5445, %v4748
    %v5470 = vmul.f32 %v5446, %v4748
    %v5471 = vmul.f32 %v5447, %v4749
    %v5472 = vmul.f32 %v5448, %v4749
    %v5473 = vmul.f32 %v5461, %v4747
    %v5474 = vmul.f32 %v5462, %v4747
    %v5475 = vmul.f32 %v5463, %v4748
    %v5476 = vmul.f32 %v5464, %v4748
    %v5477 = vmul.f32 %v5465, %v4749
    %v5478 = vmul.f32 %v5466, %v4749
    %5479 = vst [vmem:[#allocation2] sm:$0xff] %v5467
    %5480 = vst [vmem:[#allocation2 + $0x8] sm:$0xff] %v5468
    %5481 = vst [vmem:[#allocation2 + $0x10] sm:$0xff] %v5469
    %5482 = vst [vmem:[#allocation2 + $0x18] sm:$0xff] %v5470
    %5483 = vst [vmem:[#allocation2 + $0x20] sm:$0xff] %v5471
    %5484 = vst [vmem:[#allocation2 + $0x28] sm:$0xff] %v5472
    %5485 = vst [vmem:[#allocation2 + $0x30] sm:$0xff] %v5473
    %5486 = vst [vmem:[#allocation2 + $0x38] sm:$0xff] %v5474
    %5487 = vst [vmem:[#allocation2 + $0x40] sm:$0xff] %v5475
    %5488 = vst [vmem:[#allocation2 + $0x48] sm:$0xff] %v5476
    %5489 = vst [vmem:[#allocation2 + $0x50] sm:$0xff] %v5477
    %5490 = vst [vmem:[#allocation2 + $0x58] sm:$0xff] %v5478
    %v5491 = vld [vmem:[#allocation2] sm:$0xff]
    %v5492 = vld [vmem:[#allocation2 + $0x8] sm:$0xff]
    %v5493 = vld [vmem:[#allocation2 + $0x10] sm:$0xff]
    %v5494 = vld [vmem:[#allocation2 + $0x18] sm:$0xff]
    %v5495 = vld [vmem:[#allocation2 + $0x20] sm:$0xff]
    %v5496 = vld [vmem:[#allocation2 + $0x28] sm:$0xff]
    %v5497 = vld [vmem:[#allocation2 + $0x30] sm:$0xff]
    %v5498 = vld [vmem:[#allocation2 + $0x38] sm:$0xff]
    %v5499 = vld [vmem:[#allocation2 + $0x40] sm:$0xff]
    %v5500 = vld [vmem:[#allocation2 + $0x48] sm:$0xff]
    %v5501 = vld [vmem:[#allocation2 + $0x50] sm:$0xff]
    %v5502 = vld [vmem:[#allocation2 + $0x58] sm:$0xff]
    %v5503 = vpack.c.bf16 %v5493, %v5491
    %v5504 = vpack.c.bf16 %v5494, %v5492
    %v5505 = vpack.c.bf16 %v5497, %v5495
    %v5506 = vpack.c.bf16 %v5498, %v5496
    %v5507 = vpack.c.bf16 %v5501, %v5499
    %v5508 = vpack.c.bf16 %v5502, %v5500
    %v5509 = vld [vmem:[#allocation17] sm:$0xff]
    %v5510 = vld [vmem:[#allocation17 + $0x8] sm:$0xff]
    %v5511 = vld [vmem:[#allocation17 + $0x10] sm:$0xff]
    %v5512 = vld [vmem:[#allocation17 + $0x18] sm:$0xff]
    %v5513 = vld [vmem:[#allocation17 + $0x20] sm:$0xff]
    %v5514 = vld [vmem:[#allocation17 + $0x28] sm:$0xff]
    %v5515 = vld [vmem:[#allocation17 + $0x30] sm:$0xff]
    %v5516 = vld [vmem:[#allocation17 + $0x38] sm:$0xff]
    %v5517 = vld [vmem:[#allocation17 + $0x40] sm:$0xff]
    %v5518 = vld [vmem:[#allocation17 + $0x48] sm:$0xff]
    %v5519 = vld [vmem:[#allocation17 + $0x50] sm:$0xff]
    %v5520 = vld [vmem:[#allocation17 + $0x58] sm:$0xff]
    %v5521 = vld [vmem:[#allocation17 + $0x60] sm:$0xff]
    %v5522 = vld [vmem:[#allocation17 + $0x68] sm:$0xff]
    %v5523 = vld [vmem:[#allocation17 + $0x70] sm:$0xff]
    %v5524 = vld [vmem:[#allocation17 + $0x78] sm:$0xff]
    %v5525 = vld [vmem:[#allocation17 + $0x80] sm:$0xff]
    %v5526 = vld [vmem:[#allocation17 + $0x88] sm:$0xff]
    %v5527 = vld [vmem:[#allocation17 + $0x90] sm:$0xff]
    %v5528 = vld [vmem:[#allocation17 + $0x98] sm:$0xff]
    %v5529 = vld [vmem:[#allocation17 + $0xa0] sm:$0xff]
    %v5530 = vld [vmem:[#allocation17 + $0xa8] sm:$0xff]
    %v5531 = vld [vmem:[#allocation17 + $0xb0] sm:$0xff]
    %v5532 = vld [vmem:[#allocation17 + $0xb8] sm:$0xff]
    %v5533 = vld [vmem:[#allocation17 + $0xc0] sm:$0xff]
    %v5534 = vld [vmem:[#allocation17 + $0xc8] sm:$0xff]
    %v5535 = vld [vmem:[#allocation17 + $0xd0] sm:$0xff]
    %v5536 = vld [vmem:[#allocation17 + $0xd8] sm:$0xff]
    %v5537 = vld [vmem:[#allocation17 + $0xe0] sm:$0xff]
    %v5538 = vld [vmem:[#allocation17 + $0xe8] sm:$0xff]
    %v5539 = vld [vmem:[#allocation17 + $0xf0] sm:$0xff]
    %v5540 = vld [vmem:[#allocation17 + $0xf8] sm:$0xff]
    %v5541 = vld [vmem:[#allocation17 + $0x100] sm:$0xff]
    %v5542 = vld [vmem:[#allocation17 + $0x108] sm:$0xff]
    %v5543 = vld [vmem:[#allocation17 + $0x110] sm:$0xff]
    %v5544 = vld [vmem:[#allocation17 + $0x118] sm:$0xff]
    %v5545 = vld [vmem:[#allocation17 + $0x120] sm:$0xff]
    %v5546 = vld [vmem:[#allocation17 + $0x128] sm:$0xff]
    %v5547 = vld [vmem:[#allocation17 + $0x130] sm:$0xff]
    %v5548 = vld [vmem:[#allocation17 + $0x138] sm:$0xff]
    %v5549 = vld [vmem:[#allocation17 + $0x140] sm:$0xff]
    %v5550 = vld [vmem:[#allocation17 + $0x148] sm:$0xff]
    %v5551 = vld [vmem:[#allocation17 + $0x150] sm:$0xff]
    %v5552 = vld [vmem:[#allocation17 + $0x158] sm:$0xff]
    %v5553 = vld [vmem:[#allocation17 + $0x160] sm:$0xff]
    %v5554 = vld [vmem:[#allocation17 + $0x168] sm:$0xff]
    %v5555 = vld [vmem:[#allocation17 + $0x170] sm:$0xff]
    %v5556 = vld [vmem:[#allocation17 + $0x178] sm:$0xff]
    %v5557 = vld [vmem:[#allocation17 + $0x180] sm:$0xff]
    %v5558 = vld [vmem:[#allocation17 + $0x188] sm:$0xff]
    %v5559 = vld [vmem:[#allocation17 + $0x190] sm:$0xff]
    %v5560 = vld [vmem:[#allocation17 + $0x198] sm:$0xff]
    %v5561 = vld [vmem:[#allocation17 + $0x1a0] sm:$0xff]
    %v5562 = vld [vmem:[#allocation17 + $0x1a8] sm:$0xff]
    %v5563 = vld [vmem:[#allocation17 + $0x1b0] sm:$0xff]
    %v5564 = vld [vmem:[#allocation17 + $0x1b8] sm:$0xff]
    %v5565 = vld [vmem:[#allocation17 + $0x1c0] sm:$0xff]
    %v5566 = vld [vmem:[#allocation17 + $0x1c8] sm:$0xff]
    %v5567 = vld [vmem:[#allocation17 + $0x1d0] sm:$0xff]
    %v5568 = vld [vmem:[#allocation17 + $0x1d8] sm:$0xff]
    %v5569 = vld [vmem:[#allocation17 + $0x1e0] sm:$0xff]
    %v5570 = vld [vmem:[#allocation17 + $0x1e8] sm:$0xff]
    %v5571 = vld [vmem:[#allocation17 + $0x1f0] sm:$0xff]
    %v5572 = vld [vmem:[#allocation17 + $0x1f8] sm:$0xff]
    %v5637 = vunpack.c.l.b16 %v5509
    %v5638 = vunpack.c.h.b16 %v5509
    %v5639 = vunpack.c.l.b16 %v5510
    %v5640 = vunpack.c.h.b16 %v5510
    %v5641 = vunpack.c.l.b16 %v5511
    %v5642 = vunpack.c.h.b16 %v5511
    %v5643 = vunpack.c.l.b16 %v5512
    %v5644 = vunpack.c.h.b16 %v5512
    %v5645 = vunpack.c.l.b16 %v5513
    %v5646 = vunpack.c.h.b16 %v5513
    %v5647 = vunpack.c.l.b16 %v5514
    %v5648 = vunpack.c.h.b16 %v5514
    %v5649 = vunpack.c.l.b16 %v5515
    %v5650 = vunpack.c.h.b16 %v5515
    %v5651 = vunpack.c.l.b16 %v5516
    %v5652 = vunpack.c.h.b16 %v5516
    %v5653 = vunpack.c.l.b16 %v5517
    %v5654 = vunpack.c.h.b16 %v5517
    %v5655 = vunpack.c.l.b16 %v5518
    %v5656 = vunpack.c.h.b16 %v5518
    %v5657 = vunpack.c.l.b16 %v5519
    %v5658 = vunpack.c.h.b16 %v5519
    %v5659 = vunpack.c.l.b16 %v5520
    %v5660 = vunpack.c.h.b16 %v5520
    %v5661 = vunpack.c.l.b16 %v5521
    %v5662 = vunpack.c.h.b16 %v5521
    %v5663 = vunpack.c.l.b16 %v5522
    %v5664 = vunpack.c.h.b16 %v5522
    %v5665 = vunpack.c.l.b16 %v5523
    %v5666 = vunpack.c.h.b16 %v5523
    %v5667 = vunpack.c.l.b16 %v5524
    %v5668 = vunpack.c.h.b16 %v5524
    %v5669 = vunpack.c.l.b16 %v5525
    %v5670 = vunpack.c.h.b16 %v5525
    %v5671 = vunpack.c.l.b16 %v5526
    %v5672 = vunpack.c.h.b16 %v5526
    %v5673 = vunpack.c.l.b16 %v5527
    %v5674 = vunpack.c.h.b16 %v5527
    %v5675 = vunpack.c.l.b16 %v5528
    %v5676 = vunpack.c.h.b16 %v5528
    %v5677 = vunpack.c.l.b16 %v5529
    %v5678 = vunpack.c.h.b16 %v5529
    %v5679 = vunpack.c.l.b16 %v5530
    %v5680 = vunpack.c.h.b16 %v5530
    %v5681 = vunpack.c.l.b16 %v5531
    %v5682 = vunpack.c.h.b16 %v5531
    %v5683 = vunpack.c.l.b16 %v5532
    %v5684 = vunpack.c.h.b16 %v5532
    %v5685 = vunpack.c.l.b16 %v5533
    %v5686 = vunpack.c.h.b16 %v5533
    %v5687 = vunpack.c.l.b16 %v5534
    %v5688 = vunpack.c.h.b16 %v5534
    %v5689 = vunpack.c.l.b16 %v5535
    %v5690 = vunpack.c.h.b16 %v5535
    %v5691 = vunpack.c.l.b16 %v5536
    %v5692 = vunpack.c.h.b16 %v5536
    %v5693 = vunpack.c.l.b16 %v5537
    %v5694 = vunpack.c.h.b16 %v5537
    %v5695 = vunpack.c.l.b16 %v5538
    %v5696 = vunpack.c.h.b16 %v5538
    %v5697 = vunpack.c.l.b16 %v5539
    %v5698 = vunpack.c.h.b16 %v5539
    %v5699 = vunpack.c.l.b16 %v5540
    %v5700 = vunpack.c.h.b16 %v5540
    %v5701 = vunpack.c.l.b16 %v5541
    %v5702 = vunpack.c.h.b16 %v5541
    %v5703 = vunpack.c.l.b16 %v5542
    %v5704 = vunpack.c.h.b16 %v5542
    %v5705 = vunpack.c.l.b16 %v5543
    %v5706 = vunpack.c.h.b16 %v5543
    %v5707 = vunpack.c.l.b16 %v5544
    %v5708 = vunpack.c.h.b16 %v5544
    %v5709 = vunpack.c.l.b16 %v5545
    %v5710 = vunpack.c.h.b16 %v5545
    %v5711 = vunpack.c.l.b16 %v5546
    %v5712 = vunpack.c.h.b16 %v5546
    %v5713 = vunpack.c.l.b16 %v5547
    %v5714 = vunpack.c.h.b16 %v5547
    %v5715 = vunpack.c.l.b16 %v5548
    %v5716 = vunpack.c.h.b16 %v5548
    %v5717 = vunpack.c.l.b16 %v5549
    %v5718 = vunpack.c.h.b16 %v5549
    %v5719 = vunpack.c.l.b16 %v5550
    %v5720 = vunpack.c.h.b16 %v5550
    %v5721 = vunpack.c.l.b16 %v5551
    %v5722 = vunpack.c.h.b16 %v5551
    %v5723 = vunpack.c.l.b16 %v5552
    %v5724 = vunpack.c.h.b16 %v5552
    %v5725 = vunpack.c.l.b16 %v5553
    %v5726 = vunpack.c.h.b16 %v5553
    %v5727 = vunpack.c.l.b16 %v5554
    %v5728 = vunpack.c.h.b16 %v5554
    %v5729 = vunpack.c.l.b16 %v5555
    %v5730 = vunpack.c.h.b16 %v5555
    %v5731 = vunpack.c.l.b16 %v5556
    %v5732 = vunpack.c.h.b16 %v5556
    %v5733 = vunpack.c.l.b16 %v5557
    %v5734 = vunpack.c.h.b16 %v5557
    %v5735 = vunpack.c.l.b16 %v5558
    %v5736 = vunpack.c.h.b16 %v5558
    %v5737 = vunpack.c.l.b16 %v5559
    %v5738 = vunpack.c.h.b16 %v5559
    %v5739 = vunpack.c.l.b16 %v5560
    %v5740 = vunpack.c.h.b16 %v5560
    %v5741 = vunpack.c.l.b16 %v5561
    %v5742 = vunpack.c.h.b16 %v5561
    %v5743 = vunpack.c.l.b16 %v5562
    %v5744 = vunpack.c.h.b16 %v5562
    %v5745 = vunpack.c.l.b16 %v5563
    %v5746 = vunpack.c.h.b16 %v5563
    %v5747 = vunpack.c.l.b16 %v5564
    %v5748 = vunpack.c.h.b16 %v5564
    %v5749 = vunpack.c.l.b16 %v5565
    %v5750 = vunpack.c.h.b16 %v5565
    %v5751 = vunpack.c.l.b16 %v5566
    %v5752 = vunpack.c.h.b16 %v5566
    %v5753 = vunpack.c.l.b16 %v5567
    %v5754 = vunpack.c.h.b16 %v5567
    %v5755 = vunpack.c.l.b16 %v5568
    %v5756 = vunpack.c.h.b16 %v5568
    %v5757 = vunpack.c.l.b16 %v5569
    %v5758 = vunpack.c.h.b16 %v5569
    %v5759 = vunpack.c.l.b16 %v5570
    %v5760 = vunpack.c.h.b16 %v5570
    %v5761 = vunpack.c.l.b16 %v5571
    %v5762 = vunpack.c.h.b16 %v5571
    %v5763 = vunpack.c.l.b16 %v5572
    %v5764 = vunpack.c.h.b16 %v5572
    %v5765 = vpack.c.b16 %v5641, %v5637
    %v5766 = vpack.c.b16 %v5642, %v5638
    %v5767 = vpack.c.b16 %v5643, %v5639
    %v5768 = vpack.c.b16 %v5644, %v5640
    %v5769 = vpack.c.b16 %v5649, %v5645
    %v5770 = vpack.c.b16 %v5650, %v5646
    %v5771 = vpack.c.b16 %v5651, %v5647
    %v5772 = vpack.c.b16 %v5652, %v5648
    %v5773 = vpack.c.b16 %v5657, %v5653
    %v5774 = vpack.c.b16 %v5658, %v5654
    %v5775 = vpack.c.b16 %v5659, %v5655
    %v5776 = vpack.c.b16 %v5660, %v5656
    %v5777 = vpack.c.b16 %v5665, %v5661
    %v5778 = vpack.c.b16 %v5666, %v5662
    %v5779 = vpack.c.b16 %v5667, %v5663
    %v5780 = vpack.c.b16 %v5668, %v5664
    %v5781 = vpack.c.b16 %v5673, %v5669
    %v5782 = vpack.c.b16 %v5674, %v5670
    %v5783 = vpack.c.b16 %v5675, %v5671
    %v5784 = vpack.c.b16 %v5676, %v5672
    %v5785 = vpack.c.b16 %v5681, %v5677
    %v5786 = vpack.c.b16 %v5682, %v5678
    %v5787 = vpack.c.b16 %v5683, %v5679
    %v5788 = vpack.c.b16 %v5684, %v5680
    %v5789 = vpack.c.b16 %v5689, %v5685
    %v5790 = vpack.c.b16 %v5690, %v5686
    %v5791 = vpack.c.b16 %v5691, %v5687
    %v5792 = vpack.c.b16 %v5692, %v5688
    %v5793 = vpack.c.b16 %v5697, %v5693
    %v5794 = vpack.c.b16 %v5698, %v5694
    %v5795 = vpack.c.b16 %v5699, %v5695
    %v5796 = vpack.c.b16 %v5700, %v5696
    %v5797 = vpack.c.b16 %v5705, %v5701
    %v5798 = vpack.c.b16 %v5706, %v5702
    %v5799 = vpack.c.b16 %v5707, %v5703
    %v5800 = vpack.c.b16 %v5708, %v5704
    %v5801 = vpack.c.b16 %v5713, %v5709
    %v5802 = vpack.c.b16 %v5714, %v5710
    %v5803 = vpack.c.b16 %v5715, %v5711
    %v5804 = vpack.c.b16 %v5716, %v5712
    %v5805 = vpack.c.b16 %v5721, %v5717
    %v5806 = vpack.c.b16 %v5722, %v5718
    %v5807 = vpack.c.b16 %v5723, %v5719
    %v5808 = vpack.c.b16 %v5724, %v5720
    %v5809 = vpack.c.b16 %v5729, %v5725
    %v5810 = vpack.c.b16 %v5730, %v5726
    %v5811 = vpack.c.b16 %v5731, %v5727
    %v5812 = vpack.c.b16 %v5732, %v5728
    %v5813 = vpack.c.b16 %v5737, %v5733
    %v5814 = vpack.c.b16 %v5738, %v5734
    %v5815 = vpack.c.b16 %v5739, %v5735
    %v5816 = vpack.c.b16 %v5740, %v5736
    %v5817 = vpack.c.b16 %v5745, %v5741
    %v5818 = vpack.c.b16 %v5746, %v5742
    %v5819 = vpack.c.b16 %v5747, %v5743
    %v5820 = vpack.c.b16 %v5748, %v5744
    %v5821 = vpack.c.b16 %v5753, %v5749
    %v5822 = vpack.c.b16 %v5754, %v5750
    %v5823 = vpack.c.b16 %v5755, %v5751
    %v5824 = vpack.c.b16 %v5756, %v5752
    %v5825 = vpack.c.b16 %v5761, %v5757
    %v5826 = vpack.c.b16 %v5762, %v5758
    %v5827 = vpack.c.b16 %v5763, %v5759
    %v5828 = vpack.c.b16 %v5764, %v5760
    %5893 = vmatprep.subr.bf16.mxu0 %v5766
    %5894 = vmatpush1.bf16.msra.mxu0 %v5765
    %5895 = vmatprep.subr.bf16.mxu0 %v5770
    %5896 = vmatpush1.bf16.msra.mxu0 %v5769
    %5897 = vmatprep.subr.bf16.mxu0 %v5774
    %5898 = vmatpush1.bf16.msra.mxu0 %v5773
    %5899 = vmatprep.subr.bf16.mxu0 %v5778
    %5900 = vmatpush1.bf16.msra.mxu0 %v5777
    %5901 = vmatprep.subr.bf16.mxu0 %v5782
    %5902 = vmatpush1.bf16.msra.mxu0 %v5781
    %5903 = vmatprep.subr.bf16.mxu0 %v5786
    %5904 = vmatpush1.bf16.msra.mxu0 %v5785
    %5905 = vmatprep.subr.bf16.mxu0 %v5790
    %5906 = vmatpush1.bf16.msra.mxu0 %v5789
    %5907 = vmatprep.subr.bf16.mxu0 %v5794
    %5908 = vmatpush1.bf16.msra.mxu0 %v5793
    %5909 = vmatprep.subr.bf16.mxu0 %v5798
    %5910 = vmatpush1.bf16.msra.mxu0 %v5797
    %5911 = vmatprep.subr.bf16.mxu0 %v5802
    %5912 = vmatpush1.bf16.msra.mxu0 %v5801
    %5913 = vmatprep.subr.bf16.mxu0 %v5806
    %5914 = vmatpush1.bf16.msra.mxu0 %v5805
    %5915 = vmatprep.subr.bf16.mxu0 %v5810
    %5916 = vmatpush1.bf16.msra.mxu0 %v5809
    %5917 = vmatprep.subr.bf16.mxu0 %v5814
    %5918 = vmatpush1.bf16.msra.mxu0 %v5813
    %5919 = vmatprep.subr.bf16.mxu0 %v5818
    %5920 = vmatpush1.bf16.msra.mxu0 %v5817
    %5921 = vmatprep.subr.bf16.mxu0 %v5822
    %5922 = vmatpush1.bf16.msra.mxu0 %v5821
    %5923 = vmatprep.subr.bf16.mxu0 %v5826
    %5924 = vmatpush1.bf16.msra.mxu0 %v5825
    %5925 = vmatprep.mubr.bf16.mxu0 %v5504
    %5926 = vmatmul.mubr.bf16.gmra.mrb[0].mxu0 %v5503
    %v5927 = vpop.f32.mrb[0].mxu0
    %v5928 = vadd.f32 0.0, %v5927
    %v5929 = vpop.f32.mrb[0].mxu0
    %v5930 = vadd.f32 0.0, %v5929
    %v5931 = vpop.f32.mrb[0].mxu0
    %v5932 = vadd.f32 0.0, %v5931
    %v5933 = vpop.f32.mrb[0].mxu0
    %v5934 = vadd.f32 0.0, %v5933
    %5935 = vmatprep.mubr.bf16.mxu0 %v5506
    %5936 = vmatmul.mubr.bf16.gmra.mrb[0].mxu0 %v5505
    %v5937 = vpop.f32.mrb[0].mxu0
    %v5938 = vadd.f32 0.0, %v5937
    %v5939 = vpop.f32.mrb[0].mxu0
    %v5940 = vadd.f32 0.0, %v5939
    %v5941 = vpop.f32.mrb[0].mxu0
    %v5942 = vadd.f32 0.0, %v5941
    %v5943 = vpop.f32.mrb[0].mxu0
    %v5944 = vadd.f32 0.0, %v5943
    %5945 = vmatprep.mubr.bf16.mxu0 %v5508
    %5946 = vmatmul.mubr.bf16.gmra.mrb[0].mxu0 %v5507
    %v5947 = vpop.f32.mrb[0].mxu0
    %v5948 = vadd.f32 0.0, %v5947
    %v5949 = vpop.f32.mrb[0].mxu0
    %v5950 = vadd.f32 0.0, %v5949
    %v5951 = vpop.f32.mrb[0].mxu0
    %v5952 = vadd.f32 0.0, %v5951
    %v5953 = vpop.f32.mrb[0].mxu0
    %v5954 = vadd.f32 0.0, %v5953
    %5955 = vdwg.mxu0
    %5956 = vmatprep.subr.bf16.mxu0 %v5768
    %5957 = vmatpush1.bf16.msra.mxu0 %v5767
    %5958 = vmatprep.subr.bf16.mxu0 %v5772
    %5959 = vmatpush1.bf16.msra.mxu0 %v5771
    %5960 = vmatprep.subr.bf16.mxu0 %v5776
    %5961 = vmatpush1.bf16.msra.mxu0 %v5775
    %5962 = vmatprep.subr.bf16.mxu0 %v5780
    %5963 = vmatpush1.bf16.msra.mxu0 %v5779
    %5964 = vmatprep.subr.bf16.mxu0 %v5784
    %5965 = vmatpush1.bf16.msra.mxu0 %v5783
    %5966 = vmatprep.subr.bf16.mxu0 %v5788
    %5967 = vmatpush1.bf16.msra.mxu0 %v5787
    %5968 = vmatprep.subr.bf16.mxu0 %v5792
    %5969 = vmatpush1.bf16.msra.mxu0 %v5791
    %5970 = vmatprep.subr.bf16.mxu0 %v5796
    %5971 = vmatpush1.bf16.msra.mxu0 %v5795
    %5972 = vmatprep.subr.bf16.mxu0 %v5800
    %5973 = vmatpush1.bf16.msra.mxu0 %v5799
    %5974 = vmatprep.subr.bf16.mxu0 %v5804
    %5975 = vmatpush1.bf16.msra.mxu0 %v5803
    %5976 = vmatprep.subr.bf16.mxu0 %v5808
    %5977 = vmatpush1.bf16.msra.mxu0 %v5807
    %5978 = vmatprep.subr.bf16.mxu0 %v5812
    %5979 = vmatpush1.bf16.msra.mxu0 %v5811
    %5980 = vmatprep.subr.bf16.mxu0 %v5816
    %5981 = vmatpush1.bf16.msra.mxu0 %v5815
    %5982 = vmatprep.subr.bf16.mxu0 %v5820
    %5983 = vmatpush1.bf16.msra.mxu0 %v5819
    %5984 = vmatprep.subr.bf16.mxu0 %v5824
    %5985 = vmatpush1.bf16.msra.mxu0 %v5823
    %5986 = vmatprep.subr.bf16.mxu0 %v5828
    %5987 = vmatpush1.bf16.msra.mxu0 %v5827
    %5988 = vmatprep.mubr.bf16.mxu0 %v5504
    %5989 = vmatmul.mubr.bf16.gmra.mrb[0].mxu0 %v5503
    %v5990 = vpop.f32.mrb[0].mxu0
    %v5991 = vadd.f32 0.0, %v5990
    %v5992 = vpop.f32.mrb[0].mxu0
    %v5993 = vadd.f32 0.0, %v5992
    %v5994 = vpop.f32.mrb[0].mxu0
    %v5995 = vadd.f32 0.0, %v5994
    %v5996 = vpop.f32.mrb[0].mxu0
    %v5997 = vadd.f32 0.0, %v5996
    %5998 = vmatprep.mubr.bf16.mxu0 %v5506
    %5999 = vmatmul.mubr.bf16.gmra.mrb[0].mxu0 %v5505
    %v6000 = vpop.f32.mrb[0].mxu0
    %v6001 = vadd.f32 0.0, %v6000
    %v6002 = vpop.f32.mrb[0].mxu0
    %v6003 = vadd.f32 0.0, %v6002
    %v6004 = vpop.f32.mrb[0].mxu0
    %v6005 = vadd.f32 0.0, %v6004
    %v6006 = vpop.f32.mrb[0].mxu0
    %v6007 = vadd.f32 0.0, %v6006
    %6008 = vmatprep.mubr.bf16.mxu0 %v5508
    %6009 = vmatmul.mubr.bf16.gmra.mrb[0].mxu0 %v5507
    %v6010 = vpop.f32.mrb[0].mxu0
    %v6011 = vadd.f32 0.0, %v6010
    %v6012 = vpop.f32.mrb[0].mxu0
    %v6013 = vadd.f32 0.0, %v6012
    %v6014 = vpop.f32.mrb[0].mxu0
    %v6015 = vadd.f32 0.0, %v6014
    %v6016 = vpop.f32.mrb[0].mxu0
    %v6017 = vadd.f32 0.0, %v6016
    %6018 = vdwg.mxu0
    %v6019 = vadd.f32 %v5928, %v5932
    %v6020 = vadd.f32 %v6019, %v5938
    %v6021 = vadd.f32 %v6020, %v5942
    %v6022 = vadd.f32 %v6021, %v5948
    %v6023 = vadd.f32 %v6022, %v5952
    %v6024 = vrot.slane %v6023, 4
    %v6025 = vadd.f32 %v6023, %v6024
    %v6026 = vrot.slane %v6025, 2
    %v6027 = vadd.f32 %v6025, %v6026
    %v6028 = vrot.slane %v6027, 1
    %v6029 = vadd.f32 %v6027, %v6028
    %v6030 = vadd.f32 %v5930, %v5934
    %v6031 = vadd.f32 %v6030, %v5940
    %v6032 = vadd.f32 %v6031, %v5944
    %v6033 = vadd.f32 %v6032, %v5950
    %v6034 = vadd.f32 %v6033, %v5954
    %v6035 = vrot.slane %v6034, 4
    %v6036 = vadd.f32 %v6034, %v6035
    %v6037 = vrot.slane %v6036, 2
    %v6038 = vadd.f32 %v6036, %v6037
    %v6039 = vrot.slane %v6038, 1
    %v6040 = vadd.f32 %v6038, %v6039
    %v6041 = vadd.f32 %v5991, %v5995
    %v6042 = vadd.f32 %v6041, %v6001
    %v6043 = vadd.f32 %v6042, %v6005
    %v6044 = vadd.f32 %v6043, %v6011
    %v6045 = vadd.f32 %v6044, %v6015
    %v6046 = vrot.slane %v6045, 4
    %v6047 = vadd.f32 %v6045, %v6046
    %v6048 = vrot.slane %v6047, 2
    %v6049 = vadd.f32 %v6047, %v6048
    %v6050 = vrot.slane %v6049, 1
    %v6051 = vadd.f32 %v6049, %v6050
    %v6052 = vadd.f32 %v5993, %v5997
    %v6053 = vadd.f32 %v6052, %v6003
    %v6054 = vadd.f32 %v6053, %v6007
    %v6055 = vadd.f32 %v6054, %v6013
    %v6056 = vadd.f32 %v6055, %v6017
    %v6057 = vrot.slane %v6056, 4
    %v6058 = vadd.f32 %v6056, %v6057
    %v6059 = vrot.slane %v6058, 2
    %v6060 = vadd.f32 %v6058, %v6059
    %v6061 = vrot.slane %v6060, 1
    %v6062 = vadd.f32 %v6060, %v6061
    %v6063 = vmul.f32 %v5928, %v5928
    %v6064 = vmul.f32 %v5930, %v5930
    %v6065 = vmul.f32 %v5991, %v5991
    %v6066 = vmul.f32 %v5993, %v5993
    %v6067 = vmul.f32 %v5932, %v5932
    %v6068 = vmul.f32 %v5934, %v5934
    %v6069 = vmul.f32 %v5995, %v5995
    %v6070 = vmul.f32 %v5997, %v5997
    %v6071 = vmul.f32 %v5938, %v5938
    %v6072 = vmul.f32 %v5940, %v5940
    %v6073 = vmul.f32 %v6001, %v6001
    %v6074 = vmul.f32 %v6003, %v6003
    %v6075 = vmul.f32 %v5942, %v5942
    %v6076 = vmul.f32 %v5944, %v5944
    %v6077 = vmul.f32 %v6005, %v6005
    %v6078 = vmul.f32 %v6007, %v6007
    %v6079 = vmul.f32 %v5948, %v5948
    %v6080 = vmul.f32 %v5950, %v5950
    %v6081 = vmul.f32 %v6011, %v6011
    %v6082 = vmul.f32 %v6013, %v6013
    %v6083 = vmul.f32 %v5952, %v5952
    %v6084 = vmul.f32 %v5954, %v5954
    %v6085 = vmul.f32 %v6015, %v6015
    %v6086 = vmul.f32 %v6017, %v6017
    %v6087 = vadd.f32 %v6063, %v6067
    %v6088 = vadd.f32 %v6087, %v6071
    %v6089 = vadd.f32 %v6088, %v6075
    %v6090 = vadd.f32 %v6089, %v6079
    %v6091 = vadd.f32 %v6090, %v6083
    %v6092 = vrot.slane %v6091, 4
    %v6093 = vadd.f32 %v6091, %v6092
    %v6094 = vrot.slane %v6093, 2
    %v6095 = vadd.f32 %v6093, %v6094
    %v6096 = vrot.slane %v6095, 1
    %v6097 = vadd.f32 %v6095, %v6096
    %v6098 = vadd.f32 %v6064, %v6068
    %v6099 = vadd.f32 %v6098, %v6072
    %v6100 = vadd.f32 %v6099, %v6076
    %v6101 = vadd.f32 %v6100, %v6080
    %v6102 = vadd.f32 %v6101, %v6084
    %v6103 = vrot.slane %v6102, 4
    %v6104 = vadd.f32 %v6102, %v6103
    %v6105 = vrot.slane %v6104, 2
    %v6106 = vadd.f32 %v6104, %v6105
    %v6107 = vrot.slane %v6106, 1
    %v6108 = vadd.f32 %v6106, %v6107
    %v6109 = vadd.f32 %v6065, %v6069
    %v6110 = vadd.f32 %v6109, %v6073
    %v6111 = vadd.f32 %v6110, %v6077
    %v6112 = vadd.f32 %v6111, %v6081
    %v6113 = vadd.f32 %v6112, %v6085
    %v6114 = vrot.slane %v6113, 4
    %v6115 = vadd.f32 %v6113, %v6114
    %v6116 = vrot.slane %v6115, 2
    %v6117 = vadd.f32 %v6115, %v6116
    %v6118 = vrot.slane %v6117, 1
    %v6119 = vadd.f32 %v6117, %v6118
    %v6120 = vadd.f32 %v6066, %v6070
    %v6121 = vadd.f32 %v6120, %v6074
    %v6122 = vadd.f32 %v6121, %v6078
    %v6123 = vadd.f32 %v6122, %v6082
    %v6124 = vadd.f32 %v6123, %v6086
    %v6125 = vrot.slane %v6124, 4
    %v6126 = vadd.f32 %v6124, %v6125
    %v6127 = vrot.slane %v6126, 2
    %v6128 = vadd.f32 %v6126, %v6127
    %v6129 = vrot.slane %v6128, 1
    %v6130 = vadd.f32 %v6128, %v6129
    %v6131 = vadd.f32 %v6029, %v6051
    %v6132 = vadd.f32 %v6040, %v6062
    %v6133 = vmul.f32 %v6131, 0.041666668
    %v6134 = vmul.f32 %v6132, 0.041666668
    %v6135 = vadd.f32 %v6097, %v6119
    %v6136 = vadd.f32 %v6108, %v6130
    %v6137 = vmul.f32 %v6135, 0.041666668
    %v6138 = vmul.f32 %v6136, 0.041666668
    %v6139 = vmul.f32 %v6133, %v6133
    %v6140 = vmul.f32 %v6134, %v6134
    %v6141 = vsub.f32 %v6137, %v6139
    %v6142 = vsub.f32 %v6138, %v6140
    %v6143 = vmax.f32 %v6141, 0.0
    %v6144 = vmax.f32 %v6142, 0.0
    %v6145 = vld [vmem:[#allocation19] sm:$0x3]
    %v6146 = vadd.f32 %v6143, 1e-05
    %v6147 = vadd.f32 %v6144, 1e-05
    %v6148 = vrsqrt.pop %v6146
    %v6149 = vrsqrt.pop %v6147
    %v6152 = vcombine.low %v6148, %v6149
    %v6154 = vunpack.c.l.s4 1966171168
    %v6155 = vunpack.c.0.s8 %v6154
    %v6156 = vlaneseq
    %v6157 = vshrl.u32 %v6156, 7
    %v6158 = vsub.s32 %v6155, %v6157
    %v6159 = vrot.slane %v6152, %v6158
    %v6161 = vunpack.c.l.s4 1966171168
    %v6162 = vunpack.c.0.s8 %v6161
    %v6163 = vlaneseq
    %v6164 = vshrl.u32 %v6163, 7
    %v6165 = vsub.s32 %v6162, %v6164
    %v6166 = vrot.slane %v6159, %v6165
    %v6168 = vmul.f32 %v6145, %v6166
    %v6169 = vld [vmem:[#allocation20] sm:$0x3]
    %v6171 = vlaneseq
    %v6172 = vshrl.u32 %v6171, 7
    %v6173 = vsub.s32 0, %v6172
    %v6174 = vrot.slane %v6168, %v6173
    %v6175 = vlaneseq
    %v6176 = vshrl.u32 %v6175, 7
    %v6177 = vsub.s32 1, %v6176
    %v6178 = vrot.slane %v6168, %v6177
    %v6181 = vmul.f32 %v6133, %v6174
    %v6182 = vmul.f32 %v6134, %v6178
    %v6185 = vcombine.low %v6181, %v6182
    %v6187 = vunpack.c.l.s4 1966171168
    %v6188 = vunpack.c.0.s8 %v6187
    %v6189 = vlaneseq
    %v6190 = vshrl.u32 %v6189, 7
    %v6191 = vsub.s32 %v6188, %v6190
    %v6192 = vrot.slane %v6185, %v6191
    %v6194 = vunpack.c.l.s4 1966171168
    %v6195 = vunpack.c.0.s8 %v6194
    %v6196 = vlaneseq
    %v6197 = vshrl.u32 %v6196, 7
    %v6198 = vsub.s32 %v6195, %v6197
    %v6199 = vrot.slane %v6192, %v6198
    %v6201 = vsub.f32 %v6169, %v6199
    %v6202 = vmul.f32 %v5928, %v6174
    %v6203 = vmul.f32 %v5930, %v6178
    %v6204 = vmul.f32 %v5932, %v6174
    %v6205 = vmul.f32 %v5934, %v6178
    %v6206 = vmul.f32 %v5938, %v6174
    %v6207 = vmul.f32 %v5940, %v6178
    %v6208 = vmul.f32 %v5942, %v6174
    %v6209 = vmul.f32 %v5944, %v6178
    %v6210 = vmul.f32 %v5948, %v6174
    %v6211 = vmul.f32 %v5950, %v6178
    %v6212 = vmul.f32 %v5952, %v6174
    %v6213 = vmul.f32 %v5954, %v6178
    %v6215 = vlaneseq
    %v6216 = vshrl.u32 %v6215, 7
    %v6217 = vsub.s32 0, %v6216
    %v6218 = vrot.slane %v6201, %v6217
    %v6219 = vlaneseq
    %v6220 = vshrl.u32 %v6219, 7
    %v6221 = vsub.s32 1, %v6220
    %v6222 = vrot.slane %v6201, %v6221
    %v6225 = vadd.f32 %v6202, %v6218
    %v6226 = vadd.f32 %v6203, %v6222
    %v6227 = vadd.f32 %v6204, %v6218
    %v6228 = vadd.f32 %v6205, %v6222
    %v6229 = vadd.f32 %v6206, %v6218
    %v6230 = vadd.f32 %v6207, %v6222
    %v6231 = vadd.f32 %v6208, %v6218
    %v6232 = vadd.f32 %v6209, %v6222
    %v6233 = vadd.f32 %v6210, %v6218
    %v6234 = vadd.f32 %v6211, %v6222
    %v6235 = vadd.f32 %v6212, %v6218
    %v6236 = vadd.f32 %v6213, %v6222
    %v6237 = vmax.f32 %v6225, 0.0
    %v6238 = vmax.f32 %v6226, 0.0
    %v6239 = vmax.f32 %v6227, 0.0
    %v6240 = vmax.f32 %v6228, 0.0
    %v6241 = vmax.f32 %v6229, 0.0
    %v6242 = vmax.f32 %v6230, 0.0
    %v6243 = vmax.f32 %v6231, 0.0
    %v6244 = vmax.f32 %v6232, 0.0
    %v6245 = vmax.f32 %v6233, 0.0
    %v6246 = vmax.f32 %v6234, 0.0
    %v6247 = vmax.f32 %v6235, 0.0
    %v6248 = vmax.f32 %v6236, 0.0
    %v6249 = vmul.f32 %v5991, %v6174
    %v6250 = vmul.f32 %v5993, %v6178
    %v6251 = vmul.f32 %v5995, %v6174
    %v6252 = vmul.f32 %v5997, %v6178
    %v6253 = vmul.f32 %v6001, %v6174
    %v6254 = vmul.f32 %v6003, %v6178
    %v6255 = vmul.f32 %v6005, %v6174
    %v6256 = vmul.f32 %v6007, %v6178
    %v6257 = vmul.f32 %v6011, %v6174
    %v6258 = vmul.f32 %v6013, %v6178
    %v6259 = vmul.f32 %v6015, %v6174
    %v6260 = vmul.f32 %v6017, %v6178
    %v6261 = vadd.f32 %v6249, %v6218
    %v6262 = vadd.f32 %v6250, %v6222
    %v6263 = vadd.f32 %v6251, %v6218
    %v6264 = vadd.f32 %v6252, %v6222
    %v6265 = vadd.f32 %v6253, %v6218
    %v6266 = vadd.f32 %v6254, %v6222
    %v6267 = vadd.f32 %v6255, %v6218
    %v6268 = vadd.f32 %v6256, %v6222
    %v6269 = vadd.f32 %v6257, %v6218
    %v6270 = vadd.f32 %v6258, %v6222
    %v6271 = vadd.f32 %v6259, %v6218
    %v6272 = vadd.f32 %v6260, %v6222
    %v6273 = vmax.f32 %v6261, 0.0
    %v6274 = vmax.f32 %v6262, 0.0
    %v6275 = vmax.f32 %v6263, 0.0
    %v6276 = vmax.f32 %v6264, 0.0
    %v6277 = vmax.f32 %v6265, 0.0
    %v6278 = vmax.f32 %v6266, 0.0
    %v6279 = vmax.f32 %v6267, 0.0
    %v6280 = vmax.f32 %v6268, 0.0
    %v6281 = vmax.f32 %v6269, 0.0
    %v6282 = vmax.f32 %v6270, 0.0
    %v6283 = vmax.f32 %v6271, 0.0
    %v6284 = vmax.f32 %v6272, 0.0
    %v6285 = vmul.f32 %v6237, %v4747
    %v6286 = vmul.f32 %v6238, %v4747
    %v6287 = vmul.f32 %v6239, %v4748
    %v6288 = vmul.f32 %v6240, %v4748
    %v6289 = vmul.f32 %v6241, %v4749
    %v6290 = vmul.f32 %v6242, %v4749
    %v6291 = vmul.f32 %v6243, %v4750
    %v6292 = vmul.f32 %v6244, %v4750
    %v6293 = vmul.f32 %v6245, %v4751
    %v6294 = vmul.f32 %v6246, %v4751
    %v6295 = vmul.f32 %v6247, %v4752
    %v6296 = vmul.f32 %v6248, %v4752
    %v6297 = vmul.f32 %v6273, %v4747
    %v6298 = vmul.f32 %v6274, %v4747
    %v6299 = vmul.f32 %v6275, %v4748
    %v6300 = vmul.f32 %v6276, %v4748
    %v6301 = vmul.f32 %v6277, %v4749
    %v6302 = vmul.f32 %v6278, %v4749
    %v6303 = vmul.f32 %v6279, %v4750
    %v6304 = vmul.f32 %v6280, %v4750
    %v6305 = vmul.f32 %v6281, %v4751
    %v6306 = vmul.f32 %v6282, %v4751
    %v6307 = vmul.f32 %v6283, %v4752
    %v6308 = vmul.f32 %v6284, %v4752
    %6309 = vst [vmem:[#allocation2] sm:$0xff] %v6285
    %6310 = vst [vmem:[#allocation2 + $0x8] sm:$0xff] %v6286
    %6311 = vst [vmem:[#allocation2 + $0x10] sm:$0xff] %v6287
    %6312 = vst [vmem:[#allocation2 + $0x18] sm:$0xff] %v6288
    %6313 = vst [vmem:[#allocation2 + $0x20] sm:$0xff] %v6289
    %6314 = vst [vmem:[#allocation2 + $0x28] sm:$0xff] %v6290
    %6315 = vst [vmem:[#allocation2 + $0x30] sm:$0xff] %v6291
    %6316 = vst [vmem:[#allocation2 + $0x38] sm:$0xff] %v6292
    %6317 = vst [vmem:[#allocation2 + $0x40] sm:$0xff] %v6293
    %6318 = vst [vmem:[#allocation2 + $0x48] sm:$0xff] %v6294
    %6319 = vst [vmem:[#allocation2 + $0x50] sm:$0xff] %v6295
    %6320 = vst [vmem:[#allocation2 + $0x58] sm:$0xff] %v6296
    %6321 = vst [vmem:[#allocation2 + $0x60] sm:$0xff] %v6297
    %6322 = vst [vmem:[#allocation2 + $0x68] sm:$0xff] %v6298
    %6323 = vst [vmem:[#allocation2 + $0x70] sm:$0xff] %v6299
    %6324 = vst [vmem:[#allocation2 + $0x78] sm:$0xff] %v6300
    %6325 = vst [vmem:[#allocation2 + $0x80] sm:$0xff] %v6301
    %6326 = vst [vmem:[#allocation2 + $0x88] sm:$0xff] %v6302
    %6327 = vst [vmem:[#allocation2 + $0x90] sm:$0xff] %v6303
    %6328 = vst [vmem:[#allocation2 + $0x98] sm:$0xff] %v6304
    %6329 = vst [vmem:[#allocation2 + $0xa0] sm:$0xff] %v6305
    %6330 = vst [vmem:[#allocation2 + $0xa8] sm:$0xff] %v6306
    %6331 = vst [vmem:[#allocation2 + $0xb0] sm:$0xff] %v6307
    %6332 = vst [vmem:[#allocation2 + $0xb8] sm:$0xff] %v6308
    %v6333 = vld [vmem:[#allocation2] sm:$0xff]
    %v6334 = vld [vmem:[#allocation2 + $0x8] sm:$0xff]
    %v6335 = vld [vmem:[#allocation2 + $0x10] sm:$0xff]
    %v6336 = vld [vmem:[#allocation2 + $0x18] sm:$0xff]
    %v6337 = vld [vmem:[#allocation2 + $0x20] sm:$0xff]
    %v6338 = vld [vmem:[#allocation2 + $0x28] sm:$0xff]
    %v6339 = vld [vmem:[#allocation2 + $0x30] sm:$0xff]
    %v6340 = vld [vmem:[#allocation2 + $0x38] sm:$0xff]
    %v6341 = vld [vmem:[#allocation2 + $0x40] sm:$0xff]
    %v6342 = vld [vmem:[#allocation2 + $0x48] sm:$0xff]
    %v6343 = vld [vmem:[#allocation2 + $0x50] sm:$0xff]
    %v6344 = vld [vmem:[#allocation2 + $0x58] sm:$0xff]
    %v6345 = vld [vmem:[#allocation2 + $0x60] sm:$0xff]
    %v6346 = vld [vmem:[#allocation2 + $0x68] sm:$0xff]
    %v6347 = vld [vmem:[#allocation2 + $0x70] sm:$0xff]
    %v6348 = vld [vmem:[#allocation2 + $0x78] sm:$0xff]
    %v6349 = vld [vmem:[#allocation2 + $0x80] sm:$0xff]
    %v6350 = vld [vmem:[#allocation2 + $0x88] sm:$0xff]
    %v6351 = vld [vmem:[#allocation2 + $0x90] sm:$0xff]
    %v6352 = vld [vmem:[#allocation2 + $0x98] sm:$0xff]
    %v6353 = vld [vmem:[#allocation2 + $0xa0] sm:$0xff]
    %v6354 = vld [vmem:[#allocation2 + $0xa8] sm:$0xff]
    %v6355 = vld [vmem:[#allocation2 + $0xb0] sm:$0xff]
    %v6356 = vld [vmem:[#allocation2 + $0xb8] sm:$0xff]
    %v6357 = vpack.c.bf16 %v6335, %v6333
    %v6358 = vpack.c.bf16 %v6336, %v6334
    %v6359 = vpack.c.bf16 %v6339, %v6337
    %v6360 = vpack.c.bf16 %v6340, %v6338
    %v6361 = vpack.c.bf16 %v6343, %v6341
    %v6362 = vpack.c.bf16 %v6344, %v6342
    %v6363 = vpack.c.bf16 %v6347, %v6345
    %v6364 = vpack.c.bf16 %v6348, %v6346
    %v6365 = vpack.c.bf16 %v6351, %v6349
    %v6366 = vpack.c.bf16 %v6352, %v6350
    %v6367 = vpack.c.bf16 %v6355, %v6353
    %v6368 = vpack.c.bf16 %v6356, %v6354
    %v6369 = vld [vmem:[#allocation22] sm:$0xff]
    %v6370 = vld [vmem:[#allocation22 + $0x8] sm:$0xff]
    %v6371 = vld [vmem:[#allocation22 + $0x10] sm:$0xff]
    %v6372 = vld [vmem:[#allocation22 + $0x18] sm:$0xff]
    %v6373 = vld [vmem:[#allocation22 + $0x20] sm:$0xff]
    %v6374 = vld [vmem:[#allocation22 + $0x28] sm:$0xff]
    %v6375 = vld [vmem:[#allocation22 + $0x30] sm:$0xff]
    %v6376 = vld [vmem:[#allocation22 + $0x38] sm:$0xff]
    %v6377 = vld [vmem:[#allocation22 + $0x40] sm:$0xff]
    %v6378 = vld [vmem:[#allocation22 + $0x48] sm:$0xff]
    %v6379 = vld [vmem:[#allocation22 + $0x50] sm:$0xff]
    %v6380 = vld [vmem:[#allocation22 + $0x58] sm:$0xff]
    %v6381 = vld [vmem:[#allocation22 + $0x60] sm:$0xff]
    %v6382 = vld [vmem:[#allocation22 + $0x68] sm:$0xff]
    %v6383 = vld [vmem:[#allocation22 + $0x70] sm:$0xff]
    %v6384 = vld [vmem:[#allocation22 + $0x78] sm:$0xff]
    %v6385 = vld [vmem:[#allocation22 + $0x80] sm:$0xff]
    %v6386 = vld [vmem:[#allocation22 + $0x88] sm:$0xff]
    %v6387 = vld [vmem:[#allocation22 + $0x90] sm:$0xff]
    %v6388 = vld [vmem:[#allocation22 + $0x98] sm:$0xff]
    %v6389 = vld [vmem:[#allocation22 + $0xa0] sm:$0xff]
    %v6390 = vld [vmem:[#allocation22 + $0xa8] sm:$0xff]
    %v6391 = vld [vmem:[#allocation22 + $0xb0] sm:$0xff]
    %v6392 = vld [vmem:[#allocation22 + $0xb8] sm:$0xff]
    %v6393 = vld [vmem:[#allocation22 + $0xc0] sm:$0xff]
    %v6394 = vld [vmem:[#allocation22 + $0xc8] sm:$0xff]
    %v6395 = vld [vmem:[#allocation22 + $0xd0] sm:$0xff]
    %v6396 = vld [vmem:[#allocation22 + $0xd8] sm:$0xff]
    %v6397 = vld [vmem:[#allocation22 + $0xe0] sm:$0xff]
    %v6398 = vld [vmem:[#allocation22 + $0xe8] sm:$0xff]
    %v6399 = vld [vmem:[#allocation22 + $0xf0] sm:$0xff]
    %v6400 = vld [vmem:[#allocation22 + $0xf8] sm:$0xff]
    %v6401 = vld [vmem:[#allocation22 + $0x100] sm:$0xff]
    %v6402 = vld [vmem:[#allocation22 + $0x108] sm:$0xff]
    %v6403 = vld [vmem:[#allocation22 + $0x110] sm:$0xff]
    %v6404 = vld [vmem:[#allocation22 + $0x118] sm:$0xff]
    %v6405 = vld [vmem:[#allocation22 + $0x120] sm:$0xff]
    %v6406 = vld [vmem:[#allocation22 + $0x128] sm:$0xff]
    %v6407 = vld [vmem:[#allocation22 + $0x130] sm:$0xff]
    %v6408 = vld [vmem:[#allocation22 + $0x138] sm:$0xff]
    %v6409 = vld [vmem:[#allocation22 + $0x140] sm:$0xff]
    %v6410 = vld [vmem:[#allocation22 + $0x148] sm:$0xff]
    %v6411 = vld [vmem:[#allocation22 + $0x150] sm:$0xff]
    %v6412 = vld [vmem:[#allocation22 + $0x158] sm:$0xff]
    %v6413 = vld [vmem:[#allocation22 + $0x160] sm:$0xff]
    %v6414 = vld [vmem:[#allocation22 + $0x168] sm:$0xff]
    %v6415 = vld [vmem:[#allocation22 + $0x170] sm:$0xff]
    %v6416 = vld [vmem:[#allocation22 + $0x178] sm:$0xff]
    %v6417 = vld [vmem:[#allocation22 + $0x180] sm:$0xff]
    %v6418 = vld [vmem:[#allocation22 + $0x188] sm:$0xff]
    %v6419 = vld [vmem:[#allocation22 + $0x190] sm:$0xff]
    %v6420 = vld [vmem:[#allocation22 + $0x198] sm:$0xff]
    %v6421 = vld [vmem:[#allocation22 + $0x1a0] sm:$0xff]
    %v6422 = vld [vmem:[#allocation22 + $0x1a8] sm:$0xff]
    %v6423 = vld [vmem:[#allocation22 + $0x1b0] sm:$0xff]
    %v6424 = vld [vmem:[#allocation22 + $0x1b8] sm:$0xff]
    %v6425 = vld [vmem:[#allocation22 + $0x1c0] sm:$0xff]
    %v6426 = vld [vmem:[#allocation22 + $0x1c8] sm:$0xff]
    %v6427 = vld [vmem:[#allocation22 + $0x1d0] sm:$0xff]
    %v6428 = vld [vmem:[#allocation22 + $0x1d8] sm:$0xff]
    %v6429 = vld [vmem:[#allocation22 + $0x1e0] sm:$0xff]
    %v6430 = vld [vmem:[#allocation22 + $0x1e8] sm:$0xff]
    %v6431 = vld [vmem:[#allocation22 + $0x1f0] sm:$0xff]
    %v6432 = vld [vmem:[#allocation22 + $0x1f8] sm:$0xff]
    %v6497 = vunpack.c.l.b16 %v6369
    %v6498 = vunpack.c.h.b16 %v6369
    %v6499 = vunpack.c.l.b16 %v6370
    %v6500 = vunpack.c.h.b16 %v6370
    %v6501 = vunpack.c.l.b16 %v6371
    %v6502 = vunpack.c.h.b16 %v6371
    %v6503 = vunpack.c.l.b16 %v6372
    %v6504 = vunpack.c.h.b16 %v6372
    %v6505 = vunpack.c.l.b16 %v6373
    %v6506 = vunpack.c.h.b16 %v6373
    %v6507 = vunpack.c.l.b16 %v6374
    %v6508 = vunpack.c.h.b16 %v6374
    %v6509 = vunpack.c.l.b16 %v6375
    %v6510 = vunpack.c.h.b16 %v6375
    %v6511 = vunpack.c.l.b16 %v6376
    %v6512 = vunpack.c.h.b16 %v6376
    %v6513 = vunpack.c.l.b16 %v6377
    %v6514 = vunpack.c.h.b16 %v6377
    %v6515 = vunpack.c.l.b16 %v6378
    %v6516 = vunpack.c.h.b16 %v6378
    %v6517 = vunpack.c.l.b16 %v6379
    %v6518 = vunpack.c.h.b16 %v6379
    %v6519 = vunpack.c.l.b16 %v6380
    %v6520 = vunpack.c.h.b16 %v6380
    %v6521 = vunpack.c.l.b16 %v6381
    %v6522 = vunpack.c.h.b16 %v6381
    %v6523 = vunpack.c.l.b16 %v6382
    %v6524 = vunpack.c.h.b16 %v6382
    %v6525 = vunpack.c.l.b16 %v6383
    %v6526 = vunpack.c.h.b16 %v6383
    %v6527 = vunpack.c.l.b16 %v6384
    %v6528 = vunpack.c.h.b16 %v6384
    %v6529 = vunpack.c.l.b16 %v6385
    %v6530 = vunpack.c.h.b16 %v6385
    %v6531 = vunpack.c.l.b16 %v6386
    %v6532 = vunpack.c.h.b16 %v6386
    %v6533 = vunpack.c.l.b16 %v6387
    %v6534 = vunpack.c.h.b16 %v6387
    %v6535 = vunpack.c.l.b16 %v6388
    %v6536 = vunpack.c.h.b16 %v6388
    %v6537 = vunpack.c.l.b16 %v6389
    %v6538 = vunpack.c.h.b16 %v6389
    %v6539 = vunpack.c.l.b16 %v6390
    %v6540 = vunpack.c.h.b16 %v6390
    %v6541 = vunpack.c.l.b16 %v6391
    %v6542 = vunpack.c.h.b16 %v6391
    %v6543 = vunpack.c.l.b16 %v6392
    %v6544 = vunpack.c.h.b16 %v6392
    %v6545 = vunpack.c.l.b16 %v6393
    %v6546 = vunpack.c.h.b16 %v6393
    %v6547 = vunpack.c.l.b16 %v6394
    %v6548 = vunpack.c.h.b16 %v6394
    %v6549 = vunpack.c.l.b16 %v6395
    %v6550 = vunpack.c.h.b16 %v6395
    %v6551 = vunpack.c.l.b16 %v6396
    %v6552 = vunpack.c.h.b16 %v6396
    %v6553 = vunpack.c.l.b16 %v6397
    %v6554 = vunpack.c.h.b16 %v6397
    %v6555 = vunpack.c.l.b16 %v6398
    %v6556 = vunpack.c.h.b16 %v6398
    %v6557 = vunpack.c.l.b16 %v6399
    %v6558 = vunpack.c.h.b16 %v6399
    %v6559 = vunpack.c.l.b16 %v6400
    %v6560 = vunpack.c.h.b16 %v6400
    %v6561 = vunpack.c.l.b16 %v6401
    %v6562 = vunpack.c.h.b16 %v6401
    %v6563 = vunpack.c.l.b16 %v6402
    %v6564 = vunpack.c.h.b16 %v6402
    %v6565 = vunpack.c.l.b16 %v6403
    %v6566 = vunpack.c.h.b16 %v6403
    %v6567 = vunpack.c.l.b16 %v6404
    %v6568 = vunpack.c.h.b16 %v6404
    %v6569 = vunpack.c.l.b16 %v6405
    %v6570 = vunpack.c.h.b16 %v6405
    %v6571 = vunpack.c.l.b16 %v6406
    %v6572 = vunpack.c.h.b16 %v6406
    %v6573 = vunpack.c.l.b16 %v6407
    %v6574 = vunpack.c.h.b16 %v6407
    %v6575 = vunpack.c.l.b16 %v6408
    %v6576 = vunpack.c.h.b16 %v6408
    %v6577 = vunpack.c.l.b16 %v6409
    %v6578 = vunpack.c.h.b16 %v6409
    %v6579 = vunpack.c.l.b16 %v6410
    %v6580 = vunpack.c.h.b16 %v6410
    %v6581 = vunpack.c.l.b16 %v6411
    %v6582 = vunpack.c.h.b16 %v6411
    %v6583 = vunpack.c.l.b16 %v6412
    %v6584 = vunpack.c.h.b16 %v6412
    %v6585 = vunpack.c.l.b16 %v6413
    %v6586 = vunpack.c.h.b16 %v6413
    %v6587 = vunpack.c.l.b16 %v6414
    %v6588 = vunpack.c.h.b16 %v6414
    %v6589 = vunpack.c.l.b16 %v6415
    %v6590 = vunpack.c.h.b16 %v6415
    %v6591 = vunpack.c.l.b16 %v6416
    %v6592 = vunpack.c.h.b16 %v6416
    %v6593 = vunpack.c.l.b16 %v6417
    %v6594 = vunpack.c.h.b16 %v6417
    %v6595 = vunpack.c.l.b16 %v6418
    %v6596 = vunpack.c.h.b16 %v6418
    %v6597 = vunpack.c.l.b16 %v6419
    %v6598 = vunpack.c.h.b16 %v6419
    %v6599 = vunpack.c.l.b16 %v6420
    %v6600 = vunpack.c.h.b16 %v6420
    %v6601 = vunpack.c.l.b16 %v6421
    %v6602 = vunpack.c.h.b16 %v6421
    %v6603 = vunpack.c.l.b16 %v6422
    %v6604 = vunpack.c.h.b16 %v6422
    %v6605 = vunpack.c.l.b16 %v6423
    %v6606 = vunpack.c.h.b16 %v6423
    %v6607 = vunpack.c.l.b16 %v6424
    %v6608 = vunpack.c.h.b16 %v6424
    %v6609 = vunpack.c.l.b16 %v6425
    %v6610 = vunpack.c.h.b16 %v6425
    %v6611 = vunpack.c.l.b16 %v6426
    %v6612 = vunpack.c.h.b16 %v6426
    %v6613 = vunpack.c.l.b16 %v6427
    %v6614 = vunpack.c.h.b16 %v6427
    %v6615 = vunpack.c.l.b16 %v6428
    %v6616 = vunpack.c.h.b16 %v6428
    %v6617 = vunpack.c.l.b16 %v6429
    %v6618 = vunpack.c.h.b16 %v6429
    %v6619 = vunpack.c.l.b16 %v6430
    %v6620 = vunpack.c.h.b16 %v6430
    %v6621 = vunpack.c.l.b16 %v6431
    %v6622 = vunpack.c.h.b16 %v6431
    %v6623 = vunpack.c.l.b16 %v6432
    %v6624 = vunpack.c.h.b16 %v6432
    %v6625 = vpack.c.b16 %v6501, %v6497
    %v6626 = vpack.c.b16 %v6502, %v6498
    %v6627 = vpack.c.b16 %v6503, %v6499
    %v6628 = vpack.c.b16 %v6504, %v6500
    %v6629 = vpack.c.b16 %v6509, %v6505
    %v6630 = vpack.c.b16 %v6510, %v6506
    %v6631 = vpack.c.b16 %v6511, %v6507
    %v6632 = vpack.c.b16 %v6512, %v6508
    %v6633 = vpack.c.b16 %v6517, %v6513
    %v6634 = vpack.c.b16 %v6518, %v6514
    %v6635 = vpack.c.b16 %v6519, %v6515
    %v6636 = vpack.c.b16 %v6520, %v6516
    %v6637 = vpack.c.b16 %v6525, %v6521
    %v6638 = vpack.c.b16 %v6526, %v6522
    %v6639 = vpack.c.b16 %v6527, %v6523
    %v6640 = vpack.c.b16 %v6528, %v6524
    %v6641 = vpack.c.b16 %v6533, %v6529
    %v6642 = vpack.c.b16 %v6534, %v6530
    %v6643 = vpack.c.b16 %v6535, %v6531
    %v6644 = vpack.c.b16 %v6536, %v6532
    %v6645 = vpack.c.b16 %v6541, %v6537
    %v6646 = vpack.c.b16 %v6542, %v6538
    %v6647 = vpack.c.b16 %v6543, %v6539
    %v6648 = vpack.c.b16 %v6544, %v6540
    %v6649 = vpack.c.b16 %v6549, %v6545
    %v6650 = vpack.c.b16 %v6550, %v6546
    %v6651 = vpack.c.b16 %v6551, %v6547
    %v6652 = vpack.c.b16 %v6552, %v6548
    %v6653 = vpack.c.b16 %v6557, %v6553
    %v6654 = vpack.c.b16 %v6558, %v6554
    %v6655 = vpack.c.b16 %v6559, %v6555
    %v6656 = vpack.c.b16 %v6560, %v6556
    %v6657 = vpack.c.b16 %v6565, %v6561
    %v6658 = vpack.c.b16 %v6566, %v6562
    %v6659 = vpack.c.b16 %v6567, %v6563
    %v6660 = vpack.c.b16 %v6568, %v6564
    %v6661 = vpack.c.b16 %v6573, %v6569
    %v6662 = vpack.c.b16 %v6574, %v6570
    %v6663 = vpack.c.b16 %v6575, %v6571
    %v6664 = vpack.c.b16 %v6576, %v6572
    %v6665 = vpack.c.b16 %v6581, %v6577
    %v6666 = vpack.c.b16 %v6582, %v6578
    %v6667 = vpack.c.b16 %v6583, %v6579
    %v6668 = vpack.c.b16 %v6584, %v6580
    %v6669 = vpack.c.b16 %v6589, %v6585
    %v6670 = vpack.c.b16 %v6590, %v6586
    %v6671 = vpack.c.b16 %v6591, %v6587
    %v6672 = vpack.c.b16 %v6592, %v6588
    %v6673 = vpack.c.b16 %v6597, %v6593
    %v6674 = vpack.c.b16 %v6598, %v6594
    %v6675 = vpack.c.b16 %v6599, %v6595
    %v6676 = vpack.c.b16 %v6600, %v6596
    %v6677 = vpack.c.b16 %v6605, %v6601
    %v6678 = vpack.c.b16 %v6606, %v6602
    %v6679 = vpack.c.b16 %v6607, %v6603
    %v6680 = vpack.c.b16 %v6608, %v6604
    %v6681 = vpack.c.b16 %v6613, %v6609
    %v6682 = vpack.c.b16 %v6614, %v6610
    %v6683 = vpack.c.b16 %v6615, %v6611
    %v6684 = vpack.c.b16 %v6616, %v6612
    %v6685 = vpack.c.b16 %v6621, %v6617
    %v6686 = vpack.c.b16 %v6622, %v6618
    %v6687 = vpack.c.b16 %v6623, %v6619
    %v6688 = vpack.c.b16 %v6624, %v6620
    %6753 = vmatprep.subr.bf16.mxu0 %v6626
    %6754 = vmatpush1.bf16.msra.mxu0 %v6625
    %6755 = vmatprep.subr.bf16.mxu0 %v6630
    %6756 = vmatpush1.bf16.msra.mxu0 %v6629
    %6757 = vmatprep.subr.bf16.mxu0 %v6634
    %6758 = vmatpush1.bf16.msra.mxu0 %v6633
    %6759 = vmatprep.subr.bf16.mxu0 %v6638
    %6760 = vmatpush1.bf16.msra.mxu0 %v6637
    %6761 = vmatprep.subr.bf16.mxu0 %v6642
    %6762 = vmatpush1.bf16.msra.mxu0 %v6641
    %6763 = vmatprep.subr.bf16.mxu0 %v6646
    %6764 = vmatpush1.bf16.msra.mxu0 %v6645
    %6765 = vmatprep.subr.bf16.mxu0 %v6650
    %6766 = vmatpush1.bf16.msra.mxu0 %v6649
    %6767 = vmatprep.subr.bf16.mxu0 %v6654
    %6768 = vmatpush1.bf16.msra.mxu0 %v6653
    %6769 = vmatprep.subr.bf16.mxu0 %v6658
    %6770 = vmatpush1.bf16.msra.mxu0 %v6657
    %6771 = vmatprep.subr.bf16.mxu0 %v6662
    %6772 = vmatpush1.bf16.msra.mxu0 %v6661
    %6773 = vmatprep.subr.bf16.mxu0 %v6666
    %6774 = vmatpush1.bf16.msra.mxu0 %v6665
    %6775 = vmatprep.subr.bf16.mxu0 %v6670
    %6776 = vmatpush1.bf16.msra.mxu0 %v6669
    %6777 = vmatprep.subr.bf16.mxu0 %v6674
    %6778 = vmatpush1.bf16.msra.mxu0 %v6673
    %6779 = vmatprep.subr.bf16.mxu0 %v6678
    %6780 = vmatpush1.bf16.msra.mxu0 %v6677
    %6781 = vmatprep.subr.bf16.mxu0 %v6682
    %6782 = vmatpush1.bf16.msra.mxu0 %v6681
    %6783 = vmatprep.subr.bf16.mxu0 %v6686
    %6784 = vmatpush1.bf16.msra.mxu0 %v6685
    %6785 = vmatprep.mubr.bf16.mxu0 %v6358
    %6786 = vmatmul.mubr.bf16.gmra.mrb[0].mxu0 %v6357
    %v6787 = vpop.f32.mrb[0].mxu0
    %v6788 = vadd.f32 0.0, %v6787
    %v6789 = vpop.f32.mrb[0].mxu0
    %v6790 = vadd.f32 0.0, %v6789
    %v6791 = vpop.f32.mrb[0].mxu0
    %v6792 = vadd.f32 0.0, %v6791
    %v6793 = vpop.f32.mrb[0].mxu0
    %v6794 = vadd.f32 0.0, %v6793
    %6795 = vmatprep.mubr.bf16.mxu0 %v6360
    %6796 = vmatmul.mubr.bf16.gmra.mrb[0].mxu0 %v6359
    %v6797 = vpop.f32.mrb[0].mxu0
    %v6798 = vadd.f32 0.0, %v6797
    %v6799 = vpop.f32.mrb[0].mxu0
    %v6800 = vadd.f32 0.0, %v6799
    %v6801 = vpop.f32.mrb[0].mxu0
    %v6802 = vadd.f32 0.0, %v6801
    %v6803 = vpop.f32.mrb[0].mxu0
    %v6804 = vadd.f32 0.0, %v6803
    %6805 = vmatprep.mubr.bf16.mxu0 %v6362
    %6806 = vmatmul.mubr.bf16.gmra.mrb[0].mxu0 %v6361
    %v6807 = vpop.f32.mrb[0].mxu0
    %v6808 = vadd.f32 0.0, %v6807
    %v6809 = vpop.f32.mrb[0].mxu0
    %v6810 = vadd.f32 0.0, %v6809
    %v6811 = vpop.f32.mrb[0].mxu0
    %v6812 = vadd.f32 0.0, %v6811
    %v6813 = vpop.f32.mrb[0].mxu0
    %v6814 = vadd.f32 0.0, %v6813
    %6815 = vmatprep.mubr.bf16.mxu0 %v6364
    %6816 = vmatmul.mubr.bf16.gmra.mrb[0].mxu0 %v6363
    %v6817 = vpop.f32.mrb[0].mxu0
    %v6818 = vadd.f32 0.0, %v6817
    %v6819 = vpop.f32.mrb[0].mxu0
    %v6820 = vadd.f32 0.0, %v6819
    %v6821 = vpop.f32.mrb[0].mxu0
    %v6822 = vadd.f32 0.0, %v6821
    %v6823 = vpop.f32.mrb[0].mxu0
    %v6824 = vadd.f32 0.0, %v6823
    %6825 = vmatprep.mubr.bf16.mxu0 %v6366
    %6826 = vmatmul.mubr.bf16.gmra.mrb[0].mxu0 %v6365
    %v6827 = vpop.f32.mrb[0].mxu0
    %v6828 = vadd.f32 0.0, %v6827
    %v6829 = vpop.f32.mrb[0].mxu0
    %v6830 = vadd.f32 0.0, %v6829
    %v6831 = vpop.f32.mrb[0].mxu0
    %v6832 = vadd.f32 0.0, %v6831
    %v6833 = vpop.f32.mrb[0].mxu0
    %v6834 = vadd.f32 0.0, %v6833
    %6835 = vmatprep.mubr.bf16.mxu0 %v6368
    %6836 = vmatmul.mubr.bf16.gmra.mrb[0].mxu0 %v6367
    %v6837 = vpop.f32.mrb[0].mxu0
    %v6838 = vadd.f32 0.0, %v6837
    %v6839 = vpop.f32.mrb[0].mxu0
    %v6840 = vadd.f32 0.0, %v6839
    %v6841 = vpop.f32.mrb[0].mxu0
    %v6842 = vadd.f32 0.0, %v6841
    %v6843 = vpop.f32.mrb[0].mxu0
    %v6844 = vadd.f32 0.0, %v6843
    %6845 = vdwg.mxu0
    %6846 = vmatprep.subr.bf16.mxu0 %v6628
    %6847 = vmatpush1.bf16.msra.mxu0 %v6627
    %6848 = vmatprep.subr.bf16.mxu0 %v6632
    %6849 = vmatpush1.bf16.msra.mxu0 %v6631
    %6850 = vmatprep.subr.bf16.mxu0 %v6636
    %6851 = vmatpush1.bf16.msra.mxu0 %v6635
    %6852 = vmatprep.subr.bf16.mxu0 %v6640
    %6853 = vmatpush1.bf16.msra.mxu0 %v6639
    %6854 = vmatprep.subr.bf16.mxu0 %v6644
    %6855 = vmatpush1.bf16.msra.mxu0 %v6643
    %6856 = vmatprep.subr.bf16.mxu0 %v6648
    %6857 = vmatpush1.bf16.msra.mxu0 %v6647
    %6858 = vmatprep.subr.bf16.mxu0 %v6652
    %6859 = vmatpush1.bf16.msra.mxu0 %v6651
    %6860 = vmatprep.subr.bf16.mxu0 %v6656
    %6861 = vmatpush1.bf16.msra.mxu0 %v6655
    %6862 = vmatprep.subr.bf16.mxu0 %v6660
    %6863 = vmatpush1.bf16.msra.mxu0 %v6659
    %6864 = vmatprep.subr.bf16.mxu0 %v6664
    %6865 = vmatpush1.bf16.msra.mxu0 %v6663
    %6866 = vmatprep.subr.bf16.mxu0 %v6668
    %6867 = vmatpush1.bf16.msra.mxu0 %v6667
    %6868 = vmatprep.subr.bf16.mxu0 %v6672
    %6869 = vmatpush1.bf16.msra.mxu0 %v6671
    %6870 = vmatprep.subr.bf16.mxu0 %v6676
    %6871 = vmatpush1.bf16.msra.mxu0 %v6675
    %6872 = vmatprep.subr.bf16.mxu0 %v6680
    %6873 = vmatpush1.bf16.msra.mxu0 %v6679
    %6874 = vmatprep.subr.bf16.mxu0 %v6684
    %6875 = vmatpush1.bf16.msra.mxu0 %v6683
    %6876 = vmatprep.subr.bf16.mxu0 %v6688
    %6877 = vmatpush1.bf16.msra.mxu0 %v6687
    %6878 = vmatprep.mubr.bf16.mxu0 %v6358
    %6879 = vmatmul.mubr.bf16.gmra.mrb[0].mxu0 %v6357
    %v6880 = vpop.f32.mrb[0].mxu0
    %v6881 = vadd.f32 0.0, %v6880
    %v6882 = vpop.f32.mrb[0].mxu0
    %v6883 = vadd.f32 0.0, %v6882
    %v6884 = vpop.f32.mrb[0].mxu0
    %v6885 = vadd.f32 0.0, %v6884
    %v6886 = vpop.f32.mrb[0].mxu0
    %v6887 = vadd.f32 0.0, %v6886
    %6888 = vmatprep.mubr.bf16.mxu0 %v6360
    %6889 = vmatmul.mubr.bf16.gmra.mrb[0].mxu0 %v6359
    %v6890 = vpop.f32.mrb[0].mxu0
    %v6891 = vadd.f32 0.0, %v6890
    %v6892 = vpop.f32.mrb[0].mxu0
    %v6893 = vadd.f32 0.0, %v6892
    %v6894 = vpop.f32.mrb[0].mxu0
    %v6895 = vadd.f32 0.0, %v6894
    %v6896 = vpop.f32.mrb[0].mxu0
    %v6897 = vadd.f32 0.0, %v6896
    %6898 = vmatprep.mubr.bf16.mxu0 %v6362
    %6899 = vmatmul.mubr.bf16.gmra.mrb[0].mxu0 %v6361
    %v6900 = vpop.f32.mrb[0].mxu0
    %v6901 = vadd.f32 0.0, %v6900
    %v6902 = vpop.f32.mrb[0].mxu0
    %v6903 = vadd.f32 0.0, %v6902
    %v6904 = vpop.f32.mrb[0].mxu0
    %v6905 = vadd.f32 0.0, %v6904
    %v6906 = vpop.f32.mrb[0].mxu0
    %v6907 = vadd.f32 0.0, %v6906
    %6908 = vmatprep.mubr.bf16.mxu0 %v6364
    %6909 = vmatmul.mubr.bf16.gmra.mrb[0].mxu0 %v6363
    %v6910 = vpop.f32.mrb[0].mxu0
    %v6911 = vadd.f32 0.0, %v6910
    %v6912 = vpop.f32.mrb[0].mxu0
    %v6913 = vadd.f32 0.0, %v6912
    %v6914 = vpop.f32.mrb[0].mxu0
    %v6915 = vadd.f32 0.0, %v6914
    %v6916 = vpop.f32.mrb[0].mxu0
    %v6917 = vadd.f32 0.0, %v6916
    %6918 = vmatprep.mubr.bf16.mxu0 %v6366
    %6919 = vmatmul.mubr.bf16.gmra.mrb[0].mxu0 %v6365
    %v6920 = vpop.f32.mrb[0].mxu0
    %v6921 = vadd.f32 0.0, %v6920
    %v6922 = vpop.f32.mrb[0].mxu0
    %v6923 = vadd.f32 0.0, %v6922
    %v6924 = vpop.f32.mrb[0].mxu0
    %v6925 = vadd.f32 0.0, %v6924
    %v6926 = vpop.f32.mrb[0].mxu0
    %v6927 = vadd.f32 0.0, %v6926
    %6928 = vmatprep.mubr.bf16.mxu0 %v6368
    %6929 = vmatmul.mubr.bf16.gmra.mrb[0].mxu0 %v6367
    %v6930 = vpop.f32.mrb[0].mxu0
    %v6931 = vadd.f32 0.0, %v6930
    %v6932 = vpop.f32.mrb[0].mxu0
    %v6933 = vadd.f32 0.0, %v6932
    %v6934 = vpop.f32.mrb[0].mxu0
    %v6935 = vadd.f32 0.0, %v6934
    %v6936 = vpop.f32.mrb[0].mxu0
    %v6937 = vadd.f32 0.0, %v6936
    %6938 = vdwg.mxu0
    %v6939 = vadd.f32 %v6788, %v6792
    %v6940 = vadd.f32 %v6939, %v6798
    %v6941 = vadd.f32 %v6940, %v6802
    %v6942 = vadd.f32 %v6941, %v6808
    %v6943 = vadd.f32 %v6942, %v6812
    %v6944 = vadd.f32 %v6943, %v6818
    %v6945 = vadd.f32 %v6944, %v6822
    %v6946 = vadd.f32 %v6945, %v6828
    %v6947 = vadd.f32 %v6946, %v6832
    %v6948 = vadd.f32 %v6947, %v6838
    %v6949 = vadd.f32 %v6948, %v6842
    %v6950 = vrot.slane %v6949, 4
    %v6951 = vadd.f32 %v6949, %v6950
    %v6952 = vrot.slane %v6951, 2
    %v6953 = vadd.f32 %v6951, %v6952
    %v6954 = vrot.slane %v6953, 1
    %v6955 = vadd.f32 %v6953, %v6954
    %v6956 = vadd.f32 %v6790, %v6794
    %v6957 = vadd.f32 %v6956, %v6800
    %v6958 = vadd.f32 %v6957, %v6804
    %v6959 = vadd.f32 %v6958, %v6810
    %v6960 = vadd.f32 %v6959, %v6814
    %v6961 = vadd.f32 %v6960, %v6820
    %v6962 = vadd.f32 %v6961, %v6824
    %v6963 = vadd.f32 %v6962, %v6830
    %v6964 = vadd.f32 %v6963, %v6834
    %v6965 = vadd.f32 %v6964, %v6840
    %v6966 = vadd.f32 %v6965, %v6844
    %v6967 = vrot.slane %v6966, 4
    %v6968 = vadd.f32 %v6966, %v6967
    %v6969 = vrot.slane %v6968, 2
    %v6970 = vadd.f32 %v6968, %v6969
    %v6971 = vrot.slane %v6970, 1
    %v6972 = vadd.f32 %v6970, %v6971
    %v6973 = vadd.f32 %v6881, %v6885
    %v6974 = vadd.f32 %v6973, %v6891
    %v6975 = vadd.f32 %v6974, %v6895
    %v6976 = vadd.f32 %v6975, %v6901
    %v6977 = vadd.f32 %v6976, %v6905
    %v6978 = vadd.f32 %v6977, %v6911
    %v6979 = vadd.f32 %v6978, %v6915
    %v6980 = vadd.f32 %v6979, %v6921
    %v6981 = vadd.f32 %v6980, %v6925
    %v6982 = vadd.f32 %v6981, %v6931
    %v6983 = vadd.f32 %v6982, %v6935
    %v6984 = vrot.slane %v6983, 4
    %v6985 = vadd.f32 %v6983, %v6984
    %v6986 = vrot.slane %v6985, 2
    %v6987 = vadd.f32 %v6985, %v6986
    %v6988 = vrot.slane %v6987, 1
    %v6989 = vadd.f32 %v6987, %v6988
    %v6990 = vadd.f32 %v6883, %v6887
    %v6991 = vadd.f32 %v6990, %v6893
    %v6992 = vadd.f32 %v6991, %v6897
    %v6993 = vadd.f32 %v6992, %v6903
    %v6994 = vadd.f32 %v6993, %v6907
    %v6995 = vadd.f32 %v6994, %v6913
    %v6996 = vadd.f32 %v6995, %v6917
    %v6997 = vadd.f32 %v6996, %v6923
    %v6998 = vadd.f32 %v6997, %v6927
    %v6999 = vadd.f32 %v6998, %v6933
    %v7000 = vadd.f32 %v6999, %v6937
    %v7001 = vrot.slane %v7000, 4
    %v7002 = vadd.f32 %v7000, %v7001
    %v7003 = vrot.slane %v7002, 2
    %v7004 = vadd.f32 %v7002, %v7003
    %v7005 = vrot.slane %v7004, 1
    %v7006 = vadd.f32 %v7004, %v7005
    %v7007 = vmul.f32 %v6788, %v6788
    %v7008 = vmul.f32 %v6790, %v6790
    %v7009 = vmul.f32 %v6881, %v6881
    %v7010 = vmul.f32 %v6883, %v6883
    %v7011 = vmul.f32 %v6792, %v6792
    %v7012 = vmul.f32 %v6794, %v6794
    %v7013 = vmul.f32 %v6885, %v6885
    %v7014 = vmul.f32 %v6887, %v6887
    %v7015 = vmul.f32 %v6798, %v6798
    %v7016 = vmul.f32 %v6800, %v6800
    %v7017 = vmul.f32 %v6891, %v6891
    %v7018 = vmul.f32 %v6893, %v6893
    %v7019 = vmul.f32 %v6802, %v6802
    %v7020 = vmul.f32 %v6804, %v6804
    %v7021 = vmul.f32 %v6895, %v6895
    %v7022 = vmul.f32 %v6897, %v6897
    %v7023 = vmul.f32 %v6808, %v6808
    %v7024 = vmul.f32 %v6810, %v6810
    %v7025 = vmul.f32 %v6901, %v6901
    %v7026 = vmul.f32 %v6903, %v6903
    %v7027 = vmul.f32 %v6812, %v6812
    %v7028 = vmul.f32 %v6814, %v6814
    %v7029 = vmul.f32 %v6905, %v6905
    %v7030 = vmul.f32 %v6907, %v6907
    %v7031 = vmul.f32 %v6818, %v6818
    %v7032 = vmul.f32 %v6820, %v6820
    %v7033 = vmul.f32 %v6911, %v6911
    %v7034 = vmul.f32 %v6913, %v6913
    %v7035 = vmul.f32 %v6822, %v6822
    %v7036 = vmul.f32 %v6824, %v6824
    %v7037 = vmul.f32 %v6915, %v6915
    %v7038 = vmul.f32 %v6917, %v6917
    %v7039 = vmul.f32 %v6828, %v6828
    %v7040 = vmul.f32 %v6830, %v6830
    %v7041 = vmul.f32 %v6921, %v6921
    %v7042 = vmul.f32 %v6923, %v6923
    %v7043 = vmul.f32 %v6832, %v6832
    %v7044 = vmul.f32 %v6834, %v6834
    %v7045 = vmul.f32 %v6925, %v6925
    %v7046 = vmul.f32 %v6927, %v6927
    %v7047 = vmul.f32 %v6838, %v6838
    %v7048 = vmul.f32 %v6840, %v6840
    %v7049 = vmul.f32 %v6931, %v6931
    %v7050 = vmul.f32 %v6933, %v6933
    %v7051 = vmul.f32 %v6842, %v6842
    %v7052 = vmul.f32 %v6844, %v6844
    %v7053 = vmul.f32 %v6935, %v6935
    %v7054 = vmul.f32 %v6937, %v6937
    %v7055 = vadd.f32 %v7007, %v7011
    %v7056 = vadd.f32 %v7055, %v7015
    %v7057 = vadd.f32 %v7056, %v7019
    %v7058 = vadd.f32 %v7057, %v7023
    %v7059 = vadd.f32 %v7058, %v7027
    %v7060 = vadd.f32 %v7059, %v7031
    %v7061 = vadd.f32 %v7060, %v7035
    %v7062 = vadd.f32 %v7061, %v7039
    %v7063 = vadd.f32 %v7062, %v7043
    %v7064 = vadd.f32 %v7063, %v7047
    %v7065 = vadd.f32 %v7064, %v7051
    %v7066 = vrot.slane %v7065, 4
    %v7067 = vadd.f32 %v7065, %v7066
    %v7068 = vrot.slane %v7067, 2
    %v7069 = vadd.f32 %v7067, %v7068
    %v7070 = vrot.slane %v7069, 1
    %v7071 = vadd.f32 %v7069, %v7070
    %v7072 = vadd.f32 %v7008, %v7012
    %v7073 = vadd.f32 %v7072, %v7016
    %v7074 = vadd.f32 %v7073, %v7020
    %v7075 = vadd.f32 %v7074, %v7024
    %v7076 = vadd.f32 %v7075, %v7028
    %v7077 = vadd.f32 %v7076, %v7032
    %v7078 = vadd.f32 %v7077, %v7036
    %v7079 = vadd.f32 %v7078, %v7040
    %v7080 = vadd.f32 %v7079, %v7044
    %v7081 = vadd.f32 %v7080, %v7048
    %v7082 = vadd.f32 %v7081, %v7052
    %v7083 = vrot.slane %v7082, 4
    %v7084 = vadd.f32 %v7082, %v7083
    %v7085 = vrot.slane %v7084, 2
    %v7086 = vadd.f32 %v7084, %v7085
    %v7087 = vrot.slane %v7086, 1
    %v7088 = vadd.f32 %v7086, %v7087
    %v7089 = vadd.f32 %v7009, %v7013
    %v7090 = vadd.f32 %v7089, %v7017
    %v7091 = vadd.f32 %v7090, %v7021
    %v7092 = vadd.f32 %v7091, %v7025
    %v7093 = vadd.f32 %v7092, %v7029
    %v7094 = vadd.f32 %v7093, %v7033
    %v7095 = vadd.f32 %v7094, %v7037
    %v7096 = vadd.f32 %v7095, %v7041
    %v7097 = vadd.f32 %v7096, %v7045
    %v7098 = vadd.f32 %v7097, %v7049
    %v7099 = vadd.f32 %v7098, %v7053
    %v7100 = vrot.slane %v7099, 4
    %v7101 = vadd.f32 %v7099, %v7100
    %v7102 = vrot.slane %v7101, 2
    %v7103 = vadd.f32 %v7101, %v7102
    %v7104 = vrot.slane %v7103, 1
    %v7105 = vadd.f32 %v7103, %v7104
    %v7106 = vadd.f32 %v7010, %v7014
    %v7107 = vadd.f32 %v7106, %v7018
    %v7108 = vadd.f32 %v7107, %v7022
    %v7109 = vadd.f32 %v7108, %v7026
    %v7110 = vadd.f32 %v7109, %v7030
    %v7111 = vadd.f32 %v7110, %v7034
    %v7112 = vadd.f32 %v7111, %v7038
    %v7113 = vadd.f32 %v7112, %v7042
    %v7114 = vadd.f32 %v7113, %v7046
    %v7115 = vadd.f32 %v7114, %v7050
    %v7116 = vadd.f32 %v7115, %v7054
    %v7117 = vrot.slane %v7116, 4
    %v7118 = vadd.f32 %v7116, %v7117
    %v7119 = vrot.slane %v7118, 2
    %v7120 = vadd.f32 %v7118, %v7119
    %v7121 = vrot.slane %v7120, 1
    %v7122 = vadd.f32 %v7120, %v7121
    %v7123 = vadd.f32 %v6955, %v6989
    %v7124 = vadd.f32 %v6972, %v7006
    %v7125 = vmul.f32 %v7123, 0.020833334
    %v7126 = vmul.f32 %v7124, 0.020833334
    %v7127 = vadd.f32 %v7071, %v7105
    %v7128 = vadd.f32 %v7088, %v7122
    %v7129 = vmul.f32 %v7127, 0.020833334
    %v7130 = vmul.f32 %v7128, 0.020833334
    %v7131 = vmul.f32 %v7125, %v7125
    %v7132 = vmul.f32 %v7126, %v7126
    %v7133 = vsub.f32 %v7129, %v7131
    %v7134 = vsub.f32 %v7130, %v7132
    %v7135 = vmax.f32 %v7133, 0.0
    %v7136 = vmax.f32 %v7134, 0.0
    %v7137 = vld [vmem:[#allocation23] sm:$0x3]
    %v7138 = vadd.f32 %v7135, 1e-05
    %v7139 = vadd.f32 %v7136, 1e-05
    %v7140 = vrsqrt.pop %v7138
    %v7141 = vrsqrt.pop %v7139
    %v7144 = vcombine.low %v7140, %v7141
    %v7146 = vunpack.c.l.s4 1966171168
    %v7147 = vunpack.c.0.s8 %v7146
    %v7148 = vlaneseq
    %v7149 = vshrl.u32 %v7148, 7
    %v7150 = vsub.s32 %v7147, %v7149
    %v7151 = vrot.slane %v7144, %v7150
    %v7153 = vunpack.c.l.s4 1966171168
    %v7154 = vunpack.c.0.s8 %v7153
    %v7155 = vlaneseq
    %v7156 = vshrl.u32 %v7155, 7
    %v7157 = vsub.s32 %v7154, %v7156
    %v7158 = vrot.slane %v7151, %v7157
    %v7160 = vmul.f32 %v7137, %v7158
    %v7161 = vld [vmem:[#allocation25] sm:$0x3]
    %v7163 = vlaneseq
    %v7164 = vshrl.u32 %v7163, 7
    %v7165 = vsub.s32 0, %v7164
    %v7166 = vrot.slane %v7160, %v7165
    %v7167 = vlaneseq
    %v7168 = vshrl.u32 %v7167, 7
    %v7169 = vsub.s32 1, %v7168
    %v7170 = vrot.slane %v7160, %v7169
    %v7173 = vmul.f32 %v7125, %v7166
    %v7174 = vmul.f32 %v7126, %v7170
    %v7177 = vcombine.low %v7173, %v7174
    %v7179 = vunpack.c.l.s4 1966171168
    %v7180 = vunpack.c.0.s8 %v7179
    %v7181 = vlaneseq
    %v7182 = vshrl.u32 %v7181, 7
    %v7183 = vsub.s32 %v7180, %v7182
    %v7184 = vrot.slane %v7177, %v7183
    %v7186 = vunpack.c.l.s4 1966171168
    %v7187 = vunpack.c.0.s8 %v7186
    %v7188 = vlaneseq
    %v7189 = vshrl.u32 %v7188, 7
    %v7190 = vsub.s32 %v7187, %v7189
    %v7191 = vrot.slane %v7184, %v7190
    %v7193 = vsub.f32 %v7161, %v7191
    %v7194 = vmul.f32 %v6788, %v7166
    %v7195 = vmul.f32 %v6790, %v7170
    %v7196 = vmul.f32 %v6792, %v7166
    %v7197 = vmul.f32 %v6794, %v7170
    %v7198 = vmul.f32 %v6798, %v7166
    %v7199 = vmul.f32 %v6800, %v7170
    %v7200 = vmul.f32 %v6802, %v7166
    %v7201 = vmul.f32 %v6804, %v7170
    %v7202 = vmul.f32 %v6808, %v7166
    %v7203 = vmul.f32 %v6810, %v7170
    %v7204 = vmul.f32 %v6812, %v7166
    %v7205 = vmul.f32 %v6814, %v7170
    %v7206 = vmul.f32 %v6818, %v7166
    %v7207 = vmul.f32 %v6820, %v7170
    %v7208 = vmul.f32 %v6822, %v7166
    %v7209 = vmul.f32 %v6824, %v7170
    %v7210 = vmul.f32 %v6828, %v7166
    %v7211 = vmul.f32 %v6830, %v7170
    %v7212 = vmul.f32 %v6832, %v7166
    %v7213 = vmul.f32 %v6834, %v7170
    %v7214 = vmul.f32 %v6838, %v7166
    %v7215 = vmul.f32 %v6840, %v7170
    %v7216 = vmul.f32 %v6842, %v7166
    %v7217 = vmul.f32 %v6844, %v7170
    %v7219 = vlaneseq
    %v7220 = vshrl.u32 %v7219, 7
    %v7221 = vsub.s32 0, %v7220
    %v7222 = vrot.slane %v7193, %v7221
    %v7223 = vlaneseq
    %v7224 = vshrl.u32 %v7223, 7
    %v7225 = vsub.s32 1, %v7224
    %v7226 = vrot.slane %v7193, %v7225
    %v7229 = vadd.f32 %v7194, %v7222
    %v7230 = vadd.f32 %v7195, %v7226
    %v7231 = vadd.f32 %v7196, %v7222
    %v7232 = vadd.f32 %v7197, %v7226
    %v7233 = vadd.f32 %v7198, %v7222
    %v7234 = vadd.f32 %v7199, %v7226
    %v7235 = vadd.f32 %v7200, %v7222
    %v7236 = vadd.f32 %v7201, %v7226
    %v7237 = vadd.f32 %v7202, %v7222
    %v7238 = vadd.f32 %v7203, %v7226
    %v7239 = vadd.f32 %v7204, %v7222
    %v7240 = vadd.f32 %v7205, %v7226
    %v7241 = vadd.f32 %v7206, %v7222
    %v7242 = vadd.f32 %v7207, %v7226
    %v7243 = vadd.f32 %v7208, %v7222
    %v7244 = vadd.f32 %v7209, %v7226
    %v7245 = vadd.f32 %v7210, %v7222
    %v7246 = vadd.f32 %v7211, %v7226
    %v7247 = vadd.f32 %v7212, %v7222
    %v7248 = vadd.f32 %v7213, %v7226
    %v7249 = vadd.f32 %v7214, %v7222
    %v7250 = vadd.f32 %v7215, %v7226
    %v7251 = vadd.f32 %v7216, %v7222
    %v7252 = vadd.f32 %v7217, %v7226
    %v7253 = vmax.f32 %v7229, 0.0
    %v7254 = vmax.f32 %v7230, 0.0
    %v7255 = vmax.f32 %v7231, 0.0
    %v7256 = vmax.f32 %v7232, 0.0
    %v7257 = vmax.f32 %v7233, 0.0
    %v7258 = vmax.f32 %v7234, 0.0
    %v7259 = vmax.f32 %v7235, 0.0
    %v7260 = vmax.f32 %v7236, 0.0
    %v7261 = vmax.f32 %v7237, 0.0
    %v7262 = vmax.f32 %v7238, 0.0
    %v7263 = vmax.f32 %v7239, 0.0
    %v7264 = vmax.f32 %v7240, 0.0
    %v7265 = vmax.f32 %v7241, 0.0
    %v7266 = vmax.f32 %v7242, 0.0
    %v7267 = vmax.f32 %v7243, 0.0
    %v7268 = vmax.f32 %v7244, 0.0
    %v7269 = vmax.f32 %v7245, 0.0
    %v7270 = vmax.f32 %v7246, 0.0
    %v7271 = vmax.f32 %v7247, 0.0
    %v7272 = vmax.f32 %v7248, 0.0
    %v7273 = vmax.f32 %v7249, 0.0
    %v7274 = vmax.f32 %v7250, 0.0
    %v7275 = vmax.f32 %v7251, 0.0
    %v7276 = vmax.f32 %v7252, 0.0
    %v7277 = vmul.f32 %v6881, %v7166
    %v7278 = vmul.f32 %v6883, %v7170
    %v7279 = vmul.f32 %v6885, %v7166
    %v7280 = vmul.f32 %v6887, %v7170
    %v7281 = vmul.f32 %v6891, %v7166
    %v7282 = vmul.f32 %v6893, %v7170
    %v7283 = vmul.f32 %v6895, %v7166
    %v7284 = vmul.f32 %v6897, %v7170
    %v7285 = vmul.f32 %v6901, %v7166
    %v7286 = vmul.f32 %v6903, %v7170
    %v7287 = vmul.f32 %v6905, %v7166
    %v7288 = vmul.f32 %v6907, %v7170
    %v7289 = vmul.f32 %v6911, %v7166
    %v7290 = vmul.f32 %v6913, %v7170
    %v7291 = vmul.f32 %v6915, %v7166
    %v7292 = vmul.f32 %v6917, %v7170
    %v7293 = vmul.f32 %v6921, %v7166
    %v7294 = vmul.f32 %v6923, %v7170
    %v7295 = vmul.f32 %v6925, %v7166
    %v7296 = vmul.f32 %v6927, %v7170
    %v7297 = vmul.f32 %v6931, %v7166
    %v7298 = vmul.f32 %v6933, %v7170
    %v7299 = vmul.f32 %v6935, %v7166
    %v7300 = vmul.f32 %v6937, %v7170
    %v7301 = vadd.f32 %v7277, %v7222
    %v7302 = vadd.f32 %v7278, %v7226
    %v7303 = vadd.f32 %v7279, %v7222
    %v7304 = vadd.f32 %v7280, %v7226
    %v7305 = vadd.f32 %v7281, %v7222
    %v7306 = vadd.f32 %v7282, %v7226
    %v7307 = vadd.f32 %v7283, %v7222
    %v7308 = vadd.f32 %v7284, %v7226
    %v7309 = vadd.f32 %v7285, %v7222
    %v7310 = vadd.f32 %v7286, %v7226
    %v7311 = vadd.f32 %v7287, %v7222
    %v7312 = vadd.f32 %v7288, %v7226
    %v7313 = vadd.f32 %v7289, %v7222
    %v7314 = vadd.f32 %v7290, %v7226
    %v7315 = vadd.f32 %v7291, %v7222
    %v7316 = vadd.f32 %v7292, %v7226
    %v7317 = vadd.f32 %v7293, %v7222
    %v7318 = vadd.f32 %v7294, %v7226
    %v7319 = vadd.f32 %v7295, %v7222
    %v7320 = vadd.f32 %v7296, %v7226
    %v7321 = vadd.f32 %v7297, %v7222
    %v7322 = vadd.f32 %v7298, %v7226
    %v7323 = vadd.f32 %v7299, %v7222
    %v7324 = vadd.f32 %v7300, %v7226
    %v7325 = vmax.f32 %v7301, 0.0
    %v7326 = vmax.f32 %v7302, 0.0
    %v7327 = vmax.f32 %v7303, 0.0
    %v7328 = vmax.f32 %v7304, 0.0
    %v7329 = vmax.f32 %v7305, 0.0
    %v7330 = vmax.f32 %v7306, 0.0
    %v7331 = vmax.f32 %v7307, 0.0
    %v7332 = vmax.f32 %v7308, 0.0
    %v7333 = vmax.f32 %v7309, 0.0
    %v7334 = vmax.f32 %v7310, 0.0
    %v7335 = vmax.f32 %v7311, 0.0
    %v7336 = vmax.f32 %v7312, 0.0
    %v7337 = vmax.f32 %v7313, 0.0
    %v7338 = vmax.f32 %v7314, 0.0
    %v7339 = vmax.f32 %v7315, 0.0
    %v7340 = vmax.f32 %v7316, 0.0
    %v7341 = vmax.f32 %v7317, 0.0
    %v7342 = vmax.f32 %v7318, 0.0
    %v7343 = vmax.f32 %v7319, 0.0
    %v7344 = vmax.f32 %v7320, 0.0
    %v7345 = vmax.f32 %v7321, 0.0
    %v7346 = vmax.f32 %v7322, 0.0
    %v7347 = vmax.f32 %v7323, 0.0
    %v7348 = vmax.f32 %v7324, 0.0
    %v7349 = vmul.f32 %v7253, %v4747
    %v7350 = vmul.f32 %v7254, %v4747
    %v7351 = vmul.f32 %v7255, %v4748
    %v7352 = vmul.f32 %v7256, %v4748
    %v7353 = vmul.f32 %v7257, %v4749
    %v7354 = vmul.f32 %v7258, %v4749
    %v7355 = vmul.f32 %v7259, %v4750
    %v7356 = vmul.f32 %v7260, %v4750
    %v7357 = vmul.f32 %v7261, %v4751
    %v7358 = vmul.f32 %v7262, %v4751
    %v7359 = vmul.f32 %v7263, %v4752
    %v7360 = vmul.f32 %v7264, %v4752
    %v7361 = vmul.f32 %v7265, %v4753
    %v7362 = vmul.f32 %v7266, %v4753
    %v7363 = vmul.f32 %v7267, %v4754
    %v7364 = vmul.f32 %v7268, %v4754
    %v7365 = vmul.f32 %v7269, %v4755
    %v7366 = vmul.f32 %v7270, %v4755
    %v7367 = vmul.f32 %v7271, %v4756
    %v7368 = vmul.f32 %v7272, %v4756
    %v7369 = vmul.f32 %v7273, %v4757
    %v7370 = vmul.f32 %v7274, %v4757
    %v7371 = vmul.f32 %v7275, %v4758
    %v7372 = vmul.f32 %v7276, %v4758
    %v7373 = vmul.f32 %v7325, %v4747
    %v7374 = vmul.f32 %v7326, %v4747
    %v7375 = vmul.f32 %v7327, %v4748
    %v7376 = vmul.f32 %v7328, %v4748
    %v7377 = vmul.f32 %v7329, %v4749
    %v7378 = vmul.f32 %v7330, %v4749
    %v7379 = vmul.f32 %v7331, %v4750
    %v7380 = vmul.f32 %v7332, %v4750
    %v7381 = vmul.f32 %v7333, %v4751
    %v7382 = vmul.f32 %v7334, %v4751
    %v7383 = vmul.f32 %v7335, %v4752
    %v7384 = vmul.f32 %v7336, %v4752
    %v7385 = vmul.f32 %v7337, %v4753
    %v7386 = vmul.f32 %v7338, %v4753
    %v7387 = vmul.f32 %v7339, %v4754
    %v7388 = vmul.f32 %v7340, %v4754
    %v7389 = vmul.f32 %v7341, %v4755
    %v7390 = vmul.f32 %v7342, %v4755
    %v7391 = vmul.f32 %v7343, %v4756
    %v7392 = vmul.f32 %v7344, %v4756
    %v7393 = vmul.f32 %v7345, %v4757
    %v7394 = vmul.f32 %v7346, %v4757
    %v7395 = vmul.f32 %v7347, %v4758
    %v7396 = vmul.f32 %v7348, %v4758
    %7397 = vst [vmem:[#allocation2] sm:$0xff] %v7349
    %7398 = vst [vmem:[#allocation2 + $0x8] sm:$0xff] %v7350
    %7399 = vst [vmem:[#allocation2 + $0x10] sm:$0xff] %v7351
    %7400 = vst [vmem:[#allocation2 + $0x18] sm:$0xff] %v7352
    %7401 = vst [vmem:[#allocation2 + $0x20] sm:$0xff] %v7353
    %7402 = vst [vmem:[#allocation2 + $0x28] sm:$0xff] %v7354
    %7403 = vst [vmem:[#allocation2 + $0x30] sm:$0xff] %v7355
    %7404 = vst [vmem:[#allocation2 + $0x38] sm:$0xff] %v7356
    %7405 = vst [vmem:[#allocation2 + $0x40] sm:$0xff] %v7357
    %7406 = vst [vmem:[#allocation2 + $0x48] sm:$0xff] %v7358
    %7407 = vst [vmem:[#allocation2 + $0x50] sm:$0xff] %v7359
    %7408 = vst [vmem:[#allocation2 + $0x58] sm:$0xff] %v7360
    %7409 = vst [vmem:[#allocation2 + $0x60] sm:$0xff] %v7361
    %7410 = vst [vmem:[#allocation2 + $0x68] sm:$0xff] %v7362
    %7411 = vst [vmem:[#allocation2 + $0x70] sm:$0xff] %v7363
    %7412 = vst [vmem:[#allocation2 + $0x78] sm:$0xff] %v7364
    %7413 = vst [vmem:[#allocation2 + $0x80] sm:$0xff] %v7365
    %7414 = vst [vmem:[#allocation2 + $0x88] sm:$0xff] %v7366
    %7415 = vst [vmem:[#allocation2 + $0x90] sm:$0xff] %v7367
    %7416 = vst [vmem:[#allocation2 + $0x98] sm:$0xff] %v7368
    %7417 = vst [vmem:[#allocation2 + $0xa0] sm:$0xff] %v7369
    %7418 = vst [vmem:[#allocation2 + $0xa8] sm:$0xff] %v7370
    %7419 = vst [vmem:[#allocation2 + $0xb0] sm:$0xff] %v7371
    %7420 = vst [vmem:[#allocation2 + $0xb8] sm:$0xff] %v7372
    %7421 = vst [vmem:[#allocation2 + $0xc0] sm:$0xff] %v7373
    %7422 = vst [vmem:[#allocation2 + $0xc8] sm:$0xff] %v7374
    %7423 = vst [vmem:[#allocation2 + $0xd0] sm:$0xff] %v7375
    %7424 = vst [vmem:[#allocation2 + $0xd8] sm:$0xff] %v7376
    %7425 = vst [vmem:[#allocation2 + $0xe0] sm:$0xff] %v7377
    %7426 = vst [vmem:[#allocation2 + $0xe8] sm:$0xff] %v7378
    %7427 = vst [vmem:[#allocation2 + $0xf0] sm:$0xff] %v7379
    %7428 = vst [vmem:[#allocation2 + $0xf8] sm:$0xff] %v7380
    %7429 = vst [vmem:[#allocation2 + $0x100] sm:$0xff] %v7381
    %7430 = vst [vmem:[#allocation2 + $0x108] sm:$0xff] %v7382
    %7431 = vst [vmem:[#allocation2 + $0x110] sm:$0xff] %v7383
    %7432 = vst [vmem:[#allocation2 + $0x118] sm:$0xff] %v7384
    %7433 = vst [vmem:[#allocation2 + $0x120] sm:$0xff] %v7385
    %7434 = vst [vmem:[#allocation2 + $0x128] sm:$0xff] %v7386
    %7435 = vst [vmem:[#allocation2 + $0x130] sm:$0xff] %v7387
    %7436 = vst [vmem:[#allocation2 + $0x138] sm:$0xff] %v7388
    %7437 = vst [vmem:[#allocation2 + $0x140] sm:$0xff] %v7389
    %7438 = vst [vmem:[#allocation2 + $0x148] sm:$0xff] %v7390
    %7439 = vst [vmem:[#allocation2 + $0x150] sm:$0xff] %v7391
    %7440 = vst [vmem:[#allocation2 + $0x158] sm:$0xff] %v7392
    %7441 = vst [vmem:[#allocation2 + $0x160] sm:$0xff] %v7393
    %7442 = vst [vmem:[#allocation2 + $0x168] sm:$0xff] %v7394
    %7443 = vst [vmem:[#allocation2 + $0x170] sm:$0xff] %v7395
    %7444 = vst [vmem:[#allocation2 + $0x178] sm:$0xff] %v7396
    %v7445 = vld [vmem:[#allocation2] sm:$0xff]
    %v7446 = vld [vmem:[#allocation2 + $0x8] sm:$0xff]
    %v7447 = vld [vmem:[#allocation2 + $0x10] sm:$0xff]
    %v7448 = vld [vmem:[#allocation2 + $0x18] sm:$0xff]
    %v7449 = vld [vmem:[#allocation2 + $0x20] sm:$0xff]
    %v7450 = vld [vmem:[#allocation2 + $0x28] sm:$0xff]
    %v7451 = vld [vmem:[#allocation2 + $0x30] sm:$0xff]
    %v7452 = vld [vmem:[#allocation2 + $0x38] sm:$0xff]
    %v7453 = vld [vmem:[#allocation2 + $0x40] sm:$0xff]
    %v7454 = vld [vmem:[#allocation2 + $0x48] sm:$0xff]
    %v7455 = vld [vmem:[#allocation2 + $0x50] sm:$0xff]
    %v7456 = vld [vmem:[#allocation2 + $0x58] sm:$0xff]
    %v7457 = vld [vmem:[#allocation2 + $0x60] sm:$0xff]
    %v7458 = vld [vmem:[#allocation2 + $0x68] sm:$0xff]
    %v7459 = vld [vmem:[#allocation2 + $0x70] sm:$0xff]
    %v7460 = vld [vmem:[#allocation2 + $0x78] sm:$0xff]
    %v7461 = vld [vmem:[#allocation2 + $0x80] sm:$0xff]
    %v7462 = vld [vmem:[#allocation2 + $0x88] sm:$0xff]
    %v7463 = vld [vmem:[#allocation2 + $0x90] sm:$0xff]
    %v7464 = vld [vmem:[#allocation2 + $0x98] sm:$0xff]
    %v7465 = vld [vmem:[#allocation2 + $0xa0] sm:$0xff]
    %v7466 = vld [vmem:[#allocation2 + $0xa8] sm:$0xff]
    %v7467 = vld [vmem:[#allocation2 + $0xb0] sm:$0xff]
    %v7468 = vld [vmem:[#allocation2 + $0xb8] sm:$0xff]
    %v7469 = vld [vmem:[#allocation2 + $0xc0] sm:$0xff]
    %v7470 = vld [vmem:[#allocation2 + $0xc8] sm:$0xff]
    %v7471 = vld [vmem:[#allocation2 + $0xd0] sm:$0xff]
    %v7472 = vld [vmem:[#allocation2 + $0xd8] sm:$0xff]
    %v7473 = vld [vmem:[#allocation2 + $0xe0] sm:$0xff]
    %v7474 = vld [vmem:[#allocation2 + $0xe8] sm:$0xff]
    %v7475 = vld [vmem:[#allocation2 + $0xf0] sm:$0xff]
    %v7476 = vld [vmem:[#allocation2 + $0xf8] sm:$0xff]
    %v7477 = vld [vmem:[#allocation2 + $0x100] sm:$0xff]
    %v7478 = vld [vmem:[#allocation2 + $0x108] sm:$0xff]
    %v7479 = vld [vmem:[#allocation2 + $0x110] sm:$0xff]
    %v7480 = vld [vmem:[#allocation2 + $0x118] sm:$0xff]
    %v7481 = vld [vmem:[#allocation2 + $0x120] sm:$0xff]
    %v7482 = vld [vmem:[#allocation2 + $0x128] sm:$0xff]
    %v7483 = vld [vmem:[#allocation2 + $0x130] sm:$0xff]
    %v7484 = vld [vmem:[#allocation2 + $0x138] sm:$0xff]
    %v7485 = vld [vmem:[#allocation2 + $0x140] sm:$0xff]
    %v7486 = vld [vmem:[#allocation2 + $0x148] sm:$0xff]
    %v7487 = vld [vmem:[#allocation2 + $0x150] sm:$0xff]
    %v7488 = vld [vmem:[#allocation2 + $0x158] sm:$0xff]
    %v7489 = vld [vmem:[#allocation2 + $0x160] sm:$0xff]
    %v7490 = vld [vmem:[#allocation2 + $0x168] sm:$0xff]
    %v7491 = vld [vmem:[#allocation2 + $0x170] sm:$0xff]
    %v7492 = vld [vmem:[#allocation2 + $0x178] sm:$0xff]
    %v7493 = vpack.c.bf16 %v7447, %v7445
    %v7494 = vpack.c.bf16 %v7448, %v7446
    %v7495 = vpack.c.bf16 %v7451, %v7449
    %v7496 = vpack.c.bf16 %v7452, %v7450
    %v7497 = vpack.c.bf16 %v7455, %v7453
    %v7498 = vpack.c.bf16 %v7456, %v7454
    %v7499 = vpack.c.bf16 %v7459, %v7457
    %v7500 = vpack.c.bf16 %v7460, %v7458
    %v7501 = vpack.c.bf16 %v7463, %v7461
    %v7502 = vpack.c.bf16 %v7464, %v7462
    %v7503 = vpack.c.bf16 %v7467, %v7465
    %v7504 = vpack.c.bf16 %v7468, %v7466
    %v7505 = vpack.c.bf16 %v7471, %v7469
    %v7506 = vpack.c.bf16 %v7472, %v7470
    %v7507 = vpack.c.bf16 %v7475, %v7473
    %v7508 = vpack.c.bf16 %v7476, %v7474
    %v7509 = vpack.c.bf16 %v7479, %v7477
    %v7510 = vpack.c.bf16 %v7480, %v7478
    %v7511 = vpack.c.bf16 %v7483, %v7481
    %v7512 = vpack.c.bf16 %v7484, %v7482
    %v7513 = vpack.c.bf16 %v7487, %v7485
    %v7514 = vpack.c.bf16 %v7488, %v7486
    %v7515 = vpack.c.bf16 %v7491, %v7489
    %v7516 = vpack.c.bf16 %v7492, %v7490
    %v7517 = vld [vmem:[#allocation26] sm:$0xff]
    %v7518 = vld [vmem:[#allocation26 + $0x8] sm:$0xff]
    %v7519 = vld [vmem:[#allocation26 + $0x10] sm:$0xff]
    %v7520 = vld [vmem:[#allocation26 + $0x18] sm:$0xff]
    %v7521 = vld [vmem:[#allocation26 + $0x20] sm:$0xff]
    %v7522 = vld [vmem:[#allocation26 + $0x28] sm:$0xff]
    %v7523 = vld [vmem:[#allocation26 + $0x30] sm:$0xff]
    %v7524 = vld [vmem:[#allocation26 + $0x38] sm:$0xff]
    %v7525 = vld [vmem:[#allocation26 + $0x40] sm:$0xff]
    %v7526 = vld [vmem:[#allocation26 + $0x48] sm:$0xff]
    %v7527 = vld [vmem:[#allocation26 + $0x50] sm:$0xff]
    %v7528 = vld [vmem:[#allocation26 + $0x58] sm:$0xff]
    %v7529 = vld [vmem:[#allocation26 + $0x60] sm:$0xff]
    %v7530 = vld [vmem:[#allocation26 + $0x68] sm:$0xff]
    %v7531 = vld [vmem:[#allocation26 + $0x70] sm:$0xff]
    %v7532 = vld [vmem:[#allocation26 + $0x78] sm:$0xff]
    %v7533 = vld [vmem:[#allocation26 + $0x80] sm:$0xff]
    %v7534 = vld [vmem:[#allocation26 + $0x88] sm:$0xff]
    %v7535 = vld [vmem:[#allocation26 + $0x90] sm:$0xff]
    %v7536 = vld [vmem:[#allocation26 + $0x98] sm:$0xff]
    %v7537 = vld [vmem:[#allocation26 + $0xa0] sm:$0xff]
    %v7538 = vld [vmem:[#allocation26 + $0xa8] sm:$0xff]
    %v7539 = vld [vmem:[#allocation26 + $0xb0] sm:$0xff]
    %v7540 = vld [vmem:[#allocation26 + $0xb8] sm:$0xff]
    %v7541 = vld [vmem:[#allocation26 + $0xc0] sm:$0xff]
    %v7542 = vld [vmem:[#allocation26 + $0xc8] sm:$0xff]
    %v7543 = vld [vmem:[#allocation26 + $0xd0] sm:$0xff]
    %v7544 = vld [vmem:[#allocation26 + $0xd8] sm:$0xff]
    %v7545 = vld [vmem:[#allocation26 + $0xe0] sm:$0xff]
    %v7546 = vld [vmem:[#allocation26 + $0xe8] sm:$0xff]
    %v7547 = vld [vmem:[#allocation26 + $0xf0] sm:$0xff]
    %v7548 = vld [vmem:[#allocation26 + $0xf8] sm:$0xff]
    %v7549 = vld [vmem:[#allocation26 + $0x100] sm:$0xff]
    %v7550 = vld [vmem:[#allocation26 + $0x108] sm:$0xff]
    %v7551 = vld [vmem:[#allocation26 + $0x110] sm:$0xff]
    %v7552 = vld [vmem:[#allocation26 + $0x118] sm:$0xff]
    %v7553 = vld [vmem:[#allocation26 + $0x120] sm:$0xff]
    %v7554 = vld [vmem:[#allocation26 + $0x128] sm:$0xff]
    %v7555 = vld [vmem:[#allocation26 + $0x130] sm:$0xff]
    %v7556 = vld [vmem:[#allocation26 + $0x138] sm:$0xff]
    %v7557 = vld [vmem:[#allocation26 + $0x140] sm:$0xff]
    %v7558 = vld [vmem:[#allocation26 + $0x148] sm:$0xff]
    %v7559 = vld [vmem:[#allocation26 + $0x150] sm:$0xff]
    %v7560 = vld [vmem:[#allocation26 + $0x158] sm:$0xff]
    %v7561 = vld [vmem:[#allocation26 + $0x160] sm:$0xff]
    %v7562 = vld [vmem:[#allocation26 + $0x168] sm:$0xff]
    %v7563 = vld [vmem:[#allocation26 + $0x170] sm:$0xff]
    %v7564 = vld [vmem:[#allocation26 + $0x178] sm:$0xff]
    %v7565 = vld [vmem:[#allocation26 + $0x180] sm:$0xff]
    %v7566 = vld [vmem:[#allocation26 + $0x188] sm:$0xff]
    %v7567 = vld [vmem:[#allocation26 + $0x190] sm:$0xff]
    %v7568 = vld [vmem:[#allocation26 + $0x198] sm:$0xff]
    %v7569 = vld [vmem:[#allocation26 + $0x1a0] sm:$0xff]
    %v7570 = vld [vmem:[#allocation26 + $0x1a8] sm:$0xff]
    %v7571 = vld [vmem:[#allocation26 + $0x1b0] sm:$0xff]
    %v7572 = vld [vmem:[#allocation26 + $0x1b8] sm:$0xff]
    %v7573 = vld [vmem:[#allocation26 + $0x1c0] sm:$0xff]
    %v7574 = vld [vmem:[#allocation26 + $0x1c8] sm:$0xff]
    %v7575 = vld [vmem:[#allocation26 + $0x1d0] sm:$0xff]
    %v7576 = vld [vmem:[#allocation26 + $0x1d8] sm:$0xff]
    %v7577 = vld [vmem:[#allocation26 + $0x1e0] sm:$0xff]
    %v7578 = vld [vmem:[#allocation26 + $0x1e8] sm:$0xff]
    %v7579 = vld [vmem:[#allocation26 + $0x1f0] sm:$0xff]
    %v7580 = vld [vmem:[#allocation26 + $0x1f8] sm:$0xff]
    %v7645 = vunpack.c.l.b16 %v7517
    %v7646 = vunpack.c.h.b16 %v7517
    %v7647 = vunpack.c.l.b16 %v7518
    %v7648 = vunpack.c.h.b16 %v7518
    %v7649 = vunpack.c.l.b16 %v7519
    %v7650 = vunpack.c.h.b16 %v7519
    %v7651 = vunpack.c.l.b16 %v7520
    %v7652 = vunpack.c.h.b16 %v7520
    %v7653 = vunpack.c.l.b16 %v7521
    %v7654 = vunpack.c.h.b16 %v7521
    %v7655 = vunpack.c.l.b16 %v7522
    %v7656 = vunpack.c.h.b16 %v7522
    %v7657 = vunpack.c.l.b16 %v7523
    %v7658 = vunpack.c.h.b16 %v7523
    %v7659 = vunpack.c.l.b16 %v7524
    %v7660 = vunpack.c.h.b16 %v7524
    %v7661 = vunpack.c.l.b16 %v7525
    %v7662 = vunpack.c.h.b16 %v7525
    %v7663 = vunpack.c.l.b16 %v7526
    %v7664 = vunpack.c.h.b16 %v7526
    %v7665 = vunpack.c.l.b16 %v7527
    %v7666 = vunpack.c.h.b16 %v7527
    %v7667 = vunpack.c.l.b16 %v7528
    %v7668 = vunpack.c.h.b16 %v7528
    %v7669 = vunpack.c.l.b16 %v7529
    %v7670 = vunpack.c.h.b16 %v7529
    %v7671 = vunpack.c.l.b16 %v7530
    %v7672 = vunpack.c.h.b16 %v7530
    %v7673 = vunpack.c.l.b16 %v7531
    %v7674 = vunpack.c.h.b16 %v7531
    %v7675 = vunpack.c.l.b16 %v7532
    %v7676 = vunpack.c.h.b16 %v7532
    %v7677 = vunpack.c.l.b16 %v7533
    %v7678 = vunpack.c.h.b16 %v7533
    %v7679 = vunpack.c.l.b16 %v7534
    %v7680 = vunpack.c.h.b16 %v7534
    %v7681 = vunpack.c.l.b16 %v7535
    %v7682 = vunpack.c.h.b16 %v7535
    %v7683 = vunpack.c.l.b16 %v7536
    %v7684 = vunpack.c.h.b16 %v7536
    %v7685 = vunpack.c.l.b16 %v7537
    %v7686 = vunpack.c.h.b16 %v7537
    %v7687 = vunpack.c.l.b16 %v7538
    %v7688 = vunpack.c.h.b16 %v7538
    %v7689 = vunpack.c.l.b16 %v7539
    %v7690 = vunpack.c.h.b16 %v7539
    %v7691 = vunpack.c.l.b16 %v7540
    %v7692 = vunpack.c.h.b16 %v7540
    %v7693 = vunpack.c.l.b16 %v7541
    %v7694 = vunpack.c.h.b16 %v7541
    %v7695 = vunpack.c.l.b16 %v7542
    %v7696 = vunpack.c.h.b16 %v7542
    %v7697 = vunpack.c.l.b16 %v7543
    %v7698 = vunpack.c.h.b16 %v7543
    %v7699 = vunpack.c.l.b16 %v7544
    %v7700 = vunpack.c.h.b16 %v7544
    %v7701 = vunpack.c.l.b16 %v7545
    %v7702 = vunpack.c.h.b16 %v7545
    %v7703 = vunpack.c.l.b16 %v7546
    %v7704 = vunpack.c.h.b16 %v7546
    %v7705 = vunpack.c.l.b16 %v7547
    %v7706 = vunpack.c.h.b16 %v7547
    %v7707 = vunpack.c.l.b16 %v7548
    %v7708 = vunpack.c.h.b16 %v7548
    %v7709 = vunpack.c.l.b16 %v7549
    %v7710 = vunpack.c.h.b16 %v7549
    %v7711 = vunpack.c.l.b16 %v7550
    %v7712 = vunpack.c.h.b16 %v7550
    %v7713 = vunpack.c.l.b16 %v7551
    %v7714 = vunpack.c.h.b16 %v7551
    %v7715 = vunpack.c.l.b16 %v7552
    %v7716 = vunpack.c.h.b16 %v7552
    %v7717 = vunpack.c.l.b16 %v7553
    %v7718 = vunpack.c.h.b16 %v7553
    %v7719 = vunpack.c.l.b16 %v7554
    %v7720 = vunpack.c.h.b16 %v7554
    %v7721 = vunpack.c.l.b16 %v7555
    %v7722 = vunpack.c.h.b16 %v7555
    %v7723 = vunpack.c.l.b16 %v7556
    %v7724 = vunpack.c.h.b16 %v7556
    %v7725 = vunpack.c.l.b16 %v7557
    %v7726 = vunpack.c.h.b16 %v7557
    %v7727 = vunpack.c.l.b16 %v7558
    %v7728 = vunpack.c.h.b16 %v7558
    %v7729 = vunpack.c.l.b16 %v7559
    %v7730 = vunpack.c.h.b16 %v7559
    %v7731 = vunpack.c.l.b16 %v7560
    %v7732 = vunpack.c.h.b16 %v7560
    %v7733 = vunpack.c.l.b16 %v7561
    %v7734 = vunpack.c.h.b16 %v7561
    %v7735 = vunpack.c.l.b16 %v7562
    %v7736 = vunpack.c.h.b16 %v7562
    %v7737 = vunpack.c.l.b16 %v7563
    %v7738 = vunpack.c.h.b16 %v7563
    %v7739 = vunpack.c.l.b16 %v7564
    %v7740 = vunpack.c.h.b16 %v7564
    %v7741 = vunpack.c.l.b16 %v7565
    %v7742 = vunpack.c.h.b16 %v7565
    %v7743 = vunpack.c.l.b16 %v7566
    %v7744 = vunpack.c.h.b16 %v7566
    %v7745 = vunpack.c.l.b16 %v7567
    %v7746 = vunpack.c.h.b16 %v7567
    %v7747 = vunpack.c.l.b16 %v7568
    %v7748 = vunpack.c.h.b16 %v7568
    %v7749 = vunpack.c.l.b16 %v7569
    %v7750 = vunpack.c.h.b16 %v7569
    %v7751 = vunpack.c.l.b16 %v7570
    %v7752 = vunpack.c.h.b16 %v7570
    %v7753 = vunpack.c.l.b16 %v7571
    %v7754 = vunpack.c.h.b16 %v7571
    %v7755 = vunpack.c.l.b16 %v7572
    %v7756 = vunpack.c.h.b16 %v7572
    %v7757 = vunpack.c.l.b16 %v7573
    %v7758 = vunpack.c.h.b16 %v7573
    %v7759 = vunpack.c.l.b16 %v7574
    %v7760 = vunpack.c.h.b16 %v7574
    %v7761 = vunpack.c.l.b16 %v7575
    %v7762 = vunpack.c.h.b16 %v7575
    %v7763 = vunpack.c.l.b16 %v7576
    %v7764 = vunpack.c.h.b16 %v7576
    %v7765 = vunpack.c.l.b16 %v7577
    %v7766 = vunpack.c.h.b16 %v7577
    %v7767 = vunpack.c.l.b16 %v7578
    %v7768 = vunpack.c.h.b16 %v7578
    %v7769 = vunpack.c.l.b16 %v7579
    %v7770 = vunpack.c.h.b16 %v7579
    %v7771 = vunpack.c.l.b16 %v7580
    %v7772 = vunpack.c.h.b16 %v7580
    %v7773 = vpack.c.b16 %v7649, %v7645
    %v7774 = vpack.c.b16 %v7650, %v7646
    %v7775 = vpack.c.b16 %v7651, %v7647
    %v7776 = vpack.c.b16 %v7652, %v7648
    %v7777 = vpack.c.b16 %v7657, %v7653
    %v7778 = vpack.c.b16 %v7658, %v7654
    %v7779 = vpack.c.b16 %v7659, %v7655
    %v7780 = vpack.c.b16 %v7660, %v7656
    %v7781 = vpack.c.b16 %v7665, %v7661
    %v7782 = vpack.c.b16 %v7666, %v7662
    %v7783 = vpack.c.b16 %v7667, %v7663
    %v7784 = vpack.c.b16 %v7668, %v7664
    %v7785 = vpack.c.b16 %v7673, %v7669
    %v7786 = vpack.c.b16 %v7674, %v7670
    %v7787 = vpack.c.b16 %v7675, %v7671
    %v7788 = vpack.c.b16 %v7676, %v7672
    %v7789 = vpack.c.b16 %v7681, %v7677
    %v7790 = vpack.c.b16 %v7682, %v7678
    %v7791 = vpack.c.b16 %v7683, %v7679
    %v7792 = vpack.c.b16 %v7684, %v7680
    %v7793 = vpack.c.b16 %v7689, %v7685
    %v7794 = vpack.c.b16 %v7690, %v7686
    %v7795 = vpack.c.b16 %v7691, %v7687
    %v7796 = vpack.c.b16 %v7692, %v7688
    %v7797 = vpack.c.b16 %v7697, %v7693
    %v7798 = vpack.c.b16 %v7698, %v7694
    %v7799 = vpack.c.b16 %v7699, %v7695
    %v7800 = vpack.c.b16 %v7700, %v7696
    %v7801 = vpack.c.b16 %v7705, %v7701
    %v7802 = vpack.c.b16 %v7706, %v7702
    %v7803 = vpack.c.b16 %v7707, %v7703
    %v7804 = vpack.c.b16 %v7708, %v7704
    %v7805 = vpack.c.b16 %v7713, %v7709
    %v7806 = vpack.c.b16 %v7714, %v7710
    %v7807 = vpack.c.b16 %v7715, %v7711
    %v7808 = vpack.c.b16 %v7716, %v7712
    %v7809 = vpack.c.b16 %v7721, %v7717
    %v7810 = vpack.c.b16 %v7722, %v7718
    %v7811 = vpack.c.b16 %v7723, %v7719
    %v7812 = vpack.c.b16 %v7724, %v7720
    %v7813 = vpack.c.b16 %v7729, %v7725
    %v7814 = vpack.c.b16 %v7730, %v7726
    %v7815 = vpack.c.b16 %v7731, %v7727
    %v7816 = vpack.c.b16 %v7732, %v7728
    %v7817 = vpack.c.b16 %v7737, %v7733
    %v7818 = vpack.c.b16 %v7738, %v7734
    %v7819 = vpack.c.b16 %v7739, %v7735
    %v7820 = vpack.c.b16 %v7740, %v7736
    %v7821 = vpack.c.b16 %v7745, %v7741
    %v7822 = vpack.c.b16 %v7746, %v7742
    %v7823 = vpack.c.b16 %v7747, %v7743
    %v7824 = vpack.c.b16 %v7748, %v7744
    %v7825 = vpack.c.b16 %v7753, %v7749
    %v7826 = vpack.c.b16 %v7754, %v7750
    %v7827 = vpack.c.b16 %v7755, %v7751
    %v7828 = vpack.c.b16 %v7756, %v7752
    %v7829 = vpack.c.b16 %v7761, %v7757
    %v7830 = vpack.c.b16 %v7762, %v7758
    %v7831 = vpack.c.b16 %v7763, %v7759
    %v7832 = vpack.c.b16 %v7764, %v7760
    %v7833 = vpack.c.b16 %v7769, %v7765
    %v7834 = vpack.c.b16 %v7770, %v7766
    %v7835 = vpack.c.b16 %v7771, %v7767
    %v7836 = vpack.c.b16 %v7772, %v7768
    %7901 = vmatprep.subr.bf16.mxu0 %v7774
    %7902 = vmatpush1.bf16.msra.mxu0 %v7773
    %7903 = vmatprep.subr.bf16.mxu0 %v7778
    %7904 = vmatpush1.bf16.msra.mxu0 %v7777
    %7905 = vmatprep.subr.bf16.mxu0 %v7782
    %7906 = vmatpush1.bf16.msra.mxu0 %v7781
    %7907 = vmatprep.subr.bf16.mxu0 %v7786
    %7908 = vmatpush1.bf16.msra.mxu0 %v7785
    %7909 = vmatprep.subr.bf16.mxu0 %v7790
    %7910 = vmatpush1.bf16.msra.mxu0 %v7789
    %7911 = vmatprep.subr.bf16.mxu0 %v7794
    %7912 = vmatpush1.bf16.msra.mxu0 %v7793
    %7913 = vmatprep.subr.bf16.mxu0 %v7798
    %7914 = vmatpush1.bf16.msra.mxu0 %v7797
    %7915 = vmatprep.subr.bf16.mxu0 %v7802
    %7916 = vmatpush1.bf16.msra.mxu0 %v7801
    %7917 = vmatprep.subr.bf16.mxu0 %v7806
    %7918 = vmatpush1.bf16.msra.mxu0 %v7805
    %7919 = vmatprep.subr.bf16.mxu0 %v7810
    %7920 = vmatpush1.bf16.msra.mxu0 %v7809
    %7921 = vmatprep.subr.bf16.mxu0 %v7814
    %7922 = vmatpush1.bf16.msra.mxu0 %v7813
    %7923 = vmatprep.subr.bf16.mxu0 %v7818
    %7924 = vmatpush1.bf16.msra.mxu0 %v7817
    %7925 = vmatprep.subr.bf16.mxu0 %v7822
    %7926 = vmatpush1.bf16.msra.mxu0 %v7821
    %7927 = vmatprep.subr.bf16.mxu0 %v7826
    %7928 = vmatpush1.bf16.msra.mxu0 %v7825
    %7929 = vmatprep.subr.bf16.mxu0 %v7830
    %7930 = vmatpush1.bf16.msra.mxu0 %v7829
    %7931 = vmatprep.subr.bf16.mxu0 %v7834
    %7932 = vmatpush1.bf16.msra.mxu0 %v7833
    %7933 = vmatprep.mubr.bf16.mxu0 %v7494
    %7934 = vmatmul.mubr.bf16.gmra.mrb[0].mxu0 %v7493
    %v7935 = vpop.f32.mrb[0].mxu0
    %v7936 = vadd.f32 0.0, %v7935
    %v7937 = vpop.f32.mrb[0].mxu0
    %v7938 = vadd.f32 0.0, %v7937
    %v7939 = vpop.f32.mrb[0].mxu0
    %v7940 = vadd.f32 0.0, %v7939
    %v7941 = vpop.f32.mrb[0].mxu0
    %v7942 = vadd.f32 0.0, %v7941
    %7943 = vmatprep.mubr.bf16.mxu0 %v7496
    %7944 = vmatmul.mubr.bf16.gmra.mrb[0].mxu0 %v7495
    %v7945 = vpop.f32.mrb[0].mxu0
    %v7946 = vadd.f32 0.0, %v7945
    %v7947 = vpop.f32.mrb[0].mxu0
    %v7948 = vadd.f32 0.0, %v7947
    %v7949 = vpop.f32.mrb[0].mxu0
    %v7950 = vadd.f32 0.0, %v7949
    %v7951 = vpop.f32.mrb[0].mxu0
    %v7952 = vadd.f32 0.0, %v7951
    %7953 = vmatprep.mubr.bf16.mxu0 %v7498
    %7954 = vmatmul.mubr.bf16.gmra.mrb[0].mxu0 %v7497
    %v7955 = vpop.f32.mrb[0].mxu0
    %v7956 = vadd.f32 0.0, %v7955
    %v7957 = vpop.f32.mrb[0].mxu0
    %v7958 = vadd.f32 0.0, %v7957
    %v7959 = vpop.f32.mrb[0].mxu0
    %v7960 = vadd.f32 0.0, %v7959
    %v7961 = vpop.f32.mrb[0].mxu0
    %v7962 = vadd.f32 0.0, %v7961
    %7963 = vmatprep.mubr.bf16.mxu0 %v7500
    %7964 = vmatmul.mubr.bf16.gmra.mrb[0].mxu0 %v7499
    %v7965 = vpop.f32.mrb[0].mxu0
    %v7966 = vadd.f32 0.0, %v7965
    %v7967 = vpop.f32.mrb[0].mxu0
    %v7968 = vadd.f32 0.0, %v7967
    %v7969 = vpop.f32.mrb[0].mxu0
    %v7970 = vadd.f32 0.0, %v7969
    %v7971 = vpop.f32.mrb[0].mxu0
    %v7972 = vadd.f32 0.0, %v7971
    %7973 = vmatprep.mubr.bf16.mxu0 %v7502
    %7974 = vmatmul.mubr.bf16.gmra.mrb[0].mxu0 %v7501
    %v7975 = vpop.f32.mrb[0].mxu0
    %v7976 = vadd.f32 0.0, %v7975
    %v7977 = vpop.f32.mrb[0].mxu0
    %v7978 = vadd.f32 0.0, %v7977
    %v7979 = vpop.f32.mrb[0].mxu0
    %v7980 = vadd.f32 0.0, %v7979
    %v7981 = vpop.f32.mrb[0].mxu0
    %v7982 = vadd.f32 0.0, %v7981
    %7983 = vmatprep.mubr.bf16.mxu0 %v7504
    %7984 = vmatmul.mubr.bf16.gmra.mrb[0].mxu0 %v7503
    %v7985 = vpop.f32.mrb[0].mxu0
    %v7986 = vadd.f32 0.0, %v7985
    %v7987 = vpop.f32.mrb[0].mxu0
    %v7988 = vadd.f32 0.0, %v7987
    %v7989 = vpop.f32.mrb[0].mxu0
    %v7990 = vadd.f32 0.0, %v7989
    %v7991 = vpop.f32.mrb[0].mxu0
    %v7992 = vadd.f32 0.0, %v7991
    %7993 = vmatprep.mubr.bf16.mxu0 %v7506
    %7994 = vmatmul.mubr.bf16.gmra.mrb[0].mxu0 %v7505
    %v7995 = vpop.f32.mrb[0].mxu0
    %v7996 = vadd.f32 0.0, %v7995
    %v7997 = vpop.f32.mrb[0].mxu0
    %v7998 = vadd.f32 0.0, %v7997
    %v7999 = vpop.f32.mrb[0].mxu0
    %v8000 = vadd.f32 0.0, %v7999
    %v8001 = vpop.f32.mrb[0].mxu0
    %v8002 = vadd.f32 0.0, %v8001
    %8003 = vmatprep.mubr.bf16.mxu0 %v7508
    %8004 = vmatmul.mubr.bf16.gmra.mrb[0].mxu0 %v7507
    %v8005 = vpop.f32.mrb[0].mxu0
    %v8006 = vadd.f32 0.0, %v8005
    %v8007 = vpop.f32.mrb[0].mxu0
    %v8008 = vadd.f32 0.0, %v8007
    %v8009 = vpop.f32.mrb[0].mxu0
    %v8010 = vadd.f32 0.0, %v8009
    %v8011 = vpop.f32.mrb[0].mxu0
    %v8012 = vadd.f32 0.0, %v8011
    %8013 = vmatprep.mubr.bf16.mxu0 %v7510
    %8014 = vmatmul.mubr.bf16.gmra.mrb[0].mxu0 %v7509
    %v8015 = vpop.f32.mrb[0].mxu0
    %v8016 = vadd.f32 0.0, %v8015
    %v8017 = vpop.f32.mrb[0].mxu0
    %v8018 = vadd.f32 0.0, %v8017
    %v8019 = vpop.f32.mrb[0].mxu0
    %v8020 = vadd.f32 0.0, %v8019
    %v8021 = vpop.f32.mrb[0].mxu0
    %v8022 = vadd.f32 0.0, %v8021
    %8023 = vmatprep.mubr.bf16.mxu0 %v7512
    %8024 = vmatmul.mubr.bf16.gmra.mrb[0].mxu0 %v7511
    %v8025 = vpop.f32.mrb[0].mxu0
    %v8026 = vadd.f32 0.0, %v8025
    %v8027 = vpop.f32.mrb[0].mxu0
    %v8028 = vadd.f32 0.0, %v8027
    %v8029 = vpop.f32.mrb[0].mxu0
    %v8030 = vadd.f32 0.0, %v8029
    %v8031 = vpop.f32.mrb[0].mxu0
    %v8032 = vadd.f32 0.0, %v8031
    %8033 = vmatprep.mubr.bf16.mxu0 %v7514
    %8034 = vmatmul.mubr.bf16.gmra.mrb[0].mxu0 %v7513
    %v8035 = vpop.f32.mrb[0].mxu0
    %v8036 = vadd.f32 0.0, %v8035
    %v8037 = vpop.f32.mrb[0].mxu0
    %v8038 = vadd.f32 0.0, %v8037
    %v8039 = vpop.f32.mrb[0].mxu0
    %v8040 = vadd.f32 0.0, %v8039
    %v8041 = vpop.f32.mrb[0].mxu0
    %v8042 = vadd.f32 0.0, %v8041
    %8043 = vmatprep.mubr.bf16.mxu0 %v7516
    %8044 = vmatmul.mubr.bf16.gmra.mrb[0].mxu0 %v7515
    %v8045 = vpop.f32.mrb[0].mxu0
    %v8046 = vadd.f32 0.0, %v8045
    %v8047 = vpop.f32.mrb[0].mxu0
    %v8048 = vadd.f32 0.0, %v8047
    %v8049 = vpop.f32.mrb[0].mxu0
    %v8050 = vadd.f32 0.0, %v8049
    %v8051 = vpop.f32.mrb[0].mxu0
    %v8052 = vadd.f32 0.0, %v8051
    %8053 = vdwg.mxu0
    %8054 = vmatprep.subr.bf16.mxu0 %v7776
    %8055 = vmatpush1.bf16.msra.mxu0 %v7775
    %8056 = vmatprep.subr.bf16.mxu0 %v7780
    %8057 = vmatpush1.bf16.msra.mxu0 %v7779
    %8058 = vmatprep.subr.bf16.mxu0 %v7784
    %8059 = vmatpush1.bf16.msra.mxu0 %v7783
    %8060 = vmatprep.subr.bf16.mxu0 %v7788
    %8061 = vmatpush1.bf16.msra.mxu0 %v7787
    %8062 = vmatprep.subr.bf16.mxu0 %v7792
    %8063 = vmatpush1.bf16.msra.mxu0 %v7791
    %8064 = vmatprep.subr.bf16.mxu0 %v7796
    %8065 = vmatpush1.bf16.msra.mxu0 %v7795
    %8066 = vmatprep.subr.bf16.mxu0 %v7800
    %8067 = vmatpush1.bf16.msra.mxu0 %v7799
    %8068 = vmatprep.subr.bf16.mxu0 %v7804
    %8069 = vmatpush1.bf16.msra.mxu0 %v7803
    %8070 = vmatprep.subr.bf16.mxu0 %v7808
    %8071 = vmatpush1.bf16.msra.mxu0 %v7807
    %8072 = vmatprep.subr.bf16.mxu0 %v7812
    %8073 = vmatpush1.bf16.msra.mxu0 %v7811
    %8074 = vmatprep.subr.bf16.mxu0 %v7816
    %8075 = vmatpush1.bf16.msra.mxu0 %v7815
    %8076 = vmatprep.subr.bf16.mxu0 %v7820
    %8077 = vmatpush1.bf16.msra.mxu0 %v7819
    %8078 = vmatprep.subr.bf16.mxu0 %v7824
    %8079 = vmatpush1.bf16.msra.mxu0 %v7823
    %8080 = vmatprep.subr.bf16.mxu0 %v7828
    %8081 = vmatpush1.bf16.msra.mxu0 %v7827
    %8082 = vmatprep.subr.bf16.mxu0 %v7832
    %8083 = vmatpush1.bf16.msra.mxu0 %v7831
    %8084 = vmatprep.subr.bf16.mxu0 %v7836
    %8085 = vmatpush1.bf16.msra.mxu0 %v7835
    %8086 = vmatprep.mubr.bf16.mxu0 %v7494
    %8087 = vmatmul.mubr.bf16.gmra.mrb[0].mxu0 %v7493
    %v8088 = vpop.f32.mrb[0].mxu0
    %v8089 = vadd.f32 0.0, %v8088
    %v8090 = vpop.f32.mrb[0].mxu0
    %v8091 = vadd.f32 0.0, %v8090
    %v8092 = vpop.f32.mrb[0].mxu0
    %v8093 = vadd.f32 0.0, %v8092
    %v8094 = vpop.f32.mrb[0].mxu0
    %v8095 = vadd.f32 0.0, %v8094
    %8096 = vmatprep.mubr.bf16.mxu0 %v7496
    %8097 = vmatmul.mubr.bf16.gmra.mrb[0].mxu0 %v7495
    %v8098 = vpop.f32.mrb[0].mxu0
    %v8099 = vadd.f32 0.0, %v8098
    %v8100 = vpop.f32.mrb[0].mxu0
    %v8101 = vadd.f32 0.0, %v8100
    %v8102 = vpop.f32.mrb[0].mxu0
    %v8103 = vadd.f32 0.0, %v8102
    %v8104 = vpop.f32.mrb[0].mxu0
    %v8105 = vadd.f32 0.0, %v8104
    %8106 = vmatprep.mubr.bf16.mxu0 %v7498
    %8107 = vmatmul.mubr.bf16.gmra.mrb[0].mxu0 %v7497
    %v8108 = vpop.f32.mrb[0].mxu0
    %v8109 = vadd.f32 0.0, %v8108
    %v8110 = vpop.f32.mrb[0].mxu0
    %v8111 = vadd.f32 0.0, %v8110
    %v8112 = vpop.f32.mrb[0].mxu0
    %v8113 = vadd.f32 0.0, %v8112
    %v8114 = vpop.f32.mrb[0].mxu0
    %v8115 = vadd.f32 0.0, %v8114
    %8116 = vmatprep.mubr.bf16.mxu0 %v7500
    %8117 = vmatmul.mubr.bf16.gmra.mrb[0].mxu0 %v7499
    %v8118 = vpop.f32.mrb[0].mxu0
    %v8119 = vadd.f32 0.0, %v8118
    %v8120 = vpop.f32.mrb[0].mxu0
    %v8121 = vadd.f32 0.0, %v8120
    %v8122 = vpop.f32.mrb[0].mxu0
    %v8123 = vadd.f32 0.0, %v8122
    %v8124 = vpop.f32.mrb[0].mxu0
    %v8125 = vadd.f32 0.0, %v8124
    %8126 = vmatprep.mubr.bf16.mxu0 %v7502
    %8127 = vmatmul.mubr.bf16.gmra.mrb[0].mxu0 %v7501
    %v8128 = vpop.f32.mrb[0].mxu0
    %v8129 = vadd.f32 0.0, %v8128
    %v8130 = vpop.f32.mrb[0].mxu0
    %v8131 = vadd.f32 0.0, %v8130
    %v8132 = vpop.f32.mrb[0].mxu0
    %v8133 = vadd.f32 0.0, %v8132
    %v8134 = vpop.f32.mrb[0].mxu0
    %v8135 = vadd.f32 0.0, %v8134
    %8136 = vmatprep.mubr.bf16.mxu0 %v7504
    %8137 = vmatmul.mubr.bf16.gmra.mrb[0].mxu0 %v7503
    %v8138 = vpop.f32.mrb[0].mxu0
    %v8139 = vadd.f32 0.0, %v8138
    %v8140 = vpop.f32.mrb[0].mxu0
    %v8141 = vadd.f32 0.0, %v8140
    %v8142 = vpop.f32.mrb[0].mxu0
    %v8143 = vadd.f32 0.0, %v8142
    %v8144 = vpop.f32.mrb[0].mxu0
    %v8145 = vadd.f32 0.0, %v8144
    %8146 = vmatprep.mubr.bf16.mxu0 %v7506
    %8147 = vmatmul.mubr.bf16.gmra.mrb[0].mxu0 %v7505
    %v8148 = vpop.f32.mrb[0].mxu0
    %v8149 = vadd.f32 0.0, %v8148
    %v8150 = vpop.f32.mrb[0].mxu0
    %v8151 = vadd.f32 0.0, %v8150
    %v8152 = vpop.f32.mrb[0].mxu0
    %v8153 = vadd.f32 0.0, %v8152
    %v8154 = vpop.f32.mrb[0].mxu0
    %v8155 = vadd.f32 0.0, %v8154
    %8156 = vmatprep.mubr.bf16.mxu0 %v7508
    %8157 = vmatmul.mubr.bf16.gmra.mrb[0].mxu0 %v7507
    %v8158 = vpop.f32.mrb[0].mxu0
    %v8159 = vadd.f32 0.0, %v8158
    %v8160 = vpop.f32.mrb[0].mxu0
    %v8161 = vadd.f32 0.0, %v8160
    %v8162 = vpop.f32.mrb[0].mxu0
    %v8163 = vadd.f32 0.0, %v8162
    %v8164 = vpop.f32.mrb[0].mxu0
    %v8165 = vadd.f32 0.0, %v8164
    %8166 = vmatprep.mubr.bf16.mxu0 %v7510
    %8167 = vmatmul.mubr.bf16.gmra.mrb[0].mxu0 %v7509
    %v8168 = vpop.f32.mrb[0].mxu0
    %v8169 = vadd.f32 0.0, %v8168
    %v8170 = vpop.f32.mrb[0].mxu0
    %v8171 = vadd.f32 0.0, %v8170
    %v8172 = vpop.f32.mrb[0].mxu0
    %v8173 = vadd.f32 0.0, %v8172
    %v8174 = vpop.f32.mrb[0].mxu0
    %v8175 = vadd.f32 0.0, %v8174
    %8176 = vmatprep.mubr.bf16.mxu0 %v7512
    %8177 = vmatmul.mubr.bf16.gmra.mrb[0].mxu0 %v7511
    %v8178 = vpop.f32.mrb[0].mxu0
    %v8179 = vadd.f32 0.0, %v8178
    %v8180 = vpop.f32.mrb[0].mxu0
    %v8181 = vadd.f32 0.0, %v8180
    %v8182 = vpop.f32.mrb[0].mxu0
    %v8183 = vadd.f32 0.0, %v8182
    %v8184 = vpop.f32.mrb[0].mxu0
    %v8185 = vadd.f32 0.0, %v8184
    %8186 = vmatprep.mubr.bf16.mxu0 %v7514
    %8187 = vmatmul.mubr.bf16.gmra.mrb[0].mxu0 %v7513
    %v8188 = vpop.f32.mrb[0].mxu0
    %v8189 = vadd.f32 0.0, %v8188
    %v8190 = vpop.f32.mrb[0].mxu0
    %v8191 = vadd.f32 0.0, %v8190
    %v8192 = vpop.f32.mrb[0].mxu0
    %v8193 = vadd.f32 0.0, %v8192
    %v8194 = vpop.f32.mrb[0].mxu0
    %v8195 = vadd.f32 0.0, %v8194
    %8196 = vmatprep.mubr.bf16.mxu0 %v7516
    %8197 = vmatmul.mubr.bf16.gmra.mrb[0].mxu0 %v7515
    %v8198 = vpop.f32.mrb[0].mxu0
    %v8199 = vadd.f32 0.0, %v8198
    %v8200 = vpop.f32.mrb[0].mxu0
    %v8201 = vadd.f32 0.0, %v8200
    %v8202 = vpop.f32.mrb[0].mxu0
    %v8203 = vadd.f32 0.0, %v8202
    %v8204 = vpop.f32.mrb[0].mxu0
    %v8205 = vadd.f32 0.0, %v8204
    %8206 = vdwg.mxu0
    %v8207 = vadd.f32 %v7936, %v7940
    %v8208 = vadd.f32 %v8207, %v7946
    %v8209 = vadd.f32 %v8208, %v7950
    %v8210 = vadd.f32 %v8209, %v7956
    %v8211 = vadd.f32 %v8210, %v7960
    %v8212 = vadd.f32 %v8211, %v7966
    %v8213 = vadd.f32 %v8212, %v7970
    %v8214 = vadd.f32 %v8213, %v7976
    %v8215 = vadd.f32 %v8214, %v7980
    %v8216 = vadd.f32 %v8215, %v7986
    %v8217 = vadd.f32 %v8216, %v7990
    %v8218 = vadd.f32 %v8217, %v7996
    %v8219 = vadd.f32 %v8218, %v8000
    %v8220 = vadd.f32 %v8219, %v8006
    %v8221 = vadd.f32 %v8220, %v8010
    %v8222 = vadd.f32 %v8221, %v8016
    %v8223 = vadd.f32 %v8222, %v8020
    %v8224 = vadd.f32 %v8223, %v8026
    %v8225 = vadd.f32 %v8224, %v8030
    %v8226 = vadd.f32 %v8225, %v8036
    %v8227 = vadd.f32 %v8226, %v8040
    %v8228 = vadd.f32 %v8227, %v8046
    %v8229 = vadd.f32 %v8228, %v8050
    %v8230 = vrot.slane %v8229, 4
    %v8231 = vadd.f32 %v8229, %v8230
    %v8232 = vrot.slane %v8231, 2
    %v8233 = vadd.f32 %v8231, %v8232
    %v8234 = vrot.slane %v8233, 1
    %v8235 = vadd.f32 %v8233, %v8234
    %v8236 = vadd.f32 %v7938, %v7942
    %v8237 = vadd.f32 %v8236, %v7948
    %v8238 = vadd.f32 %v8237, %v7952
    %v8239 = vadd.f32 %v8238, %v7958
    %v8240 = vadd.f32 %v8239, %v7962
    %v8241 = vadd.f32 %v8240, %v7968
    %v8242 = vadd.f32 %v8241, %v7972
    %v8243 = vadd.f32 %v8242, %v7978
    %v8244 = vadd.f32 %v8243, %v7982
    %v8245 = vadd.f32 %v8244, %v7988
    %v8246 = vadd.f32 %v8245, %v7992
    %v8247 = vadd.f32 %v8246, %v7998
    %v8248 = vadd.f32 %v8247, %v8002
    %v8249 = vadd.f32 %v8248, %v8008
    %v8250 = vadd.f32 %v8249, %v8012
    %v8251 = vadd.f32 %v8250, %v8018
    %v8252 = vadd.f32 %v8251, %v8022
    %v8253 = vadd.f32 %v8252, %v8028
    %v8254 = vadd.f32 %v8253, %v8032
    %v8255 = vadd.f32 %v8254, %v8038
    %v8256 = vadd.f32 %v8255, %v8042
    %v8257 = vadd.f32 %v8256, %v8048
    %v8258 = vadd.f32 %v8257, %v8052
    %v8259 = vrot.slane %v8258, 4
    %v8260 = vadd.f32 %v8258, %v8259
    %v8261 = vrot.slane %v8260, 2
    %v8262 = vadd.f32 %v8260, %v8261
    %v8263 = vrot.slane %v8262, 1
    %v8264 = vadd.f32 %v8262, %v8263
    %v8265 = vadd.f32 %v8089, %v8093
    %v8266 = vadd.f32 %v8265, %v8099
    %v8267 = vadd.f32 %v8266, %v8103
    %v8268 = vadd.f32 %v8267, %v8109
    %v8269 = vadd.f32 %v8268, %v8113
    %v8270 = vadd.f32 %v8269, %v8119
    %v8271 = vadd.f32 %v8270, %v8123
    %v8272 = vadd.f32 %v8271, %v8129
    %v8273 = vadd.f32 %v8272, %v8133
    %v8274 = vadd.f32 %v8273, %v8139
    %v8275 = vadd.f32 %v8274, %v8143
    %v8276 = vadd.f32 %v8275, %v8149
    %v8277 = vadd.f32 %v8276, %v8153
    %v8278 = vadd.f32 %v8277, %v8159
    %v8279 = vadd.f32 %v8278, %v8163
    %v8280 = vadd.f32 %v8279, %v8169
    %v8281 = vadd.f32 %v8280, %v8173
    %v8282 = vadd.f32 %v8281, %v8179
    %v8283 = vadd.f32 %v8282, %v8183
    %v8284 = vadd.f32 %v8283, %v8189
    %v8285 = vadd.f32 %v8284, %v8193
    %v8286 = vadd.f32 %v8285, %v8199
    %v8287 = vadd.f32 %v8286, %v8203
    %v8288 = vrot.slane %v8287, 4
    %v8289 = vadd.f32 %v8287, %v8288
    %v8290 = vrot.slane %v8289, 2
    %v8291 = vadd.f32 %v8289, %v8290
    %v8292 = vrot.slane %v8291, 1
    %v8293 = vadd.f32 %v8291, %v8292
    %v8294 = vadd.f32 %v8091, %v8095
    %v8295 = vadd.f32 %v8294, %v8101
    %v8296 = vadd.f32 %v8295, %v8105
    %v8297 = vadd.f32 %v8296, %v8111
    %v8298 = vadd.f32 %v8297, %v8115
    %v8299 = vadd.f32 %v8298, %v8121
    %v8300 = vadd.f32 %v8299, %v8125
    %v8301 = vadd.f32 %v8300, %v8131
    %v8302 = vadd.f32 %v8301, %v8135
    %v8303 = vadd.f32 %v8302, %v8141
    %v8304 = vadd.f32 %v8303, %v8145
    %v8305 = vadd.f32 %v8304, %v8151
    %v8306 = vadd.f32 %v8305, %v8155
    %v8307 = vadd.f32 %v8306, %v8161
    %v8308 = vadd.f32 %v8307, %v8165
    %v8309 = vadd.f32 %v8308, %v8171
    %v8310 = vadd.f32 %v8309, %v8175
    %v8311 = vadd.f32 %v8310, %v8181
    %v8312 = vadd.f32 %v8311, %v8185
    %v8313 = vadd.f32 %v8312, %v8191
    %v8314 = vadd.f32 %v8313, %v8195
    %v8315 = vadd.f32 %v8314, %v8201
    %v8316 = vadd.f32 %v8315, %v8205
    %v8317 = vrot.slane %v8316, 4
    %v8318 = vadd.f32 %v8316, %v8317
    %v8319 = vrot.slane %v8318, 2
    %v8320 = vadd.f32 %v8318, %v8319
    %v8321 = vrot.slane %v8320, 1
    %v8322 = vadd.f32 %v8320, %v8321
    %v8323 = vmul.f32 %v7936, %v7936
    %v8324 = vmul.f32 %v7938, %v7938
    %v8325 = vmul.f32 %v8089, %v8089
    %v8326 = vmul.f32 %v8091, %v8091
    %v8327 = vmul.f32 %v7940, %v7940
    %v8328 = vmul.f32 %v7942, %v7942
    %v8329 = vmul.f32 %v8093, %v8093
    %v8330 = vmul.f32 %v8095, %v8095
    %v8331 = vmul.f32 %v7946, %v7946
    %v8332 = vmul.f32 %v7948, %v7948
    %v8333 = vmul.f32 %v8099, %v8099
    %v8334 = vmul.f32 %v8101, %v8101
    %v8335 = vmul.f32 %v7950, %v7950
    %v8336 = vmul.f32 %v7952, %v7952
    %v8337 = vmul.f32 %v8103, %v8103
    %v8338 = vmul.f32 %v8105, %v8105
    %v8339 = vmul.f32 %v7956, %v7956
    %v8340 = vmul.f32 %v7958, %v7958
    %v8341 = vmul.f32 %v8109, %v8109
    %v8342 = vmul.f32 %v8111, %v8111
    %v8343 = vmul.f32 %v7960, %v7960
    %v8344 = vmul.f32 %v7962, %v7962
    %v8345 = vmul.f32 %v8113, %v8113
    %v8346 = vmul.f32 %v8115, %v8115
    %v8347 = vmul.f32 %v7966, %v7966
    %v8348 = vmul.f32 %v7968, %v7968
    %v8349 = vmul.f32 %v8119, %v8119
    %v8350 = vmul.f32 %v8121, %v8121
    %v8351 = vmul.f32 %v7970, %v7970
    %v8352 = vmul.f32 %v7972, %v7972
    %v8353 = vmul.f32 %v8123, %v8123
    %v8354 = vmul.f32 %v8125, %v8125
    %v8355 = vmul.f32 %v7976, %v7976
    %v8356 = vmul.f32 %v7978, %v7978
    %v8357 = vmul.f32 %v8129, %v8129
    %v8358 = vmul.f32 %v8131, %v8131
    %v8359 = vmul.f32 %v7980, %v7980
    %v8360 = vmul.f32 %v7982, %v7982
    %v8361 = vmul.f32 %v8133, %v8133
    %v8362 = vmul.f32 %v8135, %v8135
    %v8363 = vmul.f32 %v7986, %v7986
    %v8364 = vmul.f32 %v7988, %v7988
    %v8365 = vmul.f32 %v8139, %v8139
    %v8366 = vmul.f32 %v8141, %v8141
    %v8367 = vmul.f32 %v7990, %v7990
    %v8368 = vmul.f32 %v7992, %v7992
    %v8369 = vmul.f32 %v8143, %v8143
    %v8370 = vmul.f32 %v8145, %v8145
    %v8371 = vmul.f32 %v7996, %v7996
    %v8372 = vmul.f32 %v7998, %v7998
    %v8373 = vmul.f32 %v8149, %v8149
    %v8374 = vmul.f32 %v8151, %v8151
    %v8375 = vmul.f32 %v8000, %v8000
    %v8376 = vmul.f32 %v8002, %v8002
    %v8377 = vmul.f32 %v8153, %v8153
    %v8378 = vmul.f32 %v8155, %v8155
    %v8379 = vmul.f32 %v8006, %v8006
    %v8380 = vmul.f32 %v8008, %v8008
    %v8381 = vmul.f32 %v8159, %v8159
    %v8382 = vmul.f32 %v8161, %v8161
    %v8383 = vmul.f32 %v8010, %v8010
    %v8384 = vmul.f32 %v8012, %v8012
    %v8385 = vmul.f32 %v8163, %v8163
    %v8386 = vmul.f32 %v8165, %v8165
    %v8387 = vmul.f32 %v8016, %v8016
    %v8388 = vmul.f32 %v8018, %v8018
    %v8389 = vmul.f32 %v8169, %v8169
    %v8390 = vmul.f32 %v8171, %v8171
    %v8391 = vmul.f32 %v8020, %v8020
    %v8392 = vmul.f32 %v8022, %v8022
    %v8393 = vmul.f32 %v8173, %v8173
    %v8394 = vmul.f32 %v8175, %v8175
    %v8395 = vmul.f32 %v8026, %v8026
    %v8396 = vmul.f32 %v8028, %v8028
    %v8397 = vmul.f32 %v8179, %v8179
    %v8398 = vmul.f32 %v8181, %v8181
    %v8399 = vmul.f32 %v8030, %v8030
    %v8400 = vmul.f32 %v8032, %v8032
    %v8401 = vmul.f32 %v8183, %v8183
    %v8402 = vmul.f32 %v8185, %v8185
    %v8403 = vmul.f32 %v8036, %v8036
    %v8404 = vmul.f32 %v8038, %v8038
    %v8405 = vmul.f32 %v8189, %v8189
    %v8406 = vmul.f32 %v8191, %v8191
    %v8407 = vmul.f32 %v8040, %v8040
    %v8408 = vmul.f32 %v8042, %v8042
    %v8409 = vmul.f32 %v8193, %v8193
    %v8410 = vmul.f32 %v8195, %v8195
    %v8411 = vmul.f32 %v8046, %v8046
    %v8412 = vmul.f32 %v8048, %v8048
    %v8413 = vmul.f32 %v8199, %v8199
    %v8414 = vmul.f32 %v8201, %v8201
    %v8415 = vmul.f32 %v8050, %v8050
    %v8416 = vmul.f32 %v8052, %v8052
    %v8417 = vmul.f32 %v8203, %v8203
    %v8418 = vmul.f32 %v8205, %v8205
    %v8419 = vadd.f32 %v8323, %v8327
    %v8420 = vadd.f32 %v8419, %v8331
    %v8421 = vadd.f32 %v8420, %v8335
    %v8422 = vadd.f32 %v8421, %v8339
    %v8423 = vadd.f32 %v8422, %v8343
    %v8424 = vadd.f32 %v8423, %v8347
    %v8425 = vadd.f32 %v8424, %v8351
    %v8426 = vadd.f32 %v8425, %v8355
    %v8427 = vadd.f32 %v8426, %v8359
    %v8428 = vadd.f32 %v8427, %v8363
    %v8429 = vadd.f32 %v8428, %v8367
    %v8430 = vadd.f32 %v8429, %v8371
    %v8431 = vadd.f32 %v8430, %v8375
    %v8432 = vadd.f32 %v8431, %v8379
    %v8433 = vadd.f32 %v8432, %v8383
    %v8434 = vadd.f32 %v8433, %v8387
    %v8435 = vadd.f32 %v8434, %v8391
    %v8436 = vadd.f32 %v8435, %v8395
    %v8437 = vadd.f32 %v8436, %v8399
    %v8438 = vadd.f32 %v8437, %v8403
    %v8439 = vadd.f32 %v8438, %v8407
    %v8440 = vadd.f32 %v8439, %v8411
    %v8441 = vadd.f32 %v8440, %v8415
    %v8442 = vrot.slane %v8441, 4
    %v8443 = vadd.f32 %v8441, %v8442
    %v8444 = vrot.slane %v8443, 2
    %v8445 = vadd.f32 %v8443, %v8444
    %v8446 = vrot.slane %v8445, 1
    %v8447 = vadd.f32 %v8445, %v8446
    %v8448 = vadd.f32 %v8324, %v8328
    %v8449 = vadd.f32 %v8448, %v8332
    %v8450 = vadd.f32 %v8449, %v8336
    %v8451 = vadd.f32 %v8450, %v8340
    %v8452 = vadd.f32 %v8451, %v8344
    %v8453 = vadd.f32 %v8452, %v8348
    %v8454 = vadd.f32 %v8453, %v8352
    %v8455 = vadd.f32 %v8454, %v8356
    %v8456 = vadd.f32 %v8455, %v8360
    %v8457 = vadd.f32 %v8456, %v8364
    %v8458 = vadd.f32 %v8457, %v8368
    %v8459 = vadd.f32 %v8458, %v8372
    %v8460 = vadd.f32 %v8459, %v8376
    %v8461 = vadd.f32 %v8460, %v8380
    %v8462 = vadd.f32 %v8461, %v8384
    %v8463 = vadd.f32 %v8462, %v8388
    %v8464 = vadd.f32 %v8463, %v8392
    %v8465 = vadd.f32 %v8464, %v8396
    %v8466 = vadd.f32 %v8465, %v8400
    %v8467 = vadd.f32 %v8466, %v8404
    %v8468 = vadd.f32 %v8467, %v8408
    %v8469 = vadd.f32 %v8468, %v8412
    %v8470 = vadd.f32 %v8469, %v8416
    %v8471 = vrot.slane %v8470, 4
    %v8472 = vadd.f32 %v8470, %v8471
    %v8473 = vrot.slane %v8472, 2
    %v8474 = vadd.f32 %v8472, %v8473
    %v8475 = vrot.slane %v8474, 1
    %v8476 = vadd.f32 %v8474, %v8475
    %v8477 = vadd.f32 %v8325, %v8329
    %v8478 = vadd.f32 %v8477, %v8333
    %v8479 = vadd.f32 %v8478, %v8337
    %v8480 = vadd.f32 %v8479, %v8341
    %v8481 = vadd.f32 %v8480, %v8345
    %v8482 = vadd.f32 %v8481, %v8349
    %v8483 = vadd.f32 %v8482, %v8353
    %v8484 = vadd.f32 %v8483, %v8357
    %v8485 = vadd.f32 %v8484, %v8361
    %v8486 = vadd.f32 %v8485, %v8365
    %v8487 = vadd.f32 %v8486, %v8369
    %v8488 = vadd.f32 %v8487, %v8373
    %v8489 = vadd.f32 %v8488, %v8377
    %v8490 = vadd.f32 %v8489, %v8381
    %v8491 = vadd.f32 %v8490, %v8385
    %v8492 = vadd.f32 %v8491, %v8389
    %v8493 = vadd.f32 %v8492, %v8393
    %v8494 = vadd.f32 %v8493, %v8397
    %v8495 = vadd.f32 %v8494, %v8401
    %v8496 = vadd.f32 %v8495, %v8405
    %v8497 = vadd.f32 %v8496, %v8409
    %v8498 = vadd.f32 %v8497, %v8413
    %v8499 = vadd.f32 %v8498, %v8417
    %v8500 = vrot.slane %v8499, 4
    %v8501 = vadd.f32 %v8499, %v8500
    %v8502 = vrot.slane %v8501, 2
    %v8503 = vadd.f32 %v8501, %v8502
    %v8504 = vrot.slane %v8503, 1
    %v8505 = vadd.f32 %v8503, %v8504
    %v8506 = vadd.f32 %v8326, %v8330
    %v8507 = vadd.f32 %v8506, %v8334
    %v8508 = vadd.f32 %v8507, %v8338
    %v8509 = vadd.f32 %v8508, %v8342
    %v8510 = vadd.f32 %v8509, %v8346
    %v8511 = vadd.f32 %v8510, %v8350
    %v8512 = vadd.f32 %v8511, %v8354
    %v8513 = vadd.f32 %v8512, %v8358
    %v8514 = vadd.f32 %v8513, %v8362
    %v8515 = vadd.f32 %v8514, %v8366
    %v8516 = vadd.f32 %v8515, %v8370
    %v8517 = vadd.f32 %v8516, %v8374
    %v8518 = vadd.f32 %v8517, %v8378
    %v8519 = vadd.f32 %v8518, %v8382
    %v8520 = vadd.f32 %v8519, %v8386
    %v8521 = vadd.f32 %v8520, %v8390
    %v8522 = vadd.f32 %v8521, %v8394
    %v8523 = vadd.f32 %v8522, %v8398
    %v8524 = vadd.f32 %v8523, %v8402
    %v8525 = vadd.f32 %v8524, %v8406
    %v8526 = vadd.f32 %v8525, %v8410
    %v8527 = vadd.f32 %v8526, %v8414
    %v8528 = vadd.f32 %v8527, %v8418
    %v8529 = vrot.slane %v8528, 4
    %v8530 = vadd.f32 %v8528, %v8529
    %v8531 = vrot.slane %v8530, 2
    %v8532 = vadd.f32 %v8530, %v8531
    %v8533 = vrot.slane %v8532, 1
    %v8534 = vadd.f32 %v8532, %v8533
    %v8535 = vadd.f32 %v8235, %v8293
    %v8536 = vadd.f32 %v8264, %v8322
    %v8537 = vmul.f32 %v8535, 0.010416667
    %v8538 = vmul.f32 %v8536, 0.010416667
    %v8539 = vadd.f32 %v8447, %v8505
    %v8540 = vadd.f32 %v8476, %v8534
    %v8541 = vmul.f32 %v8539, 0.010416667
    %v8542 = vmul.f32 %v8540, 0.010416667
    %v8543 = vmul.f32 %v8537, %v8537
    %v8544 = vmul.f32 %v8538, %v8538
    %v8545 = vsub.f32 %v8541, %v8543
    %v8546 = vsub.f32 %v8542, %v8544
    %v8547 = vmax.f32 %v8545, 0.0
    %v8548 = vmax.f32 %v8546, 0.0
    %v8549 = vld [vmem:[#allocation28] sm:$0x3]
    %v8550 = vadd.f32 %v8547, 1e-05
    %v8551 = vadd.f32 %v8548, 1e-05
    %v8552 = vrsqrt.pop %v8550
    %v8553 = vrsqrt.pop %v8551
    %v8556 = vcombine.low %v8552, %v8553
    %v8558 = vunpack.c.l.s4 1966171168
    %v8559 = vunpack.c.0.s8 %v8558
    %v8560 = vlaneseq
    %v8561 = vshrl.u32 %v8560, 7
    %v8562 = vsub.s32 %v8559, %v8561
    %v8563 = vrot.slane %v8556, %v8562
    %v8565 = vunpack.c.l.s4 1966171168
    %v8566 = vunpack.c.0.s8 %v8565
    %v8567 = vlaneseq
    %v8568 = vshrl.u32 %v8567, 7
    %v8569 = vsub.s32 %v8566, %v8568
    %v8570 = vrot.slane %v8563, %v8569
    %v8572 = vmul.f32 %v8549, %v8570
    %v8573 = vld [vmem:[#allocation29] sm:$0x3]
    %v8575 = vlaneseq
    %v8576 = vshrl.u32 %v8575, 7
    %v8577 = vsub.s32 0, %v8576
    %v8578 = vrot.slane %v8572, %v8577
    %v8579 = vlaneseq
    %v8580 = vshrl.u32 %v8579, 7
    %v8581 = vsub.s32 1, %v8580
    %v8582 = vrot.slane %v8572, %v8581
    %v8585 = vmul.f32 %v8537, %v8578
    %v8586 = vmul.f32 %v8538, %v8582
    %v8589 = vcombine.low %v8585, %v8586
    %v8591 = vunpack.c.l.s4 1966171168
    %v8592 = vunpack.c.0.s8 %v8591
    %v8593 = vlaneseq
    %v8594 = vshrl.u32 %v8593, 7
    %v8595 = vsub.s32 %v8592, %v8594
    %v8596 = vrot.slane %v8589, %v8595
    %v8598 = vunpack.c.l.s4 1966171168
    %v8599 = vunpack.c.0.s8 %v8598
    %v8600 = vlaneseq
    %v8601 = vshrl.u32 %v8600, 7
    %v8602 = vsub.s32 %v8599, %v8601
    %v8603 = vrot.slane %v8596, %v8602
    %v8605 = vsub.f32 %v8573, %v8603
    %v8606 = vmul.f32 %v7936, %v8578
    %v8607 = vmul.f32 %v7938, %v8582
    %v8608 = vmul.f32 %v7940, %v8578
    %v8609 = vmul.f32 %v7942, %v8582
    %v8610 = vmul.f32 %v7946, %v8578
    %v8611 = vmul.f32 %v7948, %v8582
    %v8612 = vmul.f32 %v7950, %v8578
    %v8613 = vmul.f32 %v7952, %v8582
    %v8614 = vmul.f32 %v7956, %v8578
    %v8615 = vmul.f32 %v7958, %v8582
    %v8616 = vmul.f32 %v7960, %v8578
    %v8617 = vmul.f32 %v7962, %v8582
    %v8618 = vmul.f32 %v7966, %v8578
    %v8619 = vmul.f32 %v7968, %v8582
    %v8620 = vmul.f32 %v7970, %v8578
    %v8621 = vmul.f32 %v7972, %v8582
    %v8622 = vmul.f32 %v7976, %v8578
    %v8623 = vmul.f32 %v7978, %v8582
    %v8624 = vmul.f32 %v7980, %v8578
    %v8625 = vmul.f32 %v7982, %v8582
    %v8626 = vmul.f32 %v7986, %v8578
    %v8627 = vmul.f32 %v7988, %v8582
    %v8628 = vmul.f32 %v7990, %v8578
    %v8629 = vmul.f32 %v7992, %v8582
    %v8630 = vmul.f32 %v7996, %v8578
    %v8631 = vmul.f32 %v7998, %v8582
    %v8632 = vmul.f32 %v8000, %v8578
    %v8633 = vmul.f32 %v8002, %v8582
    %v8634 = vmul.f32 %v8006, %v8578
    %v8635 = vmul.f32 %v8008, %v8582
    %v8636 = vmul.f32 %v8010, %v8578
    %v8637 = vmul.f32 %v8012, %v8582
    %v8638 = vmul.f32 %v8016, %v8578
    %v8639 = vmul.f32 %v8018, %v8582
    %v8640 = vmul.f32 %v8020, %v8578
    %v8641 = vmul.f32 %v8022, %v8582
    %v8642 = vmul.f32 %v8026, %v8578
    %v8643 = vmul.f32 %v8028, %v8582
    %v8644 = vmul.f32 %v8030, %v8578
    %v8645 = vmul.f32 %v8032, %v8582
    %v8646 = vmul.f32 %v8036, %v8578
    %v8647 = vmul.f32 %v8038, %v8582
    %v8648 = vmul.f32 %v8040, %v8578
    %v8649 = vmul.f32 %v8042, %v8582
    %v8650 = vmul.f32 %v8046, %v8578
    %v8651 = vmul.f32 %v8048, %v8582
    %v8652 = vmul.f32 %v8050, %v8578
    %v8653 = vmul.f32 %v8052, %v8582
    %v8655 = vlaneseq
    %v8656 = vshrl.u32 %v8655, 7
    %v8657 = vsub.s32 0, %v8656
    %v8658 = vrot.slane %v8605, %v8657
    %v8659 = vlaneseq
    %v8660 = vshrl.u32 %v8659, 7
    %v8661 = vsub.s32 1, %v8660
    %v8662 = vrot.slane %v8605, %v8661
    %v8665 = vadd.f32 %v8606, %v8658
    %v8666 = vadd.f32 %v8607, %v8662
    %v8667 = vadd.f32 %v8608, %v8658
    %v8668 = vadd.f32 %v8609, %v8662
    %v8669 = vadd.f32 %v8610, %v8658
    %v8670 = vadd.f32 %v8611, %v8662
    %v8671 = vadd.f32 %v8612, %v8658
    %v8672 = vadd.f32 %v8613, %v8662
    %v8673 = vadd.f32 %v8614, %v8658
    %v8674 = vadd.f32 %v8615, %v8662
    %v8675 = vadd.f32 %v8616, %v8658
    %v8676 = vadd.f32 %v8617, %v8662
    %v8677 = vadd.f32 %v8618, %v8658
    %v8678 = vadd.f32 %v8619, %v8662
    %v8679 = vadd.f32 %v8620, %v8658
    %v8680 = vadd.f32 %v8621, %v8662
    %v8681 = vadd.f32 %v8622, %v8658
    %v8682 = vadd.f32 %v8623, %v8662
    %v8683 = vadd.f32 %v8624, %v8658
    %v8684 = vadd.f32 %v8625, %v8662
    %v8685 = vadd.f32 %v8626, %v8658
    %v8686 = vadd.f32 %v8627, %v8662
    %v8687 = vadd.f32 %v8628, %v8658
    %v8688 = vadd.f32 %v8629, %v8662
    %v8689 = vadd.f32 %v8630, %v8658
    %v8690 = vadd.f32 %v8631, %v8662
    %v8691 = vadd.f32 %v8632, %v8658
    %v8692 = vadd.f32 %v8633, %v8662
    %v8693 = vadd.f32 %v8634, %v8658
    %v8694 = vadd.f32 %v8635, %v8662
    %v8695 = vadd.f32 %v8636, %v8658
    %v8696 = vadd.f32 %v8637, %v8662
    %v8697 = vadd.f32 %v8638, %v8658
    %v8698 = vadd.f32 %v8639, %v8662
    %v8699 = vadd.f32 %v8640, %v8658
    %v8700 = vadd.f32 %v8641, %v8662
    %v8701 = vadd.f32 %v8642, %v8658
    %v8702 = vadd.f32 %v8643, %v8662
    %v8703 = vadd.f32 %v8644, %v8658
    %v8704 = vadd.f32 %v8645, %v8662
    %v8705 = vadd.f32 %v8646, %v8658
    %v8706 = vadd.f32 %v8647, %v8662
    %v8707 = vadd.f32 %v8648, %v8658
    %v8708 = vadd.f32 %v8649, %v8662
    %v8709 = vadd.f32 %v8650, %v8658
    %v8710 = vadd.f32 %v8651, %v8662
    %v8711 = vadd.f32 %v8652, %v8658
    %v8712 = vadd.f32 %v8653, %v8662
    %v8713 = vmax.f32 %v8665, 0.0
    %v8714 = vmax.f32 %v8666, 0.0
    %v8715 = vmax.f32 %v8667, 0.0
    %v8716 = vmax.f32 %v8668, 0.0
    %v8717 = vmax.f32 %v8669, 0.0
    %v8718 = vmax.f32 %v8670, 0.0
    %v8719 = vmax.f32 %v8671, 0.0
    %v8720 = vmax.f32 %v8672, 0.0
    %v8721 = vmax.f32 %v8673, 0.0
    %v8722 = vmax.f32 %v8674, 0.0
    %v8723 = vmax.f32 %v8675, 0.0
    %v8724 = vmax.f32 %v8676, 0.0
    %v8725 = vmax.f32 %v8677, 0.0
    %v8726 = vmax.f32 %v8678, 0.0
    %v8727 = vmax.f32 %v8679, 0.0
    %v8728 = vmax.f32 %v8680, 0.0
    %v8729 = vmax.f32 %v8681, 0.0
    %v8730 = vmax.f32 %v8682, 0.0
    %v8731 = vmax.f32 %v8683, 0.0
    %v8732 = vmax.f32 %v8684, 0.0
    %v8733 = vmax.f32 %v8685, 0.0
    %v8734 = vmax.f32 %v8686, 0.0
    %v8735 = vmax.f32 %v8687, 0.0
    %v8736 = vmax.f32 %v8688, 0.0
    %v8737 = vmax.f32 %v8689, 0.0
    %v8738 = vmax.f32 %v8690, 0.0
    %v8739 = vmax.f32 %v8691, 0.0
    %v8740 = vmax.f32 %v8692, 0.0
    %v8741 = vmax.f32 %v8693, 0.0
    %v8742 = vmax.f32 %v8694, 0.0
    %v8743 = vmax.f32 %v8695, 0.0
    %v8744 = vmax.f32 %v8696, 0.0
    %v8745 = vmax.f32 %v8697, 0.0
    %v8746 = vmax.f32 %v8698, 0.0
    %v8747 = vmax.f32 %v8699, 0.0
    %v8748 = vmax.f32 %v8700, 0.0
    %v8749 = vmax.f32 %v8701, 0.0
    %v8750 = vmax.f32 %v8702, 0.0
    %v8751 = vmax.f32 %v8703, 0.0
    %v8752 = vmax.f32 %v8704, 0.0
    %v8753 = vmax.f32 %v8705, 0.0
    %v8754 = vmax.f32 %v8706, 0.0
    %v8755 = vmax.f32 %v8707, 0.0
    %v8756 = vmax.f32 %v8708, 0.0
    %v8757 = vmax.f32 %v8709, 0.0
    %v8758 = vmax.f32 %v8710, 0.0
    %v8759 = vmax.f32 %v8711, 0.0
    %v8760 = vmax.f32 %v8712, 0.0
    %v8761 = vmul.f32 %v8089, %v8578
    %v8762 = vmul.f32 %v8091, %v8582
    %v8763 = vmul.f32 %v8093, %v8578
    %v8764 = vmul.f32 %v8095, %v8582
    %v8765 = vmul.f32 %v8099, %v8578
    %v8766 = vmul.f32 %v8101, %v8582
    %v8767 = vmul.f32 %v8103, %v8578
    %v8768 = vmul.f32 %v8105, %v8582
    %v8769 = vmul.f32 %v8109, %v8578
    %v8770 = vmul.f32 %v8111, %v8582
    %v8771 = vmul.f32 %v8113, %v8578
    %v8772 = vmul.f32 %v8115, %v8582
    %v8773 = vmul.f32 %v8119, %v8578
    %v8774 = vmul.f32 %v8121, %v8582
    %v8775 = vmul.f32 %v8123, %v8578
    %v8776 = vmul.f32 %v8125, %v8582
    %v8777 = vmul.f32 %v8129, %v8578
    %v8778 = vmul.f32 %v8131, %v8582
    %v8779 = vmul.f32 %v8133, %v8578
    %v8780 = vmul.f32 %v8135, %v8582
    %v8781 = vmul.f32 %v8139, %v8578
    %v8782 = vmul.f32 %v8141, %v8582
    %v8783 = vmul.f32 %v8143, %v8578
    %v8784 = vmul.f32 %v8145, %v8582
    %v8785 = vmul.f32 %v8149, %v8578
    %v8786 = vmul.f32 %v8151, %v8582
    %v8787 = vmul.f32 %v8153, %v8578
    %v8788 = vmul.f32 %v8155, %v8582
    %v8789 = vmul.f32 %v8159, %v8578
    %v8790 = vmul.f32 %v8161, %v8582
    %v8791 = vmul.f32 %v8163, %v8578
    %v8792 = vmul.f32 %v8165, %v8582
    %v8793 = vmul.f32 %v8169, %v8578
    %v8794 = vmul.f32 %v8171, %v8582
    %v8795 = vmul.f32 %v8173, %v8578
    %v8796 = vmul.f32 %v8175, %v8582
    %v8797 = vmul.f32 %v8179, %v8578
    %v8798 = vmul.f32 %v8181, %v8582
    %v8799 = vmul.f32 %v8183, %v8578
    %v8800 = vmul.f32 %v8185, %v8582
    %v8801 = vmul.f32 %v8189, %v8578
    %v8802 = vmul.f32 %v8191, %v8582
    %v8803 = vmul.f32 %v8193, %v8578
    %v8804 = vmul.f32 %v8195, %v8582
    %v8805 = vmul.f32 %v8199, %v8578
    %v8806 = vmul.f32 %v8201, %v8582
    %v8807 = vmul.f32 %v8203, %v8578
    %v8808 = vmul.f32 %v8205, %v8582
    %v8809 = vadd.f32 %v8761, %v8658
    %v8810 = vadd.f32 %v8762, %v8662
    %v8811 = vadd.f32 %v8763, %v8658
    %v8812 = vadd.f32 %v8764, %v8662
    %v8813 = vadd.f32 %v8765, %v8658
    %v8814 = vadd.f32 %v8766, %v8662
    %v8815 = vadd.f32 %v8767, %v8658
    %v8816 = vadd.f32 %v8768, %v8662
    %v8817 = vadd.f32 %v8769, %v8658
    %v8818 = vadd.f32 %v8770, %v8662
    %v8819 = vadd.f32 %v8771, %v8658
    %v8820 = vadd.f32 %v8772, %v8662
    %v8821 = vadd.f32 %v8773, %v8658
    %v8822 = vadd.f32 %v8774, %v8662
    %v8823 = vadd.f32 %v8775, %v8658
    %v8824 = vadd.f32 %v8776, %v8662
    %v8825 = vadd.f32 %v8777, %v8658
    %v8826 = vadd.f32 %v8778, %v8662
    %v8827 = vadd.f32 %v8779, %v8658
    %v8828 = vadd.f32 %v8780, %v8662
    %v8829 = vadd.f32 %v8781, %v8658
    %v8830 = vadd.f32 %v8782, %v8662
    %v8831 = vadd.f32 %v8783, %v8658
    %v8832 = vadd.f32 %v8784, %v8662
    %v8833 = vadd.f32 %v8785, %v8658
    %v8834 = vadd.f32 %v8786, %v8662
    %v8835 = vadd.f32 %v8787, %v8658
    %v8836 = vadd.f32 %v8788, %v8662
    %v8837 = vadd.f32 %v8789, %v8658
    %v8838 = vadd.f32 %v8790, %v8662
    %v8839 = vadd.f32 %v8791, %v8658
    %v8840 = vadd.f32 %v8792, %v8662
    %v8841 = vadd.f32 %v8793, %v8658
    %v8842 = vadd.f32 %v8794, %v8662
    %v8843 = vadd.f32 %v8795, %v8658
    %v8844 = vadd.f32 %v8796, %v8662
    %v8845 = vadd.f32 %v8797, %v8658
    %v8846 = vadd.f32 %v8798, %v8662
    %v8847 = vadd.f32 %v8799, %v8658
    %v8848 = vadd.f32 %v8800, %v8662
    %v8849 = vadd.f32 %v8801, %v8658
    %v8850 = vadd.f32 %v8802, %v8662
    %v8851 = vadd.f32 %v8803, %v8658
    %v8852 = vadd.f32 %v8804, %v8662
    %v8853 = vadd.f32 %v8805, %v8658
    %v8854 = vadd.f32 %v8806, %v8662
    %v8855 = vadd.f32 %v8807, %v8658
    %v8856 = vadd.f32 %v8808, %v8662
    %v8857 = vmax.f32 %v8809, 0.0
    %v8858 = vmax.f32 %v8810, 0.0
    %v8859 = vmax.f32 %v8811, 0.0
    %v8860 = vmax.f32 %v8812, 0.0
    %v8861 = vmax.f32 %v8813, 0.0
    %v8862 = vmax.f32 %v8814, 0.0
    %v8863 = vmax.f32 %v8815, 0.0
    %v8864 = vmax.f32 %v8816, 0.0
    %v8865 = vmax.f32 %v8817, 0.0
    %v8866 = vmax.f32 %v8818, 0.0
    %v8867 = vmax.f32 %v8819, 0.0
    %v8868 = vmax.f32 %v8820, 0.0
    %v8869 = vmax.f32 %v8821, 0.0
    %v8870 = vmax.f32 %v8822, 0.0
    %v8871 = vmax.f32 %v8823, 0.0
    %v8872 = vmax.f32 %v8824, 0.0
    %v8873 = vmax.f32 %v8825, 0.0
    %v8874 = vmax.f32 %v8826, 0.0
    %v8875 = vmax.f32 %v8827, 0.0
    %v8876 = vmax.f32 %v8828, 0.0
    %v8877 = vmax.f32 %v8829, 0.0
    %v8878 = vmax.f32 %v8830, 0.0
    %v8879 = vmax.f32 %v8831, 0.0
    %v8880 = vmax.f32 %v8832, 0.0
    %v8881 = vmax.f32 %v8833, 0.0
    %v8882 = vmax.f32 %v8834, 0.0
    %v8883 = vmax.f32 %v8835, 0.0
    %v8884 = vmax.f32 %v8836, 0.0
    %v8885 = vmax.f32 %v8837, 0.0
    %v8886 = vmax.f32 %v8838, 0.0
    %v8887 = vmax.f32 %v8839, 0.0
    %v8888 = vmax.f32 %v8840, 0.0
    %v8889 = vmax.f32 %v8841, 0.0
    %v8890 = vmax.f32 %v8842, 0.0
    %v8891 = vmax.f32 %v8843, 0.0
    %v8892 = vmax.f32 %v8844, 0.0
    %v8893 = vmax.f32 %v8845, 0.0
    %v8894 = vmax.f32 %v8846, 0.0
    %v8895 = vmax.f32 %v8847, 0.0
    %v8896 = vmax.f32 %v8848, 0.0
    %v8897 = vmax.f32 %v8849, 0.0
    %v8898 = vmax.f32 %v8850, 0.0
    %v8899 = vmax.f32 %v8851, 0.0
    %v8900 = vmax.f32 %v8852, 0.0
    %v8901 = vmax.f32 %v8853, 0.0
    %v8902 = vmax.f32 %v8854, 0.0
    %v8903 = vmax.f32 %v8855, 0.0
    %v8904 = vmax.f32 %v8856, 0.0
    %v8905 = vmul.f32 %v8713, %v4747
    %v8906 = vmul.f32 %v8714, %v4747
    %v8907 = vmul.f32 %v8715, %v4748
    %v8908 = vmul.f32 %v8716, %v4748
    %v8909 = vmul.f32 %v8717, %v4749
    %v8910 = vmul.f32 %v8718, %v4749
    %v8911 = vmul.f32 %v8719, %v4750
    %v8912 = vmul.f32 %v8720, %v4750
    %v8913 = vmul.f32 %v8721, %v4751
    %v8914 = vmul.f32 %v8722, %v4751
    %v8915 = vmul.f32 %v8723, %v4752
    %v8916 = vmul.f32 %v8724, %v4752
    %v8917 = vmul.f32 %v8725, %v4753
    %v8918 = vmul.f32 %v8726, %v4753
    %v8919 = vmul.f32 %v8727, %v4754
    %v8920 = vmul.f32 %v8728, %v4754
    %v8921 = vmul.f32 %v8729, %v4755
    %v8922 = vmul.f32 %v8730, %v4755
    %v8923 = vmul.f32 %v8731, %v4756
    %v8924 = vmul.f32 %v8732, %v4756
    %v8925 = vmul.f32 %v8733, %v4757
    %v8926 = vmul.f32 %v8734, %v4757
    %v8927 = vmul.f32 %v8735, %v4758
    %v8928 = vmul.f32 %v8736, %v4758
    %v8929 = vmul.f32 %v8737, %v4759
    %v8930 = vmul.f32 %v8738, %v4759
    %v8931 = vmul.f32 %v8739, %v4760
    %v8932 = vmul.f32 %v8740, %v4760
    %v8933 = vmul.f32 %v8741, %v4761
    %v8934 = vmul.f32 %v8742, %v4761
    %v8935 = vmul.f32 %v8743, %v4762
    %v8936 = vmul.f32 %v8744, %v4762
    %v8937 = vmul.f32 %v8745, %v4763
    %v8938 = vmul.f32 %v8746, %v4763
    %v8939 = vmul.f32 %v8747, %v4764
    %v8940 = vmul.f32 %v8748, %v4764
    %v8941 = vmul.f32 %v8749, %v4765
    %v8942 = vmul.f32 %v8750, %v4765
    %v8943 = vmul.f32 %v8751, %v4766
    %v8944 = vmul.f32 %v8752, %v4766
    %v8945 = vmul.f32 %v8753, %v4767
    %v8946 = vmul.f32 %v8754, %v4767
    %v8947 = vmul.f32 %v8755, %v4768
    %v8948 = vmul.f32 %v8756, %v4768
    %v8949 = vmul.f32 %v8757, %v4769
    %v8950 = vmul.f32 %v8758, %v4769
    %v8951 = vmul.f32 %v8759, %v4770
    %v8952 = vmul.f32 %v8760, %v4770
    %v8953 = vmul.f32 %v8857, %v4747
    %v8954 = vmul.f32 %v8858, %v4747
    %v8955 = vmul.f32 %v8859, %v4748
    %v8956 = vmul.f32 %v8860, %v4748
    %v8957 = vmul.f32 %v8861, %v4749
    %v8958 = vmul.f32 %v8862, %v4749
    %v8959 = vmul.f32 %v8863, %v4750
    %v8960 = vmul.f32 %v8864, %v4750
    %v8961 = vmul.f32 %v8865, %v4751
    %v8962 = vmul.f32 %v8866, %v4751
    %v8963 = vmul.f32 %v8867, %v4752
    %v8964 = vmul.f32 %v8868, %v4752
    %v8965 = vmul.f32 %v8869, %v4753
    %v8966 = vmul.f32 %v8870, %v4753
    %v8967 = vmul.f32 %v8871, %v4754
    %v8968 = vmul.f32 %v8872, %v4754
    %v8969 = vmul.f32 %v8873, %v4755
    %v8970 = vmul.f32 %v8874, %v4755
    %v8971 = vmul.f32 %v8875, %v4756
    %v8972 = vmul.f32 %v8876, %v4756
    %v8973 = vmul.f32 %v8877, %v4757
    %v8974 = vmul.f32 %v8878, %v4757
    %v8975 = vmul.f32 %v8879, %v4758
    %v8976 = vmul.f32 %v8880, %v4758
    %v8977 = vmul.f32 %v8881, %v4759
    %v8978 = vmul.f32 %v8882, %v4759
    %v8979 = vmul.f32 %v8883, %v4760
    %v8980 = vmul.f32 %v8884, %v4760
    %v8981 = vmul.f32 %v8885, %v4761
    %v8982 = vmul.f32 %v8886, %v4761
    %v8983 = vmul.f32 %v8887, %v4762
    %v8984 = vmul.f32 %v8888, %v4762
    %v8985 = vmul.f32 %v8889, %v4763
    %v8986 = vmul.f32 %v8890, %v4763
    %v8987 = vmul.f32 %v8891, %v4764
    %v8988 = vmul.f32 %v8892, %v4764
    %v8989 = vmul.f32 %v8893, %v4765
    %v8990 = vmul.f32 %v8894, %v4765
    %v8991 = vmul.f32 %v8895, %v4766
    %v8992 = vmul.f32 %v8896, %v4766
    %v8993 = vmul.f32 %v8897, %v4767
    %v8994 = vmul.f32 %v8898, %v4767
    %v8995 = vmul.f32 %v8899, %v4768
    %v8996 = vmul.f32 %v8900, %v4768
    %v8997 = vmul.f32 %v8901, %v4769
    %v8998 = vmul.f32 %v8902, %v4769
    %v8999 = vmul.f32 %v8903, %v4770
    %v9000 = vmul.f32 %v8904, %v4770
    %9001 = vst [vmem:[#allocation2] sm:$0xff] %v8905
    %9002 = vst [vmem:[#allocation2 + $0x8] sm:$0xff] %v8906
    %9003 = vst [vmem:[#allocation2 + $0x10] sm:$0xff] %v8907
    %9004 = vst [vmem:[#allocation2 + $0x18] sm:$0xff] %v8908
    %9005 = vst [vmem:[#allocation2 + $0x20] sm:$0xff] %v8909
    %9006 = vst [vmem:[#allocation2 + $0x28] sm:$0xff] %v8910
    %9007 = vst [vmem:[#allocation2 + $0x30] sm:$0xff] %v8911
    %9008 = vst [vmem:[#allocation2 + $0x38] sm:$0xff] %v8912
    %9009 = vst [vmem:[#allocation2 + $0x40] sm:$0xff] %v8913
    %9010 = vst [vmem:[#allocation2 + $0x48] sm:$0xff] %v8914
    %9011 = vst [vmem:[#allocation2 + $0x50] sm:$0xff] %v8915
    %9012 = vst [vmem:[#allocation2 + $0x58] sm:$0xff] %v8916
    %9013 = vst [vmem:[#allocation2 + $0x60] sm:$0xff] %v8917
    %9014 = vst [vmem:[#allocation2 + $0x68] sm:$0xff] %v8918
    %9015 = vst [vmem:[#allocation2 + $0x70] sm:$0xff] %v8919
    %9016 = vst [vmem:[#allocation2 + $0x78] sm:$0xff] %v8920
    %9017 = vst [vmem:[#allocation2 + $0x80] sm:$0xff] %v8921
    %9018 = vst [vmem:[#allocation2 + $0x88] sm:$0xff] %v8922
    %9019 = vst [vmem:[#allocation2 + $0x90] sm:$0xff] %v8923
    %9020 = vst [vmem:[#allocation2 + $0x98] sm:$0xff] %v8924
    %9021 = vst [vmem:[#allocation2 + $0xa0] sm:$0xff] %v8925
    %9022 = vst [vmem:[#allocation2 + $0xa8] sm:$0xff] %v8926
    %9023 = vst [vmem:[#allocation2 + $0xb0] sm:$0xff] %v8927
    %9024 = vst [vmem:[#allocation2 + $0xb8] sm:$0xff] %v8928
    %9025 = vst [vmem:[#allocation2 + $0xc0] sm:$0xff] %v8929
    %9026 = vst [vmem:[#allocation2 + $0xc8] sm:$0xff] %v8930
    %9027 = vst [vmem:[#allocation2 + $0xd0] sm:$0xff] %v8931
    %9028 = vst [vmem:[#allocation2 + $0xd8] sm:$0xff] %v8932
    %9029 = vst [vmem:[#allocation2 + $0xe0] sm:$0xff] %v8933
    %9030 = vst [vmem:[#allocation2 + $0xe8] sm:$0xff] %v8934
    %9031 = vst [vmem:[#allocation2 + $0xf0] sm:$0xff] %v8935
    %9032 = vst [vmem:[#allocation2 + $0xf8] sm:$0xff] %v8936
    %9033 = vst [vmem:[#allocation2 + $0x100] sm:$0xff] %v8937
    %9034 = vst [vmem:[#allocation2 + $0x108] sm:$0xff] %v8938
    %9035 = vst [vmem:[#allocation2 + $0x110] sm:$0xff] %v8939
    %9036 = vst [vmem:[#allocation2 + $0x118] sm:$0xff] %v8940
    %9037 = vst [vmem:[#allocation2 + $0x120] sm:$0xff] %v8941
    %9038 = vst [vmem:[#allocation2 + $0x128] sm:$0xff] %v8942
    %9039 = vst [vmem:[#allocation2 + $0x130] sm:$0xff] %v8943
    %9040 = vst [vmem:[#allocation2 + $0x138] sm:$0xff] %v8944
    %9041 = vst [vmem:[#allocation2 + $0x140] sm:$0xff] %v8945
    %9042 = vst [vmem:[#allocation2 + $0x148] sm:$0xff] %v8946
    %9043 = vst [vmem:[#allocation2 + $0x150] sm:$0xff] %v8947
    %9044 = vst [vmem:[#allocation2 + $0x158] sm:$0xff] %v8948
    %9045 = vst [vmem:[#allocation2 + $0x160] sm:$0xff] %v8949
    %9046 = vst [vmem:[#allocation2 + $0x168] sm:$0xff] %v8950
    %9047 = vst [vmem:[#allocation2 + $0x170] sm:$0xff] %v8951
    %9048 = vst [vmem:[#allocation2 + $0x178] sm:$0xff] %v8952
    %9049 = vst [vmem:[#allocation2 + $0x180] sm:$0xff] %v8953
    %9050 = vst [vmem:[#allocation2 + $0x188] sm:$0xff] %v8954
    %9051 = vst [vmem:[#allocation2 + $0x190] sm:$0xff] %v8955
    %9052 = vst [vmem:[#allocation2 + $0x198] sm:$0xff] %v8956
    %9053 = vst [vmem:[#allocation2 + $0x1a0] sm:$0xff] %v8957
    %9054 = vst [vmem:[#allocation2 + $0x1a8] sm:$0xff] %v8958
    %9055 = vst [vmem:[#allocation2 + $0x1b0] sm:$0xff] %v8959
    %9056 = vst [vmem:[#allocation2 + $0x1b8] sm:$0xff] %v8960
    %9057 = vst [vmem:[#allocation2 + $0x1c0] sm:$0xff] %v8961
    %9058 = vst [vmem:[#allocation2 + $0x1c8] sm:$0xff] %v8962
    %9059 = vst [vmem:[#allocation2 + $0x1d0] sm:$0xff] %v8963
    %9060 = vst [vmem:[#allocation2 + $0x1d8] sm:$0xff] %v8964
    %9061 = vst [vmem:[#allocation2 + $0x1e0] sm:$0xff] %v8965
    %9062 = vst [vmem:[#allocation2 + $0x1e8] sm:$0xff] %v8966
    %9063 = vst [vmem:[#allocation2 + $0x1f0] sm:$0xff] %v8967
    %9064 = vst [vmem:[#allocation2 + $0x1f8] sm:$0xff] %v8968
    %9065 = vst [vmem:[#allocation2 + $0x200] sm:$0xff] %v8969
    %9066 = vst [vmem:[#allocation2 + $0x208] sm:$0xff] %v8970
    %9067 = vst [vmem:[#allocation2 + $0x210] sm:$0xff] %v8971
    %9068 = vst [vmem:[#allocation2 + $0x218] sm:$0xff] %v8972
    %9069 = vst [vmem:[#allocation2 + $0x220] sm:$0xff] %v8973
    %9070 = vst [vmem:[#allocation2 + $0x228] sm:$0xff] %v8974
    %9071 = vst [vmem:[#allocation2 + $0x230] sm:$0xff] %v8975
    %9072 = vst [vmem:[#allocation2 + $0x238] sm:$0xff] %v8976
    %9073 = vst [vmem:[#allocation2 + $0x240] sm:$0xff] %v8977
    %9074 = vst [vmem:[#allocation2 + $0x248] sm:$0xff] %v8978
    %9075 = vst [vmem:[#allocation2 + $0x250] sm:$0xff] %v8979
    %9076 = vst [vmem:[#allocation2 + $0x258] sm:$0xff] %v8980
    %9077 = vst [vmem:[#allocation2 + $0x260] sm:$0xff] %v8981
    %9078 = vst [vmem:[#allocation2 + $0x268] sm:$0xff] %v8982
    %9079 = vst [vmem:[#allocation2 + $0x270] sm:$0xff] %v8983
    %9080 = vst [vmem:[#allocation2 + $0x278] sm:$0xff] %v8984
    %9081 = vst [vmem:[#allocation2 + $0x280] sm:$0xff] %v8985
    %9082 = vst [vmem:[#allocation2 + $0x288] sm:$0xff] %v8986
    %9083 = vst [vmem:[#allocation2 + $0x290] sm:$0xff] %v8987
    %9084 = vst [vmem:[#allocation2 + $0x298] sm:$0xff] %v8988
    %9085 = vst [vmem:[#allocation2 + $0x2a0] sm:$0xff] %v8989
    %9086 = vst [vmem:[#allocation2 + $0x2a8] sm:$0xff] %v8990
    %9087 = vst [vmem:[#allocation2 + $0x2b0] sm:$0xff] %v8991
    %9088 = vst [vmem:[#allocation2 + $0x2b8] sm:$0xff] %v8992
    %9089 = vst [vmem:[#allocation2 + $0x2c0] sm:$0xff] %v8993
    %9090 = vst [vmem:[#allocation2 + $0x2c8] sm:$0xff] %v8994
    %9091 = vst [vmem:[#allocation2 + $0x2d0] sm:$0xff] %v8995
    %9092 = vst [vmem:[#allocation2 + $0x2d8] sm:$0xff] %v8996
    %9093 = vst [vmem:[#allocation2 + $0x2e0] sm:$0xff] %v8997
    %9094 = vst [vmem:[#allocation2 + $0x2e8] sm:$0xff] %v8998
    %9095 = vst [vmem:[#allocation2 + $0x2f0] sm:$0xff] %v8999
    %9096 = vst [vmem:[#allocation2 + $0x2f8] sm:$0xff] %v9000
    %v9097 = vld [vmem:[#allocation2] sm:$0xff]
    %v9098 = vld [vmem:[#allocation2 + $0x8] sm:$0xff]
    %v9099 = vld [vmem:[#allocation2 + $0x10] sm:$0xff]
    %v9100 = vld [vmem:[#allocation2 + $0x18] sm:$0xff]
    %v9101 = vld [vmem:[#allocation2 + $0x20] sm:$0xff]
    %v9102 = vld [vmem:[#allocation2 + $0x28] sm:$0xff]
    %v9103 = vld [vmem:[#allocation2 + $0x30] sm:$0xff]
    %v9104 = vld [vmem:[#allocation2 + $0x38] sm:$0xff]
    %v9105 = vld [vmem:[#allocation2 + $0x40] sm:$0xff]
    %v9106 = vld [vmem:[#allocation2 + $0x48] sm:$0xff]
    %v9107 = vld [vmem:[#allocation2 + $0x50] sm:$0xff]
    %v9108 = vld [vmem:[#allocation2 + $0x58] sm:$0xff]
    %v9109 = vld [vmem:[#allocation2 + $0x60] sm:$0xff]
    %v9110 = vld [vmem:[#allocation2 + $0x68] sm:$0xff]
    %v9111 = vld [vmem:[#allocation2 + $0x70] sm:$0xff]
    %v9112 = vld [vmem:[#allocation2 + $0x78] sm:$0xff]
    %v9113 = vld [vmem:[#allocation2 + $0x80] sm:$0xff]
    %v9114 = vld [vmem:[#allocation2 + $0x88] sm:$0xff]
    %v9115 = vld [vmem:[#allocation2 + $0x90] sm:$0xff]
    %v9116 = vld [vmem:[#allocation2 + $0x98] sm:$0xff]
    %v9117 = vld [vmem:[#allocation2 + $0xa0] sm:$0xff]
    %v9118 = vld [vmem:[#allocation2 + $0xa8] sm:$0xff]
    %v9119 = vld [vmem:[#allocation2 + $0xb0] sm:$0xff]
    %v9120 = vld [vmem:[#allocation2 + $0xb8] sm:$0xff]
    %v9121 = vld [vmem:[#allocation2 + $0xc0] sm:$0xff]
    %v9122 = vld [vmem:[#allocation2 + $0xc8] sm:$0xff]
    %v9123 = vld [vmem:[#allocation2 + $0xd0] sm:$0xff]
    %v9124 = vld [vmem:[#allocation2 + $0xd8] sm:$0xff]
    %v9125 = vld [vmem:[#allocation2 + $0xe0] sm:$0xff]
    %v9126 = vld [vmem:[#allocation2 + $0xe8] sm:$0xff]
    %v9127 = vld [vmem:[#allocation2 + $0xf0] sm:$0xff]
    %v9128 = vld [vmem:[#allocation2 + $0xf8] sm:$0xff]
    %v9129 = vld [vmem:[#allocation2 + $0x100] sm:$0xff]
    %v9130 = vld [vmem:[#allocation2 + $0x108] sm:$0xff]
    %v9131 = vld [vmem:[#allocation2 + $0x110] sm:$0xff]
    %v9132 = vld [vmem:[#allocation2 + $0x118] sm:$0xff]
    %v9133 = vld [vmem:[#allocation2 + $0x120] sm:$0xff]
    %v9134 = vld [vmem:[#allocation2 + $0x128] sm:$0xff]
    %v9135 = vld [vmem:[#allocation2 + $0x130] sm:$0xff]
    %v9136 = vld [vmem:[#allocation2 + $0x138] sm:$0xff]
    %v9137 = vld [vmem:[#allocation2 + $0x140] sm:$0xff]
    %v9138 = vld [vmem:[#allocation2 + $0x148] sm:$0xff]
    %v9139 = vld [vmem:[#allocation2 + $0x150] sm:$0xff]
    %v9140 = vld [vmem:[#allocation2 + $0x158] sm:$0xff]
    %v9141 = vld [vmem:[#allocation2 + $0x160] sm:$0xff]
    %v9142 = vld [vmem:[#allocation2 + $0x168] sm:$0xff]
    %v9143 = vld [vmem:[#allocation2 + $0x170] sm:$0xff]
    %v9144 = vld [vmem:[#allocation2 + $0x178] sm:$0xff]
    %v9145 = vld [vmem:[#allocation2 + $0x180] sm:$0xff]
    %v9146 = vld [vmem:[#allocation2 + $0x188] sm:$0xff]
    %v9147 = vld [vmem:[#allocation2 + $0x190] sm:$0xff]
    %v9148 = vld [vmem:[#allocation2 + $0x198] sm:$0xff]
    %v9149 = vld [vmem:[#allocation2 + $0x1a0] sm:$0xff]
    %v9150 = vld [vmem:[#allocation2 + $0x1a8] sm:$0xff]
    %v9151 = vld [vmem:[#allocation2 + $0x1b0] sm:$0xff]
    %v9152 = vld [vmem:[#allocation2 + $0x1b8] sm:$0xff]
    %v9153 = vld [vmem:[#allocation2 + $0x1c0] sm:$0xff]
    %v9154 = vld [vmem:[#allocation2 + $0x1c8] sm:$0xff]
    %v9155 = vld [vmem:[#allocation2 + $0x1d0] sm:$0xff]
    %v9156 = vld [vmem:[#allocation2 + $0x1d8] sm:$0xff]
    %v9157 = vld [vmem:[#allocation2 + $0x1e0] sm:$0xff]
    %v9158 = vld [vmem:[#allocation2 + $0x1e8] sm:$0xff]
    %v9159 = vld [vmem:[#allocation2 + $0x1f0] sm:$0xff]
    %v9160 = vld [vmem:[#allocation2 + $0x1f8] sm:$0xff]
    %v9161 = vld [vmem:[#allocation2 + $0x200] sm:$0xff]
    %v9162 = vld [vmem:[#allocation2 + $0x208] sm:$0xff]
    %v9163 = vld [vmem:[#allocation2 + $0x210] sm:$0xff]
    %v9164 = vld [vmem:[#allocation2 + $0x218] sm:$0xff]
    %v9165 = vld [vmem:[#allocation2 + $0x220] sm:$0xff]
    %v9166 = vld [vmem:[#allocation2 + $0x228] sm:$0xff]
    %v9167 = vld [vmem:[#allocation2 + $0x230] sm:$0xff]
    %v9168 = vld [vmem:[#allocation2 + $0x238] sm:$0xff]
    %v9169 = vld [vmem:[#allocation2 + $0x240] sm:$0xff]
    %v9170 = vld [vmem:[#allocation2 + $0x248] sm:$0xff]
    %v9171 = vld [vmem:[#allocation2 + $0x250] sm:$0xff]
    %v9172 = vld [vmem:[#allocation2 + $0x258] sm:$0xff]
    %v9173 = vld [vmem:[#allocation2 + $0x260] sm:$0xff]
    %v9174 = vld [vmem:[#allocation2 + $0x268] sm:$0xff]
    %v9175 = vld [vmem:[#allocation2 + $0x270] sm:$0xff]
    %v9176 = vld [vmem:[#allocation2 + $0x278] sm:$0xff]
    %v9177 = vld [vmem:[#allocation2 + $0x280] sm:$0xff]
    %v9178 = vld [vmem:[#allocation2 + $0x288] sm:$0xff]
    %v9179 = vld [vmem:[#allocation2 + $0x290] sm:$0xff]
    %v9180 = vld [vmem:[#allocation2 + $0x298] sm:$0xff]
    %v9181 = vld [vmem:[#allocation2 + $0x2a0] sm:$0xff]
    %v9182 = vld [vmem:[#allocation2 + $0x2a8] sm:$0xff]
    %v9183 = vld [vmem:[#allocation2 + $0x2b0] sm:$0xff]
    %v9184 = vld [vmem:[#allocation2 + $0x2b8] sm:$0xff]
    %v9185 = vld [vmem:[#allocation2 + $0x2c0] sm:$0xff]
    %v9186 = vld [vmem:[#allocation2 + $0x2c8] sm:$0xff]
    %v9187 = vld [vmem:[#allocation2 + $0x2d0] sm:$0xff]
    %v9188 = vld [vmem:[#allocation2 + $0x2d8] sm:$0xff]
    %v9189 = vld [vmem:[#allocation2 + $0x2e0] sm:$0xff]
    %v9190 = vld [vmem:[#allocation2 + $0x2e8] sm:$0xff]
    %v9191 = vld [vmem:[#allocation2 + $0x2f0] sm:$0xff]
    %v9192 = vld [vmem:[#allocation2 + $0x2f8] sm:$0xff]
    %v9193 = vpack.c.bf16 %v9099, %v9097
    %v9194 = vpack.c.bf16 %v9100, %v9098
    %v9195 = vpack.c.bf16 %v9103, %v9101
    %v9196 = vpack.c.bf16 %v9104, %v9102
    %v9197 = vpack.c.bf16 %v9107, %v9105
    %v9198 = vpack.c.bf16 %v9108, %v9106
    %v9199 = vpack.c.bf16 %v9111, %v9109
    %v9200 = vpack.c.bf16 %v9112, %v9110
    %v9201 = vpack.c.bf16 %v9115, %v9113
    %v9202 = vpack.c.bf16 %v9116, %v9114
    %v9203 = vpack.c.bf16 %v9119, %v9117
    %v9204 = vpack.c.bf16 %v9120, %v9118
    %v9205 = vpack.c.bf16 %v9123, %v9121
    %v9206 = vpack.c.bf16 %v9124, %v9122
    %v9207 = vpack.c.bf16 %v9127, %v9125
    %v9208 = vpack.c.bf16 %v9128, %v9126
    %v9209 = vpack.c.bf16 %v9131, %v9129
    %v9210 = vpack.c.bf16 %v9132, %v9130
    %v9211 = vpack.c.bf16 %v9135, %v9133
    %v9212 = vpack.c.bf16 %v9136, %v9134
    %v9213 = vpack.c.bf16 %v9139, %v9137
    %v9214 = vpack.c.bf16 %v9140, %v9138
    %v9215 = vpack.c.bf16 %v9143, %v9141
    %v9216 = vpack.c.bf16 %v9144, %v9142
    %v9217 = vpack.c.bf16 %v9147, %v9145
    %v9218 = vpack.c.bf16 %v9148, %v9146
    %v9219 = vpack.c.bf16 %v9151, %v9149
    %v9220 = vpack.c.bf16 %v9152, %v9150
    %v9221 = vpack.c.bf16 %v9155, %v9153
    %v9222 = vpack.c.bf16 %v9156, %v9154
    %v9223 = vpack.c.bf16 %v9159, %v9157
    %v9224 = vpack.c.bf16 %v9160, %v9158
    %v9225 = vpack.c.bf16 %v9163, %v9161
    %v9226 = vpack.c.bf16 %v9164, %v9162
    %v9227 = vpack.c.bf16 %v9167, %v9165
    %v9228 = vpack.c.bf16 %v9168, %v9166
    %v9229 = vpack.c.bf16 %v9171, %v9169
    %v9230 = vpack.c.bf16 %v9172, %v9170
    %v9231 = vpack.c.bf16 %v9175, %v9173
    %v9232 = vpack.c.bf16 %v9176, %v9174
    %v9233 = vpack.c.bf16 %v9179, %v9177
    %v9234 = vpack.c.bf16 %v9180, %v9178
    %v9235 = vpack.c.bf16 %v9183, %v9181
    %v9236 = vpack.c.bf16 %v9184, %v9182
    %v9237 = vpack.c.bf16 %v9187, %v9185
    %v9238 = vpack.c.bf16 %v9188, %v9186
    %v9239 = vpack.c.bf16 %v9191, %v9189
    %v9240 = vpack.c.bf16 %v9192, %v9190
    %v9241 = vld [vmem:[#allocation31] sm:$0xf]
    %v9242 = vld [vmem:[#allocation31 + $0x4] sm:$0xf]
    %v9243 = vld [vmem:[#allocation31 + $0x8] sm:$0xf]
    %v9244 = vld [vmem:[#allocation31 + $0xc] sm:$0xf]
    %v9245 = vld [vmem:[#allocation31 + $0x10] sm:$0xf]
    %v9246 = vld [vmem:[#allocation31 + $0x14] sm:$0xf]
    %v9247 = vld [vmem:[#allocation31 + $0x18] sm:$0xf]
    %v9248 = vld [vmem:[#allocation31 + $0x1c] sm:$0xf]
    %v9249 = vld [vmem:[#allocation31 + $0x20] sm:$0xf]
    %v9250 = vld [vmem:[#allocation31 + $0x24] sm:$0xf]
    %v9251 = vld [vmem:[#allocation31 + $0x28] sm:$0xf]
    %v9252 = vld [vmem:[#allocation31 + $0x2c] sm:$0xf]
    %v9253 = vld [vmem:[#allocation31 + $0x30] sm:$0xf]
    %v9254 = vld [vmem:[#allocation31 + $0x34] sm:$0xf]
    %v9255 = vld [vmem:[#allocation31 + $0x38] sm:$0xf]
    %v9256 = vld [vmem:[#allocation31 + $0x3c] sm:$0xf]
    %v9257 = vld [vmem:[#allocation31 + $0x40] sm:$0xf]
    %v9258 = vld [vmem:[#allocation31 + $0x44] sm:$0xf]
    %v9259 = vld [vmem:[#allocation31 + $0x48] sm:$0xf]
    %v9260 = vld [vmem:[#allocation31 + $0x4c] sm:$0xf]
    %v9261 = vld [vmem:[#allocation31 + $0x50] sm:$0xf]
    %v9262 = vld [vmem:[#allocation31 + $0x54] sm:$0xf]
    %v9263 = vld [vmem:[#allocation31 + $0x58] sm:$0xf]
    %v9264 = vld [vmem:[#allocation31 + $0x5c] sm:$0xf]
    %v9265 = vld [vmem:[#allocation31 + $0x60] sm:$0xf]
    %v9266 = vld [vmem:[#allocation31 + $0x64] sm:$0xf]
    %v9267 = vld [vmem:[#allocation31 + $0x68] sm:$0xf]
    %v9268 = vld [vmem:[#allocation31 + $0x6c] sm:$0xf]
    %v9269 = vld [vmem:[#allocation31 + $0x70] sm:$0xf]
    %v9270 = vld [vmem:[#allocation31 + $0x74] sm:$0xf]
    %v9271 = vld [vmem:[#allocation31 + $0x78] sm:$0xf]
    %v9272 = vld [vmem:[#allocation31 + $0x7c] sm:$0xf]
    %v9305 = vunpack.c.l.b16 %v9241
    %v9306 = vunpack.c.l.b16 %v9242
    %v9307 = vunpack.c.l.b16 %v9243
    %v9308 = vunpack.c.l.b16 %v9244
    %v9309 = vunpack.c.l.b16 %v9245
    %v9310 = vunpack.c.l.b16 %v9246
    %v9311 = vunpack.c.l.b16 %v9247
    %v9312 = vunpack.c.l.b16 %v9248
    %v9313 = vunpack.c.l.b16 %v9249
    %v9314 = vunpack.c.l.b16 %v9250
    %v9315 = vunpack.c.l.b16 %v9251
    %v9316 = vunpack.c.l.b16 %v9252
    %v9317 = vunpack.c.l.b16 %v9253
    %v9318 = vunpack.c.l.b16 %v9254
    %v9319 = vunpack.c.l.b16 %v9255
    %v9320 = vunpack.c.l.b16 %v9256
    %v9321 = vunpack.c.l.b16 %v9257
    %v9322 = vunpack.c.l.b16 %v9258
    %v9323 = vunpack.c.l.b16 %v9259
    %v9324 = vunpack.c.l.b16 %v9260
    %v9325 = vunpack.c.l.b16 %v9261
    %v9326 = vunpack.c.l.b16 %v9262
    %v9327 = vunpack.c.l.b16 %v9263
    %v9328 = vunpack.c.l.b16 %v9264
    %v9329 = vunpack.c.l.b16 %v9265
    %v9330 = vunpack.c.l.b16 %v9266
    %v9331 = vunpack.c.l.b16 %v9267
    %v9332 = vunpack.c.l.b16 %v9268
    %v9333 = vunpack.c.l.b16 %v9269
    %v9334 = vunpack.c.l.b16 %v9270
    %v9335 = vunpack.c.l.b16 %v9271
    %v9336 = vunpack.c.l.b16 %v9272
    %v9337 = vpack.c.b16 %v9306, %v9305
    %v9338 = vpack.c.b16 %v9308, %v9307
    %v9339 = vpack.c.b16 %v9310, %v9309
    %v9340 = vpack.c.b16 %v9312, %v9311
    %v9341 = vpack.c.b16 %v9314, %v9313
    %v9342 = vpack.c.b16 %v9316, %v9315
    %v9343 = vpack.c.b16 %v9318, %v9317
    %v9344 = vpack.c.b16 %v9320, %v9319
    %v9345 = vpack.c.b16 %v9322, %v9321
    %v9346 = vpack.c.b16 %v9324, %v9323
    %v9347 = vpack.c.b16 %v9326, %v9325
    %v9348 = vpack.c.b16 %v9328, %v9327
    %v9349 = vpack.c.b16 %v9330, %v9329
    %v9350 = vpack.c.b16 %v9332, %v9331
    %v9351 = vpack.c.b16 %v9334, %v9333
    %v9352 = vpack.c.b16 %v9336, %v9335
    %9369 = vmatprep.subr.bf16.mxu0 0
    %9370 = vmatpush1.bf16.msra.mxu0 %v9337
    %9371 = vmatprep.subr.bf16.mxu0 0
    %9372 = vmatpush1.bf16.msra.mxu0 %v9338
    %9373 = vmatprep.subr.bf16.mxu0 0
    %9374 = vmatpush1.bf16.msra.mxu0 %v9339
    %9375 = vmatprep.subr.bf16.mxu0 0
    %9376 = vmatpush1.bf16.msra.mxu0 %v9340
    %9377 = vmatprep.subr.bf16.mxu0 0
    %9378 = vmatpush1.bf16.msra.mxu0 %v9341
    %9379 = vmatprep.subr.bf16.mxu0 0
    %9380 = vmatpush1.bf16.msra.mxu0 %v9342
    %9381 = vmatprep.subr.bf16.mxu0 0
    %9382 = vmatpush1.bf16.msra.mxu0 %v9343
    %9383 = vmatprep.subr.bf16.mxu0 0
    %9384 = vmatpush1.bf16.msra.mxu0 %v9344
    %9385 = vmatprep.subr.bf16.mxu0 0
    %9386 = vmatpush1.bf16.msra.mxu0 %v9345
    %9387 = vmatprep.subr.bf16.mxu0 0
    %9388 = vmatpush1.bf16.msra.mxu0 %v9346
    %9389 = vmatprep.subr.bf16.mxu0 0
    %9390 = vmatpush1.bf16.msra.mxu0 %v9347
    %9391 = vmatprep.subr.bf16.mxu0 0
    %9392 = vmatpush1.bf16.msra.mxu0 %v9348
    %9393 = vmatprep.subr.bf16.mxu0 0
    %9394 = vmatpush1.bf16.msra.mxu0 %v9349
    %9395 = vmatprep.subr.bf16.mxu0 0
    %9396 = vmatpush1.bf16.msra.mxu0 %v9350
    %9397 = vmatprep.subr.bf16.mxu0 0
    %9398 = vmatpush1.bf16.msra.mxu0 %v9351
    %9399 = vmatprep.subr.bf16.mxu0 0
    %9400 = vmatpush1.bf16.msra.mxu0 %v9352
    %9401 = vmatprep.mubr.bf16.mxu0 %v9194
    %9402 = vmatmul.mubr.bf16.gmra.mrb[0].mxu0 %v9193
    %v9403 = vpop.f32.mrb[0].mxu0
    %v9404 = vadd.f32 0.0, %v9403
    %v9405 = vpop.f32.mrb[0].mxu0
    %v9406 = vpop.f32.mrb[0].mxu0
    %v9407 = vadd.f32 0.0, %v9406
    %v9408 = vpop.f32.mrb[0].mxu0
    %9409 = vmatprep.mubr.bf16.mxu0 %v9196
    %9410 = vmatmul.mubr.bf16.gmra.mrb[0].mxu0 %v9195
    %v9411 = vpop.f32.mrb[0].mxu0
    %v9412 = vadd.f32 0.0, %v9411
    %v9413 = vpop.f32.mrb[0].mxu0
    %v9414 = vpop.f32.mrb[0].mxu0
    %v9415 = vadd.f32 0.0, %v9414
    %v9416 = vpop.f32.mrb[0].mxu0
    %9417 = vmatprep.mubr.bf16.mxu0 %v9198
    %9418 = vmatmul.mubr.bf16.gmra.mrb[0].mxu0 %v9197
    %v9419 = vpop.f32.mrb[0].mxu0
    %v9420 = vadd.f32 0.0, %v9419
    %v9421 = vpop.f32.mrb[0].mxu0
    %v9422 = vpop.f32.mrb[0].mxu0
    %v9423 = vadd.f32 0.0, %v9422
    %v9424 = vpop.f32.mrb[0].mxu0
    %9425 = vmatprep.mubr.bf16.mxu0 %v9200
    %9426 = vmatmul.mubr.bf16.gmra.mrb[0].mxu0 %v9199
    %v9427 = vpop.f32.mrb[0].mxu0
    %v9428 = vadd.f32 0.0, %v9427
    %v9429 = vpop.f32.mrb[0].mxu0
    %v9430 = vpop.f32.mrb[0].mxu0
    %v9431 = vadd.f32 0.0, %v9430
    %v9432 = vpop.f32.mrb[0].mxu0
    %9433 = vmatprep.mubr.bf16.mxu0 %v9202
    %9434 = vmatmul.mubr.bf16.gmra.mrb[0].mxu0 %v9201
    %v9435 = vpop.f32.mrb[0].mxu0
    %v9436 = vadd.f32 0.0, %v9435
    %v9437 = vpop.f32.mrb[0].mxu0
    %v9438 = vpop.f32.mrb[0].mxu0
    %v9439 = vadd.f32 0.0, %v9438
    %v9440 = vpop.f32.mrb[0].mxu0
    %9441 = vmatprep.mubr.bf16.mxu0 %v9204
    %9442 = vmatmul.mubr.bf16.gmra.mrb[0].mxu0 %v9203
    %v9443 = vpop.f32.mrb[0].mxu0
    %v9444 = vadd.f32 0.0, %v9443
    %v9445 = vpop.f32.mrb[0].mxu0
    %v9446 = vpop.f32.mrb[0].mxu0
    %v9447 = vadd.f32 0.0, %v9446
    %v9448 = vpop.f32.mrb[0].mxu0
    %9449 = vmatprep.mubr.bf16.mxu0 %v9206
    %9450 = vmatmul.mubr.bf16.gmra.mrb[0].mxu0 %v9205
    %v9451 = vpop.f32.mrb[0].mxu0
    %v9452 = vadd.f32 0.0, %v9451
    %v9453 = vpop.f32.mrb[0].mxu0
    %v9454 = vpop.f32.mrb[0].mxu0
    %v9455 = vadd.f32 0.0, %v9454
    %v9456 = vpop.f32.mrb[0].mxu0
    %9457 = vmatprep.mubr.bf16.mxu0 %v9208
    %9458 = vmatmul.mubr.bf16.gmra.mrb[0].mxu0 %v9207
    %v9459 = vpop.f32.mrb[0].mxu0
    %v9460 = vadd.f32 0.0, %v9459
    %v9461 = vpop.f32.mrb[0].mxu0
    %v9462 = vpop.f32.mrb[0].mxu0
    %v9463 = vadd.f32 0.0, %v9462
    %v9464 = vpop.f32.mrb[0].mxu0
    %9465 = vmatprep.mubr.bf16.mxu0 %v9210
    %9466 = vmatmul.mubr.bf16.gmra.mrb[0].mxu0 %v9209
    %v9467 = vpop.f32.mrb[0].mxu0
    %v9468 = vadd.f32 0.0, %v9467
    %v9469 = vpop.f32.mrb[0].mxu0
    %v9470 = vpop.f32.mrb[0].mxu0
    %v9471 = vadd.f32 0.0, %v9470
    %v9472 = vpop.f32.mrb[0].mxu0
    %9473 = vmatprep.mubr.bf16.mxu0 %v9212
    %9474 = vmatmul.mubr.bf16.gmra.mrb[0].mxu0 %v9211
    %v9475 = vpop.f32.mrb[0].mxu0
    %v9476 = vadd.f32 0.0, %v9475
    %v9477 = vpop.f32.mrb[0].mxu0
    %v9478 = vpop.f32.mrb[0].mxu0
    %v9479 = vadd.f32 0.0, %v9478
    %v9480 = vpop.f32.mrb[0].mxu0
    %9481 = vmatprep.mubr.bf16.mxu0 %v9214
    %9482 = vmatmul.mubr.bf16.gmra.mrb[0].mxu0 %v9213
    %v9483 = vpop.f32.mrb[0].mxu0
    %v9484 = vadd.f32 0.0, %v9483
    %v9485 = vpop.f32.mrb[0].mxu0
    %v9486 = vpop.f32.mrb[0].mxu0
    %v9487 = vadd.f32 0.0, %v9486
    %v9488 = vpop.f32.mrb[0].mxu0
    %9489 = vmatprep.mubr.bf16.mxu0 %v9216
    %9490 = vmatmul.mubr.bf16.gmra.mrb[0].mxu0 %v9215
    %v9491 = vpop.f32.mrb[0].mxu0
    %v9492 = vadd.f32 0.0, %v9491
    %v9493 = vpop.f32.mrb[0].mxu0
    %v9494 = vpop.f32.mrb[0].mxu0
    %v9495 = vadd.f32 0.0, %v9494
    %v9496 = vpop.f32.mrb[0].mxu0
    %9497 = vmatprep.mubr.bf16.mxu0 %v9218
    %9498 = vmatmul.mubr.bf16.gmra.mrb[0].mxu0 %v9217
    %v9499 = vpop.f32.mrb[0].mxu0
    %v9500 = vadd.f32 0.0, %v9499
    %v9501 = vpop.f32.mrb[0].mxu0
    %v9502 = vpop.f32.mrb[0].mxu0
    %v9503 = vadd.f32 0.0, %v9502
    %v9504 = vpop.f32.mrb[0].mxu0
    %9505 = vmatprep.mubr.bf16.mxu0 %v9220
    %9506 = vmatmul.mubr.bf16.gmra.mrb[0].mxu0 %v9219
    %v9507 = vpop.f32.mrb[0].mxu0
    %v9508 = vadd.f32 0.0, %v9507
    %v9509 = vpop.f32.mrb[0].mxu0
    %v9510 = vpop.f32.mrb[0].mxu0
    %v9511 = vadd.f32 0.0, %v9510
    %v9512 = vpop.f32.mrb[0].mxu0
    %9513 = vmatprep.mubr.bf16.mxu0 %v9222
    %9514 = vmatmul.mubr.bf16.gmra.mrb[0].mxu0 %v9221
    %v9515 = vpop.f32.mrb[0].mxu0
    %v9516 = vadd.f32 0.0, %v9515
    %v9517 = vpop.f32.mrb[0].mxu0
    %v9518 = vpop.f32.mrb[0].mxu0
    %v9519 = vadd.f32 0.0, %v9518
    %v9520 = vpop.f32.mrb[0].mxu0
    %9521 = vmatprep.mubr.bf16.mxu0 %v9224
    %9522 = vmatmul.mubr.bf16.gmra.mrb[0].mxu0 %v9223
    %v9523 = vpop.f32.mrb[0].mxu0
    %v9524 = vadd.f32 0.0, %v9523
    %v9525 = vpop.f32.mrb[0].mxu0
    %v9526 = vpop.f32.mrb[0].mxu0
    %v9527 = vadd.f32 0.0, %v9526
    %v9528 = vpop.f32.mrb[0].mxu0
    %9529 = vmatprep.mubr.bf16.mxu0 %v9226
    %9530 = vmatmul.mubr.bf16.gmra.mrb[0].mxu0 %v9225
    %v9531 = vpop.f32.mrb[0].mxu0
    %v9532 = vadd.f32 0.0, %v9531
    %v9533 = vpop.f32.mrb[0].mxu0
    %v9534 = vpop.f32.mrb[0].mxu0
    %v9535 = vadd.f32 0.0, %v9534
    %v9536 = vpop.f32.mrb[0].mxu0
    %9537 = vmatprep.mubr.bf16.mxu0 %v9228
    %9538 = vmatmul.mubr.bf16.gmra.mrb[0].mxu0 %v9227
    %v9539 = vpop.f32.mrb[0].mxu0
    %v9540 = vadd.f32 0.0, %v9539
    %v9541 = vpop.f32.mrb[0].mxu0
    %v9542 = vpop.f32.mrb[0].mxu0
    %v9543 = vadd.f32 0.0, %v9542
    %v9544 = vpop.f32.mrb[0].mxu0
    %9545 = vmatprep.mubr.bf16.mxu0 %v9230
    %9546 = vmatmul.mubr.bf16.gmra.mrb[0].mxu0 %v9229
    %v9547 = vpop.f32.mrb[0].mxu0
    %v9548 = vadd.f32 0.0, %v9547
    %v9549 = vpop.f32.mrb[0].mxu0
    %v9550 = vpop.f32.mrb[0].mxu0
    %v9551 = vadd.f32 0.0, %v9550
    %v9552 = vpop.f32.mrb[0].mxu0
    %9553 = vmatprep.mubr.bf16.mxu0 %v9232
    %9554 = vmatmul.mubr.bf16.gmra.mrb[0].mxu0 %v9231
    %v9555 = vpop.f32.mrb[0].mxu0
    %v9556 = vadd.f32 0.0, %v9555
    %v9557 = vpop.f32.mrb[0].mxu0
    %v9558 = vpop.f32.mrb[0].mxu0
    %v9559 = vadd.f32 0.0, %v9558
    %v9560 = vpop.f32.mrb[0].mxu0
    %9561 = vmatprep.mubr.bf16.mxu0 %v9234
    %9562 = vmatmul.mubr.bf16.gmra.mrb[0].mxu0 %v9233
    %v9563 = vpop.f32.mrb[0].mxu0
    %v9564 = vadd.f32 0.0, %v9563
    %v9565 = vpop.f32.mrb[0].mxu0
    %v9566 = vpop.f32.mrb[0].mxu0
    %v9567 = vadd.f32 0.0, %v9566
    %v9568 = vpop.f32.mrb[0].mxu0
    %9569 = vmatprep.mubr.bf16.mxu0 %v9236
    %9570 = vmatmul.mubr.bf16.gmra.mrb[0].mxu0 %v9235
    %v9571 = vpop.f32.mrb[0].mxu0
    %v9572 = vadd.f32 0.0, %v9571
    %v9573 = vpop.f32.mrb[0].mxu0
    %v9574 = vpop.f32.mrb[0].mxu0
    %v9575 = vadd.f32 0.0, %v9574
    %v9576 = vpop.f32.mrb[0].mxu0
    %9577 = vmatprep.mubr.bf16.mxu0 %v9238
    %9578 = vmatmul.mubr.bf16.gmra.mrb[0].mxu0 %v9237
    %v9579 = vpop.f32.mrb[0].mxu0
    %v9580 = vadd.f32 0.0, %v9579
    %v9581 = vpop.f32.mrb[0].mxu0
    %v9582 = vpop.f32.mrb[0].mxu0
    %v9583 = vadd.f32 0.0, %v9582
    %v9584 = vpop.f32.mrb[0].mxu0
    %9585 = vmatprep.mubr.bf16.mxu0 %v9240
    %9586 = vmatmul.mubr.bf16.gmra.mrb[0].mxu0 %v9239
    %v9587 = vpop.f32.mrb[0].mxu0
    %v9588 = vadd.f32 0.0, %v9587
    %v9589 = vpop.f32.mrb[0].mxu0
    %v9590 = vpop.f32.mrb[0].mxu0
    %v9591 = vadd.f32 0.0, %v9590
    %v9592 = vpop.f32.mrb[0].mxu0
    %9593 = vdwg.mxu0
    %v9594 = vxor.u32 %v9404, 2147483648
    %v9595 = vxor.u32 %v9407, 2147483648
    %v9596 = vxor.u32 %v9412, 2147483648
    %v9597 = vxor.u32 %v9415, 2147483648
    %v9598 = vxor.u32 %v9420, 2147483648
    %v9599 = vxor.u32 %v9423, 2147483648
    %v9600 = vxor.u32 %v9428, 2147483648
    %v9601 = vxor.u32 %v9431, 2147483648
    %v9602 = vxor.u32 %v9436, 2147483648
    %v9603 = vxor.u32 %v9439, 2147483648
    %v9604 = vxor.u32 %v9444, 2147483648
    %v9605 = vxor.u32 %v9447, 2147483648
    %v9606 = vxor.u32 %v9452, 2147483648
    %v9607 = vxor.u32 %v9455, 2147483648
    %v9608 = vxor.u32 %v9460, 2147483648
    %v9609 = vxor.u32 %v9463, 2147483648
    %v9610 = vxor.u32 %v9468, 2147483648
    %v9611 = vxor.u32 %v9471, 2147483648
    %v9612 = vxor.u32 %v9476, 2147483648
    %v9613 = vxor.u32 %v9479, 2147483648
    %v9614 = vxor.u32 %v9484, 2147483648
    %v9615 = vxor.u32 %v9487, 2147483648
    %v9616 = vxor.u32 %v9492, 2147483648
    %v9617 = vxor.u32 %v9495, 2147483648
    %v9618 = vxor.u32 %v9500, 2147483648
    %v9619 = vxor.u32 %v9503, 2147483648
    %v9620 = vxor.u32 %v9508, 2147483648
    %v9621 = vxor.u32 %v9511, 2147483648
    %v9622 = vxor.u32 %v9516, 2147483648
    %v9623 = vxor.u32 %v9519, 2147483648
    %v9624 = vxor.u32 %v9524, 2147483648
    %v9625 = vxor.u32 %v9527, 2147483648
    %v9626 = vxor.u32 %v9532, 2147483648
    %v9627 = vxor.u32 %v9535, 2147483648
    %v9628 = vxor.u32 %v9540, 2147483648
    %v9629 = vxor.u32 %v9543, 2147483648
    %v9630 = vxor.u32 %v9548, 2147483648
    %v9631 = vxor.u32 %v9551, 2147483648
    %v9632 = vxor.u32 %v9556, 2147483648
    %v9633 = vxor.u32 %v9559, 2147483648
    %v9634 = vxor.u32 %v9564, 2147483648
    %v9635 = vxor.u32 %v9567, 2147483648
    %v9636 = vxor.u32 %v9572, 2147483648
    %v9637 = vxor.u32 %v9575, 2147483648
    %v9638 = vxor.u32 %v9580, 2147483648
    %v9639 = vxor.u32 %v9583, 2147483648
    %v9640 = vxor.u32 %v9588, 2147483648
    %v9641 = vxor.u32 %v9591, 2147483648
    %v9642 = vmul.f32 %v9594, 1.442695
    %v9643 = vpow.pop %v9642
    %v9644 = vmul.f32 %v9595, 1.442695
    %v9645 = vpow.pop %v9644
    %v9646 = vmul.f32 %v9596, 1.442695
    %v9647 = vpow.pop %v9646
    %v9648 = vmul.f32 %v9597, 1.442695
    %v9649 = vpow.pop %v9648
    %v9650 = vmul.f32 %v9598, 1.442695
    %v9651 = vpow.pop %v9650
    %v9652 = vmul.f32 %v9599, 1.442695
    %v9653 = vpow.pop %v9652
    %v9654 = vmul.f32 %v9600, 1.442695
    %v9655 = vpow.pop %v9654
    %v9656 = vmul.f32 %v9601, 1.442695
    %v9657 = vpow.pop %v9656
    %v9658 = vmul.f32 %v9602, 1.442695
    %v9659 = vpow.pop %v9658
    %v9660 = vmul.f32 %v9603, 1.442695
    %v9661 = vpow.pop %v9660
    %v9662 = vmul.f32 %v9604, 1.442695
    %v9663 = vpow.pop %v9662
    %v9664 = vmul.f32 %v9605, 1.442695
    %v9665 = vpow.pop %v9664
    %v9666 = vmul.f32 %v9606, 1.442695
    %v9667 = vpow.pop %v9666
    %v9668 = vmul.f32 %v9607, 1.442695
    %v9669 = vpow.pop %v9668
    %v9670 = vmul.f32 %v9608, 1.442695
    %v9671 = vpow.pop %v9670
    %v9672 = vmul.f32 %v9609, 1.442695
    %v9673 = vpow.pop %v9672
    %v9674 = vmul.f32 %v9610, 1.442695
    %v9675 = vpow.pop %v9674
    %v9676 = vmul.f32 %v9611, 1.442695
    %v9677 = vpow.pop %v9676
    %v9678 = vmul.f32 %v9612, 1.442695
    %v9679 = vpow.pop %v9678
    %v9680 = vmul.f32 %v9613, 1.442695
    %v9681 = vpow.pop %v9680
    %v9682 = vmul.f32 %v9614, 1.442695
    %v9683 = vpow.pop %v9682
    %v9684 = vmul.f32 %v9615, 1.442695
    %v9685 = vpow.pop %v9684
    %v9686 = vmul.f32 %v9616, 1.442695
    %v9687 = vpow.pop %v9686
    %v9688 = vmul.f32 %v9617, 1.442695
    %v9689 = vpow.pop %v9688
    %v9690 = vmul.f32 %v9618, 1.442695
    %v9691 = vpow.pop %v9690
    %v9692 = vmul.f32 %v9619, 1.442695
    %v9693 = vpow.pop %v9692
    %v9694 = vmul.f32 %v9620, 1.442695
    %v9695 = vpow.pop %v9694
    %v9696 = vmul.f32 %v9621, 1.442695
    %v9697 = vpow.pop %v9696
    %v9698 = vmul.f32 %v9622, 1.442695
    %v9699 = vpow.pop %v9698
    %v9700 = vmul.f32 %v9623, 1.442695
    %v9701 = vpow.pop %v9700
    %v9702 = vmul.f32 %v9624, 1.442695
    %v9703 = vpow.pop %v9702
    %v9704 = vmul.f32 %v9625, 1.442695
    %v9705 = vpow.pop %v9704
    %v9706 = vmul.f32 %v9626, 1.442695
    %v9707 = vpow.pop %v9706
    %v9708 = vmul.f32 %v9627, 1.442695
    %v9709 = vpow.pop %v9708
    %v9710 = vmul.f32 %v9628, 1.442695
    %v9711 = vpow.pop %v9710
    %v9712 = vmul.f32 %v9629, 1.442695
    %v9713 = vpow.pop %v9712
    %v9714 = vmul.f32 %v9630, 1.442695
    %v9715 = vpow.pop %v9714
    %v9716 = vmul.f32 %v9631, 1.442695
    %v9717 = vpow.pop %v9716
    %v9718 = vmul.f32 %v9632, 1.442695
    %v9719 = vpow.pop %v9718
    %v9720 = vmul.f32 %v9633, 1.442695
    %v9721 = vpow.pop %v9720
    %v9722 = vmul.f32 %v9634, 1.442695
    %v9723 = vpow.pop %v9722
    %v9724 = vmul.f32 %v9635, 1.442695
    %v9725 = vpow.pop %v9724
    %v9726 = vmul.f32 %v9636, 1.442695
    %v9727 = vpow.pop %v9726
    %v9728 = vmul.f32 %v9637, 1.442695
    %v9729 = vpow.pop %v9728
    %v9730 = vmul.f32 %v9638, 1.442695
    %v9731 = vpow.pop %v9730
    %v9732 = vmul.f32 %v9639, 1.442695
    %v9733 = vpow.pop %v9732
    %v9734 = vmul.f32 %v9640, 1.442695
    %v9735 = vpow.pop %v9734
    %v9736 = vmul.f32 %v9641, 1.442695
    %v9737 = vpow.pop %v9736
    %v9738 = vadd.f32 %v9643, 1.0
    %v9739 = vadd.f32 %v9645, 1.0
    %v9740 = vadd.f32 %v9647, 1.0
    %v9741 = vadd.f32 %v9649, 1.0
    %v9742 = vadd.f32 %v9651, 1.0
    %v9743 = vadd.f32 %v9653, 1.0
    %v9744 = vadd.f32 %v9655, 1.0
    %v9745 = vadd.f32 %v9657, 1.0
    %v9746 = vadd.f32 %v9659, 1.0
    %v9747 = vadd.f32 %v9661, 1.0
    %v9748 = vadd.f32 %v9663, 1.0
    %v9749 = vadd.f32 %v9665, 1.0
    %v9750 = vadd.f32 %v9667, 1.0
    %v9751 = vadd.f32 %v9669, 1.0
    %v9752 = vadd.f32 %v9671, 1.0
    %v9753 = vadd.f32 %v9673, 1.0
    %v9754 = vadd.f32 %v9675, 1.0
    %v9755 = vadd.f32 %v9677, 1.0
    %v9756 = vadd.f32 %v9679, 1.0
    %v9757 = vadd.f32 %v9681, 1.0
    %v9758 = vadd.f32 %v9683, 1.0
    %v9759 = vadd.f32 %v9685, 1.0
    %v9760 = vadd.f32 %v9687, 1.0
    %v9761 = vadd.f32 %v9689, 1.0
    %v9762 = vadd.f32 %v9691, 1.0
    %v9763 = vadd.f32 %v9693, 1.0
    %v9764 = vadd.f32 %v9695, 1.0
    %v9765 = vadd.f32 %v9697, 1.0
    %v9766 = vadd.f32 %v9699, 1.0
    %v9767 = vadd.f32 %v9701, 1.0
    %v9768 = vadd.f32 %v9703, 1.0
    %v9769 = vadd.f32 %v9705, 1.0
    %v9770 = vadd.f32 %v9707, 1.0
    %v9771 = vadd.f32 %v9709, 1.0
    %v9772 = vadd.f32 %v9711, 1.0
    %v9773 = vadd.f32 %v9713, 1.0
    %v9774 = vadd.f32 %v9715, 1.0
    %v9775 = vadd.f32 %v9717, 1.0
    %v9776 = vadd.f32 %v9719, 1.0
    %v9777 = vadd.f32 %v9721, 1.0
    %v9778 = vadd.f32 %v9723, 1.0
    %v9779 = vadd.f32 %v9725, 1.0
    %v9780 = vadd.f32 %v9727, 1.0
    %v9781 = vadd.f32 %v9729, 1.0
    %v9782 = vadd.f32 %v9731, 1.0
    %v9783 = vadd.f32 %v9733, 1.0
    %v9784 = vadd.f32 %v9735, 1.0
    %v9785 = vadd.f32 %v9737, 1.0
    %v9786 = vrcp.pop %v9738
    %v9787 = vmul.f32 1.0, %v9786
    %v9788 = vrcp.pop %v9739
    %v9789 = vmul.f32 1.0, %v9788
    %v9790 = vrcp.pop %v9740
    %v9791 = vmul.f32 1.0, %v9790
    %v9792 = vrcp.pop %v9741
    %v9793 = vmul.f32 1.0, %v9792
    %v9794 = vrcp.pop %v9742
    %v9795 = vmul.f32 1.0, %v9794
    %v9796 = vrcp.pop %v9743
    %v9797 = vmul.f32 1.0, %v9796
    %v9798 = vrcp.pop %v9744
    %v9799 = vmul.f32 1.0, %v9798
    %v9800 = vrcp.pop %v9745
    %v9801 = vmul.f32 1.0, %v9800
    %v9802 = vrcp.pop %v9746
    %v9803 = vmul.f32 1.0, %v9802
    %v9804 = vrcp.pop %v9747
    %v9805 = vmul.f32 1.0, %v9804
    %v9806 = vrcp.pop %v9748
    %v9807 = vmul.f32 1.0, %v9806
    %v9808 = vrcp.pop %v9749
    %v9809 = vmul.f32 1.0, %v9808
    %v9810 = vrcp.pop %v9750
    %v9811 = vmul.f32 1.0, %v9810
    %v9812 = vrcp.pop %v9751
    %v9813 = vmul.f32 1.0, %v9812
    %v9814 = vrcp.pop %v9752
    %v9815 = vmul.f32 1.0, %v9814
    %v9816 = vrcp.pop %v9753
    %v9817 = vmul.f32 1.0, %v9816
    %v9818 = vrcp.pop %v9754
    %v9819 = vmul.f32 1.0, %v9818
    %v9820 = vrcp.pop %v9755
    %v9821 = vmul.f32 1.0, %v9820
    %v9822 = vrcp.pop %v9756
    %v9823 = vmul.f32 1.0, %v9822
    %v9824 = vrcp.pop %v9757
    %v9825 = vmul.f32 1.0, %v9824
    %v9826 = vrcp.pop %v9758
    %v9827 = vmul.f32 1.0, %v9826
    %v9828 = vrcp.pop %v9759
    %v9829 = vmul.f32 1.0, %v9828
    %v9830 = vrcp.pop %v9760
    %v9831 = vmul.f32 1.0, %v9830
    %v9832 = vrcp.pop %v9761
    %v9833 = vmul.f32 1.0, %v9832
    %v9834 = vrcp.pop %v9762
    %v9835 = vmul.f32 1.0, %v9834
    %v9836 = vrcp.pop %v9763
    %v9837 = vmul.f32 1.0, %v9836
    %v9838 = vrcp.pop %v9764
    %v9839 = vmul.f32 1.0, %v9838
    %v9840 = vrcp.pop %v9765
    %v9841 = vmul.f32 1.0, %v9840
    %v9842 = vrcp.pop %v9766
    %v9843 = vmul.f32 1.0, %v9842
    %v9844 = vrcp.pop %v9767
    %v9845 = vmul.f32 1.0, %v9844
    %v9846 = vrcp.pop %v9768
    %v9847 = vmul.f32 1.0, %v9846
    %v9848 = vrcp.pop %v9769
    %v9849 = vmul.f32 1.0, %v9848
    %v9850 = vrcp.pop %v9770
    %v9851 = vmul.f32 1.0, %v9850
    %v9852 = vrcp.pop %v9771
    %v9853 = vmul.f32 1.0, %v9852
    %v9854 = vrcp.pop %v9772
    %v9855 = vmul.f32 1.0, %v9854
    %v9856 = vrcp.pop %v9773
    %v9857 = vmul.f32 1.0, %v9856
    %v9858 = vrcp.pop %v9774
    %v9859 = vmul.f32 1.0, %v9858
    %v9860 = vrcp.pop %v9775
    %v9861 = vmul.f32 1.0, %v9860
    %v9862 = vrcp.pop %v9776
    %v9863 = vmul.f32 1.0, %v9862
    %v9864 = vrcp.pop %v9777
    %v9865 = vmul.f32 1.0, %v9864
    %v9866 = vrcp.pop %v9778
    %v9867 = vmul.f32 1.0, %v9866
    %v9868 = vrcp.pop %v9779
    %v9869 = vmul.f32 1.0, %v9868
    %v9870 = vrcp.pop %v9780
    %v9871 = vmul.f32 1.0, %v9870
    %v9872 = vrcp.pop %v9781
    %v9873 = vmul.f32 1.0, %v9872
    %v9874 = vrcp.pop %v9782
    %v9875 = vmul.f32 1.0, %v9874
    %v9876 = vrcp.pop %v9783
    %v9877 = vmul.f32 1.0, %v9876
    %v9878 = vrcp.pop %v9784
    %v9879 = vmul.f32 1.0, %v9878
    %v9880 = vrcp.pop %v9785
    %v9881 = vmul.f32 1.0, %v9880
    %9882 = vst [vmem:[%s20] sm:$0xff] %v9787
    %9883 = vst [vmem:[%s20 + $0x8] sm:$0xff] %v9789
    %9884 = vst [vmem:[%s20 + $0x10] sm:$0xff] %v9791
    %9885 = vst [vmem:[%s20 + $0x18] sm:$0xff] %v9793
    %9886 = vst [vmem:[%s20 + $0x20] sm:$0xff] %v9795
    %9887 = vst [vmem:[%s20 + $0x28] sm:$0xff] %v9797
    %9888 = vst [vmem:[%s20 + $0x30] sm:$0xff] %v9799
    %9889 = vst [vmem:[%s20 + $0x38] sm:$0xff] %v9801
    %9890 = vst [vmem:[%s20 + $0x40] sm:$0xff] %v9803
    %9891 = vst [vmem:[%s20 + $0x48] sm:$0xff] %v9805
    %9892 = vst [vmem:[%s20 + $0x50] sm:$0xff] %v9807
    %9893 = vst [vmem:[%s20 + $0x58] sm:$0xff] %v9809
    %9894 = vst [vmem:[%s20 + $0x60] sm:$0xff] %v9811
    %9895 = vst [vmem:[%s20 + $0x68] sm:$0xff] %v9813
    %9896 = vst [vmem:[%s20 + $0x70] sm:$0xff] %v9815
    %9897 = vst [vmem:[%s20 + $0x78] sm:$0xff] %v9817
    %9898 = vst [vmem:[%s20 + $0x80] sm:$0xff] %v9819
    %9899 = vst [vmem:[%s20 + $0x88] sm:$0xff] %v9821
    %9900 = vst [vmem:[%s20 + $0x90] sm:$0xff] %v9823
    %9901 = vst [vmem:[%s20 + $0x98] sm:$0xff] %v9825
    %9902 = vst [vmem:[%s20 + $0xa0] sm:$0xff] %v9827
    %9903 = vst [vmem:[%s20 + $0xa8] sm:$0xff] %v9829
    %9904 = vst [vmem:[%s20 + $0xb0] sm:$0xff] %v9831
    %9905 = vst [vmem:[%s20 + $0xb8] sm:$0xff] %v9833
    %9906 = vst [vmem:[%s20 + $0xc0] sm:$0xff] %v9835
    %9907 = vst [vmem:[%s20 + $0xc8] sm:$0xff] %v9837
    %9908 = vst [vmem:[%s20 + $0xd0] sm:$0xff] %v9839
    %9909 = vst [vmem:[%s20 + $0xd8] sm:$0xff] %v9841
    %9910 = vst [vmem:[%s20 + $0xe0] sm:$0xff] %v9843
    %9911 = vst [vmem:[%s20 + $0xe8] sm:$0xff] %v9845
    %9912 = vst [vmem:[%s20 + $0xf0] sm:$0xff] %v9847
    %9913 = vst [vmem:[%s20 + $0xf8] sm:$0xff] %v9849
    %9914 = vst [vmem:[%s20 + $0x100] sm:$0xff] %v9851
    %9915 = vst [vmem:[%s20 + $0x108] sm:$0xff] %v9853
    %9916 = vst [vmem:[%s20 + $0x110] sm:$0xff] %v9855
    %9917 = vst [vmem:[%s20 + $0x118] sm:$0xff] %v9857
    %9918 = vst [vmem:[%s20 + $0x120] sm:$0xff] %v9859
    %9919 = vst [vmem:[%s20 + $0x128] sm:$0xff] %v9861
    %9920 = vst [vmem:[%s20 + $0x130] sm:$0xff] %v9863
    %9921 = vst [vmem:[%s20 + $0x138] sm:$0xff] %v9865
    %9922 = vst [vmem:[%s20 + $0x140] sm:$0xff] %v9867
    %9923 = vst [vmem:[%s20 + $0x148] sm:$0xff] %v9869
    %9924 = vst [vmem:[%s20 + $0x150] sm:$0xff] %v9871
    %9925 = vst [vmem:[%s20 + $0x158] sm:$0xff] %v9873
    %9926 = vst [vmem:[%s20 + $0x160] sm:$0xff] %v9875
    %9927 = vst [vmem:[%s20 + $0x168] sm:$0xff] %v9877
    %9928 = vst [vmem:[%s20 + $0x170] sm:$0xff] %v9879
    %9929 = vst [vmem:[%s20 + $0x178] sm:$0xff] %v9881
    // Predicated region
    $region158: #{generator_forward.1} parent=1 // pred_check
      _
    $region159: #{generator_forward.1} parent=1 // pred_check_branch
      %9931 = sbr.rel (0) target = $region161
    $region160: #{generator_forward.1} parent=1 // pred_region
      _
    $region161: #{generator_forward.1} parent=1 // pred_fallthru
      _
    // Predicated region
    $region162: #{generator_forward.1} parent=1 // pred_check
      _
    $region163: #{generator_forward.1} parent=1 // pred_check_branch
      %9933 = sbr.rel (0) target = $region165
    $region164: #{generator_forward.1} parent=1 // pred_region
      _
    $region165: #{generator_forward.1} parent=1 // pred_fallthru
      _
    %9934 = vsyncpa [#allocation4], 1
    %9935 = vsyncpa [#allocation6], 1
    %9936 = vsyncpa [#allocation9], 1
    %9937 = vsyncpa [#allocation12], 1
    %9938 = vsyncpa [#allocation15], 1
    %9939 = vsyncpa [#allocation18], 1
    %9940 = vsyncpa [#allocation21], 1
    %9941 = vsyncpa [#allocation24], 1
    %9942 = vsyncpa [#allocation27], 1
    %9943 = vsyncpa [#allocation30], 1

</llo_original>
